<compile_context>
chip_gen: v5e
topology: v5e:2x2
jax: 0.10.0
libtpu: 0.0.40
codegen_flags: <defaults>
</compile_context>

<pallas_src>
import functools
import math

import jax
import jax.numpy as jnp
from jax.experimental import pallas as pl
from jax.experimental.pallas import tpu as pltpu


# ----------------------------------------------------------------------------
# Fused kernel: whole CNNEncoder forward, one image per grid step.
# Activation layout inside the kernel: (channels, Hp*Wp)  -- lane dim = spatial.
# ----------------------------------------------------------------------------
def _encoder_kernel(x_ref, mask_ref,
                    w1_ref, b1_ref, w2_ref, b2_ref, w3_ref, b3_ref,
                    wb_ref, bb_ref, ws_ref,
                    o_ref, buf_ref, feat_ref, *, Wp, L, neg):
    off = Wp + 1                     # largest |tap shift|; valid data at [off, off+L)
    tap_shifts = [(dh - 1) * Wp + (dw - 1) for dh in range(3) for dw in range(3)]
    mask = mask_ref[...]             # (1, L): 1 at interior pixels, 0 on the pad ring

    # Zero the shift buffer so the +/-off border columns always read as zeros.
    buf_ref[...] = jnp.zeros_like(buf_ref)

    def conv3x3_lrelu(w_ref, b_ref):
        # 3x3 "same" conv of the activation currently held in buf_ref.
        acc = jnp.zeros((w_ref.shape[1], L), jnp.float32)
        for t, s in enumerate(tap_shifts):
            xs = buf_ref[:, off + s: off + s + L]             # shifted (Cin, L) view
            acc = acc + jnp.dot(w_ref[t], xs,
                                preferred_element_type=jnp.float32)
        y = acc + b_ref[...]
        y = jnp.where(y >= 0.0, y, neg * y)                   # LeakyReLU(0.2)
        return y * mask                                       # keep the pad ring at 0

    # ---- self.model: three 3x3 convs + LeakyReLU ----
    buf_ref[:, off:off + L] = x_ref[...]
    h = conv3x3_lrelu(w1_ref, b1_ref)          # (ch, L)
    buf_ref[:, off:off + L] = h
    h = conv3x3_lrelu(w2_ref, b2_ref)          # (ch, L)
    buf_ref[:, off:off + L] = h
    feat = conv3x3_lrelu(w3_ref, b3_ref)       # (cmax, L)  == feat_in
    feat_ref[...] = feat

    # ---- self.bottleneck: nine 1x1 convs + ReLU ----
    # TODO(synk): the two Dropout2d(p=0.1) layers and self.dropout(p=0.6) are
    # identity under eval-mode semantics and are not materialized.
    g = feat
    for i in range(9):
        g = jnp.dot(wb_ref[i], g, preferred_element_type=jnp.float32) + bb_ref[i]
        g = jnp.maximum(g, 0.0)

    # ---- fresh 1x1 shortcut (bias=False) + residual tail ----
    proj = jnp.dot(ws_ref[...], feat_ref[...], preferred_element_type=jnp.float32)
    r = jnp.clip(jnp.abs(proj - g), 0.0, 1.0)
    y = 1.0 - r
    y2 = y * y
    y4 = y2 * y2
    o_ref[...] = (y4 * y4)[0:o_ref.shape[0], :]


# ----------------------------------------------------------------------------
# Wrapper
# ----------------------------------------------------------------------------
def cnn_encoder_forward(params, x_nchw, *, cnn_dim):
    N, _, H, W = x_nchw.shape
    Hp, Wp = H + 2, W + 2
    L = Hp * Wp
    m3 = cnn_dim // 8
    ch = max(8, cnn_dim // 2)        # padded channel count for the conv3x3 stage
    cmax = max(8, cnn_dim)           # padded channel count for the bottleneck stage

    # Zero-pad: spatial ring (conv padding=1) and channels 1 -> ch (sublane tile).
    xp = jnp.pad(x_nchw.astype(jnp.float32),
                 ((0, 0), (0, ch - 1), (1, 1), (1, 1)))        # (N, ch, Hp, Wp)
    xf = xp.reshape(N, ch, L)

    # Interior-pixel mask in the flattened padded layout.
    idx = jnp.arange(L)
    hi, wi = idx // Wp, idx % Wp
    mask = (((hi >= 1) & (hi <= H) & (wi >= 1) & (wi <= W))
            .astype(jnp.float32).reshape(1, L))

    c0 = lambda n: (0, 0)
    c3 = lambda n: (0, 0, 0)
    in_specs = [
        pl.BlockSpec((None, ch, L), lambda n: (n, 0, 0)),           # x (one image)
        pl.BlockSpec((1, L), c0),                                   # interior mask
        pl.BlockSpec((9, ch, ch), c3),   pl.BlockSpec((ch, 1), c0),    # conv1
        pl.BlockSpec((9, ch, ch), c3),   pl.BlockSpec((ch, 1), c0),    # conv2
        pl.BlockSpec((9, cmax, ch), c3), pl.BlockSpec((cmax, 1), c0),  # conv3
        pl.BlockSpec((9, cmax, cmax), c3),                             # bottleneck W
        pl.BlockSpec((9, cmax, 1), c3),                                # bottleneck b
        pl.BlockSpec((cmax, cmax), c0),                                # shortcut W
    ]

    kernel = functools.partial(_encoder_kernel, Wp=Wp, L=L, neg=0.2)
    out = pl.pallas_call(
        kernel,
        out_shape=jax.ShapeDtypeStruct((N, m3, L), jnp.float32),
        grid_spec=pltpu.PrefetchScalarGridSpec(
            num_scalar_prefetch=0,
            grid=(N,),
            in_specs=in_specs,
            out_specs=pl.BlockSpec((None, m3, L), lambda n: (n, 0, 0)),
            scratch_shapes=[
                pltpu.VMEM((ch, L + 2 * (Wp + 1)), jnp.float32),   # shift buffer
                pltpu.VMEM((cmax, L), jnp.float32),                # feat_in
            ],
        ),
        compiler_params=pltpu.CompilerParams(
            dimension_semantics=("parallel",)),
    )(xf, mask,
      params["w1"], params["b1"], params["w2"], params["b2"],
      params["w3"], params["b3"], params["wb"], params["bb"], params["ws"])

    # Drop the padding ring and return NCHW, matching the PyTorch output.
    return out.reshape(N, m3, Hp, Wp)[:, :, 1:1 + H, 1:1 + W]


# ----------------------------------------------------------------------------
# Parameter initialization (deterministic, PyTorch-like uniform bounds).
# Weights are stored pre-padded in the kernel's layout; zero-padded rows/cols
# contribute exactly zero, so the padded math equals the unpadded math.
# ----------------------------------------------------------------------------
def _uniform(key, shape, bound):
    return jax.random.uniform(key, shape, jnp.float32, -bound, bound)


def _pad_to(a, shape):
    return jnp.pad(a, [(0, t - s) for s, t in zip(a.shape, shape)])


def _conv3x3_params(key, cin, cout, cin_pad, cout_pad):
    bound = 1.0 / math.sqrt(cin * 9)
    kw, kb = jax.random.split(key)
    w = _uniform(kw, (cout, cin, 3, 3), bound)       # PyTorch (Cout, Cin, kh, kw)
    b = _uniform(kb, (cout,), bound)
    w_taps = jnp.transpose(w, (2, 3, 0, 1)).reshape(9, cout, cin)   # tap-major
    return (_pad_to(w_taps, (9, cout_pad, cin_pad)),
            _pad_to(b.reshape(cout, 1), (cout_pad, 1)))


def _conv1x1_params(key, cin, cout, pad):
    bound = 1.0 / math.sqrt(cin)
    kw, kb = jax.random.split(key)
    w = _uniform(kw, (cout, cin), bound)
    b = _uniform(kb, (cout,), bound)
    return _pad_to(w, (pad, pad)), _pad_to(b.reshape(cout, 1), (pad, 1))


def init_params(key, cnn_dim):
    m1, m2, m3 = cnn_dim // 2, cnn_dim // 4, cnn_dim // 8
    ch = max(8, cnn_dim // 2)
    cmax = max(8, cnn_dim)
    keys = iter(jax.random.split(key, 16))

    w1, b1 = _conv3x3_params(next(keys), 1, m1, ch, ch)
    w2, b2 = _conv3x3_params(next(keys), m1, m1, ch, ch)
    w3, b3 = _conv3x3_params(next(keys), m1, cnn_dim, ch, cmax)

    bn_dims = [(cnn_dim, m1), (m1, m2), (m2, m3), (m3, m2), (m2, m1),
               (m1, cnn_dim), (cnn_dim, m1), (m1, m2), (m2, m3)]
    wb, bb = [], []
    for cin, cout in bn_dims:
        w, b = _conv1x1_params(next(keys), cin, cout, cmax)
        wb.append(w)
        bb.append(b)
    wb = jnp.stack(wb)       # (9, cmax, cmax)
    bb = jnp.stack(bb)       # (9, cmax, 1)

    # TODO(synk): PyTorch re-creates this 1x1 shortcut conv with fresh random
    # weights on every forward call; here it is initialized deterministically once.
    ws = _pad_to(_uniform(next(keys), (m3, cnn_dim), 1.0 / math.sqrt(cnn_dim)),
                 (cmax, cmax))

    return {"w1": w1, "b1": b1, "w2": w2, "b2": b2, "w3": w3, "b3": b3,
            "wb": wb, "bb": bb, "ws": ws}


# ----------------------------------------------------------------------------
if __name__ == "__main__":
    CNN_DIM = 16                 # -> bottleneck channels 16/8/4/2, output channels 2
    N, H, W = 2, 28, 28

    root = jax.random.PRNGKey(0)
    k_param, k_x = jax.random.split(root)

    params = init_params(k_param, CNN_DIM)
    x = jax.random.normal(k_x, (N, 1, H, W), jnp.float32)     # NCHW input

    fwd = jax.jit(functools.partial(cnn_encoder_forward, cnn_dim=CNN_DIM))
    y = jax.block_until_ready(fwd(params, x))

    m3 = CNN_DIM // 8
    assert y.shape == (N, m3, H, W)
    assert bool(jnp.all(jnp.isfinite(y)))
    assert bool(jnp.all((y >= 0.0) & (y <= 1.0)))   # (1 - clamp(.,0,1))**8 in [0,1]
    print("KERNEL_OK")
</pallas_src>

<mosaic_0001>
module attributes {stable_mosaic.version = 11 : i64} {
  func.func @_encoder_kernel(%arg0: i32, %arg1: memref<1x8x900xf32, #tpu.memory_space<vmem>>, %arg2: memref<1x900xf32, #tpu.memory_space<vmem>>, %arg3: memref<9x8x8xf32, #tpu.memory_space<vmem>>, %arg4: memref<8x1xf32, #tpu.memory_space<vmem>>, %arg5: memref<9x8x8xf32, #tpu.memory_space<vmem>>, %arg6: memref<8x1xf32, #tpu.memory_space<vmem>>, %arg7: memref<9x16x8xf32, #tpu.memory_space<vmem>>, %arg8: memref<16x1xf32, #tpu.memory_space<vmem>>, %arg9: memref<9x16x16xf32, #tpu.memory_space<vmem>>, %arg10: memref<9x16x1xf32, #tpu.memory_space<vmem>>, %arg11: memref<16x16xf32, #tpu.memory_space<vmem>>, %arg12: memref<1x2x900xf32, #tpu.memory_space<vmem>>, %arg13: memref<8x962xf32, #tpu.memory_space<vmem>>, %arg14: memref<16x900xf32, #tpu.memory_space<vmem>>) attributes {dimension_semantics = [#tpu.dimension_semantics<parallel>], iteration_bounds = array<i64: 2>, scalar_prefetch = 0 : i64, scratch_operands = 2 : i64, tpu.core_type = #tpu.core_type<tc>, window_params = [{transform_indices = @transform_0, window_bounds = array<i64: 1, 8, 900>}, {pipeline_mode = #tpu.pipeline_mode<synchronous>, transform_indices = @transform_1, window_bounds = array<i64: 1, 900>}, {pipeline_mode = #tpu.pipeline_mode<synchronous>, transform_indices = @transform_2, window_bounds = array<i64: 9, 8, 8>}, {pipeline_mode = #tpu.pipeline_mode<synchronous>, transform_indices = @transform_3, window_bounds = array<i64: 8, 1>}, {pipeline_mode = #tpu.pipeline_mode<synchronous>, transform_indices = @transform_4, window_bounds = array<i64: 9, 8, 8>}, {pipeline_mode = #tpu.pipeline_mode<synchronous>, transform_indices = @transform_5, window_bounds = array<i64: 8, 1>}, {pipeline_mode = #tpu.pipeline_mode<synchronous>, transform_indices = @transform_6, window_bounds = array<i64: 9, 16, 8>}, {pipeline_mode = #tpu.pipeline_mode<synchronous>, transform_indices = @transform_7, window_bounds = array<i64: 16, 1>}, {pipeline_mode = #tpu.pipeline_mode<synchronous>, transform_indices = @transform_8, window_bounds = array<i64: 9, 16, 16>}, {pipeline_mode = #tpu.pipeline_mode<synchronous>, transform_indices = @transform_9, window_bounds = array<i64: 9, 16, 1>}, {pipeline_mode = #tpu.pipeline_mode<synchronous>, transform_indices = @transform_10, window_bounds = array<i64: 16, 16>}, {transform_indices = @transform_11, window_bounds = array<i64: 1, 2, 900>}]} {
    %c0 = arith.constant 0 : index
    %c0_0 = arith.constant 0 : index
    %0 = vector.load %arg2[%c0, %c0_0] : memref<1x900xf32, #tpu.memory_space<vmem>>, vector<1x900xf32>
    %cst = arith.constant 0.000000e+00 : f32
    %1 = vector.broadcast %cst : f32 to vector<8x962xf32>
    %c0_1 = arith.constant 0 : index
    %c0_2 = arith.constant 0 : index
    %2 = vector.load %arg13[%c0_1, %c0_2] : memref<8x962xf32, #tpu.memory_space<vmem>>, vector<8x962xf32>
    tpu.vector_store %arg13[%c0_1, %c0_2], %1 {strides = array<i32>} : memref<8x962xf32, #tpu.memory_space<vmem>>, vector<8x962xf32>,
    %c0_3 = arith.constant 0 : index
    %c0_4 = arith.constant 0 : index
    %c0_5 = arith.constant 0 : index
    %3 = vector.load %arg1[%c0_3, %c0_4, %c0_5] : memref<1x8x900xf32, #tpu.memory_space<vmem>>, vector<1x8x900xf32>
    %4 = vector.shape_cast %3 : vector<1x8x900xf32> to vector<8x900xf32>
    %c0_6 = arith.constant 0 : index
    %c31 = arith.constant 31 : index
    %5 = vector.load %arg13[%c0_6, %c31] : memref<8x962xf32, #tpu.memory_space<vmem>>, vector<8x900xf32>
    tpu.vector_store %arg13[%c0_6, %c31], %4 {strides = array<i32>} : memref<8x962xf32, #tpu.memory_space<vmem>>, vector<8x900xf32>,
    %cst_7 = arith.constant 0.000000e+00 : f32
    %6 = vector.broadcast %cst_7 : f32 to vector<8x900xf32>
    %c0_8 = arith.constant 0 : index
    %c0_9 = arith.constant 0 : index
    %7 = vector.load %arg13[%c0_8, %c0_9] : memref<8x962xf32, #tpu.memory_space<vmem>>, vector<8x900xf32>
    %c0_10 = arith.constant 0 : index
    %c0_11 = arith.constant 0 : index
    %c0_12 = arith.constant 0 : index
    %8 = vector.load %arg3[%c0_10, %c0_11, %c0_12] : memref<9x8x8xf32, #tpu.memory_space<vmem>>, vector<1x8x8xf32>
    %9 = vector.shape_cast %8 : vector<1x8x8xf32> to vector<8x8xf32>
    %cst_13 = arith.constant dense<0.000000e+00> : vector<8x900xf32>
    %10 = tpu.matmul %9, %7, %cst_13 {dimension_numbers = #tpu.dot_dimension_numbers<[1], [0], [0], [1], [0, 0, 1, 1], [], []>} : vector<8x8xf32>, vector<8x900xf32>, vector<8x900xf32> -> vector<8x900xf32>
    %11 = arith.addf %6, %10 : vector<8x900xf32>
    %c0_14 = arith.constant 0 : index
    %c1 = arith.constant 1 : index
    %12 = vector.load %arg13[%c0_14, %c1] : memref<8x962xf32, #tpu.memory_space<vmem>>, vector<8x900xf32>
    %c1_15 = arith.constant 1 : index
    %c0_16 = arith.constant 0 : index
    %c0_17 = arith.constant 0 : index
    %13 = vector.load %arg3[%c1_15, %c0_16, %c0_17] : memref<9x8x8xf32, #tpu.memory_space<vmem>>, vector<1x8x8xf32>
    %14 = vector.shape_cast %13 : vector<1x8x8xf32> to vector<8x8xf32>
    %cst_18 = arith.constant dense<0.000000e+00> : vector<8x900xf32>
    %15 = tpu.matmul %14, %12, %cst_18 {dimension_numbers = #tpu.dot_dimension_numbers<[1], [0], [0], [1], [0, 0, 1, 1], [], []>} : vector<8x8xf32>, vector<8x900xf32>, vector<8x900xf32> -> vector<8x900xf32>
    %16 = arith.addf %11, %15 : vector<8x900xf32>
    %c0_19 = arith.constant 0 : index
    %c2 = arith.constant 2 : index
    %17 = vector.load %arg13[%c0_19, %c2] : memref<8x962xf32, #tpu.memory_space<vmem>>, vector<8x900xf32>
    %c2_20 = arith.constant 2 : index
    %c0_21 = arith.constant 0 : index
    %c0_22 = arith.constant 0 : index
    %18 = vector.load %arg3[%c2_20, %c0_21, %c0_22] : memref<9x8x8xf32, #tpu.memory_space<vmem>>, vector<1x8x8xf32>
    %19 = vector.shape_cast %18 : vector<1x8x8xf32> to vector<8x8xf32>
    %cst_23 = arith.constant dense<0.000000e+00> : vector<8x900xf32>
    %20 = tpu.matmul %19, %17, %cst_23 {dimension_numbers = #tpu.dot_dimension_numbers<[1], [0], [0], [1], [0, 0, 1, 1], [], []>} : vector<8x8xf32>, vector<8x900xf32>, vector<8x900xf32> -> vector<8x900xf32>
    %21 = arith.addf %16, %20 : vector<8x900xf32>
    %c0_24 = arith.constant 0 : index
    %c30 = arith.constant 30 : index
    %22 = vector.load %arg13[%c0_24, %c30] : memref<8x962xf32, #tpu.memory_space<vmem>>, vector<8x900xf32>
    %c3 = arith.constant 3 : index
    %c0_25 = arith.constant 0 : index
    %c0_26 = arith.constant 0 : index
    %23 = vector.load %arg3[%c3, %c0_25, %c0_26] : memref<9x8x8xf32, #tpu.memory_space<vmem>>, vector<1x8x8xf32>
    %24 = vector.shape_cast %23 : vector<1x8x8xf32> to vector<8x8xf32>
    %cst_27 = arith.constant dense<0.000000e+00> : vector<8x900xf32>
    %25 = tpu.matmul %24, %22, %cst_27 {dimension_numbers = #tpu.dot_dimension_numbers<[1], [0], [0], [1], [0, 0, 1, 1], [], []>} : vector<8x8xf32>, vector<8x900xf32>, vector<8x900xf32> -> vector<8x900xf32>
    %26 = arith.addf %21, %25 : vector<8x900xf32>
    %c0_28 = arith.constant 0 : index
    %c31_29 = arith.constant 31 : index
    %27 = vector.load %arg13[%c0_28, %c31_29] : memref<8x962xf32, #tpu.memory_space<vmem>>, vector<8x900xf32>
    %c4 = arith.constant 4 : index
    %c0_30 = arith.constant 0 : index
    %c0_31 = arith.constant 0 : index
    %28 = vector.load %arg3[%c4, %c0_30, %c0_31] : memref<9x8x8xf32, #tpu.memory_space<vmem>>, vector<1x8x8xf32>
    %29 = vector.shape_cast %28 : vector<1x8x8xf32> to vector<8x8xf32>
    %cst_32 = arith.constant dense<0.000000e+00> : vector<8x900xf32>
    %30 = tpu.matmul %29, %27, %cst_32 {dimension_numbers = #tpu.dot_dimension_numbers<[1], [0], [0], [1], [0, 0, 1, 1], [], []>} : vector<8x8xf32>, vector<8x900xf32>, vector<8x900xf32> -> vector<8x900xf32>
    %31 = arith.addf %26, %30 : vector<8x900xf32>
    %c0_33 = arith.constant 0 : index
    %c32 = arith.constant 32 : index
    %32 = vector.load %arg13[%c0_33, %c32] : memref<8x962xf32, #tpu.memory_space<vmem>>, vector<8x900xf32>
    %c5 = arith.constant 5 : index
    %c0_34 = arith.constant 0 : index
    %c0_35 = arith.constant 0 : index
    %33 = vector.load %arg3[%c5, %c0_34, %c0_35] : memref<9x8x8xf32, #tpu.memory_space<vmem>>, vector<1x8x8xf32>
    %34 = vector.shape_cast %33 : vector<1x8x8xf32> to vector<8x8xf32>
    %cst_36 = arith.constant dense<0.000000e+00> : vector<8x900xf32>
    %35 = tpu.matmul %34, %32, %cst_36 {dimension_numbers = #tpu.dot_dimension_numbers<[1], [0], [0], [1], [0, 0, 1, 1], [], []>} : vector<8x8xf32>, vector<8x900xf32>, vector<8x900xf32> -> vector<8x900xf32>
    %36 = arith.addf %31, %35 : vector<8x900xf32>
    %c0_37 = arith.constant 0 : index
    %c60 = arith.constant 60 : index
    %37 = vector.load %arg13[%c0_37, %c60] : memref<8x962xf32, #tpu.memory_space<vmem>>, vector<8x900xf32>
    %c6 = arith.constant 6 : index
    %c0_38 = arith.constant 0 : index
    %c0_39 = arith.constant 0 : index
    %38 = vector.load %arg3[%c6, %c0_38, %c0_39] : memref<9x8x8xf32, #tpu.memory_space<vmem>>, vector<1x8x8xf32>
    %39 = vector.shape_cast %38 : vector<1x8x8xf32> to vector<8x8xf32>
    %cst_40 = arith.constant dense<0.000000e+00> : vector<8x900xf32>
    %40 = tpu.matmul %39, %37, %cst_40 {dimension_numbers = #tpu.dot_dimension_numbers<[1], [0], [0], [1], [0, 0, 1, 1], [], []>} : vector<8x8xf32>, vector<8x900xf32>, vector<8x900xf32> -> vector<8x900xf32>
    %41 = arith.addf %36, %40 : vector<8x900xf32>
    %c0_41 = arith.constant 0 : index
    %c61 = arith.constant 61 : index
    %42 = vector.load %arg13[%c0_41, %c61] : memref<8x962xf32, #tpu.memory_space<vmem>>, vector<8x900xf32>
    %c7 = arith.constant 7 : index
    %c0_42 = arith.constant 0 : index
    %c0_43 = arith.constant 0 : index
    %43 = vector.load %arg3[%c7, %c0_42, %c0_43] : memref<9x8x8xf32, #tpu.memory_space<vmem>>, vector<1x8x8xf32>
    %44 = vector.shape_cast %43 : vector<1x8x8xf32> to vector<8x8xf32>
    %cst_44 = arith.constant dense<0.000000e+00> : vector<8x900xf32>
    %45 = tpu.matmul %44, %42, %cst_44 {dimension_numbers = #tpu.dot_dimension_numbers<[1], [0], [0], [1], [0, 0, 1, 1], [], []>} : vector<8x8xf32>, vector<8x900xf32>, vector<8x900xf32> -> vector<8x900xf32>
    %46 = arith.addf %41, %45 : vector<8x900xf32>
    %c0_45 = arith.constant 0 : index
    %c62 = arith.constant 62 : index
    %47 = vector.load %arg13[%c0_45, %c62] : memref<8x962xf32, #tpu.memory_space<vmem>>, vector<8x900xf32>
    %c8 = arith.constant 8 : index
    %c0_46 = arith.constant 0 : index
    %c0_47 = arith.constant 0 : index
    %48 = vector.load %arg3[%c8, %c0_46, %c0_47] : memref<9x8x8xf32, #tpu.memory_space<vmem>>, vector<1x8x8xf32>
    %49 = vector.shape_cast %48 : vector<1x8x8xf32> to vector<8x8xf32>
    %cst_48 = arith.constant dense<0.000000e+00> : vector<8x900xf32>
    %50 = tpu.matmul %49, %47, %cst_48 {dimension_numbers = #tpu.dot_dimension_numbers<[1], [0], [0], [1], [0, 0, 1, 1], [], []>} : vector<8x8xf32>, vector<8x900xf32>, vector<8x900xf32> -> vector<8x900xf32>
    %51 = arith.addf %46, %50 : vector<8x900xf32>
    %c0_49 = arith.constant 0 : index
    %c0_50 = arith.constant 0 : index
    %52 = vector.load %arg4[%c0_49, %c0_50] : memref<8x1xf32, #tpu.memory_space<vmem>>, vector<8x1xf32>
    %53 = vector.broadcast %52 : vector<8x1xf32> to vector<8x900xf32>
    %54 = arith.addf %51, %53 : vector<8x900xf32>
    %cst_51 = arith.constant 0.000000e+00 : f32
    %55 = vector.broadcast %cst_51 : f32 to vector<8x900xf32>
    %56 = arith.cmpf oge, %54, %55 : vector<8x900xf32>
    %cst_52 = arith.constant 2.000000e-01 : f32
    %57 = vector.broadcast %cst_52 : f32 to vector<8x900xf32>
    %58 = arith.mulf %57, %54 : vector<8x900xf32>
    %59 = arith.select %56, %54, %58 : vector<8x900xi1>, vector<8x900xf32>
    %60 = vector.broadcast %0 : vector<1x900xf32> to vector<8x900xf32>
    %61 = arith.mulf %59, %60 : vector<8x900xf32>
    %c0_53 = arith.constant 0 : index
    %c31_54 = arith.constant 31 : index
    %62 = vector.load %arg13[%c0_53, %c31_54] : memref<8x962xf32, #tpu.memory_space<vmem>>, vector<8x900xf32>
    tpu.vector_store %arg13[%c0_53, %c31_54], %61 {strides = array<i32>} : memref<8x962xf32, #tpu.memory_space<vmem>>, vector<8x900xf32>,
    %cst_55 = arith.constant 0.000000e+00 : f32
    %63 = vector.broadcast %cst_55 : f32 to vector<8x900xf32>
    %c0_56 = arith.constant 0 : index
    %c0_57 = arith.constant 0 : index
    %64 = vector.load %arg13[%c0_56, %c0_57] : memref<8x962xf32, #tpu.memory_space<vmem>>, vector<8x900xf32>
    %c0_58 = arith.constant 0 : index
    %c0_59 = arith.constant 0 : index
    %c0_60 = arith.constant 0 : index
    %65 = vector.load %arg5[%c0_58, %c0_59, %c0_60] : memref<9x8x8xf32, #tpu.memory_space<vmem>>, vector<1x8x8xf32>
    %66 = vector.shape_cast %65 : vector<1x8x8xf32> to vector<8x8xf32>
    %cst_61 = arith.constant dense<0.000000e+00> : vector<8x900xf32>
    %67 = tpu.matmul %66, %64, %cst_61 {dimension_numbers = #tpu.dot_dimension_numbers<[1], [0], [0], [1], [0, 0, 1, 1], [], []>} : vector<8x8xf32>, vector<8x900xf32>, vector<8x900xf32> -> vector<8x900xf32>
    %68 = arith.addf %63, %67 : vector<8x900xf32>
    %c0_62 = arith.constant 0 : index
    %c1_63 = arith.constant 1 : index
    %69 = vector.load %arg13[%c0_62, %c1_63] : memref<8x962xf32, #tpu.memory_space<vmem>>, vector<8x900xf32>
    %c1_64 = arith.constant 1 : index
    %c0_65 = arith.constant 0 : index
    %c0_66 = arith.constant 0 : index
    %70 = vector.load %arg5[%c1_64, %c0_65, %c0_66] : memref<9x8x8xf32, #tpu.memory_space<vmem>>, vector<1x8x8xf32>
    %71 = vector.shape_cast %70 : vector<1x8x8xf32> to vector<8x8xf32>
    %cst_67 = arith.constant dense<0.000000e+00> : vector<8x900xf32>
    %72 = tpu.matmul %71, %69, %cst_67 {dimension_numbers = #tpu.dot_dimension_numbers<[1], [0], [0], [1], [0, 0, 1, 1], [], []>} : vector<8x8xf32>, vector<8x900xf32>, vector<8x900xf32> -> vector<8x900xf32>
    %73 = arith.addf %68, %72 : vector<8x900xf32>
    %c0_68 = arith.constant 0 : index
    %c2_69 = arith.constant 2 : index
    %74 = vector.load %arg13[%c0_68, %c2_69] : memref<8x962xf32, #tpu.memory_space<vmem>>, vector<8x900xf32>
    %c2_70 = arith.constant 2 : index
    %c0_71 = arith.constant 0 : index
    %c0_72 = arith.constant 0 : index
    %75 = vector.load %arg5[%c2_70, %c0_71, %c0_72] : memref<9x8x8xf32, #tpu.memory_space<vmem>>, vector<1x8x8xf32>
    %76 = vector.shape_cast %75 : vector<1x8x8xf32> to vector<8x8xf32>
    %cst_73 = arith.constant dense<0.000000e+00> : vector<8x900xf32>
    %77 = tpu.matmul %76, %74, %cst_73 {dimension_numbers = #tpu.dot_dimension_numbers<[1], [0], [0], [1], [0, 0, 1, 1], [], []>} : vector<8x8xf32>, vector<8x900xf32>, vector<8x900xf32> -> vector<8x900xf32>
    %78 = arith.addf %73, %77 : vector<8x900xf32>
    %c0_74 = arith.constant 0 : index
    %c30_75 = arith.constant 30 : index
    %79 = vector.load %arg13[%c0_74, %c30_75] : memref<8x962xf32, #tpu.memory_space<vmem>>, vector<8x900xf32>
    %c3_76 = arith.constant 3 : index
    %c0_77 = arith.constant 0 : index
    %c0_78 = arith.constant 0 : index
    %80 = vector.load %arg5[%c3_76, %c0_77, %c0_78] : memref<9x8x8xf32, #tpu.memory_space<vmem>>, vector<1x8x8xf32>
    %81 = vector.shape_cast %80 : vector<1x8x8xf32> to vector<8x8xf32>
    %cst_79 = arith.constant dense<0.000000e+00> : vector<8x900xf32>
    %82 = tpu.matmul %81, %79, %cst_79 {dimension_numbers = #tpu.dot_dimension_numbers<[1], [0], [0], [1], [0, 0, 1, 1], [], []>} : vector<8x8xf32>, vector<8x900xf32>, vector<8x900xf32> -> vector<8x900xf32>
    %83 = arith.addf %78, %82 : vector<8x900xf32>
    %c0_80 = arith.constant 0 : index
    %c31_81 = arith.constant 31 : index
    %84 = vector.load %arg13[%c0_80, %c31_81] : memref<8x962xf32, #tpu.memory_space<vmem>>, vector<8x900xf32>
    %c4_82 = arith.constant 4 : index
    %c0_83 = arith.constant 0 : index
    %c0_84 = arith.constant 0 : index
    %85 = vector.load %arg5[%c4_82, %c0_83, %c0_84] : memref<9x8x8xf32, #tpu.memory_space<vmem>>, vector<1x8x8xf32>
    %86 = vector.shape_cast %85 : vector<1x8x8xf32> to vector<8x8xf32>
    %cst_85 = arith.constant dense<0.000000e+00> : vector<8x900xf32>
    %87 = tpu.matmul %86, %84, %cst_85 {dimension_numbers = #tpu.dot_dimension_numbers<[1], [0], [0], [1], [0, 0, 1, 1], [], []>} : vector<8x8xf32>, vector<8x900xf32>, vector<8x900xf32> -> vector<8x900xf32>
    %88 = arith.addf %83, %87 : vector<8x900xf32>
    %c0_86 = arith.constant 0 : index
    %c32_87 = arith.constant 32 : index
    %89 = vector.load %arg13[%c0_86, %c32_87] : memref<8x962xf32, #tpu.memory_space<vmem>>, vector<8x900xf32>
    %c5_88 = arith.constant 5 : index
    %c0_89 = arith.constant 0 : index
    %c0_90 = arith.constant 0 : index
    %90 = vector.load %arg5[%c5_88, %c0_89, %c0_90] : memref<9x8x8xf32, #tpu.memory_space<vmem>>, vector<1x8x8xf32>
    %91 = vector.shape_cast %90 : vector<1x8x8xf32> to vector<8x8xf32>
    %cst_91 = arith.constant dense<0.000000e+00> : vector<8x900xf32>
    %92 = tpu.matmul %91, %89, %cst_91 {dimension_numbers = #tpu.dot_dimension_numbers<[1], [0], [0], [1], [0, 0, 1, 1], [], []>} : vector<8x8xf32>, vector<8x900xf32>, vector<8x900xf32> -> vector<8x900xf32>
    %93 = arith.addf %88, %92 : vector<8x900xf32>
    %c0_92 = arith.constant 0 : index
    %c60_93 = arith.constant 60 : index
    %94 = vector.load %arg13[%c0_92, %c60_93] : memref<8x962xf32, #tpu.memory_space<vmem>>, vector<8x900xf32>
    %c6_94 = arith.constant 6 : index
    %c0_95 = arith.constant 0 : index
    %c0_96 = arith.constant 0 : index
    %95 = vector.load %arg5[%c6_94, %c0_95, %c0_96] : memref<9x8x8xf32, #tpu.memory_space<vmem>>, vector<1x8x8xf32>
    %96 = vector.shape_cast %95 : vector<1x8x8xf32> to vector<8x8xf32>
    %cst_97 = arith.constant dense<0.000000e+00> : vector<8x900xf32>
    %97 = tpu.matmul %96, %94, %cst_97 {dimension_numbers = #tpu.dot_dimension_numbers<[1], [0], [0], [1], [0, 0, 1, 1], [], []>} : vector<8x8xf32>, vector<8x900xf32>, vector<8x900xf32> -> vector<8x900xf32>
    %98 = arith.addf %93, %97 : vector<8x900xf32>
    %c0_98 = arith.constant 0 : index
    %c61_99 = arith.constant 61 : index
    %99 = vector.load %arg13[%c0_98, %c61_99] : memref<8x962xf32, #tpu.memory_space<vmem>>, vector<8x900xf32>
    %c7_100 = arith.constant 7 : index
    %c0_101 = arith.constant 0 : index
    %c0_102 = arith.constant 0 : index
    %100 = vector.load %arg5[%c7_100, %c0_101, %c0_102] : memref<9x8x8xf32, #tpu.memory_space<vmem>>, vector<1x8x8xf32>
    %101 = vector.shape_cast %100 : vector<1x8x8xf32> to vector<8x8xf32>
    %cst_103 = arith.constant dense<0.000000e+00> : vector<8x900xf32>
    %102 = tpu.matmul %101, %99, %cst_103 {dimension_numbers = #tpu.dot_dimension_numbers<[1], [0], [0], [1], [0, 0, 1, 1], [], []>} : vector<8x8xf32>, vector<8x900xf32>, vector<8x900xf32> -> vector<8x900xf32>
    %103 = arith.addf %98, %102 : vector<8x900xf32>
    %c0_104 = arith.constant 0 : index
    %c62_105 = arith.constant 62 : index
    %104 = vector.load %arg13[%c0_104, %c62_105] : memref<8x962xf32, #tpu.memory_space<vmem>>, vector<8x900xf32>
    %c8_106 = arith.constant 8 : index
    %c0_107 = arith.constant 0 : index
    %c0_108 = arith.constant 0 : index
    %105 = vector.load %arg5[%c8_106, %c0_107, %c0_108] : memref<9x8x8xf32, #tpu.memory_space<vmem>>, vector<1x8x8xf32>
    %106 = vector.shape_cast %105 : vector<1x8x8xf32> to vector<8x8xf32>
    %cst_109 = arith.constant dense<0.000000e+00> : vector<8x900xf32>
    %107 = tpu.matmul %106, %104, %cst_109 {dimension_numbers = #tpu.dot_dimension_numbers<[1], [0], [0], [1], [0, 0, 1, 1], [], []>} : vector<8x8xf32>, vector<8x900xf32>, vector<8x900xf32> -> vector<8x900xf32>
    %108 = arith.addf %103, %107 : vector<8x900xf32>
    %c0_110 = arith.constant 0 : index
    %c0_111 = arith.constant 0 : index
    %109 = vector.load %arg6[%c0_110, %c0_111] : memref<8x1xf32, #tpu.memory_space<vmem>>, vector<8x1xf32>
    %110 = vector.broadcast %109 : vector<8x1xf32> to vector<8x900xf32>
    %111 = arith.addf %108, %110 : vector<8x900xf32>
    %cst_112 = arith.constant 0.000000e+00 : f32
    %112 = vector.broadcast %cst_112 : f32 to vector<8x900xf32>
    %113 = arith.cmpf oge, %111, %112 : vector<8x900xf32>
    %cst_113 = arith.constant 2.000000e-01 : f32
    %114 = vector.broadcast %cst_113 : f32 to vector<8x900xf32>
    %115 = arith.mulf %114, %111 : vector<8x900xf32>
    %116 = arith.select %113, %111, %115 : vector<8x900xi1>, vector<8x900xf32>
    %117 = vector.broadcast %0 : vector<1x900xf32> to vector<8x900xf32>
    %118 = arith.mulf %116, %117 : vector<8x900xf32>
    %c0_114 = arith.constant 0 : index
    %c31_115 = arith.constant 31 : index
    %119 = vector.load %arg13[%c0_114, %c31_115] : memref<8x962xf32, #tpu.memory_space<vmem>>, vector<8x900xf32>
    tpu.vector_store %arg13[%c0_114, %c31_115], %118 {strides = array<i32>} : memref<8x962xf32, #tpu.memory_space<vmem>>, vector<8x900xf32>,
    %cst_116 = arith.constant 0.000000e+00 : f32
    %120 = vector.broadcast %cst_116 : f32 to vector<16x900xf32>
    %c0_117 = arith.constant 0 : index
    %c0_118 = arith.constant 0 : index
    %121 = vector.load %arg13[%c0_117, %c0_118] : memref<8x962xf32, #tpu.memory_space<vmem>>, vector<8x900xf32>
    %c0_119 = arith.constant 0 : index
    %c0_120 = arith.constant 0 : index
    %c0_121 = arith.constant 0 : index
    %122 = vector.load %arg7[%c0_119, %c0_120, %c0_121] : memref<9x16x8xf32, #tpu.memory_space<vmem>>, vector<1x16x8xf32>
    %123 = vector.shape_cast %122 : vector<1x16x8xf32> to vector<16x8xf32>
    %cst_122 = arith.constant dense<0.000000e+00> : vector<16x900xf32>
    %124 = tpu.matmul %123, %121, %cst_122 {dimension_numbers = #tpu.dot_dimension_numbers<[1], [0], [0], [1], [0, 0, 1, 1], [], []>} : vector<16x8xf32>, vector<8x900xf32>, vector<16x900xf32> -> vector<16x900xf32>
    %125 = arith.addf %120, %124 : vector<16x900xf32>
    %c0_123 = arith.constant 0 : index
    %c1_124 = arith.constant 1 : index
    %126 = vector.load %arg13[%c0_123, %c1_124] : memref<8x962xf32, #tpu.memory_space<vmem>>, vector<8x900xf32>
    %c1_125 = arith.constant 1 : index
    %c0_126 = arith.constant 0 : index
    %c0_127 = arith.constant 0 : index
    %127 = vector.load %arg7[%c1_125, %c0_126, %c0_127] : memref<9x16x8xf32, #tpu.memory_space<vmem>>, vector<1x16x8xf32>
    %128 = vector.shape_cast %127 : vector<1x16x8xf32> to vector<16x8xf32>
    %cst_128 = arith.constant dense<0.000000e+00> : vector<16x900xf32>
    %129 = tpu.matmul %128, %126, %cst_128 {dimension_numbers = #tpu.dot_dimension_numbers<[1], [0], [0], [1], [0, 0, 1, 1], [], []>} : vector<16x8xf32>, vector<8x900xf32>, vector<16x900xf32> -> vector<16x900xf32>
    %130 = arith.addf %125, %129 : vector<16x900xf32>
    %c0_129 = arith.constant 0 : index
    %c2_130 = arith.constant 2 : index
    %131 = vector.load %arg13[%c0_129, %c2_130] : memref<8x962xf32, #tpu.memory_space<vmem>>, vector<8x900xf32>
    %c2_131 = arith.constant 2 : index
    %c0_132 = arith.constant 0 : index
    %c0_133 = arith.constant 0 : index
    %132 = vector.load %arg7[%c2_131, %c0_132, %c0_133] : memref<9x16x8xf32, #tpu.memory_space<vmem>>, vector<1x16x8xf32>
    %133 = vector.shape_cast %132 : vector<1x16x8xf32> to vector<16x8xf32>
    %cst_134 = arith.constant dense<0.000000e+00> : vector<16x900xf32>
    %134 = tpu.matmul %133, %131, %cst_134 {dimension_numbers = #tpu.dot_dimension_numbers<[1], [0], [0], [1], [0, 0, 1, 1], [], []>} : vector<16x8xf32>, vector<8x900xf32>, vector<16x900xf32> -> vector<16x900xf32>
    %135 = arith.addf %130, %134 : vector<16x900xf32>
    %c0_135 = arith.constant 0 : index
    %c30_136 = arith.constant 30 : index
    %136 = vector.load %arg13[%c0_135, %c30_136] : memref<8x962xf32, #tpu.memory_space<vmem>>, vector<8x900xf32>
    %c3_137 = arith.constant 3 : index
    %c0_138 = arith.constant 0 : index
    %c0_139 = arith.constant 0 : index
    %137 = vector.load %arg7[%c3_137, %c0_138, %c0_139] : memref<9x16x8xf32, #tpu.memory_space<vmem>>, vector<1x16x8xf32>
    %138 = vector.shape_cast %137 : vector<1x16x8xf32> to vector<16x8xf32>
    %cst_140 = arith.constant dense<0.000000e+00> : vector<16x900xf32>
    %139 = tpu.matmul %138, %136, %cst_140 {dimension_numbers = #tpu.dot_dimension_numbers<[1], [0], [0], [1], [0, 0, 1, 1], [], []>} : vector<16x8xf32>, vector<8x900xf32>, vector<16x900xf32> -> vector<16x900xf32>
    %140 = arith.addf %135, %139 : vector<16x900xf32>
    %c0_141 = arith.constant 0 : index
    %c31_142 = arith.constant 31 : index
    %141 = vector.load %arg13[%c0_141, %c31_142] : memref<8x962xf32, #tpu.memory_space<vmem>>, vector<8x900xf32>
    %c4_143 = arith.constant 4 : index
    %c0_144 = arith.constant 0 : index
    %c0_145 = arith.constant 0 : index
    %142 = vector.load %arg7[%c4_143, %c0_144, %c0_145] : memref<9x16x8xf32, #tpu.memory_space<vmem>>, vector<1x16x8xf32>
    %143 = vector.shape_cast %142 : vector<1x16x8xf32> to vector<16x8xf32>
    %cst_146 = arith.constant dense<0.000000e+00> : vector<16x900xf32>
    %144 = tpu.matmul %143, %141, %cst_146 {dimension_numbers = #tpu.dot_dimension_numbers<[1], [0], [0], [1], [0, 0, 1, 1], [], []>} : vector<16x8xf32>, vector<8x900xf32>, vector<16x900xf32> -> vector<16x900xf32>
    %145 = arith.addf %140, %144 : vector<16x900xf32>
    %c0_147 = arith.constant 0 : index
    %c32_148 = arith.constant 32 : index
    %146 = vector.load %arg13[%c0_147, %c32_148] : memref<8x962xf32, #tpu.memory_space<vmem>>, vector<8x900xf32>
    %c5_149 = arith.constant 5 : index
    %c0_150 = arith.constant 0 : index
    %c0_151 = arith.constant 0 : index
    %147 = vector.load %arg7[%c5_149, %c0_150, %c0_151] : memref<9x16x8xf32, #tpu.memory_space<vmem>>, vector<1x16x8xf32>
    %148 = vector.shape_cast %147 : vector<1x16x8xf32> to vector<16x8xf32>
    %cst_152 = arith.constant dense<0.000000e+00> : vector<16x900xf32>
    %149 = tpu.matmul %148, %146, %cst_152 {dimension_numbers = #tpu.dot_dimension_numbers<[1], [0], [0], [1], [0, 0, 1, 1], [], []>} : vector<16x8xf32>, vector<8x900xf32>, vector<16x900xf32> -> vector<16x900xf32>
    %150 = arith.addf %145, %149 : vector<16x900xf32>
    %c0_153 = arith.constant 0 : index
    %c60_154 = arith.constant 60 : index
    %151 = vector.load %arg13[%c0_153, %c60_154] : memref<8x962xf32, #tpu.memory_space<vmem>>, vector<8x900xf32>
    %c6_155 = arith.constant 6 : index
    %c0_156 = arith.constant 0 : index
    %c0_157 = arith.constant 0 : index
    %152 = vector.load %arg7[%c6_155, %c0_156, %c0_157] : memref<9x16x8xf32, #tpu.memory_space<vmem>>, vector<1x16x8xf32>
    %153 = vector.shape_cast %152 : vector<1x16x8xf32> to vector<16x8xf32>
    %cst_158 = arith.constant dense<0.000000e+00> : vector<16x900xf32>
    %154 = tpu.matmul %153, %151, %cst_158 {dimension_numbers = #tpu.dot_dimension_numbers<[1], [0], [0], [1], [0, 0, 1, 1], [], []>} : vector<16x8xf32>, vector<8x900xf32>, vector<16x900xf32> -> vector<16x900xf32>
    %155 = arith.addf %150, %154 : vector<16x900xf32>
    %c0_159 = arith.constant 0 : index
    %c61_160 = arith.constant 61 : index
    %156 = vector.load %arg13[%c0_159, %c61_160] : memref<8x962xf32, #tpu.memory_space<vmem>>, vector<8x900xf32>
    %c7_161 = arith.constant 7 : index
    %c0_162 = arith.constant 0 : index
    %c0_163 = arith.constant 0 : index
    %157 = vector.load %arg7[%c7_161, %c0_162, %c0_163] : memref<9x16x8xf32, #tpu.memory_space<vmem>>, vector<1x16x8xf32>
    %158 = vector.shape_cast %157 : vector<1x16x8xf32> to vector<16x8xf32>
    %cst_164 = arith.constant dense<0.000000e+00> : vector<16x900xf32>
    %159 = tpu.matmul %158, %156, %cst_164 {dimension_numbers = #tpu.dot_dimension_numbers<[1], [0], [0], [1], [0, 0, 1, 1], [], []>} : vector<16x8xf32>, vector<8x900xf32>, vector<16x900xf32> -> vector<16x900xf32>
    %160 = arith.addf %155, %159 : vector<16x900xf32>
    %c0_165 = arith.constant 0 : index
    %c62_166 = arith.constant 62 : index
    %161 = vector.load %arg13[%c0_165, %c62_166] : memref<8x962xf32, #tpu.memory_space<vmem>>, vector<8x900xf32>
    %c8_167 = arith.constant 8 : index
    %c0_168 = arith.constant 0 : index
    %c0_169 = arith.constant 0 : index
    %162 = vector.load %arg7[%c8_167, %c0_168, %c0_169] : memref<9x16x8xf32, #tpu.memory_space<vmem>>, vector<1x16x8xf32>
    %163 = vector.shape_cast %162 : vector<1x16x8xf32> to vector<16x8xf32>
    %cst_170 = arith.constant dense<0.000000e+00> : vector<16x900xf32>
    %164 = tpu.matmul %163, %161, %cst_170 {dimension_numbers = #tpu.dot_dimension_numbers<[1], [0], [0], [1], [0, 0, 1, 1], [], []>} : vector<16x8xf32>, vector<8x900xf32>, vector<16x900xf32> -> vector<16x900xf32>
    %165 = arith.addf %160, %164 : vector<16x900xf32>
    %c0_171 = arith.constant 0 : index
    %c0_172 = arith.constant 0 : index
    %166 = vector.load %arg8[%c0_171, %c0_172] : memref<16x1xf32, #tpu.memory_space<vmem>>, vector<16x1xf32>
    %167 = vector.broadcast %166 : vector<16x1xf32> to vector<16x900xf32>
    %168 = arith.addf %165, %167 : vector<16x900xf32>
    %cst_173 = arith.constant 0.000000e+00 : f32
    %169 = vector.broadcast %cst_173 : f32 to vector<16x900xf32>
    %170 = arith.cmpf oge, %168, %169 : vector<16x900xf32>
    %cst_174 = arith.constant 2.000000e-01 : f32
    %171 = vector.broadcast %cst_174 : f32 to vector<16x900xf32>
    %172 = arith.mulf %171, %168 : vector<16x900xf32>
    %173 = arith.select %170, %168, %172 : vector<16x900xi1>, vector<16x900xf32>
    %174 = vector.broadcast %0 : vector<1x900xf32> to vector<16x900xf32>
    %175 = arith.mulf %173, %174 : vector<16x900xf32>
    %c0_175 = arith.constant 0 : index
    %c0_176 = arith.constant 0 : index
    %176 = vector.load %arg14[%c0_175, %c0_176] : memref<16x900xf32, #tpu.memory_space<vmem>>, vector<16x900xf32>
    tpu.vector_store %arg14[%c0_175, %c0_176], %175 {strides = array<i32>} : memref<16x900xf32, #tpu.memory_space<vmem>>, vector<16x900xf32>,
    %c0_177 = arith.constant 0 : index
    %c0_178 = arith.constant 0 : index
    %c0_179 = arith.constant 0 : index
    %177 = vector.load %arg9[%c0_177, %c0_178, %c0_179] : memref<9x16x16xf32, #tpu.memory_space<vmem>>, vector<1x16x16xf32>
    %178 = vector.shape_cast %177 : vector<1x16x16xf32> to vector<16x16xf32>
    %cst_180 = arith.constant dense<0.000000e+00> : vector<16x900xf32>
    %179 = tpu.matmul %178, %175, %cst_180 {dimension_numbers = #tpu.dot_dimension_numbers<[1], [0], [0], [1], [0, 0, 1, 1], [], []>} : vector<16x16xf32>, vector<16x900xf32>, vector<16x900xf32> -> vector<16x900xf32>
    %c0_181 = arith.constant 0 : index
    %c0_182 = arith.constant 0 : index
    %c0_183 = arith.constant 0 : index
    %180 = vector.load %arg10[%c0_181, %c0_182, %c0_183] : memref<9x16x1xf32, #tpu.memory_space<vmem>>, vector<1x16x1xf32>
    %181 = vector.shape_cast %180 : vector<1x16x1xf32> to vector<16x1xf32>
    %182 = vector.broadcast %181 : vector<16x1xf32> to vector<16x900xf32>
    %183 = arith.addf %179, %182 : vector<16x900xf32>
    %cst_184 = arith.constant 0.000000e+00 : f32
    %184 = vector.broadcast %cst_184 : f32 to vector<16x900xf32>
    %185 = arith.maximumf %183, %184 : vector<16x900xf32>
    %c1_185 = arith.constant 1 : index
    %c0_186 = arith.constant 0 : index
    %c0_187 = arith.constant 0 : index
    %186 = vector.load %arg9[%c1_185, %c0_186, %c0_187] : memref<9x16x16xf32, #tpu.memory_space<vmem>>, vector<1x16x16xf32>
    %187 = vector.shape_cast %186 : vector<1x16x16xf32> to vector<16x16xf32>
    %cst_188 = arith.constant dense<0.000000e+00> : vector<16x900xf32>
    %188 = tpu.matmul %187, %185, %cst_188 {dimension_numbers = #tpu.dot_dimension_numbers<[1], [0], [0], [1], [0, 0, 1, 1], [], []>} : vector<16x16xf32>, vector<16x900xf32>, vector<16x900xf32> -> vector<16x900xf32>
    %c1_189 = arith.constant 1 : index
    %c0_190 = arith.constant 0 : index
    %c0_191 = arith.constant 0 : index
    %189 = vector.load %arg10[%c1_189, %c0_190, %c0_191] : memref<9x16x1xf32, #tpu.memory_space<vmem>>, vector<1x16x1xf32>
    %190 = vector.shape_cast %189 : vector<1x16x1xf32> to vector<16x1xf32>
    %191 = vector.broadcast %190 : vector<16x1xf32> to vector<16x900xf32>
    %192 = arith.addf %188, %191 : vector<16x900xf32>
    %cst_192 = arith.constant 0.000000e+00 : f32
    %193 = vector.broadcast %cst_192 : f32 to vector<16x900xf32>
    %194 = arith.maximumf %192, %193 : vector<16x900xf32>
    %c2_193 = arith.constant 2 : index
    %c0_194 = arith.constant 0 : index
    %c0_195 = arith.constant 0 : index
    %195 = vector.load %arg9[%c2_193, %c0_194, %c0_195] : memref<9x16x16xf32, #tpu.memory_space<vmem>>, vector<1x16x16xf32>
    %196 = vector.shape_cast %195 : vector<1x16x16xf32> to vector<16x16xf32>
    %cst_196 = arith.constant dense<0.000000e+00> : vector<16x900xf32>
    %197 = tpu.matmul %196, %194, %cst_196 {dimension_numbers = #tpu.dot_dimension_numbers<[1], [0], [0], [1], [0, 0, 1, 1], [], []>} : vector<16x16xf32>, vector<16x900xf32>, vector<16x900xf32> -> vector<16x900xf32>
    %c2_197 = arith.constant 2 : index
    %c0_198 = arith.constant 0 : index
    %c0_199 = arith.constant 0 : index
    %198 = vector.load %arg10[%c2_197, %c0_198, %c0_199] : memref<9x16x1xf32, #tpu.memory_space<vmem>>, vector<1x16x1xf32>
    %199 = vector.shape_cast %198 : vector<1x16x1xf32> to vector<16x1xf32>
    %200 = vector.broadcast %199 : vector<16x1xf32> to vector<16x900xf32>
    %201 = arith.addf %197, %200 : vector<16x900xf32>
    %cst_200 = arith.constant 0.000000e+00 : f32
    %202 = vector.broadcast %cst_200 : f32 to vector<16x900xf32>
    %203 = arith.maximumf %201, %202 : vector<16x900xf32>
    %c3_201 = arith.constant 3 : index
    %c0_202 = arith.constant 0 : index
    %c0_203 = arith.constant 0 : index
    %204 = vector.load %arg9[%c3_201, %c0_202, %c0_203] : memref<9x16x16xf32, #tpu.memory_space<vmem>>, vector<1x16x16xf32>
    %205 = vector.shape_cast %204 : vector<1x16x16xf32> to vector<16x16xf32>
    %cst_204 = arith.constant dense<0.000000e+00> : vector<16x900xf32>
    %206 = tpu.matmul %205, %203, %cst_204 {dimension_numbers = #tpu.dot_dimension_numbers<[1], [0], [0], [1], [0, 0, 1, 1], [], []>} : vector<16x16xf32>, vector<16x900xf32>, vector<16x900xf32> -> vector<16x900xf32>
    %c3_205 = arith.constant 3 : index
    %c0_206 = arith.constant 0 : index
    %c0_207 = arith.constant 0 : index
    %207 = vector.load %arg10[%c3_205, %c0_206, %c0_207] : memref<9x16x1xf32, #tpu.memory_space<vmem>>, vector<1x16x1xf32>
    %208 = vector.shape_cast %207 : vector<1x16x1xf32> to vector<16x1xf32>
    %209 = vector.broadcast %208 : vector<16x1xf32> to vector<16x900xf32>
    %210 = arith.addf %206, %209 : vector<16x900xf32>
    %cst_208 = arith.constant 0.000000e+00 : f32
    %211 = vector.broadcast %cst_208 : f32 to vector<16x900xf32>
    %212 = arith.maximumf %210, %211 : vector<16x900xf32>
    %c4_209 = arith.constant 4 : index
    %c0_210 = arith.constant 0 : index
    %c0_211 = arith.constant 0 : index
    %213 = vector.load %arg9[%c4_209, %c0_210, %c0_211] : memref<9x16x16xf32, #tpu.memory_space<vmem>>, vector<1x16x16xf32>
    %214 = vector.shape_cast %213 : vector<1x16x16xf32> to vector<16x16xf32>
    %cst_212 = arith.constant dense<0.000000e+00> : vector<16x900xf32>
    %215 = tpu.matmul %214, %212, %cst_212 {dimension_numbers = #tpu.dot_dimension_numbers<[1], [0], [0], [1], [0, 0, 1, 1], [], []>} : vector<16x16xf32>, vector<16x900xf32>, vector<16x900xf32> -> vector<16x900xf32>
    %c4_213 = arith.constant 4 : index
    %c0_214 = arith.constant 0 : index
    %c0_215 = arith.constant 0 : index
    %216 = vector.load %arg10[%c4_213, %c0_214, %c0_215] : memref<9x16x1xf32, #tpu.memory_space<vmem>>, vector<1x16x1xf32>
    %217 = vector.shape_cast %216 : vector<1x16x1xf32> to vector<16x1xf32>
    %218 = vector.broadcast %217 : vector<16x1xf32> to vector<16x900xf32>
    %219 = arith.addf %215, %218 : vector<16x900xf32>
    %cst_216 = arith.constant 0.000000e+00 : f32
    %220 = vector.broadcast %cst_216 : f32 to vector<16x900xf32>
    %221 = arith.maximumf %219, %220 : vector<16x900xf32>
    %c5_217 = arith.constant 5 : index
    %c0_218 = arith.constant 0 : index
    %c0_219 = arith.constant 0 : index
    %222 = vector.load %arg9[%c5_217, %c0_218, %c0_219] : memref<9x16x16xf32, #tpu.memory_space<vmem>>, vector<1x16x16xf32>
    %223 = vector.shape_cast %222 : vector<1x16x16xf32> to vector<16x16xf32>
    %cst_220 = arith.constant dense<0.000000e+00> : vector<16x900xf32>
    %224 = tpu.matmul %223, %221, %cst_220 {dimension_numbers = #tpu.dot_dimension_numbers<[1], [0], [0], [1], [0, 0, 1, 1], [], []>} : vector<16x16xf32>, vector<16x900xf32>, vector<16x900xf32> -> vector<16x900xf32>
    %c5_221 = arith.constant 5 : index
    %c0_222 = arith.constant 0 : index
    %c0_223 = arith.constant 0 : index
    %225 = vector.load %arg10[%c5_221, %c0_222, %c0_223] : memref<9x16x1xf32, #tpu.memory_space<vmem>>, vector<1x16x1xf32>
    %226 = vector.shape_cast %225 : vector<1x16x1xf32> to vector<16x1xf32>
    %227 = vector.broadcast %226 : vector<16x1xf32> to vector<16x900xf32>
    %228 = arith.addf %224, %227 : vector<16x900xf32>
    %cst_224 = arith.constant 0.000000e+00 : f32
    %229 = vector.broadcast %cst_224 : f32 to vector<16x900xf32>
    %230 = arith.maximumf %228, %229 : vector<16x900xf32>
    %c6_225 = arith.constant 6 : index
    %c0_226 = arith.constant 0 : index
    %c0_227 = arith.constant 0 : index
    %231 = vector.load %arg9[%c6_225, %c0_226, %c0_227] : memref<9x16x16xf32, #tpu.memory_space<vmem>>, vector<1x16x16xf32>
    %232 = vector.shape_cast %231 : vector<1x16x16xf32> to vector<16x16xf32>
    %cst_228 = arith.constant dense<0.000000e+00> : vector<16x900xf32>
    %233 = tpu.matmul %232, %230, %cst_228 {dimension_numbers = #tpu.dot_dimension_numbers<[1], [0], [0], [1], [0, 0, 1, 1], [], []>} : vector<16x16xf32>, vector<16x900xf32>, vector<16x900xf32> -> vector<16x900xf32>
    %c6_229 = arith.constant 6 : index
    %c0_230 = arith.constant 0 : index
    %c0_231 = arith.constant 0 : index
    %234 = vector.load %arg10[%c6_229, %c0_230, %c0_231] : memref<9x16x1xf32, #tpu.memory_space<vmem>>, vector<1x16x1xf32>
    %235 = vector.shape_cast %234 : vector<1x16x1xf32> to vector<16x1xf32>
    %236 = vector.broadcast %235 : vector<16x1xf32> to vector<16x900xf32>
    %237 = arith.addf %233, %236 : vector<16x900xf32>
    %cst_232 = arith.constant 0.000000e+00 : f32
    %238 = vector.broadcast %cst_232 : f32 to vector<16x900xf32>
    %239 = arith.maximumf %237, %238 : vector<16x900xf32>
    %c7_233 = arith.constant 7 : index
    %c0_234 = arith.constant 0 : index
    %c0_235 = arith.constant 0 : index
    %240 = vector.load %arg9[%c7_233, %c0_234, %c0_235] : memref<9x16x16xf32, #tpu.memory_space<vmem>>, vector<1x16x16xf32>
    %241 = vector.shape_cast %240 : vector<1x16x16xf32> to vector<16x16xf32>
    %cst_236 = arith.constant dense<0.000000e+00> : vector<16x900xf32>
    %242 = tpu.matmul %241, %239, %cst_236 {dimension_numbers = #tpu.dot_dimension_numbers<[1], [0], [0], [1], [0, 0, 1, 1], [], []>} : vector<16x16xf32>, vector<16x900xf32>, vector<16x900xf32> -> vector<16x900xf32>
    %c7_237 = arith.constant 7 : index
    %c0_238 = arith.constant 0 : index
    %c0_239 = arith.constant 0 : index
    %243 = vector.load %arg10[%c7_237, %c0_238, %c0_239] : memref<9x16x1xf32, #tpu.memory_space<vmem>>, vector<1x16x1xf32>
    %244 = vector.shape_cast %243 : vector<1x16x1xf32> to vector<16x1xf32>
    %245 = vector.broadcast %244 : vector<16x1xf32> to vector<16x900xf32>
    %246 = arith.addf %242, %245 : vector<16x900xf32>
    %cst_240 = arith.constant 0.000000e+00 : f32
    %247 = vector.broadcast %cst_240 : f32 to vector<16x900xf32>
    %248 = arith.maximumf %246, %247 : vector<16x900xf32>
    %c8_241 = arith.constant 8 : index
    %c0_242 = arith.constant 0 : index
    %c0_243 = arith.constant 0 : index
    %249 = vector.load %arg9[%c8_241, %c0_242, %c0_243] : memref<9x16x16xf32, #tpu.memory_space<vmem>>, vector<1x16x16xf32>
    %250 = vector.shape_cast %249 : vector<1x16x16xf32> to vector<16x16xf32>
    %cst_244 = arith.constant dense<0.000000e+00> : vector<16x900xf32>
    %251 = tpu.matmul %250, %248, %cst_244 {dimension_numbers = #tpu.dot_dimension_numbers<[1], [0], [0], [1], [0, 0, 1, 1], [], []>} : vector<16x16xf32>, vector<16x900xf32>, vector<16x900xf32> -> vector<16x900xf32>
    %c8_245 = arith.constant 8 : index
    %c0_246 = arith.constant 0 : index
    %c0_247 = arith.constant 0 : index
    %252 = vector.load %arg10[%c8_245, %c0_246, %c0_247] : memref<9x16x1xf32, #tpu.memory_space<vmem>>, vector<1x16x1xf32>
    %253 = vector.shape_cast %252 : vector<1x16x1xf32> to vector<16x1xf32>
    %254 = vector.broadcast %253 : vector<16x1xf32> to vector<16x900xf32>
    %255 = arith.addf %251, %254 : vector<16x900xf32>
    %cst_248 = arith.constant 0.000000e+00 : f32
    %256 = vector.broadcast %cst_248 : f32 to vector<16x900xf32>
    %257 = arith.maximumf %255, %256 : vector<16x900xf32>
    %c0_249 = arith.constant 0 : index
    %c0_250 = arith.constant 0 : index
    %258 = vector.load %arg11[%c0_249, %c0_250] : memref<16x16xf32, #tpu.memory_space<vmem>>, vector<16x16xf32>
    %c0_251 = arith.constant 0 : index
    %c0_252 = arith.constant 0 : index
    %259 = vector.load %arg14[%c0_251, %c0_252] : memref<16x900xf32, #tpu.memory_space<vmem>>, vector<16x900xf32>
    %cst_253 = arith.constant dense<0.000000e+00> : vector<16x900xf32>
    %260 = tpu.matmul %258, %259, %cst_253 {dimension_numbers = #tpu.dot_dimension_numbers<[1], [0], [0], [1], [0, 0, 1, 1], [], []>} : vector<16x16xf32>, vector<16x900xf32>, vector<16x900xf32> -> vector<16x900xf32>
    %261 = arith.subf %260, %257 : vector<16x900xf32>
    %262 = math.absf %261 : vector<16x900xf32>
    %cst_254 = arith.constant 0.000000e+00 : f32
    %cst_255 = arith.constant 1.000000e+00 : f32
    %263 = vector.broadcast %cst_254 : f32 to vector<16x900xf32>
    %264 = arith.maximumf %263, %262 : vector<16x900xf32>
    %265 = vector.broadcast %cst_255 : f32 to vector<16x900xf32>
    %266 = arith.minimumf %265, %264 : vector<16x900xf32>
    %cst_256 = arith.constant 1.000000e+00 : f32
    %267 = vector.broadcast %cst_256 : f32 to vector<16x900xf32>
    %268 = arith.subf %267, %266 : vector<16x900xf32>
    %269 = arith.mulf %268, %268 : vector<16x900xf32>
    %270 = arith.mulf %269, %269 : vector<16x900xf32>
    %271 = arith.mulf %270, %270 : vector<16x900xf32>
    %272 = vector.extract_strided_slice %271 {offsets = [0, 0], sizes = [2, 900], strides = [1, 1]} : vector<16x900xf32> to vector<2x900xf32>
    %c0_257 = arith.constant 0 : index
    %c0_258 = arith.constant 0 : index
    %c0_259 = arith.constant 0 : index
    %273 = vector.load %arg12[%c0_257, %c0_258, %c0_259] : memref<1x2x900xf32, #tpu.memory_space<vmem>>, vector<1x2x900xf32>
    %274 = vector.shape_cast %273 : vector<1x2x900xf32> to vector<2x900xf32>
    %275 = vector.shape_cast %272 : vector<2x900xf32> to vector<1x2x900xf32>
    tpu.vector_store %arg12[%c0_257, %c0_258, %c0_259], %275 {strides = array<i32>} : memref<1x2x900xf32, #tpu.memory_space<vmem>>, vector<1x2x900xf32>,
    return
  }
  func.func @transform_0(%arg0: i32) -> (i32, i32, i32) {
    %c0_i32 = arith.constant 0 : i32
    %c0_i32_0 = arith.constant 0 : i32
    %c0_i32_1 = arith.constant 0 : i32
    return %arg0, %c0_i32, %c0_i32_0 : i32, i32, i32
  }
  func.func @transform_1(%arg0: i32) -> (i32, i32) {
    %c0_i32 = arith.constant 0 : i32
    %c0_i32_0 = arith.constant 0 : i32
    %c0_i32_1 = arith.constant 0 : i32
    return %c0_i32, %c0_i32_0 : i32, i32
  }
  func.func @transform_2(%arg0: i32) -> (i32, i32, i32) {
    %c0_i32 = arith.constant 0 : i32
    %c0_i32_0 = arith.constant 0 : i32
    %c0_i32_1 = arith.constant 0 : i32
    %c0_i32_2 = arith.constant 0 : i32
    return %c0_i32, %c0_i32_0, %c0_i32_1 : i32, i32, i32
  }
  func.func @transform_3(%arg0: i32) -> (i32, i32) {
    %c0_i32 = arith.constant 0 : i32
    %c0_i32_0 = arith.constant 0 : i32
    %c0_i32_1 = arith.constant 0 : i32
    return %c0_i32, %c0_i32_0 : i32, i32
  }
  func.func @transform_4(%arg0: i32) -> (i32, i32, i32) {
    %c0_i32 = arith.constant 0 : i32
    %c0_i32_0 = arith.constant 0 : i32
    %c0_i32_1 = arith.constant 0 : i32
    %c0_i32_2 = arith.constant 0 : i32
    return %c0_i32, %c0_i32_0, %c0_i32_1 : i32, i32, i32
  }
  func.func @transform_5(%arg0: i32) -> (i32, i32) {
    %c0_i32 = arith.constant 0 : i32
    %c0_i32_0 = arith.constant 0 : i32
    %c0_i32_1 = arith.constant 0 : i32
    return %c0_i32, %c0_i32_0 : i32, i32
  }
  func.func @transform_6(%arg0: i32) -> (i32, i32, i32) {
    %c0_i32 = arith.constant 0 : i32
    %c0_i32_0 = arith.constant 0 : i32
    %c0_i32_1 = arith.constant 0 : i32
    %c0_i32_2 = arith.constant 0 : i32
    return %c0_i32, %c0_i32_0, %c0_i32_1 : i32, i32, i32
  }
  func.func @transform_7(%arg0: i32) -> (i32, i32) {
    %c0_i32 = arith.constant 0 : i32
    %c0_i32_0 = arith.constant 0 : i32
    %c0_i32_1 = arith.constant 0 : i32
    return %c0_i32, %c0_i32_0 : i32, i32
  }
  func.func @transform_8(%arg0: i32) -> (i32, i32, i32) {
    %c0_i32 = arith.constant 0 : i32
    %c0_i32_0 = arith.constant 0 : i32
    %c0_i32_1 = arith.constant 0 : i32
    %c0_i32_2 = arith.constant 0 : i32
    return %c0_i32, %c0_i32_0, %c0_i32_1 : i32, i32, i32
  }
  func.func @transform_9(%arg0: i32) -> (i32, i32, i32) {
    %c0_i32 = arith.constant 0 : i32
    %c0_i32_0 = arith.constant 0 : i32
    %c0_i32_1 = arith.constant 0 : i32
    %c0_i32_2 = arith.constant 0 : i32
    return %c0_i32, %c0_i32_0, %c0_i32_1 : i32, i32, i32
  }
  func.func @transform_10(%arg0: i32) -> (i32, i32) {
    %c0_i32 = arith.constant 0 : i32
    %c0_i32_0 = arith.constant 0 : i32
    %c0_i32_1 = arith.constant 0 : i32
    return %c0_i32, %c0_i32_0 : i32, i32
  }
  func.func @transform_11(%arg0: i32) -> (i32, i32, i32) {
    %c0_i32 = arith.constant 0 : i32
    %c0_i32_0 = arith.constant 0 : i32
    %c0_i32_1 = arith.constant 0 : i32
    return %arg0, %c0_i32, %c0_i32_0 : i32, i32, i32
  }
}

</mosaic_0001>

<llo_original>
// kernel: cnn_encoder_forward.1
$region0: #{cnn_encoder_forward.1}
  #allocation0 [shape = 'u32[]', space=smem, size = 0x4, offset = 0x4, fixed_abs, tag = 'smem constant byte address 0x4 - core index']
  #allocation1 [shape = 'u32[72,128]{1,0:T(1,128)}', space=vmem, size = 0x9000, scoped, tag = 'internal scratch']
  #allocation2 [shape = 'f32[8,962]{1,0:T(8,128)}', space=vmem, size = 0x8000, scoped, tag = 'scratch operand']
  #allocation3 [shape = 'f32[16,900]{1,0:T(8,128)}', space=vmem, size = 0x10000, scoped, tag = 'scratch operand']
  %s0 = inlined_call_operand.vmem [shape: f32[2,8,900], index: 0, kind: input, shape index: {}]
  %s1 = inlined_call_operand.vmem [shape: f32[1,900], index: 1, kind: input, shape index: {}]
  %s2 = inlined_call_operand.vmem [shape: f32[9,8,8], index: 2, kind: input, shape index: {}]
  %s3 = inlined_call_operand.vmem [shape: f32[8,1], index: 3, kind: input, shape index: {}]
  %s4 = inlined_call_operand.vmem [shape: f32[9,8,8], index: 4, kind: input, shape index: {}]
  %s5 = inlined_call_operand.vmem [shape: f32[8,1], index: 5, kind: input, shape index: {}]
  %s6 = inlined_call_operand.vmem [shape: f32[9,16,8], index: 6, kind: input, shape index: {}]
  %s7 = inlined_call_operand.vmem [shape: f32[16,1], index: 7, kind: input, shape index: {}]
  %s8 = inlined_call_operand.vmem [shape: f32[9,16,16], index: 8, kind: input, shape index: {}]
  %s9 = inlined_call_operand.vmem [shape: f32[9,16,1], index: 9, kind: input, shape index: {}]
  %s10 = inlined_call_operand.vmem [shape: f32[16,16], index: 10, kind: input, shape index: {}]
  %s11 = inlined_call_operand.vmem [shape: f32[2,2,900], index: 11, kind: output, shape index: {}]
  %s12 = sld [smem:[#allocation0]]
  $region77: #{cnn_encoder_forward.1} parent=0
    _
  %s14 = ssub.s32 1, %s12
  %s15 = scalar_select 0, %s14, %s12
  loop: start=0, step=1, limit=4
  $region2: #{cnn_encoder_forward.1} parent=0 // loop_pre_header
    _
  $region3: #{cnn_encoder_forward.1} parent=0 // loop_header
    %s17 = sphi 0, %s21
    %p18 = scmp.ge.s32.totalorder %s17, 4
    %s27 = sphi 0, %s29
    %s30 = sphi 0, %s27
    %s31 = sphi 0, %s30
    %s47 = sphi 0, %s31
    %s51 = sphi 0, %s51
    %s53 = sphi 0, %s51
    %s54 = sphi 0, %s53
    %s68 = sphi 0, %s54
    %s72 = sphi 0, %s72
    %s74 = sphi 0, %s72
    %s75 = sphi 0, %s74
    %s89 = sphi 0, %s75
    %s93 = sphi 0, %s93
    %s95 = sphi 0, %s93
    %s96 = sphi 0, %s95
    %s110 = sphi 0, %s96
    %s114 = sphi 0, %s114
    %s116 = sphi 0, %s114
    %s117 = sphi 0, %s116
    %s131 = sphi 0, %s117
    %s135 = sphi 0, %s135
    %s137 = sphi 0, %s135
    %s138 = sphi 0, %s137
    %s152 = sphi 0, %s138
    %s156 = sphi 0, %s156
    %s158 = sphi 0, %s156
    %s159 = sphi 0, %s158
    %s173 = sphi 0, %s159
    %s177 = sphi 0, %s177
    %s179 = sphi 0, %s177
    %s180 = sphi 0, %s179
    %s194 = sphi 0, %s180
    %s198 = sphi 0, %s198
    %s200 = sphi 0, %s198
    %s201 = sphi 0, %s200
    %s215 = sphi 0, %s201
    %s219 = sphi 0, %s219
    %s221 = sphi 0, %s219
    %s222 = sphi 0, %s221
    %s236 = sphi 0, %s222
    %s240 = sphi 0, %s240
    %s242 = sphi 0, %s240
    %s243 = sphi 0, %s242
    %s257 = sphi 0, %s243
    %s263 = sphi 0, %s265
    %s266 = sphi 0, %s263
    %s267 = sphi 0, %s266
    %s283 = sphi 0, %s267
  $region4: #{cnn_encoder_forward.1} parent=0 // loop_header_branch
    %20 = sbr.rel (%p18) target = $region8
  $region5: #{cnn_encoder_forward.1} parent=0 // loop_body
    %s22 = ssub.s32 %s17, 1
    %s23 = ssub.s32 %s17, 2
    %s24 = sadd.s32 %s17, 1
    %s25 = ssub.s32 %s17, %s24
    %p26 = scmp.eq.s32.totalorder %s25, 0
    %s28 = sadd.s32 %s27, 1
    %s29 = scalar_select %p26, %s27, %s28
    %p32 = pneg %p26
    %p33 = scmp.eq.s32.totalorder %s17, 1
    %p34 = por %p32, %p33
    %p35 = scmp.ne.s32.totalorder %s27, %s30
    %p36 = scmp.eq.s32.totalorder %s17, 0
    %p37 = por %p35, %p36
    %p38 = scmp.ne.s32.totalorder %s27, %s30
    %p39 = scmp.eq.s32.totalorder %s22, 1
    %p40 = por %p38, %p39
    %p41 = scmp.ne.s32.totalorder %s30, %s31
    %p42 = scmp.eq.s32.totalorder %s22, 0
    %p43 = por %p41, %p42
    %p44 = scmp.ne.s32.totalorder %s30, %s31
    %p45 = scmp.eq.s32.totalorder %s23, 1
    %p46 = por %p44, %p45
    %p48 = scmp.ne.s32.totalorder %s31, %s47
    %p49 = scmp.eq.s32.totalorder %s23, 0
    %p50 = por %p48, %p49
    %s52 = sadd.s32 %s51, 1
    %p55 = scmp.eq.s32.totalorder %s17, 1
    %p56 = scmp.ne.s32.totalorder %s51, %s53
    %p57 = scmp.eq.s32.totalorder %s17, 0
    %p58 = por %p56, %p57
    %p59 = scmp.ne.s32.totalorder %s51, %s53
    %p60 = scmp.eq.s32.totalorder %s22, 1
    %p61 = por %p59, %p60
    %p62 = scmp.ne.s32.totalorder %s53, %s54
    %p63 = scmp.eq.s32.totalorder %s22, 0
    %p64 = por %p62, %p63
    %p65 = scmp.ne.s32.totalorder %s53, %s54
    %p66 = scmp.eq.s32.totalorder %s23, 1
    %p67 = por %p65, %p66
    %p69 = scmp.ne.s32.totalorder %s54, %s68
    %p70 = scmp.eq.s32.totalorder %s23, 0
    %p71 = por %p69, %p70
    %s73 = sadd.s32 %s72, 1
    %p76 = scmp.eq.s32.totalorder %s17, 1
    %p77 = scmp.ne.s32.totalorder %s72, %s74
    %p78 = scmp.eq.s32.totalorder %s17, 0
    %p79 = por %p77, %p78
    %p80 = scmp.ne.s32.totalorder %s72, %s74
    %p81 = scmp.eq.s32.totalorder %s22, 1
    %p82 = por %p80, %p81
    %p83 = scmp.ne.s32.totalorder %s74, %s75
    %p84 = scmp.eq.s32.totalorder %s22, 0
    %p85 = por %p83, %p84
    %p86 = scmp.ne.s32.totalorder %s74, %s75
    %p87 = scmp.eq.s32.totalorder %s23, 1
    %p88 = por %p86, %p87
    %p90 = scmp.ne.s32.totalorder %s75, %s89
    %p91 = scmp.eq.s32.totalorder %s23, 0
    %p92 = por %p90, %p91
    %s94 = sadd.s32 %s93, 1
    %p97 = scmp.eq.s32.totalorder %s17, 1
    %p98 = scmp.ne.s32.totalorder %s93, %s95
    %p99 = scmp.eq.s32.totalorder %s17, 0
    %p100 = por %p98, %p99
    %p101 = scmp.ne.s32.totalorder %s93, %s95
    %p102 = scmp.eq.s32.totalorder %s22, 1
    %p103 = por %p101, %p102
    %p104 = scmp.ne.s32.totalorder %s95, %s96
    %p105 = scmp.eq.s32.totalorder %s22, 0
    %p106 = por %p104, %p105
    %p107 = scmp.ne.s32.totalorder %s95, %s96
    %p108 = scmp.eq.s32.totalorder %s23, 1
    %p109 = por %p107, %p108
    %p111 = scmp.ne.s32.totalorder %s96, %s110
    %p112 = scmp.eq.s32.totalorder %s23, 0
    %p113 = por %p111, %p112
    %s115 = sadd.s32 %s114, 1
    %p118 = scmp.eq.s32.totalorder %s17, 1
    %p119 = scmp.ne.s32.totalorder %s114, %s116
    %p120 = scmp.eq.s32.totalorder %s17, 0
    %p121 = por %p119, %p120
    %p122 = scmp.ne.s32.totalorder %s114, %s116
    %p123 = scmp.eq.s32.totalorder %s22, 1
    %p124 = por %p122, %p123
    %p125 = scmp.ne.s32.totalorder %s116, %s117
    %p126 = scmp.eq.s32.totalorder %s22, 0
    %p127 = por %p125, %p126
    %p128 = scmp.ne.s32.totalorder %s116, %s117
    %p129 = scmp.eq.s32.totalorder %s23, 1
    %p130 = por %p128, %p129
    %p132 = scmp.ne.s32.totalorder %s117, %s131
    %p133 = scmp.eq.s32.totalorder %s23, 0
    %p134 = por %p132, %p133
    %s136 = sadd.s32 %s135, 1
    %p139 = scmp.eq.s32.totalorder %s17, 1
    %p140 = scmp.ne.s32.totalorder %s135, %s137
    %p141 = scmp.eq.s32.totalorder %s17, 0
    %p142 = por %p140, %p141
    %p143 = scmp.ne.s32.totalorder %s135, %s137
    %p144 = scmp.eq.s32.totalorder %s22, 1
    %p145 = por %p143, %p144
    %p146 = scmp.ne.s32.totalorder %s137, %s138
    %p147 = scmp.eq.s32.totalorder %s22, 0
    %p148 = por %p146, %p147
    %p149 = scmp.ne.s32.totalorder %s137, %s138
    %p150 = scmp.eq.s32.totalorder %s23, 1
    %p151 = por %p149, %p150
    %p153 = scmp.ne.s32.totalorder %s138, %s152
    %p154 = scmp.eq.s32.totalorder %s23, 0
    %p155 = por %p153, %p154
    %s157 = sadd.s32 %s156, 1
    %p160 = scmp.eq.s32.totalorder %s17, 1
    %p161 = scmp.ne.s32.totalorder %s156, %s158
    %p162 = scmp.eq.s32.totalorder %s17, 0
    %p163 = por %p161, %p162
    %p164 = scmp.ne.s32.totalorder %s156, %s158
    %p165 = scmp.eq.s32.totalorder %s22, 1
    %p166 = por %p164, %p165
    %p167 = scmp.ne.s32.totalorder %s158, %s159
    %p168 = scmp.eq.s32.totalorder %s22, 0
    %p169 = por %p167, %p168
    %p170 = scmp.ne.s32.totalorder %s158, %s159
    %p171 = scmp.eq.s32.totalorder %s23, 1
    %p172 = por %p170, %p171
    %p174 = scmp.ne.s32.totalorder %s159, %s173
    %p175 = scmp.eq.s32.totalorder %s23, 0
    %p176 = por %p174, %p175
    %s178 = sadd.s32 %s177, 1
    %p181 = scmp.eq.s32.totalorder %s17, 1
    %p182 = scmp.ne.s32.totalorder %s177, %s179
    %p183 = scmp.eq.s32.totalorder %s17, 0
    %p184 = por %p182, %p183
    %p185 = scmp.ne.s32.totalorder %s177, %s179
    %p186 = scmp.eq.s32.totalorder %s22, 1
    %p187 = por %p185, %p186
    %p188 = scmp.ne.s32.totalorder %s179, %s180
    %p189 = scmp.eq.s32.totalorder %s22, 0
    %p190 = por %p188, %p189
    %p191 = scmp.ne.s32.totalorder %s179, %s180
    %p192 = scmp.eq.s32.totalorder %s23, 1
    %p193 = por %p191, %p192
    %p195 = scmp.ne.s32.totalorder %s180, %s194
    %p196 = scmp.eq.s32.totalorder %s23, 0
    %p197 = por %p195, %p196
    %s199 = sadd.s32 %s198, 1
    %p202 = scmp.eq.s32.totalorder %s17, 1
    %p203 = scmp.ne.s32.totalorder %s198, %s200
    %p204 = scmp.eq.s32.totalorder %s17, 0
    %p205 = por %p203, %p204
    %p206 = scmp.ne.s32.totalorder %s198, %s200
    %p207 = scmp.eq.s32.totalorder %s22, 1
    %p208 = por %p206, %p207
    %p209 = scmp.ne.s32.totalorder %s200, %s201
    %p210 = scmp.eq.s32.totalorder %s22, 0
    %p211 = por %p209, %p210
    %p212 = scmp.ne.s32.totalorder %s200, %s201
    %p213 = scmp.eq.s32.totalorder %s23, 1
    %p214 = por %p212, %p213
    %p216 = scmp.ne.s32.totalorder %s201, %s215
    %p217 = scmp.eq.s32.totalorder %s23, 0
    %p218 = por %p216, %p217
    %s220 = sadd.s32 %s219, 1
    %p223 = scmp.eq.s32.totalorder %s17, 1
    %p224 = scmp.ne.s32.totalorder %s219, %s221
    %p225 = scmp.eq.s32.totalorder %s17, 0
    %p226 = por %p224, %p225
    %p227 = scmp.ne.s32.totalorder %s219, %s221
    %p228 = scmp.eq.s32.totalorder %s22, 1
    %p229 = por %p227, %p228
    %p230 = scmp.ne.s32.totalorder %s221, %s222
    %p231 = scmp.eq.s32.totalorder %s22, 0
    %p232 = por %p230, %p231
    %p233 = scmp.ne.s32.totalorder %s221, %s222
    %p234 = scmp.eq.s32.totalorder %s23, 1
    %p235 = por %p233, %p234
    %p237 = scmp.ne.s32.totalorder %s222, %s236
    %p238 = scmp.eq.s32.totalorder %s23, 0
    %p239 = por %p237, %p238
    %s241 = sadd.s32 %s240, 1
    %p244 = scmp.eq.s32.totalorder %s17, 1
    %p245 = scmp.ne.s32.totalorder %s240, %s242
    %p246 = scmp.eq.s32.totalorder %s17, 0
    %p247 = por %p245, %p246
    %p248 = scmp.ne.s32.totalorder %s240, %s242
    %p249 = scmp.eq.s32.totalorder %s22, 1
    %p250 = por %p248, %p249
    %p251 = scmp.ne.s32.totalorder %s242, %s243
    %p252 = scmp.eq.s32.totalorder %s22, 0
    %p253 = por %p251, %p252
    %p254 = scmp.ne.s32.totalorder %s242, %s243
    %p255 = scmp.eq.s32.totalorder %s23, 1
    %p256 = por %p254, %p255
    %p258 = scmp.ne.s32.totalorder %s243, %s257
    %p259 = scmp.eq.s32.totalorder %s23, 0
    %p260 = por %p258, %p259
    %s261 = ssub.s32 %s17, %s24
    %p262 = scmp.eq.s32.totalorder %s261, 0
    %s264 = sadd.s32 %s263, 1
    %s265 = scalar_select %p262, %s263, %s264
    %p268 = pneg %p262
    %p269 = scmp.eq.s32.totalorder %s17, 1
    %p270 = por %p268, %p269
    %p271 = scmp.ne.s32.totalorder %s263, %s266
    %p272 = scmp.eq.s32.totalorder %s17, 0
    %p273 = por %p271, %p272
    %p274 = scmp.ne.s32.totalorder %s263, %s266
    %p275 = scmp.eq.s32.totalorder %s22, 1
    %p276 = por %p274, %p275
    %p277 = scmp.ne.s32.totalorder %s266, %s267
    %p278 = scmp.eq.s32.totalorder %s22, 0
    %p279 = por %p277, %p278
    %p280 = scmp.ne.s32.totalorder %s266, %s267
    %p281 = scmp.eq.s32.totalorder %s23, 1
    %p282 = por %p280, %p281
    %p284 = scmp.ne.s32.totalorder %s267, %s283
    %p285 = scmp.eq.s32.totalorder %s23, 0
    %p286 = por %p284, %p285
    %p287 = scmp.le.s32.totalorder 1, %s17
    %p288 = scmp.lt.s32.totalorder %s17, 3
    %p289 = pnand %p287, %p288
    %p290 = pneg %p289
    // Predicated region
    $region9: #{cnn_encoder_forward.1} parent=5 // pred_check
      _
    $region10: #{cnn_encoder_forward.1} parent=5 // pred_check_branch
      %292 = sbr.rel (%p289) target = $region12
    $region11: #{cnn_encoder_forward.1} parent=5 // pred_region
      %s293 = ssub.s32 %s17, 1
      // Predicated region
      $region13: #{cnn_encoder_forward.1} parent=11 // pred_check
        %p294 = pneg %p64
      $region14: #{cnn_encoder_forward.1} parent=11 // pred_check_branch
        %296 = sbr.rel (%p294) target = $region16
      $region15: #{cnn_encoder_forward.1} parent=11 // pred_region
        _
      $region16: #{cnn_encoder_forward.1} parent=11 // pred_fallthru
        _
      // Predicated region
      $region17: #{cnn_encoder_forward.1} parent=11 // pred_check
        %p297 = pneg %p85
      $region18: #{cnn_encoder_forward.1} parent=11 // pred_check_branch
        %299 = sbr.rel (%p297) target = $region20
      $region19: #{cnn_encoder_forward.1} parent=11 // pred_region
        _
      $region20: #{cnn_encoder_forward.1} parent=11 // pred_fallthru
        _
      // Predicated region
      $region21: #{cnn_encoder_forward.1} parent=11 // pred_check
        %p300 = pneg %p106
      $region22: #{cnn_encoder_forward.1} parent=11 // pred_check_branch
        %302 = sbr.rel (%p300) target = $region24
      $region23: #{cnn_encoder_forward.1} parent=11 // pred_region
        _
      $region24: #{cnn_encoder_forward.1} parent=11 // pred_fallthru
        _
      // Predicated region
      $region25: #{cnn_encoder_forward.1} parent=11 // pred_check
        %p303 = pneg %p127
      $region26: #{cnn_encoder_forward.1} parent=11 // pred_check_branch
        %305 = sbr.rel (%p303) target = $region28
      $region27: #{cnn_encoder_forward.1} parent=11 // pred_region
        _
      $region28: #{cnn_encoder_forward.1} parent=11 // pred_fallthru
        _
      // Predicated region
      $region29: #{cnn_encoder_forward.1} parent=11 // pred_check
        %p306 = pneg %p148
      $region30: #{cnn_encoder_forward.1} parent=11 // pred_check_branch
        %308 = sbr.rel (%p306) target = $region32
      $region31: #{cnn_encoder_forward.1} parent=11 // pred_region
        _
      $region32: #{cnn_encoder_forward.1} parent=11 // pred_fallthru
        _
      // Predicated region
      $region33: #{cnn_encoder_forward.1} parent=11 // pred_check
        %p309 = pneg %p169
      $region34: #{cnn_encoder_forward.1} parent=11 // pred_check_branch
        %311 = sbr.rel (%p309) target = $region36
      $region35: #{cnn_encoder_forward.1} parent=11 // pred_region
        _
      $region36: #{cnn_encoder_forward.1} parent=11 // pred_fallthru
        _
      // Predicated region
      $region37: #{cnn_encoder_forward.1} parent=11 // pred_check
        %p312 = pneg %p190
      $region38: #{cnn_encoder_forward.1} parent=11 // pred_check_branch
        %314 = sbr.rel (%p312) target = $region40
      $region39: #{cnn_encoder_forward.1} parent=11 // pred_region
        _
      $region40: #{cnn_encoder_forward.1} parent=11 // pred_fallthru
        _
      // Predicated region
      $region41: #{cnn_encoder_forward.1} parent=11 // pred_check
        %p315 = pneg %p211
      $region42: #{cnn_encoder_forward.1} parent=11 // pred_check_branch
        %317 = sbr.rel (%p315) target = $region44
      $region43: #{cnn_encoder_forward.1} parent=11 // pred_region
        _
      $region44: #{cnn_encoder_forward.1} parent=11 // pred_fallthru
        _
      // Predicated region
      $region45: #{cnn_encoder_forward.1} parent=11 // pred_check
        %p318 = pneg %p232
      $region46: #{cnn_encoder_forward.1} parent=11 // pred_check_branch
        %320 = sbr.rel (%p318) target = $region48
      $region47: #{cnn_encoder_forward.1} parent=11 // pred_region
        _
      $region48: #{cnn_encoder_forward.1} parent=11 // pred_fallthru
        _
      // Predicated region
      $region49: #{cnn_encoder_forward.1} parent=11 // pred_check
        %p321 = pneg %p253
      $region50: #{cnn_encoder_forward.1} parent=11 // pred_check_branch
        %323 = sbr.rel (%p321) target = $region52
      $region51: #{cnn_encoder_forward.1} parent=11 // pred_region
        _
      $region52: #{cnn_encoder_forward.1} parent=11 // pred_fallthru
        _
    $region12: #{cnn_encoder_forward.1} parent=5 // pred_fallthru
      _
    %p324 = scmp.lt.s32.totalorder %s17, 2
    // Predicated region
    $region53: #{cnn_encoder_forward.1} parent=5 // pred_check
      %p325 = pneg %p324
    $region54: #{cnn_encoder_forward.1} parent=5 // pred_check_branch
      %327 = sbr.rel (%p325) target = $region56
    $region55: #{cnn_encoder_forward.1} parent=5 // pred_region
      // Predicated region
      $region57: #{cnn_encoder_forward.1} parent=55 // pred_check
        %p328 = pneg %p37
      $region58: #{cnn_encoder_forward.1} parent=55 // pred_check_branch
        %330 = sbr.rel (%p328) target = $region60
      $region59: #{cnn_encoder_forward.1} parent=55 // pred_region
        %p331 = scmp.lt.s32.totalorder %s17, 1
        %s332 = scalar_select %p331, %s17, 1
        %s333 = smul.addr %s332, 8
        %s334 = smul.addr %s333, 8
        %s335 = scalar_lea.vmem %s0, %s334
      $region60: #{cnn_encoder_forward.1} parent=55 // pred_fallthru
        _
    $region56: #{cnn_encoder_forward.1} parent=5 // pred_fallthru
      _
    %p336 = scmp.le.s32.totalorder 1, %s17
    %p337 = scmp.lt.s32.totalorder %s17, 3
    %p338 = pnand %p336, %p337
    %p339 = pneg %p338
    // Predicated region
    $region61: #{cnn_encoder_forward.1} parent=5 // pred_check
      _
    $region62: #{cnn_encoder_forward.1} parent=5 // pred_check_branch
      %341 = sbr.rel (%p338) target = $region64
    $region63: #{cnn_encoder_forward.1} parent=5 // pred_region
      %s342 = ssub.s32 %s17, 1
      %p343 = scmp.lt.s32.totalorder %s22, 1
      %s344 = scalar_select %p343, %s22, 1
      %s345 = smul.addr %s344, 8
      %s346 = smul.addr %s345, 8
      %s347 = scalar_lea.vmem %s0, %s346
      %p348 = pneg %p43
      %p349 = pneg %p40
      %p350 = pneg %p64
      %p351 = pneg %p61
      %p352 = pneg %p85
      %p353 = pneg %p82
      %p354 = pneg %p106
      %p355 = pneg %p103
      %p356 = pneg %p127
      %p357 = pneg %p124
      %p358 = pneg %p148
      %p359 = pneg %p145
      %p360 = pneg %p169
      %p361 = pneg %p166
      %p362 = pneg %p190
      %p363 = pneg %p187
      %p364 = pneg %p211
      %p365 = pneg %p208
      %p366 = pneg %p232
      %p367 = pneg %p229
      %p368 = pneg %p253
      %p369 = pneg %p250
      %p370 = pneg %p279
      %p371 = pneg %p276
      %p372 = scmp.lt.s32.totalorder %s22, 1
      %s373 = scalar_select %p372, %s22, 1
      %s374 = smul.addr %s373, 8
      %s375 = smul.addr %s374, 2
      %s376 = scalar_lea.vmem %s11, %s375
      %p377 = scmp.lt.s32.totalorder %s22, 1
      %s378 = scalar_select %p377, %s22, 1
      %s379 = smul.addr %s378, 8
      %s380 = smul.addr %s379, 8
      %s381 = scalar_lea.vmem %s0, %s380
      %p382 = scmp.lt.s32.totalorder %s22, 1
      %s383 = scalar_select %p382, %s22, 1
      %s384 = smul.addr %s383, 8
      %s385 = smul.addr %s384, 2
      %s386 = scalar_lea.vmem %s11, %s385
      %v387 = vld [vmem:[%s1] sm:$0xff]
      %388 = vst [vmem:[#allocation2] sm:$0xff] 0.0
      %389 = vst [vmem:[#allocation2 + $0x8] sm:$0xff] 0.0
      %390 = vst [vmem:[#allocation2 + $0x10] sm:$0xff] 0.0
      %391 = vst [vmem:[#allocation2 + $0x18] sm:$0xff] 0.0
      %392 = vst [vmem:[#allocation2 + $0x20] sm:$0xff] 0.0
      %393 = vst [vmem:[#allocation2 + $0x28] sm:$0xff] 0.0
      %394 = vst [vmem:[#allocation2 + $0x30] sm:$0xff] 0.0
      %vm395 = vcmask 539648
      %396 = vst.msk [vmem:[#allocation2 + $0x38] sm:$0xff] %vm395, 0.0
      %v397 = vld [vmem:[%s381] sm:$0xff]
      %v398 = vld [vmem:[%s381 + $0x8] sm:$0xff]
      %v399 = vld [vmem:[%s381 + $0x10] sm:$0xff]
      %v400 = vld [vmem:[%s381 + $0x18] sm:$0xff]
      %v401 = vld [vmem:[%s381 + $0x20] sm:$0xff]
      %v402 = vld [vmem:[%s381 + $0x28] sm:$0xff]
      %v403 = vld [vmem:[%s381 + $0x30] sm:$0xff]
      %v404 = vld [vmem:[%s381 + $0x38] sm:$0xff]
      %413 = vrot.lane.b32.xlu0 %v397, 31
      %v414 = vpop.permute.xlu0 %413
      %415 = vrot.lane.b32.xlu0 %v398, 31
      %v416 = vpop.permute.xlu0 %415
      %417 = vrot.lane.b32.xlu0 %v399, 31
      %v418 = vpop.permute.xlu0 %417
      %419 = vrot.lane.b32.xlu0 %v400, 31
      %v420 = vpop.permute.xlu0 %419
      %421 = vrot.lane.b32.xlu0 %v401, 31
      %v422 = vpop.permute.xlu0 %421
      %423 = vrot.lane.b32.xlu0 %v402, 31
      %v424 = vpop.permute.xlu0 %423
      %425 = vrot.lane.b32.xlu0 %v403, 31
      %v426 = vpop.permute.xlu0 %425
      %427 = vrot.lane.b32.xlu0 %v404, 31
      %v428 = vpop.permute.xlu0 %427
      %vm429 = vcmask 252928
      %v430 = vsel %vm429, %v414, %v416
      %v431 = vsel %vm429, %v416, %v418
      %v432 = vsel %vm429, %v418, %v420
      %v433 = vsel %vm429, %v420, %v422
      %v434 = vsel %vm429, %v422, %v424
      %v435 = vsel %vm429, %v424, %v426
      %v436 = vsel %vm429, %v426, %v428
      %vm445 = vcmask 1047800
      %446 = vst.msk [vmem:[#allocation2] sm:$0xff] %vm445, %v414
      %447 = vst [vmem:[#allocation2 + $0x8] sm:$0xff] %v430
      %448 = vst [vmem:[#allocation2 + $0x10] sm:$0xff] %v431
      %449 = vst [vmem:[#allocation2 + $0x18] sm:$0xff] %v432
      %450 = vst [vmem:[#allocation2 + $0x20] sm:$0xff] %v433
      %451 = vst [vmem:[#allocation2 + $0x28] sm:$0xff] %v434
      %452 = vst [vmem:[#allocation2 + $0x30] sm:$0xff] %v435
      %vm453 = vcmask 285696
      %454 = vst.msk [vmem:[#allocation2 + $0x38] sm:$0xff] %vm453, %v436
      %v455 = vld [vmem:[#allocation2] sm:$0xff]
      %v456 = vld [vmem:[#allocation2 + $0x8] sm:$0xff]
      %v457 = vld [vmem:[#allocation2 + $0x10] sm:$0xff]
      %v458 = vld [vmem:[#allocation2 + $0x18] sm:$0xff]
      %v459 = vld [vmem:[#allocation2 + $0x20] sm:$0xff]
      %v460 = vld [vmem:[#allocation2 + $0x28] sm:$0xff]
      %v461 = vld [vmem:[#allocation2 + $0x30] sm:$0xff]
      %v462 = vld [vmem:[#allocation2 + $0x38] sm:$0xff]
      %v463 = vld [vmem:[%s2] sm:$0xff]
      %s464 = scalar_lea.vmem %s2, 8
      %v465 = vld [vmem:[%s464] sm:$0xff]
      %474 = vrot.lane.b32.xlu0 %v455, 127
      %v475 = vpop.permute.xlu0 %474
      %476 = vrot.lane.b32.xlu0 %v456, 127
      %v477 = vpop.permute.xlu0 %476
      %478 = vrot.lane.b32.xlu0 %v457, 127
      %v479 = vpop.permute.xlu0 %478
      %480 = vrot.lane.b32.xlu0 %v458, 127
      %v481 = vpop.permute.xlu0 %480
      %482 = vrot.lane.b32.xlu0 %v459, 127
      %v483 = vpop.permute.xlu0 %482
      %484 = vrot.lane.b32.xlu0 %v460, 127
      %v485 = vpop.permute.xlu0 %484
      %486 = vrot.lane.b32.xlu0 %v461, 127
      %v487 = vpop.permute.xlu0 %486
      %488 = vrot.lane.b32.xlu0 %v462, 127
      %v489 = vpop.permute.xlu0 %488
      %vm490 = vcmask 1039360
      %v491 = vsel %vm490, %v475, %v477
      %v492 = vsel %vm490, %v477, %v479
      %v493 = vsel %vm490, %v479, %v481
      %v494 = vsel %vm490, %v481, %v483
      %v495 = vsel %vm490, %v483, %v485
      %v496 = vsel %vm490, %v485, %v487
      %v497 = vsel %vm490, %v487, %v489
      %vm506 = vcmask 64512
      %v508 = vsel %vm506, %v465, 0
      %510 = vmatpush.msra.mxu0 0.0
      %511 = vmatpush.msra.mxu0 0.0
      %512 = vmatpush.msra.mxu0 0.0
      %513 = vmatpush.msra.mxu0 0.0
      %514 = vmatpush.msra.mxu0 0.0
      %515 = vmatpush.msra.mxu0 0.0
      %516 = vmatpush.msra.mxu0 0.0
      %517 = vmatpush.msra.mxu0 0.0
      %518 = vmatpush.msra.mxu0 0.0
      %519 = vmatpush.msra.mxu0 0.0
      %520 = vmatpush.msra.mxu0 0.0
      %521 = vmatpush.msra.mxu0 0.0
      %522 = vmatpush.msra.mxu0 0.0
      %523 = vmatpush.msra.mxu0 0.0
      %524 = vmatpush.msra.mxu0 0.0
      %525 = vmatpush.msra.mxu0 %v491
      %526 = vmatmul.f32.gmra.mxu0 %v508
      %v527 = vpop.f32.mrf.mxu0
      %v528 = vadd.f32 0.0, %v527
      %529 = vdwg.mxu0
      %530 = vmatpush.msra.mxu0 0.0
      %531 = vmatpush.msra.mxu0 0.0
      %532 = vmatpush.msra.mxu0 0.0
      %533 = vmatpush.msra.mxu0 0.0
      %534 = vmatpush.msra.mxu0 0.0
      %535 = vmatpush.msra.mxu0 0.0
      %536 = vmatpush.msra.mxu0 0.0
      %537 = vmatpush.msra.mxu0 0.0
      %538 = vmatpush.msra.mxu0 0.0
      %539 = vmatpush.msra.mxu0 0.0
      %540 = vmatpush.msra.mxu0 0.0
      %541 = vmatpush.msra.mxu0 0.0
      %542 = vmatpush.msra.mxu0 0.0
      %543 = vmatpush.msra.mxu0 0.0
      %544 = vmatpush.msra.mxu0 0.0
      %545 = vmatpush.msra.mxu0 %v492
      %546 = vmatmul.f32.gmra.mxu0 %v508
      %v547 = vpop.f32.mrf.mxu0
      %v548 = vadd.f32 0.0, %v547
      %549 = vdwg.mxu0
      %550 = vmatpush.msra.mxu0 0.0
      %551 = vmatpush.msra.mxu0 0.0
      %552 = vmatpush.msra.mxu0 0.0
      %553 = vmatpush.msra.mxu0 0.0
      %554 = vmatpush.msra.mxu0 0.0
      %555 = vmatpush.msra.mxu0 0.0
      %556 = vmatpush.msra.mxu0 0.0
      %557 = vmatpush.msra.mxu0 0.0
      %558 = vmatpush.msra.mxu0 0.0
      %559 = vmatpush.msra.mxu0 0.0
      %560 = vmatpush.msra.mxu0 0.0
      %561 = vmatpush.msra.mxu0 0.0
      %562 = vmatpush.msra.mxu0 0.0
      %563 = vmatpush.msra.mxu0 0.0
      %564 = vmatpush.msra.mxu0 0.0
      %565 = vmatpush.msra.mxu0 %v493
      %566 = vmatmul.f32.gmra.mxu0 %v508
      %v567 = vpop.f32.mrf.mxu0
      %v568 = vadd.f32 0.0, %v567
      %569 = vdwg.mxu0
      %570 = vmatpush.msra.mxu0 0.0
      %571 = vmatpush.msra.mxu0 0.0
      %572 = vmatpush.msra.mxu0 0.0
      %573 = vmatpush.msra.mxu0 0.0
      %574 = vmatpush.msra.mxu0 0.0
      %575 = vmatpush.msra.mxu0 0.0
      %576 = vmatpush.msra.mxu0 0.0
      %577 = vmatpush.msra.mxu0 0.0
      %578 = vmatpush.msra.mxu0 0.0
      %579 = vmatpush.msra.mxu0 0.0
      %580 = vmatpush.msra.mxu0 0.0
      %581 = vmatpush.msra.mxu0 0.0
      %582 = vmatpush.msra.mxu0 0.0
      %583 = vmatpush.msra.mxu0 0.0
      %584 = vmatpush.msra.mxu0 0.0
      %585 = vmatpush.msra.mxu0 %v494
      %586 = vmatmul.f32.gmra.mxu0 %v508
      %v587 = vpop.f32.mrf.mxu0
      %v588 = vadd.f32 0.0, %v587
      %589 = vdwg.mxu0
      %590 = vmatpush.msra.mxu0 0.0
      %591 = vmatpush.msra.mxu0 0.0
      %592 = vmatpush.msra.mxu0 0.0
      %593 = vmatpush.msra.mxu0 0.0
      %594 = vmatpush.msra.mxu0 0.0
      %595 = vmatpush.msra.mxu0 0.0
      %596 = vmatpush.msra.mxu0 0.0
      %597 = vmatpush.msra.mxu0 0.0
      %598 = vmatpush.msra.mxu0 0.0
      %599 = vmatpush.msra.mxu0 0.0
      %600 = vmatpush.msra.mxu0 0.0
      %601 = vmatpush.msra.mxu0 0.0
      %602 = vmatpush.msra.mxu0 0.0
      %603 = vmatpush.msra.mxu0 0.0
      %604 = vmatpush.msra.mxu0 0.0
      %605 = vmatpush.msra.mxu0 %v495
      %606 = vmatmul.f32.gmra.mxu0 %v508
      %v607 = vpop.f32.mrf.mxu0
      %v608 = vadd.f32 0.0, %v607
      %609 = vdwg.mxu0
      %610 = vmatpush.msra.mxu0 0.0
      %611 = vmatpush.msra.mxu0 0.0
      %612 = vmatpush.msra.mxu0 0.0
      %613 = vmatpush.msra.mxu0 0.0
      %614 = vmatpush.msra.mxu0 0.0
      %615 = vmatpush.msra.mxu0 0.0
      %616 = vmatpush.msra.mxu0 0.0
      %617 = vmatpush.msra.mxu0 0.0
      %618 = vmatpush.msra.mxu0 0.0
      %619 = vmatpush.msra.mxu0 0.0
      %620 = vmatpush.msra.mxu0 0.0
      %621 = vmatpush.msra.mxu0 0.0
      %622 = vmatpush.msra.mxu0 0.0
      %623 = vmatpush.msra.mxu0 0.0
      %624 = vmatpush.msra.mxu0 0.0
      %625 = vmatpush.msra.mxu0 %v496
      %626 = vmatmul.f32.gmra.mxu0 %v508
      %v627 = vpop.f32.mrf.mxu0
      %v628 = vadd.f32 0.0, %v627
      %629 = vdwg.mxu0
      %630 = vmatpush.msra.mxu0 0.0
      %631 = vmatpush.msra.mxu0 0.0
      %632 = vmatpush.msra.mxu0 0.0
      %633 = vmatpush.msra.mxu0 0.0
      %634 = vmatpush.msra.mxu0 0.0
      %635 = vmatpush.msra.mxu0 0.0
      %636 = vmatpush.msra.mxu0 0.0
      %637 = vmatpush.msra.mxu0 0.0
      %638 = vmatpush.msra.mxu0 0.0
      %639 = vmatpush.msra.mxu0 0.0
      %640 = vmatpush.msra.mxu0 0.0
      %641 = vmatpush.msra.mxu0 0.0
      %642 = vmatpush.msra.mxu0 0.0
      %643 = vmatpush.msra.mxu0 0.0
      %644 = vmatpush.msra.mxu0 0.0
      %645 = vmatpush.msra.mxu0 %v497
      %646 = vmatmul.f32.gmra.mxu0 %v508
      %v647 = vpop.f32.mrf.mxu0
      %v648 = vadd.f32 0.0, %v647
      %649 = vdwg.mxu0
      %650 = vmatpush.msra.mxu0 0.0
      %651 = vmatpush.msra.mxu0 0.0
      %652 = vmatpush.msra.mxu0 0.0
      %653 = vmatpush.msra.mxu0 0.0
      %654 = vmatpush.msra.mxu0 0.0
      %655 = vmatpush.msra.mxu0 0.0
      %656 = vmatpush.msra.mxu0 0.0
      %657 = vmatpush.msra.mxu0 0.0
      %658 = vmatpush.msra.mxu0 0.0
      %659 = vmatpush.msra.mxu0 0.0
      %660 = vmatpush.msra.mxu0 0.0
      %661 = vmatpush.msra.mxu0 0.0
      %662 = vmatpush.msra.mxu0 0.0
      %663 = vmatpush.msra.mxu0 0.0
      %664 = vmatpush.msra.mxu0 0.0
      %665 = vmatpush.msra.mxu0 %v489
      %666 = vmatmul.f32.gmra.mxu0 %v508
      %v667 = vpop.f32.mrf.mxu0
      %v668 = vadd.f32 0.0, %v667
      %669 = vdwg.mxu0
      %v671 = vsel %vm506, %v463, 0
      %673 = vmatpush.msra.mxu0 0.0
      %674 = vmatpush.msra.mxu0 0.0
      %675 = vmatpush.msra.mxu0 0.0
      %676 = vmatpush.msra.mxu0 0.0
      %677 = vmatpush.msra.mxu0 0.0
      %678 = vmatpush.msra.mxu0 0.0
      %679 = vmatpush.msra.mxu0 0.0
      %680 = vmatpush.msra.mxu0 0.0
      %681 = vmatpush.msra.mxu0 0.0
      %682 = vmatpush.msra.mxu0 0.0
      %683 = vmatpush.msra.mxu0 0.0
      %684 = vmatpush.msra.mxu0 0.0
      %685 = vmatpush.msra.mxu0 0.0
      %686 = vmatpush.msra.mxu0 0.0
      %687 = vmatpush.msra.mxu0 0.0
      %688 = vmatpush.msra.mxu0 %v455
      %689 = vmatmul.f32.gmra.mxu0 %v671
      %v690 = vpop.f32.mrf.mxu0
      %v691 = vadd.f32 %v528, %v690
      %692 = vdwg.mxu0
      %693 = vmatpush.msra.mxu0 0.0
      %694 = vmatpush.msra.mxu0 0.0
      %695 = vmatpush.msra.mxu0 0.0
      %696 = vmatpush.msra.mxu0 0.0
      %697 = vmatpush.msra.mxu0 0.0
      %698 = vmatpush.msra.mxu0 0.0
      %699 = vmatpush.msra.mxu0 0.0
      %700 = vmatpush.msra.mxu0 0.0
      %701 = vmatpush.msra.mxu0 0.0
      %702 = vmatpush.msra.mxu0 0.0
      %703 = vmatpush.msra.mxu0 0.0
      %704 = vmatpush.msra.mxu0 0.0
      %705 = vmatpush.msra.mxu0 0.0
      %706 = vmatpush.msra.mxu0 0.0
      %707 = vmatpush.msra.mxu0 0.0
      %708 = vmatpush.msra.mxu0 %v456
      %709 = vmatmul.f32.gmra.mxu0 %v671
      %v710 = vpop.f32.mrf.mxu0
      %v711 = vadd.f32 %v548, %v710
      %712 = vdwg.mxu0
      %713 = vmatpush.msra.mxu0 0.0
      %714 = vmatpush.msra.mxu0 0.0
      %715 = vmatpush.msra.mxu0 0.0
      %716 = vmatpush.msra.mxu0 0.0
      %717 = vmatpush.msra.mxu0 0.0
      %718 = vmatpush.msra.mxu0 0.0
      %719 = vmatpush.msra.mxu0 0.0
      %720 = vmatpush.msra.mxu0 0.0
      %721 = vmatpush.msra.mxu0 0.0
      %722 = vmatpush.msra.mxu0 0.0
      %723 = vmatpush.msra.mxu0 0.0
      %724 = vmatpush.msra.mxu0 0.0
      %725 = vmatpush.msra.mxu0 0.0
      %726 = vmatpush.msra.mxu0 0.0
      %727 = vmatpush.msra.mxu0 0.0
      %728 = vmatpush.msra.mxu0 %v457
      %729 = vmatmul.f32.gmra.mxu0 %v671
      %v730 = vpop.f32.mrf.mxu0
      %v731 = vadd.f32 %v568, %v730
      %732 = vdwg.mxu0
      %733 = vmatpush.msra.mxu0 0.0
      %734 = vmatpush.msra.mxu0 0.0
      %735 = vmatpush.msra.mxu0 0.0
      %736 = vmatpush.msra.mxu0 0.0
      %737 = vmatpush.msra.mxu0 0.0
      %738 = vmatpush.msra.mxu0 0.0
      %739 = vmatpush.msra.mxu0 0.0
      %740 = vmatpush.msra.mxu0 0.0
      %741 = vmatpush.msra.mxu0 0.0
      %742 = vmatpush.msra.mxu0 0.0
      %743 = vmatpush.msra.mxu0 0.0
      %744 = vmatpush.msra.mxu0 0.0
      %745 = vmatpush.msra.mxu0 0.0
      %746 = vmatpush.msra.mxu0 0.0
      %747 = vmatpush.msra.mxu0 0.0
      %748 = vmatpush.msra.mxu0 %v458
      %749 = vmatmul.f32.gmra.mxu0 %v671
      %v750 = vpop.f32.mrf.mxu0
      %v751 = vadd.f32 %v588, %v750
      %752 = vdwg.mxu0
      %753 = vmatpush.msra.mxu0 0.0
      %754 = vmatpush.msra.mxu0 0.0
      %755 = vmatpush.msra.mxu0 0.0
      %756 = vmatpush.msra.mxu0 0.0
      %757 = vmatpush.msra.mxu0 0.0
      %758 = vmatpush.msra.mxu0 0.0
      %759 = vmatpush.msra.mxu0 0.0
      %760 = vmatpush.msra.mxu0 0.0
      %761 = vmatpush.msra.mxu0 0.0
      %762 = vmatpush.msra.mxu0 0.0
      %763 = vmatpush.msra.mxu0 0.0
      %764 = vmatpush.msra.mxu0 0.0
      %765 = vmatpush.msra.mxu0 0.0
      %766 = vmatpush.msra.mxu0 0.0
      %767 = vmatpush.msra.mxu0 0.0
      %768 = vmatpush.msra.mxu0 %v459
      %769 = vmatmul.f32.gmra.mxu0 %v671
      %v770 = vpop.f32.mrf.mxu0
      %v771 = vadd.f32 %v608, %v770
      %772 = vdwg.mxu0
      %773 = vmatpush.msra.mxu0 0.0
      %774 = vmatpush.msra.mxu0 0.0
      %775 = vmatpush.msra.mxu0 0.0
      %776 = vmatpush.msra.mxu0 0.0
      %777 = vmatpush.msra.mxu0 0.0
      %778 = vmatpush.msra.mxu0 0.0
      %779 = vmatpush.msra.mxu0 0.0
      %780 = vmatpush.msra.mxu0 0.0
      %781 = vmatpush.msra.mxu0 0.0
      %782 = vmatpush.msra.mxu0 0.0
      %783 = vmatpush.msra.mxu0 0.0
      %784 = vmatpush.msra.mxu0 0.0
      %785 = vmatpush.msra.mxu0 0.0
      %786 = vmatpush.msra.mxu0 0.0
      %787 = vmatpush.msra.mxu0 0.0
      %788 = vmatpush.msra.mxu0 %v460
      %789 = vmatmul.f32.gmra.mxu0 %v671
      %v790 = vpop.f32.mrf.mxu0
      %v791 = vadd.f32 %v628, %v790
      %792 = vdwg.mxu0
      %793 = vmatpush.msra.mxu0 0.0
      %794 = vmatpush.msra.mxu0 0.0
      %795 = vmatpush.msra.mxu0 0.0
      %796 = vmatpush.msra.mxu0 0.0
      %797 = vmatpush.msra.mxu0 0.0
      %798 = vmatpush.msra.mxu0 0.0
      %799 = vmatpush.msra.mxu0 0.0
      %800 = vmatpush.msra.mxu0 0.0
      %801 = vmatpush.msra.mxu0 0.0
      %802 = vmatpush.msra.mxu0 0.0
      %803 = vmatpush.msra.mxu0 0.0
      %804 = vmatpush.msra.mxu0 0.0
      %805 = vmatpush.msra.mxu0 0.0
      %806 = vmatpush.msra.mxu0 0.0
      %807 = vmatpush.msra.mxu0 0.0
      %808 = vmatpush.msra.mxu0 %v461
      %809 = vmatmul.f32.gmra.mxu0 %v671
      %v810 = vpop.f32.mrf.mxu0
      %v811 = vadd.f32 %v648, %v810
      %812 = vdwg.mxu0
      %813 = vmatpush.msra.mxu0 0.0
      %814 = vmatpush.msra.mxu0 0.0
      %815 = vmatpush.msra.mxu0 0.0
      %816 = vmatpush.msra.mxu0 0.0
      %817 = vmatpush.msra.mxu0 0.0
      %818 = vmatpush.msra.mxu0 0.0
      %819 = vmatpush.msra.mxu0 0.0
      %820 = vmatpush.msra.mxu0 0.0
      %821 = vmatpush.msra.mxu0 0.0
      %822 = vmatpush.msra.mxu0 0.0
      %823 = vmatpush.msra.mxu0 0.0
      %824 = vmatpush.msra.mxu0 0.0
      %825 = vmatpush.msra.mxu0 0.0
      %826 = vmatpush.msra.mxu0 0.0
      %827 = vmatpush.msra.mxu0 0.0
      %828 = vmatpush.msra.mxu0 %v462
      %829 = vmatmul.f32.gmra.mxu0 %v671
      %v830 = vpop.f32.mrf.mxu0
      %v831 = vadd.f32 %v668, %v830
      %832 = vdwg.mxu0
      %s833 = scalar_lea.vmem %s2, 16
      %v834 = vld [vmem:[%s833] sm:$0xff]
      %835 = vrot.lane.b32.xlu0 %v455, 126
      %v836 = vpop.permute.xlu0 %835
      %837 = vrot.lane.b32.xlu0 %v456, 126
      %v838 = vpop.permute.xlu0 %837
      %839 = vrot.lane.b32.xlu0 %v457, 126
      %v840 = vpop.permute.xlu0 %839
      %841 = vrot.lane.b32.xlu0 %v458, 126
      %v842 = vpop.permute.xlu0 %841
      %843 = vrot.lane.b32.xlu0 %v459, 126
      %v844 = vpop.permute.xlu0 %843
      %845 = vrot.lane.b32.xlu0 %v460, 126
      %v846 = vpop.permute.xlu0 %845
      %847 = vrot.lane.b32.xlu0 %v461, 126
      %v848 = vpop.permute.xlu0 %847
      %849 = vrot.lane.b32.xlu0 %v462, 126
      %v850 = vpop.permute.xlu0 %849
      %vm851 = vcmask 1031168
      %v852 = vsel %vm851, %v836, %v838
      %v853 = vsel %vm851, %v838, %v840
      %v854 = vsel %vm851, %v840, %v842
      %v855 = vsel %vm851, %v842, %v844
      %v856 = vsel %vm851, %v844, %v846
      %v857 = vsel %vm851, %v846, %v848
      %v858 = vsel %vm851, %v848, %v850
      %v868 = vsel %vm506, %v834, 0
      %870 = vmatpush.msra.mxu0 0.0
      %871 = vmatpush.msra.mxu0 0.0
      %872 = vmatpush.msra.mxu0 0.0
      %873 = vmatpush.msra.mxu0 0.0
      %874 = vmatpush.msra.mxu0 0.0
      %875 = vmatpush.msra.mxu0 0.0
      %876 = vmatpush.msra.mxu0 0.0
      %877 = vmatpush.msra.mxu0 0.0
      %878 = vmatpush.msra.mxu0 0.0
      %879 = vmatpush.msra.mxu0 0.0
      %880 = vmatpush.msra.mxu0 0.0
      %881 = vmatpush.msra.mxu0 0.0
      %882 = vmatpush.msra.mxu0 0.0
      %883 = vmatpush.msra.mxu0 0.0
      %884 = vmatpush.msra.mxu0 0.0
      %885 = vmatpush.msra.mxu0 %v852
      %886 = vmatmul.f32.gmra.mxu0 %v868
      %v887 = vpop.f32.mrf.mxu0
      %v888 = vadd.f32 0.0, %v887
      %889 = vdwg.mxu0
      %890 = vmatpush.msra.mxu0 0.0
      %891 = vmatpush.msra.mxu0 0.0
      %892 = vmatpush.msra.mxu0 0.0
      %893 = vmatpush.msra.mxu0 0.0
      %894 = vmatpush.msra.mxu0 0.0
      %895 = vmatpush.msra.mxu0 0.0
      %896 = vmatpush.msra.mxu0 0.0
      %897 = vmatpush.msra.mxu0 0.0
      %898 = vmatpush.msra.mxu0 0.0
      %899 = vmatpush.msra.mxu0 0.0
      %900 = vmatpush.msra.mxu0 0.0
      %901 = vmatpush.msra.mxu0 0.0
      %902 = vmatpush.msra.mxu0 0.0
      %903 = vmatpush.msra.mxu0 0.0
      %904 = vmatpush.msra.mxu0 0.0
      %905 = vmatpush.msra.mxu0 %v853
      %906 = vmatmul.f32.gmra.mxu0 %v868
      %v907 = vpop.f32.mrf.mxu0
      %v908 = vadd.f32 0.0, %v907
      %909 = vdwg.mxu0
      %910 = vmatpush.msra.mxu0 0.0
      %911 = vmatpush.msra.mxu0 0.0
      %912 = vmatpush.msra.mxu0 0.0
      %913 = vmatpush.msra.mxu0 0.0
      %914 = vmatpush.msra.mxu0 0.0
      %915 = vmatpush.msra.mxu0 0.0
      %916 = vmatpush.msra.mxu0 0.0
      %917 = vmatpush.msra.mxu0 0.0
      %918 = vmatpush.msra.mxu0 0.0
      %919 = vmatpush.msra.mxu0 0.0
      %920 = vmatpush.msra.mxu0 0.0
      %921 = vmatpush.msra.mxu0 0.0
      %922 = vmatpush.msra.mxu0 0.0
      %923 = vmatpush.msra.mxu0 0.0
      %924 = vmatpush.msra.mxu0 0.0
      %925 = vmatpush.msra.mxu0 %v854
      %926 = vmatmul.f32.gmra.mxu0 %v868
      %v927 = vpop.f32.mrf.mxu0
      %v928 = vadd.f32 0.0, %v927
      %929 = vdwg.mxu0
      %930 = vmatpush.msra.mxu0 0.0
      %931 = vmatpush.msra.mxu0 0.0
      %932 = vmatpush.msra.mxu0 0.0
      %933 = vmatpush.msra.mxu0 0.0
      %934 = vmatpush.msra.mxu0 0.0
      %935 = vmatpush.msra.mxu0 0.0
      %936 = vmatpush.msra.mxu0 0.0
      %937 = vmatpush.msra.mxu0 0.0
      %938 = vmatpush.msra.mxu0 0.0
      %939 = vmatpush.msra.mxu0 0.0
      %940 = vmatpush.msra.mxu0 0.0
      %941 = vmatpush.msra.mxu0 0.0
      %942 = vmatpush.msra.mxu0 0.0
      %943 = vmatpush.msra.mxu0 0.0
      %944 = vmatpush.msra.mxu0 0.0
      %945 = vmatpush.msra.mxu0 %v855
      %946 = vmatmul.f32.gmra.mxu0 %v868
      %v947 = vpop.f32.mrf.mxu0
      %v948 = vadd.f32 0.0, %v947
      %949 = vdwg.mxu0
      %950 = vmatpush.msra.mxu0 0.0
      %951 = vmatpush.msra.mxu0 0.0
      %952 = vmatpush.msra.mxu0 0.0
      %953 = vmatpush.msra.mxu0 0.0
      %954 = vmatpush.msra.mxu0 0.0
      %955 = vmatpush.msra.mxu0 0.0
      %956 = vmatpush.msra.mxu0 0.0
      %957 = vmatpush.msra.mxu0 0.0
      %958 = vmatpush.msra.mxu0 0.0
      %959 = vmatpush.msra.mxu0 0.0
      %960 = vmatpush.msra.mxu0 0.0
      %961 = vmatpush.msra.mxu0 0.0
      %962 = vmatpush.msra.mxu0 0.0
      %963 = vmatpush.msra.mxu0 0.0
      %964 = vmatpush.msra.mxu0 0.0
      %965 = vmatpush.msra.mxu0 %v856
      %966 = vmatmul.f32.gmra.mxu0 %v868
      %v967 = vpop.f32.mrf.mxu0
      %v968 = vadd.f32 0.0, %v967
      %969 = vdwg.mxu0
      %970 = vmatpush.msra.mxu0 0.0
      %971 = vmatpush.msra.mxu0 0.0
      %972 = vmatpush.msra.mxu0 0.0
      %973 = vmatpush.msra.mxu0 0.0
      %974 = vmatpush.msra.mxu0 0.0
      %975 = vmatpush.msra.mxu0 0.0
      %976 = vmatpush.msra.mxu0 0.0
      %977 = vmatpush.msra.mxu0 0.0
      %978 = vmatpush.msra.mxu0 0.0
      %979 = vmatpush.msra.mxu0 0.0
      %980 = vmatpush.msra.mxu0 0.0
      %981 = vmatpush.msra.mxu0 0.0
      %982 = vmatpush.msra.mxu0 0.0
      %983 = vmatpush.msra.mxu0 0.0
      %984 = vmatpush.msra.mxu0 0.0
      %985 = vmatpush.msra.mxu0 %v857
      %986 = vmatmul.f32.gmra.mxu0 %v868
      %v987 = vpop.f32.mrf.mxu0
      %v988 = vadd.f32 0.0, %v987
      %989 = vdwg.mxu0
      %990 = vmatpush.msra.mxu0 0.0
      %991 = vmatpush.msra.mxu0 0.0
      %992 = vmatpush.msra.mxu0 0.0
      %993 = vmatpush.msra.mxu0 0.0
      %994 = vmatpush.msra.mxu0 0.0
      %995 = vmatpush.msra.mxu0 0.0
      %996 = vmatpush.msra.mxu0 0.0
      %997 = vmatpush.msra.mxu0 0.0
      %998 = vmatpush.msra.mxu0 0.0
      %999 = vmatpush.msra.mxu0 0.0
      %1000 = vmatpush.msra.mxu0 0.0
      %1001 = vmatpush.msra.mxu0 0.0
      %1002 = vmatpush.msra.mxu0 0.0
      %1003 = vmatpush.msra.mxu0 0.0
      %1004 = vmatpush.msra.mxu0 0.0
      %1005 = vmatpush.msra.mxu0 %v858
      %1006 = vmatmul.f32.gmra.mxu0 %v868
      %v1007 = vpop.f32.mrf.mxu0
      %v1008 = vadd.f32 0.0, %v1007
      %1009 = vdwg.mxu0
      %1010 = vmatpush.msra.mxu0 0.0
      %1011 = vmatpush.msra.mxu0 0.0
      %1012 = vmatpush.msra.mxu0 0.0
      %1013 = vmatpush.msra.mxu0 0.0
      %1014 = vmatpush.msra.mxu0 0.0
      %1015 = vmatpush.msra.mxu0 0.0
      %1016 = vmatpush.msra.mxu0 0.0
      %1017 = vmatpush.msra.mxu0 0.0
      %1018 = vmatpush.msra.mxu0 0.0
      %1019 = vmatpush.msra.mxu0 0.0
      %1020 = vmatpush.msra.mxu0 0.0
      %1021 = vmatpush.msra.mxu0 0.0
      %1022 = vmatpush.msra.mxu0 0.0
      %1023 = vmatpush.msra.mxu0 0.0
      %1024 = vmatpush.msra.mxu0 0.0
      %1025 = vmatpush.msra.mxu0 %v850
      %1026 = vmatmul.f32.gmra.mxu0 %v868
      %v1027 = vpop.f32.mrf.mxu0
      %v1028 = vadd.f32 0.0, %v1027
      %1029 = vdwg.mxu0
      %v1030 = vadd.f32 %v691, %v888
      %v1031 = vadd.f32 %v711, %v908
      %v1032 = vadd.f32 %v731, %v928
      %v1033 = vadd.f32 %v751, %v948
      %v1034 = vadd.f32 %v771, %v968
      %v1035 = vadd.f32 %v791, %v988
      %v1036 = vadd.f32 %v811, %v1008
      %v1037 = vadd.f32 %v831, %v1028
      %s1038 = scalar_lea.vmem %s2, 24
      %v1039 = vld [vmem:[%s1038] sm:$0xff]
      %1040 = vrot.lane.b32.xlu0 %v455, 98
      %v1041 = vpop.permute.xlu0 %1040
      %1042 = vrot.lane.b32.xlu0 %v456, 98
      %v1043 = vpop.permute.xlu0 %1042
      %1044 = vrot.lane.b32.xlu0 %v457, 98
      %v1045 = vpop.permute.xlu0 %1044
      %1046 = vrot.lane.b32.xlu0 %v458, 98
      %v1047 = vpop.permute.xlu0 %1046
      %1048 = vrot.lane.b32.xlu0 %v459, 98
      %v1049 = vpop.permute.xlu0 %1048
      %1050 = vrot.lane.b32.xlu0 %v460, 98
      %v1051 = vpop.permute.xlu0 %1050
      %1052 = vrot.lane.b32.xlu0 %v461, 98
      %v1053 = vpop.permute.xlu0 %1052
      %1054 = vrot.lane.b32.xlu0 %v462, 98
      %v1055 = vpop.permute.xlu0 %1054
      %vm1056 = vcmask 801792
      %v1057 = vsel %vm1056, %v1041, %v1043
      %v1058 = vsel %vm1056, %v1043, %v1045
      %v1059 = vsel %vm1056, %v1045, %v1047
      %v1060 = vsel %vm1056, %v1047, %v1049
      %v1061 = vsel %vm1056, %v1049, %v1051
      %v1062 = vsel %vm1056, %v1051, %v1053
      %v1063 = vsel %vm1056, %v1053, %v1055
      %v1073 = vsel %vm506, %v1039, 0
      %1075 = vmatpush.msra.mxu0 0.0
      %1076 = vmatpush.msra.mxu0 0.0
      %1077 = vmatpush.msra.mxu0 0.0
      %1078 = vmatpush.msra.mxu0 0.0
      %1079 = vmatpush.msra.mxu0 0.0
      %1080 = vmatpush.msra.mxu0 0.0
      %1081 = vmatpush.msra.mxu0 0.0
      %1082 = vmatpush.msra.mxu0 0.0
      %1083 = vmatpush.msra.mxu0 0.0
      %1084 = vmatpush.msra.mxu0 0.0
      %1085 = vmatpush.msra.mxu0 0.0
      %1086 = vmatpush.msra.mxu0 0.0
      %1087 = vmatpush.msra.mxu0 0.0
      %1088 = vmatpush.msra.mxu0 0.0
      %1089 = vmatpush.msra.mxu0 0.0
      %1090 = vmatpush.msra.mxu0 %v1057
      %1091 = vmatmul.f32.gmra.mxu0 %v1073
      %v1092 = vpop.f32.mrf.mxu0
      %v1093 = vadd.f32 0.0, %v1092
      %1094 = vdwg.mxu0
      %1095 = vmatpush.msra.mxu0 0.0
      %1096 = vmatpush.msra.mxu0 0.0
      %1097 = vmatpush.msra.mxu0 0.0
      %1098 = vmatpush.msra.mxu0 0.0
      %1099 = vmatpush.msra.mxu0 0.0
      %1100 = vmatpush.msra.mxu0 0.0
      %1101 = vmatpush.msra.mxu0 0.0
      %1102 = vmatpush.msra.mxu0 0.0
      %1103 = vmatpush.msra.mxu0 0.0
      %1104 = vmatpush.msra.mxu0 0.0
      %1105 = vmatpush.msra.mxu0 0.0
      %1106 = vmatpush.msra.mxu0 0.0
      %1107 = vmatpush.msra.mxu0 0.0
      %1108 = vmatpush.msra.mxu0 0.0
      %1109 = vmatpush.msra.mxu0 0.0
      %1110 = vmatpush.msra.mxu0 %v1058
      %1111 = vmatmul.f32.gmra.mxu0 %v1073
      %v1112 = vpop.f32.mrf.mxu0
      %v1113 = vadd.f32 0.0, %v1112
      %1114 = vdwg.mxu0
      %1115 = vmatpush.msra.mxu0 0.0
      %1116 = vmatpush.msra.mxu0 0.0
      %1117 = vmatpush.msra.mxu0 0.0
      %1118 = vmatpush.msra.mxu0 0.0
      %1119 = vmatpush.msra.mxu0 0.0
      %1120 = vmatpush.msra.mxu0 0.0
      %1121 = vmatpush.msra.mxu0 0.0
      %1122 = vmatpush.msra.mxu0 0.0
      %1123 = vmatpush.msra.mxu0 0.0
      %1124 = vmatpush.msra.mxu0 0.0
      %1125 = vmatpush.msra.mxu0 0.0
      %1126 = vmatpush.msra.mxu0 0.0
      %1127 = vmatpush.msra.mxu0 0.0
      %1128 = vmatpush.msra.mxu0 0.0
      %1129 = vmatpush.msra.mxu0 0.0
      %1130 = vmatpush.msra.mxu0 %v1059
      %1131 = vmatmul.f32.gmra.mxu0 %v1073
      %v1132 = vpop.f32.mrf.mxu0
      %v1133 = vadd.f32 0.0, %v1132
      %1134 = vdwg.mxu0
      %1135 = vmatpush.msra.mxu0 0.0
      %1136 = vmatpush.msra.mxu0 0.0
      %1137 = vmatpush.msra.mxu0 0.0
      %1138 = vmatpush.msra.mxu0 0.0
      %1139 = vmatpush.msra.mxu0 0.0
      %1140 = vmatpush.msra.mxu0 0.0
      %1141 = vmatpush.msra.mxu0 0.0
      %1142 = vmatpush.msra.mxu0 0.0
      %1143 = vmatpush.msra.mxu0 0.0
      %1144 = vmatpush.msra.mxu0 0.0
      %1145 = vmatpush.msra.mxu0 0.0
      %1146 = vmatpush.msra.mxu0 0.0
      %1147 = vmatpush.msra.mxu0 0.0
      %1148 = vmatpush.msra.mxu0 0.0
      %1149 = vmatpush.msra.mxu0 0.0
      %1150 = vmatpush.msra.mxu0 %v1060
      %1151 = vmatmul.f32.gmra.mxu0 %v1073
      %v1152 = vpop.f32.mrf.mxu0
      %v1153 = vadd.f32 0.0, %v1152
      %1154 = vdwg.mxu0
      %1155 = vmatpush.msra.mxu0 0.0
      %1156 = vmatpush.msra.mxu0 0.0
      %1157 = vmatpush.msra.mxu0 0.0
      %1158 = vmatpush.msra.mxu0 0.0
      %1159 = vmatpush.msra.mxu0 0.0
      %1160 = vmatpush.msra.mxu0 0.0
      %1161 = vmatpush.msra.mxu0 0.0
      %1162 = vmatpush.msra.mxu0 0.0
      %1163 = vmatpush.msra.mxu0 0.0
      %1164 = vmatpush.msra.mxu0 0.0
      %1165 = vmatpush.msra.mxu0 0.0
      %1166 = vmatpush.msra.mxu0 0.0
      %1167 = vmatpush.msra.mxu0 0.0
      %1168 = vmatpush.msra.mxu0 0.0
      %1169 = vmatpush.msra.mxu0 0.0
      %1170 = vmatpush.msra.mxu0 %v1061
      %1171 = vmatmul.f32.gmra.mxu0 %v1073
      %v1172 = vpop.f32.mrf.mxu0
      %v1173 = vadd.f32 0.0, %v1172
      %1174 = vdwg.mxu0
      %1175 = vmatpush.msra.mxu0 0.0
      %1176 = vmatpush.msra.mxu0 0.0
      %1177 = vmatpush.msra.mxu0 0.0
      %1178 = vmatpush.msra.mxu0 0.0
      %1179 = vmatpush.msra.mxu0 0.0
      %1180 = vmatpush.msra.mxu0 0.0
      %1181 = vmatpush.msra.mxu0 0.0
      %1182 = vmatpush.msra.mxu0 0.0
      %1183 = vmatpush.msra.mxu0 0.0
      %1184 = vmatpush.msra.mxu0 0.0
      %1185 = vmatpush.msra.mxu0 0.0
      %1186 = vmatpush.msra.mxu0 0.0
      %1187 = vmatpush.msra.mxu0 0.0
      %1188 = vmatpush.msra.mxu0 0.0
      %1189 = vmatpush.msra.mxu0 0.0
      %1190 = vmatpush.msra.mxu0 %v1062
      %1191 = vmatmul.f32.gmra.mxu0 %v1073
      %v1192 = vpop.f32.mrf.mxu0
      %v1193 = vadd.f32 0.0, %v1192
      %1194 = vdwg.mxu0
      %1195 = vmatpush.msra.mxu0 0.0
      %1196 = vmatpush.msra.mxu0 0.0
      %1197 = vmatpush.msra.mxu0 0.0
      %1198 = vmatpush.msra.mxu0 0.0
      %1199 = vmatpush.msra.mxu0 0.0
      %1200 = vmatpush.msra.mxu0 0.0
      %1201 = vmatpush.msra.mxu0 0.0
      %1202 = vmatpush.msra.mxu0 0.0
      %1203 = vmatpush.msra.mxu0 0.0
      %1204 = vmatpush.msra.mxu0 0.0
      %1205 = vmatpush.msra.mxu0 0.0
      %1206 = vmatpush.msra.mxu0 0.0
      %1207 = vmatpush.msra.mxu0 0.0
      %1208 = vmatpush.msra.mxu0 0.0
      %1209 = vmatpush.msra.mxu0 0.0
      %1210 = vmatpush.msra.mxu0 %v1063
      %1211 = vmatmul.f32.gmra.mxu0 %v1073
      %v1212 = vpop.f32.mrf.mxu0
      %v1213 = vadd.f32 0.0, %v1212
      %1214 = vdwg.mxu0
      %1215 = vmatpush.msra.mxu0 0.0
      %1216 = vmatpush.msra.mxu0 0.0
      %1217 = vmatpush.msra.mxu0 0.0
      %1218 = vmatpush.msra.mxu0 0.0
      %1219 = vmatpush.msra.mxu0 0.0
      %1220 = vmatpush.msra.mxu0 0.0
      %1221 = vmatpush.msra.mxu0 0.0
      %1222 = vmatpush.msra.mxu0 0.0
      %1223 = vmatpush.msra.mxu0 0.0
      %1224 = vmatpush.msra.mxu0 0.0
      %1225 = vmatpush.msra.mxu0 0.0
      %1226 = vmatpush.msra.mxu0 0.0
      %1227 = vmatpush.msra.mxu0 0.0
      %1228 = vmatpush.msra.mxu0 0.0
      %1229 = vmatpush.msra.mxu0 0.0
      %1230 = vmatpush.msra.mxu0 %v1055
      %1231 = vmatmul.f32.gmra.mxu0 %v1073
      %v1232 = vpop.f32.mrf.mxu0
      %v1233 = vadd.f32 0.0, %v1232
      %1234 = vdwg.mxu0
      %v1235 = vadd.f32 %v1030, %v1093
      %v1236 = vadd.f32 %v1031, %v1113
      %v1237 = vadd.f32 %v1032, %v1133
      %v1238 = vadd.f32 %v1033, %v1153
      %v1239 = vadd.f32 %v1034, %v1173
      %v1240 = vadd.f32 %v1035, %v1193
      %v1241 = vadd.f32 %v1036, %v1213
      %v1242 = vadd.f32 %v1037, %v1233
      %s1243 = scalar_lea.vmem %s2, 32
      %v1244 = vld [vmem:[%s1243] sm:$0xff]
      %1245 = vrot.lane.b32.xlu0 %v455, 97
      %v1246 = vpop.permute.xlu0 %1245
      %1247 = vrot.lane.b32.xlu0 %v456, 97
      %v1248 = vpop.permute.xlu0 %1247
      %1249 = vrot.lane.b32.xlu0 %v457, 97
      %v1250 = vpop.permute.xlu0 %1249
      %1251 = vrot.lane.b32.xlu0 %v458, 97
      %v1252 = vpop.permute.xlu0 %1251
      %1253 = vrot.lane.b32.xlu0 %v459, 97
      %v1254 = vpop.permute.xlu0 %1253
      %1255 = vrot.lane.b32.xlu0 %v460, 97
      %v1256 = vpop.permute.xlu0 %1255
      %1257 = vrot.lane.b32.xlu0 %v461, 97
      %v1258 = vpop.permute.xlu0 %1257
      %1259 = vrot.lane.b32.xlu0 %v462, 97
      %v1260 = vpop.permute.xlu0 %1259
      %vm1261 = vcmask 793600
      %v1262 = vsel %vm1261, %v1246, %v1248
      %v1263 = vsel %vm1261, %v1248, %v1250
      %v1264 = vsel %vm1261, %v1250, %v1252
      %v1265 = vsel %vm1261, %v1252, %v1254
      %v1266 = vsel %vm1261, %v1254, %v1256
      %v1267 = vsel %vm1261, %v1256, %v1258
      %v1268 = vsel %vm1261, %v1258, %v1260
      %v1278 = vsel %vm506, %v1244, 0
      %1280 = vmatpush.msra.mxu0 0.0
      %1281 = vmatpush.msra.mxu0 0.0
      %1282 = vmatpush.msra.mxu0 0.0
      %1283 = vmatpush.msra.mxu0 0.0
      %1284 = vmatpush.msra.mxu0 0.0
      %1285 = vmatpush.msra.mxu0 0.0
      %1286 = vmatpush.msra.mxu0 0.0
      %1287 = vmatpush.msra.mxu0 0.0
      %1288 = vmatpush.msra.mxu0 0.0
      %1289 = vmatpush.msra.mxu0 0.0
      %1290 = vmatpush.msra.mxu0 0.0
      %1291 = vmatpush.msra.mxu0 0.0
      %1292 = vmatpush.msra.mxu0 0.0
      %1293 = vmatpush.msra.mxu0 0.0
      %1294 = vmatpush.msra.mxu0 0.0
      %1295 = vmatpush.msra.mxu0 %v1262
      %1296 = vmatmul.f32.gmra.mxu0 %v1278
      %v1297 = vpop.f32.mrf.mxu0
      %v1298 = vadd.f32 0.0, %v1297
      %1299 = vdwg.mxu0
      %1300 = vmatpush.msra.mxu0 0.0
      %1301 = vmatpush.msra.mxu0 0.0
      %1302 = vmatpush.msra.mxu0 0.0
      %1303 = vmatpush.msra.mxu0 0.0
      %1304 = vmatpush.msra.mxu0 0.0
      %1305 = vmatpush.msra.mxu0 0.0
      %1306 = vmatpush.msra.mxu0 0.0
      %1307 = vmatpush.msra.mxu0 0.0
      %1308 = vmatpush.msra.mxu0 0.0
      %1309 = vmatpush.msra.mxu0 0.0
      %1310 = vmatpush.msra.mxu0 0.0
      %1311 = vmatpush.msra.mxu0 0.0
      %1312 = vmatpush.msra.mxu0 0.0
      %1313 = vmatpush.msra.mxu0 0.0
      %1314 = vmatpush.msra.mxu0 0.0
      %1315 = vmatpush.msra.mxu0 %v1263
      %1316 = vmatmul.f32.gmra.mxu0 %v1278
      %v1317 = vpop.f32.mrf.mxu0
      %v1318 = vadd.f32 0.0, %v1317
      %1319 = vdwg.mxu0
      %1320 = vmatpush.msra.mxu0 0.0
      %1321 = vmatpush.msra.mxu0 0.0
      %1322 = vmatpush.msra.mxu0 0.0
      %1323 = vmatpush.msra.mxu0 0.0
      %1324 = vmatpush.msra.mxu0 0.0
      %1325 = vmatpush.msra.mxu0 0.0
      %1326 = vmatpush.msra.mxu0 0.0
      %1327 = vmatpush.msra.mxu0 0.0
      %1328 = vmatpush.msra.mxu0 0.0
      %1329 = vmatpush.msra.mxu0 0.0
      %1330 = vmatpush.msra.mxu0 0.0
      %1331 = vmatpush.msra.mxu0 0.0
      %1332 = vmatpush.msra.mxu0 0.0
      %1333 = vmatpush.msra.mxu0 0.0
      %1334 = vmatpush.msra.mxu0 0.0
      %1335 = vmatpush.msra.mxu0 %v1264
      %1336 = vmatmul.f32.gmra.mxu0 %v1278
      %v1337 = vpop.f32.mrf.mxu0
      %v1338 = vadd.f32 0.0, %v1337
      %1339 = vdwg.mxu0
      %1340 = vmatpush.msra.mxu0 0.0
      %1341 = vmatpush.msra.mxu0 0.0
      %1342 = vmatpush.msra.mxu0 0.0
      %1343 = vmatpush.msra.mxu0 0.0
      %1344 = vmatpush.msra.mxu0 0.0
      %1345 = vmatpush.msra.mxu0 0.0
      %1346 = vmatpush.msra.mxu0 0.0
      %1347 = vmatpush.msra.mxu0 0.0
      %1348 = vmatpush.msra.mxu0 0.0
      %1349 = vmatpush.msra.mxu0 0.0
      %1350 = vmatpush.msra.mxu0 0.0
      %1351 = vmatpush.msra.mxu0 0.0
      %1352 = vmatpush.msra.mxu0 0.0
      %1353 = vmatpush.msra.mxu0 0.0
      %1354 = vmatpush.msra.mxu0 0.0
      %1355 = vmatpush.msra.mxu0 %v1265
      %1356 = vmatmul.f32.gmra.mxu0 %v1278
      %v1357 = vpop.f32.mrf.mxu0
      %v1358 = vadd.f32 0.0, %v1357
      %1359 = vdwg.mxu0
      %1360 = vmatpush.msra.mxu0 0.0
      %1361 = vmatpush.msra.mxu0 0.0
      %1362 = vmatpush.msra.mxu0 0.0
      %1363 = vmatpush.msra.mxu0 0.0
      %1364 = vmatpush.msra.mxu0 0.0
      %1365 = vmatpush.msra.mxu0 0.0
      %1366 = vmatpush.msra.mxu0 0.0
      %1367 = vmatpush.msra.mxu0 0.0
      %1368 = vmatpush.msra.mxu0 0.0
      %1369 = vmatpush.msra.mxu0 0.0
      %1370 = vmatpush.msra.mxu0 0.0
      %1371 = vmatpush.msra.mxu0 0.0
      %1372 = vmatpush.msra.mxu0 0.0
      %1373 = vmatpush.msra.mxu0 0.0
      %1374 = vmatpush.msra.mxu0 0.0
      %1375 = vmatpush.msra.mxu0 %v1266
      %1376 = vmatmul.f32.gmra.mxu0 %v1278
      %v1377 = vpop.f32.mrf.mxu0
      %v1378 = vadd.f32 0.0, %v1377
      %1379 = vdwg.mxu0
      %1380 = vmatpush.msra.mxu0 0.0
      %1381 = vmatpush.msra.mxu0 0.0
      %1382 = vmatpush.msra.mxu0 0.0
      %1383 = vmatpush.msra.mxu0 0.0
      %1384 = vmatpush.msra.mxu0 0.0
      %1385 = vmatpush.msra.mxu0 0.0
      %1386 = vmatpush.msra.mxu0 0.0
      %1387 = vmatpush.msra.mxu0 0.0
      %1388 = vmatpush.msra.mxu0 0.0
      %1389 = vmatpush.msra.mxu0 0.0
      %1390 = vmatpush.msra.mxu0 0.0
      %1391 = vmatpush.msra.mxu0 0.0
      %1392 = vmatpush.msra.mxu0 0.0
      %1393 = vmatpush.msra.mxu0 0.0
      %1394 = vmatpush.msra.mxu0 0.0
      %1395 = vmatpush.msra.mxu0 %v1267
      %1396 = vmatmul.f32.gmra.mxu0 %v1278
      %v1397 = vpop.f32.mrf.mxu0
      %v1398 = vadd.f32 0.0, %v1397
      %1399 = vdwg.mxu0
      %1400 = vmatpush.msra.mxu0 0.0
      %1401 = vmatpush.msra.mxu0 0.0
      %1402 = vmatpush.msra.mxu0 0.0
      %1403 = vmatpush.msra.mxu0 0.0
      %1404 = vmatpush.msra.mxu0 0.0
      %1405 = vmatpush.msra.mxu0 0.0
      %1406 = vmatpush.msra.mxu0 0.0
      %1407 = vmatpush.msra.mxu0 0.0
      %1408 = vmatpush.msra.mxu0 0.0
      %1409 = vmatpush.msra.mxu0 0.0
      %1410 = vmatpush.msra.mxu0 0.0
      %1411 = vmatpush.msra.mxu0 0.0
      %1412 = vmatpush.msra.mxu0 0.0
      %1413 = vmatpush.msra.mxu0 0.0
      %1414 = vmatpush.msra.mxu0 0.0
      %1415 = vmatpush.msra.mxu0 %v1268
      %1416 = vmatmul.f32.gmra.mxu0 %v1278
      %v1417 = vpop.f32.mrf.mxu0
      %v1418 = vadd.f32 0.0, %v1417
      %1419 = vdwg.mxu0
      %1420 = vmatpush.msra.mxu0 0.0
      %1421 = vmatpush.msra.mxu0 0.0
      %1422 = vmatpush.msra.mxu0 0.0
      %1423 = vmatpush.msra.mxu0 0.0
      %1424 = vmatpush.msra.mxu0 0.0
      %1425 = vmatpush.msra.mxu0 0.0
      %1426 = vmatpush.msra.mxu0 0.0
      %1427 = vmatpush.msra.mxu0 0.0
      %1428 = vmatpush.msra.mxu0 0.0
      %1429 = vmatpush.msra.mxu0 0.0
      %1430 = vmatpush.msra.mxu0 0.0
      %1431 = vmatpush.msra.mxu0 0.0
      %1432 = vmatpush.msra.mxu0 0.0
      %1433 = vmatpush.msra.mxu0 0.0
      %1434 = vmatpush.msra.mxu0 0.0
      %1435 = vmatpush.msra.mxu0 %v1260
      %1436 = vmatmul.f32.gmra.mxu0 %v1278
      %v1437 = vpop.f32.mrf.mxu0
      %v1438 = vadd.f32 0.0, %v1437
      %1439 = vdwg.mxu0
      %v1440 = vadd.f32 %v1235, %v1298
      %v1441 = vadd.f32 %v1236, %v1318
      %v1442 = vadd.f32 %v1237, %v1338
      %v1443 = vadd.f32 %v1238, %v1358
      %v1444 = vadd.f32 %v1239, %v1378
      %v1445 = vadd.f32 %v1240, %v1398
      %v1446 = vadd.f32 %v1241, %v1418
      %v1447 = vadd.f32 %v1242, %v1438
      %s1448 = scalar_lea.vmem %s2, 40
      %v1449 = vld [vmem:[%s1448] sm:$0xff]
      %1450 = vrot.lane.b32.xlu0 %v455, 96
      %v1451 = vpop.permute.xlu0 %1450
      %1452 = vrot.lane.b32.xlu0 %v456, 96
      %v1453 = vpop.permute.xlu0 %1452
      %1454 = vrot.lane.b32.xlu0 %v457, 96
      %v1455 = vpop.permute.xlu0 %1454
      %1456 = vrot.lane.b32.xlu0 %v458, 96
      %v1457 = vpop.permute.xlu0 %1456
      %1458 = vrot.lane.b32.xlu0 %v459, 96
      %v1459 = vpop.permute.xlu0 %1458
      %1460 = vrot.lane.b32.xlu0 %v460, 96
      %v1461 = vpop.permute.xlu0 %1460
      %1462 = vrot.lane.b32.xlu0 %v461, 96
      %v1463 = vpop.permute.xlu0 %1462
      %1464 = vrot.lane.b32.xlu0 %v462, 96
      %v1465 = vpop.permute.xlu0 %1464
      %vm1466 = vcmask 785408
      %v1467 = vsel %vm1466, %v1451, %v1453
      %v1468 = vsel %vm1466, %v1453, %v1455
      %v1469 = vsel %vm1466, %v1455, %v1457
      %v1470 = vsel %vm1466, %v1457, %v1459
      %v1471 = vsel %vm1466, %v1459, %v1461
      %v1472 = vsel %vm1466, %v1461, %v1463
      %v1473 = vsel %vm1466, %v1463, %v1465
      %v1483 = vsel %vm506, %v1449, 0
      %1485 = vmatpush.msra.mxu0 0.0
      %1486 = vmatpush.msra.mxu0 0.0
      %1487 = vmatpush.msra.mxu0 0.0
      %1488 = vmatpush.msra.mxu0 0.0
      %1489 = vmatpush.msra.mxu0 0.0
      %1490 = vmatpush.msra.mxu0 0.0
      %1491 = vmatpush.msra.mxu0 0.0
      %1492 = vmatpush.msra.mxu0 0.0
      %1493 = vmatpush.msra.mxu0 0.0
      %1494 = vmatpush.msra.mxu0 0.0
      %1495 = vmatpush.msra.mxu0 0.0
      %1496 = vmatpush.msra.mxu0 0.0
      %1497 = vmatpush.msra.mxu0 0.0
      %1498 = vmatpush.msra.mxu0 0.0
      %1499 = vmatpush.msra.mxu0 0.0
      %1500 = vmatpush.msra.mxu0 %v1467
      %1501 = vmatmul.f32.gmra.mxu0 %v1483
      %v1502 = vpop.f32.mrf.mxu0
      %v1503 = vadd.f32 0.0, %v1502
      %1504 = vdwg.mxu0
      %1505 = vmatpush.msra.mxu0 0.0
      %1506 = vmatpush.msra.mxu0 0.0
      %1507 = vmatpush.msra.mxu0 0.0
      %1508 = vmatpush.msra.mxu0 0.0
      %1509 = vmatpush.msra.mxu0 0.0
      %1510 = vmatpush.msra.mxu0 0.0
      %1511 = vmatpush.msra.mxu0 0.0
      %1512 = vmatpush.msra.mxu0 0.0
      %1513 = vmatpush.msra.mxu0 0.0
      %1514 = vmatpush.msra.mxu0 0.0
      %1515 = vmatpush.msra.mxu0 0.0
      %1516 = vmatpush.msra.mxu0 0.0
      %1517 = vmatpush.msra.mxu0 0.0
      %1518 = vmatpush.msra.mxu0 0.0
      %1519 = vmatpush.msra.mxu0 0.0
      %1520 = vmatpush.msra.mxu0 %v1468
      %1521 = vmatmul.f32.gmra.mxu0 %v1483
      %v1522 = vpop.f32.mrf.mxu0
      %v1523 = vadd.f32 0.0, %v1522
      %1524 = vdwg.mxu0
      %1525 = vmatpush.msra.mxu0 0.0
      %1526 = vmatpush.msra.mxu0 0.0
      %1527 = vmatpush.msra.mxu0 0.0
      %1528 = vmatpush.msra.mxu0 0.0
      %1529 = vmatpush.msra.mxu0 0.0
      %1530 = vmatpush.msra.mxu0 0.0
      %1531 = vmatpush.msra.mxu0 0.0
      %1532 = vmatpush.msra.mxu0 0.0
      %1533 = vmatpush.msra.mxu0 0.0
      %1534 = vmatpush.msra.mxu0 0.0
      %1535 = vmatpush.msra.mxu0 0.0
      %1536 = vmatpush.msra.mxu0 0.0
      %1537 = vmatpush.msra.mxu0 0.0
      %1538 = vmatpush.msra.mxu0 0.0
      %1539 = vmatpush.msra.mxu0 0.0
      %1540 = vmatpush.msra.mxu0 %v1469
      %1541 = vmatmul.f32.gmra.mxu0 %v1483
      %v1542 = vpop.f32.mrf.mxu0
      %v1543 = vadd.f32 0.0, %v1542
      %1544 = vdwg.mxu0
      %1545 = vmatpush.msra.mxu0 0.0
      %1546 = vmatpush.msra.mxu0 0.0
      %1547 = vmatpush.msra.mxu0 0.0
      %1548 = vmatpush.msra.mxu0 0.0
      %1549 = vmatpush.msra.mxu0 0.0
      %1550 = vmatpush.msra.mxu0 0.0
      %1551 = vmatpush.msra.mxu0 0.0
      %1552 = vmatpush.msra.mxu0 0.0
      %1553 = vmatpush.msra.mxu0 0.0
      %1554 = vmatpush.msra.mxu0 0.0
      %1555 = vmatpush.msra.mxu0 0.0
      %1556 = vmatpush.msra.mxu0 0.0
      %1557 = vmatpush.msra.mxu0 0.0
      %1558 = vmatpush.msra.mxu0 0.0
      %1559 = vmatpush.msra.mxu0 0.0
      %1560 = vmatpush.msra.mxu0 %v1470
      %1561 = vmatmul.f32.gmra.mxu0 %v1483
      %v1562 = vpop.f32.mrf.mxu0
      %v1563 = vadd.f32 0.0, %v1562
      %1564 = vdwg.mxu0
      %1565 = vmatpush.msra.mxu0 0.0
      %1566 = vmatpush.msra.mxu0 0.0
      %1567 = vmatpush.msra.mxu0 0.0
      %1568 = vmatpush.msra.mxu0 0.0
      %1569 = vmatpush.msra.mxu0 0.0
      %1570 = vmatpush.msra.mxu0 0.0
      %1571 = vmatpush.msra.mxu0 0.0
      %1572 = vmatpush.msra.mxu0 0.0
      %1573 = vmatpush.msra.mxu0 0.0
      %1574 = vmatpush.msra.mxu0 0.0
      %1575 = vmatpush.msra.mxu0 0.0
      %1576 = vmatpush.msra.mxu0 0.0
      %1577 = vmatpush.msra.mxu0 0.0
      %1578 = vmatpush.msra.mxu0 0.0
      %1579 = vmatpush.msra.mxu0 0.0
      %1580 = vmatpush.msra.mxu0 %v1471
      %1581 = vmatmul.f32.gmra.mxu0 %v1483
      %v1582 = vpop.f32.mrf.mxu0
      %v1583 = vadd.f32 0.0, %v1582
      %1584 = vdwg.mxu0
      %1585 = vmatpush.msra.mxu0 0.0
      %1586 = vmatpush.msra.mxu0 0.0
      %1587 = vmatpush.msra.mxu0 0.0
      %1588 = vmatpush.msra.mxu0 0.0
      %1589 = vmatpush.msra.mxu0 0.0
      %1590 = vmatpush.msra.mxu0 0.0
      %1591 = vmatpush.msra.mxu0 0.0
      %1592 = vmatpush.msra.mxu0 0.0
      %1593 = vmatpush.msra.mxu0 0.0
      %1594 = vmatpush.msra.mxu0 0.0
      %1595 = vmatpush.msra.mxu0 0.0
      %1596 = vmatpush.msra.mxu0 0.0
      %1597 = vmatpush.msra.mxu0 0.0
      %1598 = vmatpush.msra.mxu0 0.0
      %1599 = vmatpush.msra.mxu0 0.0
      %1600 = vmatpush.msra.mxu0 %v1472
      %1601 = vmatmul.f32.gmra.mxu0 %v1483
      %v1602 = vpop.f32.mrf.mxu0
      %v1603 = vadd.f32 0.0, %v1602
      %1604 = vdwg.mxu0
      %1605 = vmatpush.msra.mxu0 0.0
      %1606 = vmatpush.msra.mxu0 0.0
      %1607 = vmatpush.msra.mxu0 0.0
      %1608 = vmatpush.msra.mxu0 0.0
      %1609 = vmatpush.msra.mxu0 0.0
      %1610 = vmatpush.msra.mxu0 0.0
      %1611 = vmatpush.msra.mxu0 0.0
      %1612 = vmatpush.msra.mxu0 0.0
      %1613 = vmatpush.msra.mxu0 0.0
      %1614 = vmatpush.msra.mxu0 0.0
      %1615 = vmatpush.msra.mxu0 0.0
      %1616 = vmatpush.msra.mxu0 0.0
      %1617 = vmatpush.msra.mxu0 0.0
      %1618 = vmatpush.msra.mxu0 0.0
      %1619 = vmatpush.msra.mxu0 0.0
      %1620 = vmatpush.msra.mxu0 %v1473
      %1621 = vmatmul.f32.gmra.mxu0 %v1483
      %v1622 = vpop.f32.mrf.mxu0
      %v1623 = vadd.f32 0.0, %v1622
      %1624 = vdwg.mxu0
      %1625 = vmatpush.msra.mxu0 0.0
      %1626 = vmatpush.msra.mxu0 0.0
      %1627 = vmatpush.msra.mxu0 0.0
      %1628 = vmatpush.msra.mxu0 0.0
      %1629 = vmatpush.msra.mxu0 0.0
      %1630 = vmatpush.msra.mxu0 0.0
      %1631 = vmatpush.msra.mxu0 0.0
      %1632 = vmatpush.msra.mxu0 0.0
      %1633 = vmatpush.msra.mxu0 0.0
      %1634 = vmatpush.msra.mxu0 0.0
      %1635 = vmatpush.msra.mxu0 0.0
      %1636 = vmatpush.msra.mxu0 0.0
      %1637 = vmatpush.msra.mxu0 0.0
      %1638 = vmatpush.msra.mxu0 0.0
      %1639 = vmatpush.msra.mxu0 0.0
      %1640 = vmatpush.msra.mxu0 %v1465
      %1641 = vmatmul.f32.gmra.mxu0 %v1483
      %v1642 = vpop.f32.mrf.mxu0
      %v1643 = vadd.f32 0.0, %v1642
      %1644 = vdwg.mxu0
      %v1645 = vadd.f32 %v1440, %v1503
      %v1646 = vadd.f32 %v1441, %v1523
      %v1647 = vadd.f32 %v1442, %v1543
      %v1648 = vadd.f32 %v1443, %v1563
      %v1649 = vadd.f32 %v1444, %v1583
      %v1650 = vadd.f32 %v1445, %v1603
      %v1651 = vadd.f32 %v1446, %v1623
      %v1652 = vadd.f32 %v1447, %v1643
      %s1653 = scalar_lea.vmem %s2, 48
      %v1654 = vld [vmem:[%s1653] sm:$0xff]
      %1655 = vrot.lane.b32.xlu0 %v455, 68
      %v1656 = vpop.permute.xlu0 %1655
      %1657 = vrot.lane.b32.xlu0 %v456, 68
      %v1658 = vpop.permute.xlu0 %1657
      %1659 = vrot.lane.b32.xlu0 %v457, 68
      %v1660 = vpop.permute.xlu0 %1659
      %1661 = vrot.lane.b32.xlu0 %v458, 68
      %v1662 = vpop.permute.xlu0 %1661
      %1663 = vrot.lane.b32.xlu0 %v459, 68
      %v1664 = vpop.permute.xlu0 %1663
      %1665 = vrot.lane.b32.xlu0 %v460, 68
      %v1666 = vpop.permute.xlu0 %1665
      %1667 = vrot.lane.b32.xlu0 %v461, 68
      %v1668 = vpop.permute.xlu0 %1667
      %1669 = vrot.lane.b32.xlu0 %v462, 68
      %v1670 = vpop.permute.xlu0 %1669
      %vm1671 = vcmask 556032
      %v1672 = vsel %vm1671, %v1656, %v1658
      %v1673 = vsel %vm1671, %v1658, %v1660
      %v1674 = vsel %vm1671, %v1660, %v1662
      %v1675 = vsel %vm1671, %v1662, %v1664
      %v1676 = vsel %vm1671, %v1664, %v1666
      %v1677 = vsel %vm1671, %v1666, %v1668
      %v1678 = vsel %vm1671, %v1668, %v1670
      %v1688 = vsel %vm506, %v1654, 0
      %1690 = vmatpush.msra.mxu0 0.0
      %1691 = vmatpush.msra.mxu0 0.0
      %1692 = vmatpush.msra.mxu0 0.0
      %1693 = vmatpush.msra.mxu0 0.0
      %1694 = vmatpush.msra.mxu0 0.0
      %1695 = vmatpush.msra.mxu0 0.0
      %1696 = vmatpush.msra.mxu0 0.0
      %1697 = vmatpush.msra.mxu0 0.0
      %1698 = vmatpush.msra.mxu0 0.0
      %1699 = vmatpush.msra.mxu0 0.0
      %1700 = vmatpush.msra.mxu0 0.0
      %1701 = vmatpush.msra.mxu0 0.0
      %1702 = vmatpush.msra.mxu0 0.0
      %1703 = vmatpush.msra.mxu0 0.0
      %1704 = vmatpush.msra.mxu0 0.0
      %1705 = vmatpush.msra.mxu0 %v1672
      %1706 = vmatmul.f32.gmra.mxu0 %v1688
      %v1707 = vpop.f32.mrf.mxu0
      %v1708 = vadd.f32 0.0, %v1707
      %1709 = vdwg.mxu0
      %1710 = vmatpush.msra.mxu0 0.0
      %1711 = vmatpush.msra.mxu0 0.0
      %1712 = vmatpush.msra.mxu0 0.0
      %1713 = vmatpush.msra.mxu0 0.0
      %1714 = vmatpush.msra.mxu0 0.0
      %1715 = vmatpush.msra.mxu0 0.0
      %1716 = vmatpush.msra.mxu0 0.0
      %1717 = vmatpush.msra.mxu0 0.0
      %1718 = vmatpush.msra.mxu0 0.0
      %1719 = vmatpush.msra.mxu0 0.0
      %1720 = vmatpush.msra.mxu0 0.0
      %1721 = vmatpush.msra.mxu0 0.0
      %1722 = vmatpush.msra.mxu0 0.0
      %1723 = vmatpush.msra.mxu0 0.0
      %1724 = vmatpush.msra.mxu0 0.0
      %1725 = vmatpush.msra.mxu0 %v1673
      %1726 = vmatmul.f32.gmra.mxu0 %v1688
      %v1727 = vpop.f32.mrf.mxu0
      %v1728 = vadd.f32 0.0, %v1727
      %1729 = vdwg.mxu0
      %1730 = vmatpush.msra.mxu0 0.0
      %1731 = vmatpush.msra.mxu0 0.0
      %1732 = vmatpush.msra.mxu0 0.0
      %1733 = vmatpush.msra.mxu0 0.0
      %1734 = vmatpush.msra.mxu0 0.0
      %1735 = vmatpush.msra.mxu0 0.0
      %1736 = vmatpush.msra.mxu0 0.0
      %1737 = vmatpush.msra.mxu0 0.0
      %1738 = vmatpush.msra.mxu0 0.0
      %1739 = vmatpush.msra.mxu0 0.0
      %1740 = vmatpush.msra.mxu0 0.0
      %1741 = vmatpush.msra.mxu0 0.0
      %1742 = vmatpush.msra.mxu0 0.0
      %1743 = vmatpush.msra.mxu0 0.0
      %1744 = vmatpush.msra.mxu0 0.0
      %1745 = vmatpush.msra.mxu0 %v1674
      %1746 = vmatmul.f32.gmra.mxu0 %v1688
      %v1747 = vpop.f32.mrf.mxu0
      %v1748 = vadd.f32 0.0, %v1747
      %1749 = vdwg.mxu0
      %1750 = vmatpush.msra.mxu0 0.0
      %1751 = vmatpush.msra.mxu0 0.0
      %1752 = vmatpush.msra.mxu0 0.0
      %1753 = vmatpush.msra.mxu0 0.0
      %1754 = vmatpush.msra.mxu0 0.0
      %1755 = vmatpush.msra.mxu0 0.0
      %1756 = vmatpush.msra.mxu0 0.0
      %1757 = vmatpush.msra.mxu0 0.0
      %1758 = vmatpush.msra.mxu0 0.0
      %1759 = vmatpush.msra.mxu0 0.0
      %1760 = vmatpush.msra.mxu0 0.0
      %1761 = vmatpush.msra.mxu0 0.0
      %1762 = vmatpush.msra.mxu0 0.0
      %1763 = vmatpush.msra.mxu0 0.0
      %1764 = vmatpush.msra.mxu0 0.0
      %1765 = vmatpush.msra.mxu0 %v1675
      %1766 = vmatmul.f32.gmra.mxu0 %v1688
      %v1767 = vpop.f32.mrf.mxu0
      %v1768 = vadd.f32 0.0, %v1767
      %1769 = vdwg.mxu0
      %1770 = vmatpush.msra.mxu0 0.0
      %1771 = vmatpush.msra.mxu0 0.0
      %1772 = vmatpush.msra.mxu0 0.0
      %1773 = vmatpush.msra.mxu0 0.0
      %1774 = vmatpush.msra.mxu0 0.0
      %1775 = vmatpush.msra.mxu0 0.0
      %1776 = vmatpush.msra.mxu0 0.0
      %1777 = vmatpush.msra.mxu0 0.0
      %1778 = vmatpush.msra.mxu0 0.0
      %1779 = vmatpush.msra.mxu0 0.0
      %1780 = vmatpush.msra.mxu0 0.0
      %1781 = vmatpush.msra.mxu0 0.0
      %1782 = vmatpush.msra.mxu0 0.0
      %1783 = vmatpush.msra.mxu0 0.0
      %1784 = vmatpush.msra.mxu0 0.0
      %1785 = vmatpush.msra.mxu0 %v1676
      %1786 = vmatmul.f32.gmra.mxu0 %v1688
      %v1787 = vpop.f32.mrf.mxu0
      %v1788 = vadd.f32 0.0, %v1787
      %1789 = vdwg.mxu0
      %1790 = vmatpush.msra.mxu0 0.0
      %1791 = vmatpush.msra.mxu0 0.0
      %1792 = vmatpush.msra.mxu0 0.0
      %1793 = vmatpush.msra.mxu0 0.0
      %1794 = vmatpush.msra.mxu0 0.0
      %1795 = vmatpush.msra.mxu0 0.0
      %1796 = vmatpush.msra.mxu0 0.0
      %1797 = vmatpush.msra.mxu0 0.0
      %1798 = vmatpush.msra.mxu0 0.0
      %1799 = vmatpush.msra.mxu0 0.0
      %1800 = vmatpush.msra.mxu0 0.0
      %1801 = vmatpush.msra.mxu0 0.0
      %1802 = vmatpush.msra.mxu0 0.0
      %1803 = vmatpush.msra.mxu0 0.0
      %1804 = vmatpush.msra.mxu0 0.0
      %1805 = vmatpush.msra.mxu0 %v1677
      %1806 = vmatmul.f32.gmra.mxu0 %v1688
      %v1807 = vpop.f32.mrf.mxu0
      %v1808 = vadd.f32 0.0, %v1807
      %1809 = vdwg.mxu0
      %1810 = vmatpush.msra.mxu0 0.0
      %1811 = vmatpush.msra.mxu0 0.0
      %1812 = vmatpush.msra.mxu0 0.0
      %1813 = vmatpush.msra.mxu0 0.0
      %1814 = vmatpush.msra.mxu0 0.0
      %1815 = vmatpush.msra.mxu0 0.0
      %1816 = vmatpush.msra.mxu0 0.0
      %1817 = vmatpush.msra.mxu0 0.0
      %1818 = vmatpush.msra.mxu0 0.0
      %1819 = vmatpush.msra.mxu0 0.0
      %1820 = vmatpush.msra.mxu0 0.0
      %1821 = vmatpush.msra.mxu0 0.0
      %1822 = vmatpush.msra.mxu0 0.0
      %1823 = vmatpush.msra.mxu0 0.0
      %1824 = vmatpush.msra.mxu0 0.0
      %1825 = vmatpush.msra.mxu0 %v1678
      %1826 = vmatmul.f32.gmra.mxu0 %v1688
      %v1827 = vpop.f32.mrf.mxu0
      %v1828 = vadd.f32 0.0, %v1827
      %1829 = vdwg.mxu0
      %1830 = vmatpush.msra.mxu0 0.0
      %1831 = vmatpush.msra.mxu0 0.0
      %1832 = vmatpush.msra.mxu0 0.0
      %1833 = vmatpush.msra.mxu0 0.0
      %1834 = vmatpush.msra.mxu0 0.0
      %1835 = vmatpush.msra.mxu0 0.0
      %1836 = vmatpush.msra.mxu0 0.0
      %1837 = vmatpush.msra.mxu0 0.0
      %1838 = vmatpush.msra.mxu0 0.0
      %1839 = vmatpush.msra.mxu0 0.0
      %1840 = vmatpush.msra.mxu0 0.0
      %1841 = vmatpush.msra.mxu0 0.0
      %1842 = vmatpush.msra.mxu0 0.0
      %1843 = vmatpush.msra.mxu0 0.0
      %1844 = vmatpush.msra.mxu0 0.0
      %1845 = vmatpush.msra.mxu0 %v1670
      %1846 = vmatmul.f32.gmra.mxu0 %v1688
      %v1847 = vpop.f32.mrf.mxu0
      %v1848 = vadd.f32 0.0, %v1847
      %1849 = vdwg.mxu0
      %v1850 = vadd.f32 %v1645, %v1708
      %v1851 = vadd.f32 %v1646, %v1728
      %v1852 = vadd.f32 %v1647, %v1748
      %v1853 = vadd.f32 %v1648, %v1768
      %v1854 = vadd.f32 %v1649, %v1788
      %v1855 = vadd.f32 %v1650, %v1808
      %v1856 = vadd.f32 %v1651, %v1828
      %v1857 = vadd.f32 %v1652, %v1848
      %s1858 = scalar_lea.vmem %s2, 56
      %v1859 = vld [vmem:[%s1858] sm:$0xff]
      %1860 = vrot.lane.b32.xlu0 %v455, 67
      %v1861 = vpop.permute.xlu0 %1860
      %1862 = vrot.lane.b32.xlu0 %v456, 67
      %v1863 = vpop.permute.xlu0 %1862
      %1864 = vrot.lane.b32.xlu0 %v457, 67
      %v1865 = vpop.permute.xlu0 %1864
      %1866 = vrot.lane.b32.xlu0 %v458, 67
      %v1867 = vpop.permute.xlu0 %1866
      %1868 = vrot.lane.b32.xlu0 %v459, 67
      %v1869 = vpop.permute.xlu0 %1868
      %1870 = vrot.lane.b32.xlu0 %v460, 67
      %v1871 = vpop.permute.xlu0 %1870
      %1872 = vrot.lane.b32.xlu0 %v461, 67
      %v1873 = vpop.permute.xlu0 %1872
      %1874 = vrot.lane.b32.xlu0 %v462, 67
      %v1875 = vpop.permute.xlu0 %1874
      %vm1876 = vcmask 547840
      %v1877 = vsel %vm1876, %v1861, %v1863
      %v1878 = vsel %vm1876, %v1863, %v1865
      %v1879 = vsel %vm1876, %v1865, %v1867
      %v1880 = vsel %vm1876, %v1867, %v1869
      %v1881 = vsel %vm1876, %v1869, %v1871
      %v1882 = vsel %vm1876, %v1871, %v1873
      %v1883 = vsel %vm1876, %v1873, %v1875
      %v1893 = vsel %vm506, %v1859, 0
      %1895 = vmatpush.msra.mxu0 0.0
      %1896 = vmatpush.msra.mxu0 0.0
      %1897 = vmatpush.msra.mxu0 0.0
      %1898 = vmatpush.msra.mxu0 0.0
      %1899 = vmatpush.msra.mxu0 0.0
      %1900 = vmatpush.msra.mxu0 0.0
      %1901 = vmatpush.msra.mxu0 0.0
      %1902 = vmatpush.msra.mxu0 0.0
      %1903 = vmatpush.msra.mxu0 0.0
      %1904 = vmatpush.msra.mxu0 0.0
      %1905 = vmatpush.msra.mxu0 0.0
      %1906 = vmatpush.msra.mxu0 0.0
      %1907 = vmatpush.msra.mxu0 0.0
      %1908 = vmatpush.msra.mxu0 0.0
      %1909 = vmatpush.msra.mxu0 0.0
      %1910 = vmatpush.msra.mxu0 %v1877
      %1911 = vmatmul.f32.gmra.mxu0 %v1893
      %v1912 = vpop.f32.mrf.mxu0
      %v1913 = vadd.f32 0.0, %v1912
      %1914 = vdwg.mxu0
      %1915 = vmatpush.msra.mxu0 0.0
      %1916 = vmatpush.msra.mxu0 0.0
      %1917 = vmatpush.msra.mxu0 0.0
      %1918 = vmatpush.msra.mxu0 0.0
      %1919 = vmatpush.msra.mxu0 0.0
      %1920 = vmatpush.msra.mxu0 0.0
      %1921 = vmatpush.msra.mxu0 0.0
      %1922 = vmatpush.msra.mxu0 0.0
      %1923 = vmatpush.msra.mxu0 0.0
      %1924 = vmatpush.msra.mxu0 0.0
      %1925 = vmatpush.msra.mxu0 0.0
      %1926 = vmatpush.msra.mxu0 0.0
      %1927 = vmatpush.msra.mxu0 0.0
      %1928 = vmatpush.msra.mxu0 0.0
      %1929 = vmatpush.msra.mxu0 0.0
      %1930 = vmatpush.msra.mxu0 %v1878
      %1931 = vmatmul.f32.gmra.mxu0 %v1893
      %v1932 = vpop.f32.mrf.mxu0
      %v1933 = vadd.f32 0.0, %v1932
      %1934 = vdwg.mxu0
      %1935 = vmatpush.msra.mxu0 0.0
      %1936 = vmatpush.msra.mxu0 0.0
      %1937 = vmatpush.msra.mxu0 0.0
      %1938 = vmatpush.msra.mxu0 0.0
      %1939 = vmatpush.msra.mxu0 0.0
      %1940 = vmatpush.msra.mxu0 0.0
      %1941 = vmatpush.msra.mxu0 0.0
      %1942 = vmatpush.msra.mxu0 0.0
      %1943 = vmatpush.msra.mxu0 0.0
      %1944 = vmatpush.msra.mxu0 0.0
      %1945 = vmatpush.msra.mxu0 0.0
      %1946 = vmatpush.msra.mxu0 0.0
      %1947 = vmatpush.msra.mxu0 0.0
      %1948 = vmatpush.msra.mxu0 0.0
      %1949 = vmatpush.msra.mxu0 0.0
      %1950 = vmatpush.msra.mxu0 %v1879
      %1951 = vmatmul.f32.gmra.mxu0 %v1893
      %v1952 = vpop.f32.mrf.mxu0
      %v1953 = vadd.f32 0.0, %v1952
      %1954 = vdwg.mxu0
      %1955 = vmatpush.msra.mxu0 0.0
      %1956 = vmatpush.msra.mxu0 0.0
      %1957 = vmatpush.msra.mxu0 0.0
      %1958 = vmatpush.msra.mxu0 0.0
      %1959 = vmatpush.msra.mxu0 0.0
      %1960 = vmatpush.msra.mxu0 0.0
      %1961 = vmatpush.msra.mxu0 0.0
      %1962 = vmatpush.msra.mxu0 0.0
      %1963 = vmatpush.msra.mxu0 0.0
      %1964 = vmatpush.msra.mxu0 0.0
      %1965 = vmatpush.msra.mxu0 0.0
      %1966 = vmatpush.msra.mxu0 0.0
      %1967 = vmatpush.msra.mxu0 0.0
      %1968 = vmatpush.msra.mxu0 0.0
      %1969 = vmatpush.msra.mxu0 0.0
      %1970 = vmatpush.msra.mxu0 %v1880
      %1971 = vmatmul.f32.gmra.mxu0 %v1893
      %v1972 = vpop.f32.mrf.mxu0
      %v1973 = vadd.f32 0.0, %v1972
      %1974 = vdwg.mxu0
      %1975 = vmatpush.msra.mxu0 0.0
      %1976 = vmatpush.msra.mxu0 0.0
      %1977 = vmatpush.msra.mxu0 0.0
      %1978 = vmatpush.msra.mxu0 0.0
      %1979 = vmatpush.msra.mxu0 0.0
      %1980 = vmatpush.msra.mxu0 0.0
      %1981 = vmatpush.msra.mxu0 0.0
      %1982 = vmatpush.msra.mxu0 0.0
      %1983 = vmatpush.msra.mxu0 0.0
      %1984 = vmatpush.msra.mxu0 0.0
      %1985 = vmatpush.msra.mxu0 0.0
      %1986 = vmatpush.msra.mxu0 0.0
      %1987 = vmatpush.msra.mxu0 0.0
      %1988 = vmatpush.msra.mxu0 0.0
      %1989 = vmatpush.msra.mxu0 0.0
      %1990 = vmatpush.msra.mxu0 %v1881
      %1991 = vmatmul.f32.gmra.mxu0 %v1893
      %v1992 = vpop.f32.mrf.mxu0
      %v1993 = vadd.f32 0.0, %v1992
      %1994 = vdwg.mxu0
      %1995 = vmatpush.msra.mxu0 0.0
      %1996 = vmatpush.msra.mxu0 0.0
      %1997 = vmatpush.msra.mxu0 0.0
      %1998 = vmatpush.msra.mxu0 0.0
      %1999 = vmatpush.msra.mxu0 0.0
      %2000 = vmatpush.msra.mxu0 0.0
      %2001 = vmatpush.msra.mxu0 0.0
      %2002 = vmatpush.msra.mxu0 0.0
      %2003 = vmatpush.msra.mxu0 0.0
      %2004 = vmatpush.msra.mxu0 0.0
      %2005 = vmatpush.msra.mxu0 0.0
      %2006 = vmatpush.msra.mxu0 0.0
      %2007 = vmatpush.msra.mxu0 0.0
      %2008 = vmatpush.msra.mxu0 0.0
      %2009 = vmatpush.msra.mxu0 0.0
      %2010 = vmatpush.msra.mxu0 %v1882
      %2011 = vmatmul.f32.gmra.mxu0 %v1893
      %v2012 = vpop.f32.mrf.mxu0
      %v2013 = vadd.f32 0.0, %v2012
      %2014 = vdwg.mxu0
      %2015 = vmatpush.msra.mxu0 0.0
      %2016 = vmatpush.msra.mxu0 0.0
      %2017 = vmatpush.msra.mxu0 0.0
      %2018 = vmatpush.msra.mxu0 0.0
      %2019 = vmatpush.msra.mxu0 0.0
      %2020 = vmatpush.msra.mxu0 0.0
      %2021 = vmatpush.msra.mxu0 0.0
      %2022 = vmatpush.msra.mxu0 0.0
      %2023 = vmatpush.msra.mxu0 0.0
      %2024 = vmatpush.msra.mxu0 0.0
      %2025 = vmatpush.msra.mxu0 0.0
      %2026 = vmatpush.msra.mxu0 0.0
      %2027 = vmatpush.msra.mxu0 0.0
      %2028 = vmatpush.msra.mxu0 0.0
      %2029 = vmatpush.msra.mxu0 0.0
      %2030 = vmatpush.msra.mxu0 %v1883
      %2031 = vmatmul.f32.gmra.mxu0 %v1893
      %v2032 = vpop.f32.mrf.mxu0
      %v2033 = vadd.f32 0.0, %v2032
      %2034 = vdwg.mxu0
      %2035 = vmatpush.msra.mxu0 0.0
      %2036 = vmatpush.msra.mxu0 0.0
      %2037 = vmatpush.msra.mxu0 0.0
      %2038 = vmatpush.msra.mxu0 0.0
      %2039 = vmatpush.msra.mxu0 0.0
      %2040 = vmatpush.msra.mxu0 0.0
      %2041 = vmatpush.msra.mxu0 0.0
      %2042 = vmatpush.msra.mxu0 0.0
      %2043 = vmatpush.msra.mxu0 0.0
      %2044 = vmatpush.msra.mxu0 0.0
      %2045 = vmatpush.msra.mxu0 0.0
      %2046 = vmatpush.msra.mxu0 0.0
      %2047 = vmatpush.msra.mxu0 0.0
      %2048 = vmatpush.msra.mxu0 0.0
      %2049 = vmatpush.msra.mxu0 0.0
      %2050 = vmatpush.msra.mxu0 %v1875
      %2051 = vmatmul.f32.gmra.mxu0 %v1893
      %v2052 = vpop.f32.mrf.mxu0
      %v2053 = vadd.f32 0.0, %v2052
      %2054 = vdwg.mxu0
      %v2055 = vadd.f32 %v1850, %v1913
      %v2056 = vadd.f32 %v1851, %v1933
      %v2057 = vadd.f32 %v1852, %v1953
      %v2058 = vadd.f32 %v1853, %v1973
      %v2059 = vadd.f32 %v1854, %v1993
      %v2060 = vadd.f32 %v1855, %v2013
      %v2061 = vadd.f32 %v1856, %v2033
      %v2062 = vadd.f32 %v1857, %v2053
      %s2063 = scalar_lea.vmem %s2, 64
      %v2064 = vld [vmem:[%s2063] sm:$0xff]
      %2065 = vrot.lane.b32.xlu0 %v455, 66
      %v2066 = vpop.permute.xlu0 %2065
      %2067 = vrot.lane.b32.xlu0 %v456, 66
      %v2068 = vpop.permute.xlu0 %2067
      %2069 = vrot.lane.b32.xlu0 %v457, 66
      %v2070 = vpop.permute.xlu0 %2069
      %2071 = vrot.lane.b32.xlu0 %v458, 66
      %v2072 = vpop.permute.xlu0 %2071
      %2073 = vrot.lane.b32.xlu0 %v459, 66
      %v2074 = vpop.permute.xlu0 %2073
      %2075 = vrot.lane.b32.xlu0 %v460, 66
      %v2076 = vpop.permute.xlu0 %2075
      %2077 = vrot.lane.b32.xlu0 %v461, 66
      %v2078 = vpop.permute.xlu0 %2077
      %2079 = vrot.lane.b32.xlu0 %v462, 66
      %v2080 = vpop.permute.xlu0 %2079
      %v2081 = vsel %vm395, %v2066, %v2068
      %v2082 = vsel %vm395, %v2068, %v2070
      %v2083 = vsel %vm395, %v2070, %v2072
      %v2084 = vsel %vm395, %v2072, %v2074
      %v2085 = vsel %vm395, %v2074, %v2076
      %v2086 = vsel %vm395, %v2076, %v2078
      %v2087 = vsel %vm395, %v2078, %v2080
      %v2097 = vsel %vm506, %v2064, 0
      %2099 = vmatpush.msra.mxu0 0.0
      %2100 = vmatpush.msra.mxu0 0.0
      %2101 = vmatpush.msra.mxu0 0.0
      %2102 = vmatpush.msra.mxu0 0.0
      %2103 = vmatpush.msra.mxu0 0.0
      %2104 = vmatpush.msra.mxu0 0.0
      %2105 = vmatpush.msra.mxu0 0.0
      %2106 = vmatpush.msra.mxu0 0.0
      %2107 = vmatpush.msra.mxu0 0.0
      %2108 = vmatpush.msra.mxu0 0.0
      %2109 = vmatpush.msra.mxu0 0.0
      %2110 = vmatpush.msra.mxu0 0.0
      %2111 = vmatpush.msra.mxu0 0.0
      %2112 = vmatpush.msra.mxu0 0.0
      %2113 = vmatpush.msra.mxu0 0.0
      %2114 = vmatpush.msra.mxu0 %v2081
      %2115 = vmatmul.f32.gmra.mxu0 %v2097
      %v2116 = vpop.f32.mrf.mxu0
      %v2117 = vadd.f32 0.0, %v2116
      %2118 = vdwg.mxu0
      %2119 = vmatpush.msra.mxu0 0.0
      %2120 = vmatpush.msra.mxu0 0.0
      %2121 = vmatpush.msra.mxu0 0.0
      %2122 = vmatpush.msra.mxu0 0.0
      %2123 = vmatpush.msra.mxu0 0.0
      %2124 = vmatpush.msra.mxu0 0.0
      %2125 = vmatpush.msra.mxu0 0.0
      %2126 = vmatpush.msra.mxu0 0.0
      %2127 = vmatpush.msra.mxu0 0.0
      %2128 = vmatpush.msra.mxu0 0.0
      %2129 = vmatpush.msra.mxu0 0.0
      %2130 = vmatpush.msra.mxu0 0.0
      %2131 = vmatpush.msra.mxu0 0.0
      %2132 = vmatpush.msra.mxu0 0.0
      %2133 = vmatpush.msra.mxu0 0.0
      %2134 = vmatpush.msra.mxu0 %v2082
      %2135 = vmatmul.f32.gmra.mxu0 %v2097
      %v2136 = vpop.f32.mrf.mxu0
      %v2137 = vadd.f32 0.0, %v2136
      %2138 = vdwg.mxu0
      %2139 = vmatpush.msra.mxu0 0.0
      %2140 = vmatpush.msra.mxu0 0.0
      %2141 = vmatpush.msra.mxu0 0.0
      %2142 = vmatpush.msra.mxu0 0.0
      %2143 = vmatpush.msra.mxu0 0.0
      %2144 = vmatpush.msra.mxu0 0.0
      %2145 = vmatpush.msra.mxu0 0.0
      %2146 = vmatpush.msra.mxu0 0.0
      %2147 = vmatpush.msra.mxu0 0.0
      %2148 = vmatpush.msra.mxu0 0.0
      %2149 = vmatpush.msra.mxu0 0.0
      %2150 = vmatpush.msra.mxu0 0.0
      %2151 = vmatpush.msra.mxu0 0.0
      %2152 = vmatpush.msra.mxu0 0.0
      %2153 = vmatpush.msra.mxu0 0.0
      %2154 = vmatpush.msra.mxu0 %v2083
      %2155 = vmatmul.f32.gmra.mxu0 %v2097
      %v2156 = vpop.f32.mrf.mxu0
      %v2157 = vadd.f32 0.0, %v2156
      %2158 = vdwg.mxu0
      %2159 = vmatpush.msra.mxu0 0.0
      %2160 = vmatpush.msra.mxu0 0.0
      %2161 = vmatpush.msra.mxu0 0.0
      %2162 = vmatpush.msra.mxu0 0.0
      %2163 = vmatpush.msra.mxu0 0.0
      %2164 = vmatpush.msra.mxu0 0.0
      %2165 = vmatpush.msra.mxu0 0.0
      %2166 = vmatpush.msra.mxu0 0.0
      %2167 = vmatpush.msra.mxu0 0.0
      %2168 = vmatpush.msra.mxu0 0.0
      %2169 = vmatpush.msra.mxu0 0.0
      %2170 = vmatpush.msra.mxu0 0.0
      %2171 = vmatpush.msra.mxu0 0.0
      %2172 = vmatpush.msra.mxu0 0.0
      %2173 = vmatpush.msra.mxu0 0.0
      %2174 = vmatpush.msra.mxu0 %v2084
      %2175 = vmatmul.f32.gmra.mxu0 %v2097
      %v2176 = vpop.f32.mrf.mxu0
      %v2177 = vadd.f32 0.0, %v2176
      %2178 = vdwg.mxu0
      %2179 = vmatpush.msra.mxu0 0.0
      %2180 = vmatpush.msra.mxu0 0.0
      %2181 = vmatpush.msra.mxu0 0.0
      %2182 = vmatpush.msra.mxu0 0.0
      %2183 = vmatpush.msra.mxu0 0.0
      %2184 = vmatpush.msra.mxu0 0.0
      %2185 = vmatpush.msra.mxu0 0.0
      %2186 = vmatpush.msra.mxu0 0.0
      %2187 = vmatpush.msra.mxu0 0.0
      %2188 = vmatpush.msra.mxu0 0.0
      %2189 = vmatpush.msra.mxu0 0.0
      %2190 = vmatpush.msra.mxu0 0.0
      %2191 = vmatpush.msra.mxu0 0.0
      %2192 = vmatpush.msra.mxu0 0.0
      %2193 = vmatpush.msra.mxu0 0.0
      %2194 = vmatpush.msra.mxu0 %v2085
      %2195 = vmatmul.f32.gmra.mxu0 %v2097
      %v2196 = vpop.f32.mrf.mxu0
      %v2197 = vadd.f32 0.0, %v2196
      %2198 = vdwg.mxu0
      %2199 = vmatpush.msra.mxu0 0.0
      %2200 = vmatpush.msra.mxu0 0.0
      %2201 = vmatpush.msra.mxu0 0.0
      %2202 = vmatpush.msra.mxu0 0.0
      %2203 = vmatpush.msra.mxu0 0.0
      %2204 = vmatpush.msra.mxu0 0.0
      %2205 = vmatpush.msra.mxu0 0.0
      %2206 = vmatpush.msra.mxu0 0.0
      %2207 = vmatpush.msra.mxu0 0.0
      %2208 = vmatpush.msra.mxu0 0.0
      %2209 = vmatpush.msra.mxu0 0.0
      %2210 = vmatpush.msra.mxu0 0.0
      %2211 = vmatpush.msra.mxu0 0.0
      %2212 = vmatpush.msra.mxu0 0.0
      %2213 = vmatpush.msra.mxu0 0.0
      %2214 = vmatpush.msra.mxu0 %v2086
      %2215 = vmatmul.f32.gmra.mxu0 %v2097
      %v2216 = vpop.f32.mrf.mxu0
      %v2217 = vadd.f32 0.0, %v2216
      %2218 = vdwg.mxu0
      %2219 = vmatpush.msra.mxu0 0.0
      %2220 = vmatpush.msra.mxu0 0.0
      %2221 = vmatpush.msra.mxu0 0.0
      %2222 = vmatpush.msra.mxu0 0.0
      %2223 = vmatpush.msra.mxu0 0.0
      %2224 = vmatpush.msra.mxu0 0.0
      %2225 = vmatpush.msra.mxu0 0.0
      %2226 = vmatpush.msra.mxu0 0.0
      %2227 = vmatpush.msra.mxu0 0.0
      %2228 = vmatpush.msra.mxu0 0.0
      %2229 = vmatpush.msra.mxu0 0.0
      %2230 = vmatpush.msra.mxu0 0.0
      %2231 = vmatpush.msra.mxu0 0.0
      %2232 = vmatpush.msra.mxu0 0.0
      %2233 = vmatpush.msra.mxu0 0.0
      %2234 = vmatpush.msra.mxu0 %v2087
      %2235 = vmatmul.f32.gmra.mxu0 %v2097
      %v2236 = vpop.f32.mrf.mxu0
      %v2237 = vadd.f32 0.0, %v2236
      %2238 = vdwg.mxu0
      %2239 = vmatpush.msra.mxu0 0.0
      %2240 = vmatpush.msra.mxu0 0.0
      %2241 = vmatpush.msra.mxu0 0.0
      %2242 = vmatpush.msra.mxu0 0.0
      %2243 = vmatpush.msra.mxu0 0.0
      %2244 = vmatpush.msra.mxu0 0.0
      %2245 = vmatpush.msra.mxu0 0.0
      %2246 = vmatpush.msra.mxu0 0.0
      %2247 = vmatpush.msra.mxu0 0.0
      %2248 = vmatpush.msra.mxu0 0.0
      %2249 = vmatpush.msra.mxu0 0.0
      %2250 = vmatpush.msra.mxu0 0.0
      %2251 = vmatpush.msra.mxu0 0.0
      %2252 = vmatpush.msra.mxu0 0.0
      %2253 = vmatpush.msra.mxu0 0.0
      %2254 = vmatpush.msra.mxu0 %v2080
      %2255 = vmatmul.f32.gmra.mxu0 %v2097
      %v2256 = vpop.f32.mrf.mxu0
      %v2257 = vadd.f32 0.0, %v2256
      %2258 = vdwg.mxu0
      %v2259 = vadd.f32 %v2055, %v2117
      %v2260 = vadd.f32 %v2056, %v2137
      %v2261 = vadd.f32 %v2057, %v2157
      %v2262 = vadd.f32 %v2058, %v2177
      %v2263 = vadd.f32 %v2059, %v2197
      %v2264 = vadd.f32 %v2060, %v2217
      %v2265 = vadd.f32 %v2061, %v2237
      %v2266 = vadd.f32 %v2062, %v2257
      %v2267 = vld [vmem:[%s3] sm:$0xff]
      %2269 = vset.pattern.permute.xlu0 0
      %2270 = vperm.xlu0 %2269, %v2267
      %v2271 = vpop.permute.xlu0 %2270
      %v2273 = vadd.f32 %v2259, %v2271
      %v2274 = vadd.f32 %v2260, %v2271
      %v2275 = vadd.f32 %v2261, %v2271
      %v2276 = vadd.f32 %v2262, %v2271
      %v2277 = vadd.f32 %v2263, %v2271
      %v2278 = vadd.f32 %v2264, %v2271
      %v2279 = vadd.f32 %v2265, %v2271
      %v2280 = vadd.f32 %v2266, %v2271
      %vm2281 = vcmp.ge.f32.partialorder %v2273, 0.0
      %vm2282 = vcmp.ge.f32.partialorder %v2274, 0.0
      %vm2283 = vcmp.ge.f32.partialorder %v2275, 0.0
      %vm2284 = vcmp.ge.f32.partialorder %v2276, 0.0
      %vm2285 = vcmp.ge.f32.partialorder %v2277, 0.0
      %vm2286 = vcmp.ge.f32.partialorder %v2278, 0.0
      %vm2287 = vcmp.ge.f32.partialorder %v2279, 0.0
      %vm2288 = vcmp.ge.f32.partialorder %v2280, 0.0
      %v2289 = vmul.f32 %v2273, 0.2
      %v2290 = vmul.f32 %v2274, 0.2
      %v2291 = vmul.f32 %v2275, 0.2
      %v2292 = vmul.f32 %v2276, 0.2
      %v2293 = vmul.f32 %v2277, 0.2
      %v2294 = vmul.f32 %v2278, 0.2
      %v2295 = vmul.f32 %v2279, 0.2
      %v2296 = vmul.f32 %v2280, 0.2
      %v2297 = vsel %vm2281, %v2273, %v2289
      %v2298 = vsel %vm2282, %v2274, %v2290
      %v2299 = vsel %vm2283, %v2275, %v2291
      %v2300 = vsel %vm2284, %v2276, %v2292
      %v2301 = vsel %vm2285, %v2277, %v2293
      %v2302 = vsel %vm2286, %v2278, %v2294
      %v2303 = vsel %vm2287, %v2279, %v2295
      %v2304 = vsel %vm2288, %v2280, %v2296
      %v2306 = vperm.slane %v387, 0
      %v2307 = vperm.slane %v387, 1
      %v2308 = vperm.slane %v387, 2
      %v2309 = vperm.slane %v387, 3
      %v2310 = vperm.slane %v387, 4
      %v2311 = vperm.slane %v387, 5
      %v2312 = vperm.slane %v387, 6
      %v2313 = vperm.slane %v387, 7
      %v2322 = vmul.f32 %v2297, %v2306
      %v2323 = vmul.f32 %v2298, %v2307
      %v2324 = vmul.f32 %v2299, %v2308
      %v2325 = vmul.f32 %v2300, %v2309
      %v2326 = vmul.f32 %v2301, %v2310
      %v2327 = vmul.f32 %v2302, %v2311
      %v2328 = vmul.f32 %v2303, %v2312
      %v2329 = vmul.f32 %v2304, %v2313
      %2338 = vrot.lane.b32.xlu0 %v2322, 31
      %v2339 = vpop.permute.xlu0 %2338
      %2340 = vrot.lane.b32.xlu0 %v2323, 31
      %v2341 = vpop.permute.xlu0 %2340
      %2342 = vrot.lane.b32.xlu0 %v2324, 31
      %v2343 = vpop.permute.xlu0 %2342
      %2344 = vrot.lane.b32.xlu0 %v2325, 31
      %v2345 = vpop.permute.xlu0 %2344
      %2346 = vrot.lane.b32.xlu0 %v2326, 31
      %v2347 = vpop.permute.xlu0 %2346
      %2348 = vrot.lane.b32.xlu0 %v2327, 31
      %v2349 = vpop.permute.xlu0 %2348
      %2350 = vrot.lane.b32.xlu0 %v2328, 31
      %v2351 = vpop.permute.xlu0 %2350
      %2352 = vrot.lane.b32.xlu0 %v2329, 31
      %v2353 = vpop.permute.xlu0 %2352
      %v2354 = vsel %vm429, %v2339, %v2341
      %v2355 = vsel %vm429, %v2341, %v2343
      %v2356 = vsel %vm429, %v2343, %v2345
      %v2357 = vsel %vm429, %v2345, %v2347
      %v2358 = vsel %vm429, %v2347, %v2349
      %v2359 = vsel %vm429, %v2349, %v2351
      %v2360 = vsel %vm429, %v2351, %v2353
      %2369 = vst.msk [vmem:[#allocation2] sm:$0xff] %vm445, %v2339
      %2370 = vst [vmem:[#allocation2 + $0x8] sm:$0xff] %v2354
      %2371 = vst [vmem:[#allocation2 + $0x10] sm:$0xff] %v2355
      %2372 = vst [vmem:[#allocation2 + $0x18] sm:$0xff] %v2356
      %2373 = vst [vmem:[#allocation2 + $0x20] sm:$0xff] %v2357
      %2374 = vst [vmem:[#allocation2 + $0x28] sm:$0xff] %v2358
      %2375 = vst [vmem:[#allocation2 + $0x30] sm:$0xff] %v2359
      %2376 = vst.msk [vmem:[#allocation2 + $0x38] sm:$0xff] %vm453, %v2360
      %v2377 = vld [vmem:[#allocation2] sm:$0xff]
      %v2378 = vld [vmem:[#allocation2 + $0x8] sm:$0xff]
      %v2379 = vld [vmem:[#allocation2 + $0x10] sm:$0xff]
      %v2380 = vld [vmem:[#allocation2 + $0x18] sm:$0xff]
      %v2381 = vld [vmem:[#allocation2 + $0x20] sm:$0xff]
      %v2382 = vld [vmem:[#allocation2 + $0x28] sm:$0xff]
      %v2383 = vld [vmem:[#allocation2 + $0x30] sm:$0xff]
      %v2384 = vld [vmem:[#allocation2 + $0x38] sm:$0xff]
      %v2385 = vld [vmem:[%s4] sm:$0xff]
      %s2386 = scalar_lea.vmem %s4, 8
      %v2387 = vld [vmem:[%s2386] sm:$0xff]
      %2396 = vrot.lane.b32.xlu0 %v2377, 127
      %v2397 = vpop.permute.xlu0 %2396
      %2398 = vrot.lane.b32.xlu0 %v2378, 127
      %v2399 = vpop.permute.xlu0 %2398
      %2400 = vrot.lane.b32.xlu0 %v2379, 127
      %v2401 = vpop.permute.xlu0 %2400
      %2402 = vrot.lane.b32.xlu0 %v2380, 127
      %v2403 = vpop.permute.xlu0 %2402
      %2404 = vrot.lane.b32.xlu0 %v2381, 127
      %v2405 = vpop.permute.xlu0 %2404
      %2406 = vrot.lane.b32.xlu0 %v2382, 127
      %v2407 = vpop.permute.xlu0 %2406
      %2408 = vrot.lane.b32.xlu0 %v2383, 127
      %v2409 = vpop.permute.xlu0 %2408
      %2410 = vrot.lane.b32.xlu0 %v2384, 127
      %v2411 = vpop.permute.xlu0 %2410
      %v2412 = vsel %vm490, %v2397, %v2399
      %v2413 = vsel %vm490, %v2399, %v2401
      %v2414 = vsel %vm490, %v2401, %v2403
      %v2415 = vsel %vm490, %v2403, %v2405
      %v2416 = vsel %vm490, %v2405, %v2407
      %v2417 = vsel %vm490, %v2407, %v2409
      %v2418 = vsel %vm490, %v2409, %v2411
      %v2428 = vsel %vm506, %v2387, 0
      %2430 = vmatpush.msra.mxu0 0.0
      %2431 = vmatpush.msra.mxu0 0.0
      %2432 = vmatpush.msra.mxu0 0.0
      %2433 = vmatpush.msra.mxu0 0.0
      %2434 = vmatpush.msra.mxu0 0.0
      %2435 = vmatpush.msra.mxu0 0.0
      %2436 = vmatpush.msra.mxu0 0.0
      %2437 = vmatpush.msra.mxu0 0.0
      %2438 = vmatpush.msra.mxu0 0.0
      %2439 = vmatpush.msra.mxu0 0.0
      %2440 = vmatpush.msra.mxu0 0.0
      %2441 = vmatpush.msra.mxu0 0.0
      %2442 = vmatpush.msra.mxu0 0.0
      %2443 = vmatpush.msra.mxu0 0.0
      %2444 = vmatpush.msra.mxu0 0.0
      %2445 = vmatpush.msra.mxu0 %v2412
      %2446 = vmatmul.f32.gmra.mxu0 %v2428
      %v2447 = vpop.f32.mrf.mxu0
      %v2448 = vadd.f32 0.0, %v2447
      %2449 = vdwg.mxu0
      %2450 = vmatpush.msra.mxu0 0.0
      %2451 = vmatpush.msra.mxu0 0.0
      %2452 = vmatpush.msra.mxu0 0.0
      %2453 = vmatpush.msra.mxu0 0.0
      %2454 = vmatpush.msra.mxu0 0.0
      %2455 = vmatpush.msra.mxu0 0.0
      %2456 = vmatpush.msra.mxu0 0.0
      %2457 = vmatpush.msra.mxu0 0.0
      %2458 = vmatpush.msra.mxu0 0.0
      %2459 = vmatpush.msra.mxu0 0.0
      %2460 = vmatpush.msra.mxu0 0.0
      %2461 = vmatpush.msra.mxu0 0.0
      %2462 = vmatpush.msra.mxu0 0.0
      %2463 = vmatpush.msra.mxu0 0.0
      %2464 = vmatpush.msra.mxu0 0.0
      %2465 = vmatpush.msra.mxu0 %v2413
      %2466 = vmatmul.f32.gmra.mxu0 %v2428
      %v2467 = vpop.f32.mrf.mxu0
      %v2468 = vadd.f32 0.0, %v2467
      %2469 = vdwg.mxu0
      %2470 = vmatpush.msra.mxu0 0.0
      %2471 = vmatpush.msra.mxu0 0.0
      %2472 = vmatpush.msra.mxu0 0.0
      %2473 = vmatpush.msra.mxu0 0.0
      %2474 = vmatpush.msra.mxu0 0.0
      %2475 = vmatpush.msra.mxu0 0.0
      %2476 = vmatpush.msra.mxu0 0.0
      %2477 = vmatpush.msra.mxu0 0.0
      %2478 = vmatpush.msra.mxu0 0.0
      %2479 = vmatpush.msra.mxu0 0.0
      %2480 = vmatpush.msra.mxu0 0.0
      %2481 = vmatpush.msra.mxu0 0.0
      %2482 = vmatpush.msra.mxu0 0.0
      %2483 = vmatpush.msra.mxu0 0.0
      %2484 = vmatpush.msra.mxu0 0.0
      %2485 = vmatpush.msra.mxu0 %v2414
      %2486 = vmatmul.f32.gmra.mxu0 %v2428
      %v2487 = vpop.f32.mrf.mxu0
      %v2488 = vadd.f32 0.0, %v2487
      %2489 = vdwg.mxu0
      %2490 = vmatpush.msra.mxu0 0.0
      %2491 = vmatpush.msra.mxu0 0.0
      %2492 = vmatpush.msra.mxu0 0.0
      %2493 = vmatpush.msra.mxu0 0.0
      %2494 = vmatpush.msra.mxu0 0.0
      %2495 = vmatpush.msra.mxu0 0.0
      %2496 = vmatpush.msra.mxu0 0.0
      %2497 = vmatpush.msra.mxu0 0.0
      %2498 = vmatpush.msra.mxu0 0.0
      %2499 = vmatpush.msra.mxu0 0.0
      %2500 = vmatpush.msra.mxu0 0.0
      %2501 = vmatpush.msra.mxu0 0.0
      %2502 = vmatpush.msra.mxu0 0.0
      %2503 = vmatpush.msra.mxu0 0.0
      %2504 = vmatpush.msra.mxu0 0.0
      %2505 = vmatpush.msra.mxu0 %v2415
      %2506 = vmatmul.f32.gmra.mxu0 %v2428
      %v2507 = vpop.f32.mrf.mxu0
      %v2508 = vadd.f32 0.0, %v2507
      %2509 = vdwg.mxu0
      %2510 = vmatpush.msra.mxu0 0.0
      %2511 = vmatpush.msra.mxu0 0.0
      %2512 = vmatpush.msra.mxu0 0.0
      %2513 = vmatpush.msra.mxu0 0.0
      %2514 = vmatpush.msra.mxu0 0.0
      %2515 = vmatpush.msra.mxu0 0.0
      %2516 = vmatpush.msra.mxu0 0.0
      %2517 = vmatpush.msra.mxu0 0.0
      %2518 = vmatpush.msra.mxu0 0.0
      %2519 = vmatpush.msra.mxu0 0.0
      %2520 = vmatpush.msra.mxu0 0.0
      %2521 = vmatpush.msra.mxu0 0.0
      %2522 = vmatpush.msra.mxu0 0.0
      %2523 = vmatpush.msra.mxu0 0.0
      %2524 = vmatpush.msra.mxu0 0.0
      %2525 = vmatpush.msra.mxu0 %v2416
      %2526 = vmatmul.f32.gmra.mxu0 %v2428
      %v2527 = vpop.f32.mrf.mxu0
      %v2528 = vadd.f32 0.0, %v2527
      %2529 = vdwg.mxu0
      %2530 = vmatpush.msra.mxu0 0.0
      %2531 = vmatpush.msra.mxu0 0.0
      %2532 = vmatpush.msra.mxu0 0.0
      %2533 = vmatpush.msra.mxu0 0.0
      %2534 = vmatpush.msra.mxu0 0.0
      %2535 = vmatpush.msra.mxu0 0.0
      %2536 = vmatpush.msra.mxu0 0.0
      %2537 = vmatpush.msra.mxu0 0.0
      %2538 = vmatpush.msra.mxu0 0.0
      %2539 = vmatpush.msra.mxu0 0.0
      %2540 = vmatpush.msra.mxu0 0.0
      %2541 = vmatpush.msra.mxu0 0.0
      %2542 = vmatpush.msra.mxu0 0.0
      %2543 = vmatpush.msra.mxu0 0.0
      %2544 = vmatpush.msra.mxu0 0.0
      %2545 = vmatpush.msra.mxu0 %v2417
      %2546 = vmatmul.f32.gmra.mxu0 %v2428
      %v2547 = vpop.f32.mrf.mxu0
      %v2548 = vadd.f32 0.0, %v2547
      %2549 = vdwg.mxu0
      %2550 = vmatpush.msra.mxu0 0.0
      %2551 = vmatpush.msra.mxu0 0.0
      %2552 = vmatpush.msra.mxu0 0.0
      %2553 = vmatpush.msra.mxu0 0.0
      %2554 = vmatpush.msra.mxu0 0.0
      %2555 = vmatpush.msra.mxu0 0.0
      %2556 = vmatpush.msra.mxu0 0.0
      %2557 = vmatpush.msra.mxu0 0.0
      %2558 = vmatpush.msra.mxu0 0.0
      %2559 = vmatpush.msra.mxu0 0.0
      %2560 = vmatpush.msra.mxu0 0.0
      %2561 = vmatpush.msra.mxu0 0.0
      %2562 = vmatpush.msra.mxu0 0.0
      %2563 = vmatpush.msra.mxu0 0.0
      %2564 = vmatpush.msra.mxu0 0.0
      %2565 = vmatpush.msra.mxu0 %v2418
      %2566 = vmatmul.f32.gmra.mxu0 %v2428
      %v2567 = vpop.f32.mrf.mxu0
      %v2568 = vadd.f32 0.0, %v2567
      %2569 = vdwg.mxu0
      %2570 = vmatpush.msra.mxu0 0.0
      %2571 = vmatpush.msra.mxu0 0.0
      %2572 = vmatpush.msra.mxu0 0.0
      %2573 = vmatpush.msra.mxu0 0.0
      %2574 = vmatpush.msra.mxu0 0.0
      %2575 = vmatpush.msra.mxu0 0.0
      %2576 = vmatpush.msra.mxu0 0.0
      %2577 = vmatpush.msra.mxu0 0.0
      %2578 = vmatpush.msra.mxu0 0.0
      %2579 = vmatpush.msra.mxu0 0.0
      %2580 = vmatpush.msra.mxu0 0.0
      %2581 = vmatpush.msra.mxu0 0.0
      %2582 = vmatpush.msra.mxu0 0.0
      %2583 = vmatpush.msra.mxu0 0.0
      %2584 = vmatpush.msra.mxu0 0.0
      %2585 = vmatpush.msra.mxu0 %v2411
      %2586 = vmatmul.f32.gmra.mxu0 %v2428
      %v2587 = vpop.f32.mrf.mxu0
      %v2588 = vadd.f32 0.0, %v2587
      %2589 = vdwg.mxu0
      %v2591 = vsel %vm506, %v2385, 0
      %2593 = vmatpush.msra.mxu0 0.0
      %2594 = vmatpush.msra.mxu0 0.0
      %2595 = vmatpush.msra.mxu0 0.0
      %2596 = vmatpush.msra.mxu0 0.0
      %2597 = vmatpush.msra.mxu0 0.0
      %2598 = vmatpush.msra.mxu0 0.0
      %2599 = vmatpush.msra.mxu0 0.0
      %2600 = vmatpush.msra.mxu0 0.0
      %2601 = vmatpush.msra.mxu0 0.0
      %2602 = vmatpush.msra.mxu0 0.0
      %2603 = vmatpush.msra.mxu0 0.0
      %2604 = vmatpush.msra.mxu0 0.0
      %2605 = vmatpush.msra.mxu0 0.0
      %2606 = vmatpush.msra.mxu0 0.0
      %2607 = vmatpush.msra.mxu0 0.0
      %2608 = vmatpush.msra.mxu0 %v2377
      %2609 = vmatmul.f32.gmra.mxu0 %v2591
      %v2610 = vpop.f32.mrf.mxu0
      %v2611 = vadd.f32 %v2448, %v2610
      %2612 = vdwg.mxu0
      %2613 = vmatpush.msra.mxu0 0.0
      %2614 = vmatpush.msra.mxu0 0.0
      %2615 = vmatpush.msra.mxu0 0.0
      %2616 = vmatpush.msra.mxu0 0.0
      %2617 = vmatpush.msra.mxu0 0.0
      %2618 = vmatpush.msra.mxu0 0.0
      %2619 = vmatpush.msra.mxu0 0.0
      %2620 = vmatpush.msra.mxu0 0.0
      %2621 = vmatpush.msra.mxu0 0.0
      %2622 = vmatpush.msra.mxu0 0.0
      %2623 = vmatpush.msra.mxu0 0.0
      %2624 = vmatpush.msra.mxu0 0.0
      %2625 = vmatpush.msra.mxu0 0.0
      %2626 = vmatpush.msra.mxu0 0.0
      %2627 = vmatpush.msra.mxu0 0.0
      %2628 = vmatpush.msra.mxu0 %v2378
      %2629 = vmatmul.f32.gmra.mxu0 %v2591
      %v2630 = vpop.f32.mrf.mxu0
      %v2631 = vadd.f32 %v2468, %v2630
      %2632 = vdwg.mxu0
      %2633 = vmatpush.msra.mxu0 0.0
      %2634 = vmatpush.msra.mxu0 0.0
      %2635 = vmatpush.msra.mxu0 0.0
      %2636 = vmatpush.msra.mxu0 0.0
      %2637 = vmatpush.msra.mxu0 0.0
      %2638 = vmatpush.msra.mxu0 0.0
      %2639 = vmatpush.msra.mxu0 0.0
      %2640 = vmatpush.msra.mxu0 0.0
      %2641 = vmatpush.msra.mxu0 0.0
      %2642 = vmatpush.msra.mxu0 0.0
      %2643 = vmatpush.msra.mxu0 0.0
      %2644 = vmatpush.msra.mxu0 0.0
      %2645 = vmatpush.msra.mxu0 0.0
      %2646 = vmatpush.msra.mxu0 0.0
      %2647 = vmatpush.msra.mxu0 0.0
      %2648 = vmatpush.msra.mxu0 %v2379
      %2649 = vmatmul.f32.gmra.mxu0 %v2591
      %v2650 = vpop.f32.mrf.mxu0
      %v2651 = vadd.f32 %v2488, %v2650
      %2652 = vdwg.mxu0
      %2653 = vmatpush.msra.mxu0 0.0
      %2654 = vmatpush.msra.mxu0 0.0
      %2655 = vmatpush.msra.mxu0 0.0
      %2656 = vmatpush.msra.mxu0 0.0
      %2657 = vmatpush.msra.mxu0 0.0
      %2658 = vmatpush.msra.mxu0 0.0
      %2659 = vmatpush.msra.mxu0 0.0
      %2660 = vmatpush.msra.mxu0 0.0
      %2661 = vmatpush.msra.mxu0 0.0
      %2662 = vmatpush.msra.mxu0 0.0
      %2663 = vmatpush.msra.mxu0 0.0
      %2664 = vmatpush.msra.mxu0 0.0
      %2665 = vmatpush.msra.mxu0 0.0
      %2666 = vmatpush.msra.mxu0 0.0
      %2667 = vmatpush.msra.mxu0 0.0
      %2668 = vmatpush.msra.mxu0 %v2380
      %2669 = vmatmul.f32.gmra.mxu0 %v2591
      %v2670 = vpop.f32.mrf.mxu0
      %v2671 = vadd.f32 %v2508, %v2670
      %2672 = vdwg.mxu0
      %2673 = vmatpush.msra.mxu0 0.0
      %2674 = vmatpush.msra.mxu0 0.0
      %2675 = vmatpush.msra.mxu0 0.0
      %2676 = vmatpush.msra.mxu0 0.0
      %2677 = vmatpush.msra.mxu0 0.0
      %2678 = vmatpush.msra.mxu0 0.0
      %2679 = vmatpush.msra.mxu0 0.0
      %2680 = vmatpush.msra.mxu0 0.0
      %2681 = vmatpush.msra.mxu0 0.0
      %2682 = vmatpush.msra.mxu0 0.0
      %2683 = vmatpush.msra.mxu0 0.0
      %2684 = vmatpush.msra.mxu0 0.0
      %2685 = vmatpush.msra.mxu0 0.0
      %2686 = vmatpush.msra.mxu0 0.0
      %2687 = vmatpush.msra.mxu0 0.0
      %2688 = vmatpush.msra.mxu0 %v2381
      %2689 = vmatmul.f32.gmra.mxu0 %v2591
      %v2690 = vpop.f32.mrf.mxu0
      %v2691 = vadd.f32 %v2528, %v2690
      %2692 = vdwg.mxu0
      %2693 = vmatpush.msra.mxu0 0.0
      %2694 = vmatpush.msra.mxu0 0.0
      %2695 = vmatpush.msra.mxu0 0.0
      %2696 = vmatpush.msra.mxu0 0.0
      %2697 = vmatpush.msra.mxu0 0.0
      %2698 = vmatpush.msra.mxu0 0.0
      %2699 = vmatpush.msra.mxu0 0.0
      %2700 = vmatpush.msra.mxu0 0.0
      %2701 = vmatpush.msra.mxu0 0.0
      %2702 = vmatpush.msra.mxu0 0.0
      %2703 = vmatpush.msra.mxu0 0.0
      %2704 = vmatpush.msra.mxu0 0.0
      %2705 = vmatpush.msra.mxu0 0.0
      %2706 = vmatpush.msra.mxu0 0.0
      %2707 = vmatpush.msra.mxu0 0.0
      %2708 = vmatpush.msra.mxu0 %v2382
      %2709 = vmatmul.f32.gmra.mxu0 %v2591
      %v2710 = vpop.f32.mrf.mxu0
      %v2711 = vadd.f32 %v2548, %v2710
      %2712 = vdwg.mxu0
      %2713 = vmatpush.msra.mxu0 0.0
      %2714 = vmatpush.msra.mxu0 0.0
      %2715 = vmatpush.msra.mxu0 0.0
      %2716 = vmatpush.msra.mxu0 0.0
      %2717 = vmatpush.msra.mxu0 0.0
      %2718 = vmatpush.msra.mxu0 0.0
      %2719 = vmatpush.msra.mxu0 0.0
      %2720 = vmatpush.msra.mxu0 0.0
      %2721 = vmatpush.msra.mxu0 0.0
      %2722 = vmatpush.msra.mxu0 0.0
      %2723 = vmatpush.msra.mxu0 0.0
      %2724 = vmatpush.msra.mxu0 0.0
      %2725 = vmatpush.msra.mxu0 0.0
      %2726 = vmatpush.msra.mxu0 0.0
      %2727 = vmatpush.msra.mxu0 0.0
      %2728 = vmatpush.msra.mxu0 %v2383
      %2729 = vmatmul.f32.gmra.mxu0 %v2591
      %v2730 = vpop.f32.mrf.mxu0
      %v2731 = vadd.f32 %v2568, %v2730
      %2732 = vdwg.mxu0
      %2733 = vmatpush.msra.mxu0 0.0
      %2734 = vmatpush.msra.mxu0 0.0
      %2735 = vmatpush.msra.mxu0 0.0
      %2736 = vmatpush.msra.mxu0 0.0
      %2737 = vmatpush.msra.mxu0 0.0
      %2738 = vmatpush.msra.mxu0 0.0
      %2739 = vmatpush.msra.mxu0 0.0
      %2740 = vmatpush.msra.mxu0 0.0
      %2741 = vmatpush.msra.mxu0 0.0
      %2742 = vmatpush.msra.mxu0 0.0
      %2743 = vmatpush.msra.mxu0 0.0
      %2744 = vmatpush.msra.mxu0 0.0
      %2745 = vmatpush.msra.mxu0 0.0
      %2746 = vmatpush.msra.mxu0 0.0
      %2747 = vmatpush.msra.mxu0 0.0
      %2748 = vmatpush.msra.mxu0 %v2384
      %2749 = vmatmul.f32.gmra.mxu0 %v2591
      %v2750 = vpop.f32.mrf.mxu0
      %v2751 = vadd.f32 %v2588, %v2750
      %2752 = vdwg.mxu0
      %s2753 = scalar_lea.vmem %s4, 16
      %v2754 = vld [vmem:[%s2753] sm:$0xff]
      %2755 = vrot.lane.b32.xlu0 %v2377, 126
      %v2756 = vpop.permute.xlu0 %2755
      %2757 = vrot.lane.b32.xlu0 %v2378, 126
      %v2758 = vpop.permute.xlu0 %2757
      %2759 = vrot.lane.b32.xlu0 %v2379, 126
      %v2760 = vpop.permute.xlu0 %2759
      %2761 = vrot.lane.b32.xlu0 %v2380, 126
      %v2762 = vpop.permute.xlu0 %2761
      %2763 = vrot.lane.b32.xlu0 %v2381, 126
      %v2764 = vpop.permute.xlu0 %2763
      %2765 = vrot.lane.b32.xlu0 %v2382, 126
      %v2766 = vpop.permute.xlu0 %2765
      %2767 = vrot.lane.b32.xlu0 %v2383, 126
      %v2768 = vpop.permute.xlu0 %2767
      %2769 = vrot.lane.b32.xlu0 %v2384, 126
      %v2770 = vpop.permute.xlu0 %2769
      %v2771 = vsel %vm851, %v2756, %v2758
      %v2772 = vsel %vm851, %v2758, %v2760
      %v2773 = vsel %vm851, %v2760, %v2762
      %v2774 = vsel %vm851, %v2762, %v2764
      %v2775 = vsel %vm851, %v2764, %v2766
      %v2776 = vsel %vm851, %v2766, %v2768
      %v2777 = vsel %vm851, %v2768, %v2770
      %v2787 = vsel %vm506, %v2754, 0
      %2789 = vmatpush.msra.mxu0 0.0
      %2790 = vmatpush.msra.mxu0 0.0
      %2791 = vmatpush.msra.mxu0 0.0
      %2792 = vmatpush.msra.mxu0 0.0
      %2793 = vmatpush.msra.mxu0 0.0
      %2794 = vmatpush.msra.mxu0 0.0
      %2795 = vmatpush.msra.mxu0 0.0
      %2796 = vmatpush.msra.mxu0 0.0
      %2797 = vmatpush.msra.mxu0 0.0
      %2798 = vmatpush.msra.mxu0 0.0
      %2799 = vmatpush.msra.mxu0 0.0
      %2800 = vmatpush.msra.mxu0 0.0
      %2801 = vmatpush.msra.mxu0 0.0
      %2802 = vmatpush.msra.mxu0 0.0
      %2803 = vmatpush.msra.mxu0 0.0
      %2804 = vmatpush.msra.mxu0 %v2771
      %2805 = vmatmul.f32.gmra.mxu0 %v2787
      %v2806 = vpop.f32.mrf.mxu0
      %v2807 = vadd.f32 0.0, %v2806
      %2808 = vdwg.mxu0
      %2809 = vmatpush.msra.mxu0 0.0
      %2810 = vmatpush.msra.mxu0 0.0
      %2811 = vmatpush.msra.mxu0 0.0
      %2812 = vmatpush.msra.mxu0 0.0
      %2813 = vmatpush.msra.mxu0 0.0
      %2814 = vmatpush.msra.mxu0 0.0
      %2815 = vmatpush.msra.mxu0 0.0
      %2816 = vmatpush.msra.mxu0 0.0
      %2817 = vmatpush.msra.mxu0 0.0
      %2818 = vmatpush.msra.mxu0 0.0
      %2819 = vmatpush.msra.mxu0 0.0
      %2820 = vmatpush.msra.mxu0 0.0
      %2821 = vmatpush.msra.mxu0 0.0
      %2822 = vmatpush.msra.mxu0 0.0
      %2823 = vmatpush.msra.mxu0 0.0
      %2824 = vmatpush.msra.mxu0 %v2772
      %2825 = vmatmul.f32.gmra.mxu0 %v2787
      %v2826 = vpop.f32.mrf.mxu0
      %v2827 = vadd.f32 0.0, %v2826
      %2828 = vdwg.mxu0
      %2829 = vmatpush.msra.mxu0 0.0
      %2830 = vmatpush.msra.mxu0 0.0
      %2831 = vmatpush.msra.mxu0 0.0
      %2832 = vmatpush.msra.mxu0 0.0
      %2833 = vmatpush.msra.mxu0 0.0
      %2834 = vmatpush.msra.mxu0 0.0
      %2835 = vmatpush.msra.mxu0 0.0
      %2836 = vmatpush.msra.mxu0 0.0
      %2837 = vmatpush.msra.mxu0 0.0
      %2838 = vmatpush.msra.mxu0 0.0
      %2839 = vmatpush.msra.mxu0 0.0
      %2840 = vmatpush.msra.mxu0 0.0
      %2841 = vmatpush.msra.mxu0 0.0
      %2842 = vmatpush.msra.mxu0 0.0
      %2843 = vmatpush.msra.mxu0 0.0
      %2844 = vmatpush.msra.mxu0 %v2773
      %2845 = vmatmul.f32.gmra.mxu0 %v2787
      %v2846 = vpop.f32.mrf.mxu0
      %v2847 = vadd.f32 0.0, %v2846
      %2848 = vdwg.mxu0
      %2849 = vmatpush.msra.mxu0 0.0
      %2850 = vmatpush.msra.mxu0 0.0
      %2851 = vmatpush.msra.mxu0 0.0
      %2852 = vmatpush.msra.mxu0 0.0
      %2853 = vmatpush.msra.mxu0 0.0
      %2854 = vmatpush.msra.mxu0 0.0
      %2855 = vmatpush.msra.mxu0 0.0
      %2856 = vmatpush.msra.mxu0 0.0
      %2857 = vmatpush.msra.mxu0 0.0
      %2858 = vmatpush.msra.mxu0 0.0
      %2859 = vmatpush.msra.mxu0 0.0
      %2860 = vmatpush.msra.mxu0 0.0
      %2861 = vmatpush.msra.mxu0 0.0
      %2862 = vmatpush.msra.mxu0 0.0
      %2863 = vmatpush.msra.mxu0 0.0
      %2864 = vmatpush.msra.mxu0 %v2774
      %2865 = vmatmul.f32.gmra.mxu0 %v2787
      %v2866 = vpop.f32.mrf.mxu0
      %v2867 = vadd.f32 0.0, %v2866
      %2868 = vdwg.mxu0
      %2869 = vmatpush.msra.mxu0 0.0
      %2870 = vmatpush.msra.mxu0 0.0
      %2871 = vmatpush.msra.mxu0 0.0
      %2872 = vmatpush.msra.mxu0 0.0
      %2873 = vmatpush.msra.mxu0 0.0
      %2874 = vmatpush.msra.mxu0 0.0
      %2875 = vmatpush.msra.mxu0 0.0
      %2876 = vmatpush.msra.mxu0 0.0
      %2877 = vmatpush.msra.mxu0 0.0
      %2878 = vmatpush.msra.mxu0 0.0
      %2879 = vmatpush.msra.mxu0 0.0
      %2880 = vmatpush.msra.mxu0 0.0
      %2881 = vmatpush.msra.mxu0 0.0
      %2882 = vmatpush.msra.mxu0 0.0
      %2883 = vmatpush.msra.mxu0 0.0
      %2884 = vmatpush.msra.mxu0 %v2775
      %2885 = vmatmul.f32.gmra.mxu0 %v2787
      %v2886 = vpop.f32.mrf.mxu0
      %v2887 = vadd.f32 0.0, %v2886
      %2888 = vdwg.mxu0
      %2889 = vmatpush.msra.mxu0 0.0
      %2890 = vmatpush.msra.mxu0 0.0
      %2891 = vmatpush.msra.mxu0 0.0
      %2892 = vmatpush.msra.mxu0 0.0
      %2893 = vmatpush.msra.mxu0 0.0
      %2894 = vmatpush.msra.mxu0 0.0
      %2895 = vmatpush.msra.mxu0 0.0
      %2896 = vmatpush.msra.mxu0 0.0
      %2897 = vmatpush.msra.mxu0 0.0
      %2898 = vmatpush.msra.mxu0 0.0
      %2899 = vmatpush.msra.mxu0 0.0
      %2900 = vmatpush.msra.mxu0 0.0
      %2901 = vmatpush.msra.mxu0 0.0
      %2902 = vmatpush.msra.mxu0 0.0
      %2903 = vmatpush.msra.mxu0 0.0
      %2904 = vmatpush.msra.mxu0 %v2776
      %2905 = vmatmul.f32.gmra.mxu0 %v2787
      %v2906 = vpop.f32.mrf.mxu0
      %v2907 = vadd.f32 0.0, %v2906
      %2908 = vdwg.mxu0
      %2909 = vmatpush.msra.mxu0 0.0
      %2910 = vmatpush.msra.mxu0 0.0
      %2911 = vmatpush.msra.mxu0 0.0
      %2912 = vmatpush.msra.mxu0 0.0
      %2913 = vmatpush.msra.mxu0 0.0
      %2914 = vmatpush.msra.mxu0 0.0
      %2915 = vmatpush.msra.mxu0 0.0
      %2916 = vmatpush.msra.mxu0 0.0
      %2917 = vmatpush.msra.mxu0 0.0
      %2918 = vmatpush.msra.mxu0 0.0
      %2919 = vmatpush.msra.mxu0 0.0
      %2920 = vmatpush.msra.mxu0 0.0
      %2921 = vmatpush.msra.mxu0 0.0
      %2922 = vmatpush.msra.mxu0 0.0
      %2923 = vmatpush.msra.mxu0 0.0
      %2924 = vmatpush.msra.mxu0 %v2777
      %2925 = vmatmul.f32.gmra.mxu0 %v2787
      %v2926 = vpop.f32.mrf.mxu0
      %v2927 = vadd.f32 0.0, %v2926
      %2928 = vdwg.mxu0
      %2929 = vmatpush.msra.mxu0 0.0
      %2930 = vmatpush.msra.mxu0 0.0
      %2931 = vmatpush.msra.mxu0 0.0
      %2932 = vmatpush.msra.mxu0 0.0
      %2933 = vmatpush.msra.mxu0 0.0
      %2934 = vmatpush.msra.mxu0 0.0
      %2935 = vmatpush.msra.mxu0 0.0
      %2936 = vmatpush.msra.mxu0 0.0
      %2937 = vmatpush.msra.mxu0 0.0
      %2938 = vmatpush.msra.mxu0 0.0
      %2939 = vmatpush.msra.mxu0 0.0
      %2940 = vmatpush.msra.mxu0 0.0
      %2941 = vmatpush.msra.mxu0 0.0
      %2942 = vmatpush.msra.mxu0 0.0
      %2943 = vmatpush.msra.mxu0 0.0
      %2944 = vmatpush.msra.mxu0 %v2770
      %2945 = vmatmul.f32.gmra.mxu0 %v2787
      %v2946 = vpop.f32.mrf.mxu0
      %v2947 = vadd.f32 0.0, %v2946
      %2948 = vdwg.mxu0
      %v2949 = vadd.f32 %v2611, %v2807
      %v2950 = vadd.f32 %v2631, %v2827
      %v2951 = vadd.f32 %v2651, %v2847
      %v2952 = vadd.f32 %v2671, %v2867
      %v2953 = vadd.f32 %v2691, %v2887
      %v2954 = vadd.f32 %v2711, %v2907
      %v2955 = vadd.f32 %v2731, %v2927
      %v2956 = vadd.f32 %v2751, %v2947
      %s2957 = scalar_lea.vmem %s4, 24
      %v2958 = vld [vmem:[%s2957] sm:$0xff]
      %2959 = vrot.lane.b32.xlu0 %v2377, 98
      %v2960 = vpop.permute.xlu0 %2959
      %2961 = vrot.lane.b32.xlu0 %v2378, 98
      %v2962 = vpop.permute.xlu0 %2961
      %2963 = vrot.lane.b32.xlu0 %v2379, 98
      %v2964 = vpop.permute.xlu0 %2963
      %2965 = vrot.lane.b32.xlu0 %v2380, 98
      %v2966 = vpop.permute.xlu0 %2965
      %2967 = vrot.lane.b32.xlu0 %v2381, 98
      %v2968 = vpop.permute.xlu0 %2967
      %2969 = vrot.lane.b32.xlu0 %v2382, 98
      %v2970 = vpop.permute.xlu0 %2969
      %2971 = vrot.lane.b32.xlu0 %v2383, 98
      %v2972 = vpop.permute.xlu0 %2971
      %2973 = vrot.lane.b32.xlu0 %v2384, 98
      %v2974 = vpop.permute.xlu0 %2973
      %v2975 = vsel %vm1056, %v2960, %v2962
      %v2976 = vsel %vm1056, %v2962, %v2964
      %v2977 = vsel %vm1056, %v2964, %v2966
      %v2978 = vsel %vm1056, %v2966, %v2968
      %v2979 = vsel %vm1056, %v2968, %v2970
      %v2980 = vsel %vm1056, %v2970, %v2972
      %v2981 = vsel %vm1056, %v2972, %v2974
      %v2991 = vsel %vm506, %v2958, 0
      %2993 = vmatpush.msra.mxu0 0.0
      %2994 = vmatpush.msra.mxu0 0.0
      %2995 = vmatpush.msra.mxu0 0.0
      %2996 = vmatpush.msra.mxu0 0.0
      %2997 = vmatpush.msra.mxu0 0.0
      %2998 = vmatpush.msra.mxu0 0.0
      %2999 = vmatpush.msra.mxu0 0.0
      %3000 = vmatpush.msra.mxu0 0.0
      %3001 = vmatpush.msra.mxu0 0.0
      %3002 = vmatpush.msra.mxu0 0.0
      %3003 = vmatpush.msra.mxu0 0.0
      %3004 = vmatpush.msra.mxu0 0.0
      %3005 = vmatpush.msra.mxu0 0.0
      %3006 = vmatpush.msra.mxu0 0.0
      %3007 = vmatpush.msra.mxu0 0.0
      %3008 = vmatpush.msra.mxu0 %v2975
      %3009 = vmatmul.f32.gmra.mxu0 %v2991
      %v3010 = vpop.f32.mrf.mxu0
      %v3011 = vadd.f32 0.0, %v3010
      %3012 = vdwg.mxu0
      %3013 = vmatpush.msra.mxu0 0.0
      %3014 = vmatpush.msra.mxu0 0.0
      %3015 = vmatpush.msra.mxu0 0.0
      %3016 = vmatpush.msra.mxu0 0.0
      %3017 = vmatpush.msra.mxu0 0.0
      %3018 = vmatpush.msra.mxu0 0.0
      %3019 = vmatpush.msra.mxu0 0.0
      %3020 = vmatpush.msra.mxu0 0.0
      %3021 = vmatpush.msra.mxu0 0.0
      %3022 = vmatpush.msra.mxu0 0.0
      %3023 = vmatpush.msra.mxu0 0.0
      %3024 = vmatpush.msra.mxu0 0.0
      %3025 = vmatpush.msra.mxu0 0.0
      %3026 = vmatpush.msra.mxu0 0.0
      %3027 = vmatpush.msra.mxu0 0.0
      %3028 = vmatpush.msra.mxu0 %v2976
      %3029 = vmatmul.f32.gmra.mxu0 %v2991
      %v3030 = vpop.f32.mrf.mxu0
      %v3031 = vadd.f32 0.0, %v3030
      %3032 = vdwg.mxu0
      %3033 = vmatpush.msra.mxu0 0.0
      %3034 = vmatpush.msra.mxu0 0.0
      %3035 = vmatpush.msra.mxu0 0.0
      %3036 = vmatpush.msra.mxu0 0.0
      %3037 = vmatpush.msra.mxu0 0.0
      %3038 = vmatpush.msra.mxu0 0.0
      %3039 = vmatpush.msra.mxu0 0.0
      %3040 = vmatpush.msra.mxu0 0.0
      %3041 = vmatpush.msra.mxu0 0.0
      %3042 = vmatpush.msra.mxu0 0.0
      %3043 = vmatpush.msra.mxu0 0.0
      %3044 = vmatpush.msra.mxu0 0.0
      %3045 = vmatpush.msra.mxu0 0.0
      %3046 = vmatpush.msra.mxu0 0.0
      %3047 = vmatpush.msra.mxu0 0.0
      %3048 = vmatpush.msra.mxu0 %v2977
      %3049 = vmatmul.f32.gmra.mxu0 %v2991
      %v3050 = vpop.f32.mrf.mxu0
      %v3051 = vadd.f32 0.0, %v3050
      %3052 = vdwg.mxu0
      %3053 = vmatpush.msra.mxu0 0.0
      %3054 = vmatpush.msra.mxu0 0.0
      %3055 = vmatpush.msra.mxu0 0.0
      %3056 = vmatpush.msra.mxu0 0.0
      %3057 = vmatpush.msra.mxu0 0.0
      %3058 = vmatpush.msra.mxu0 0.0
      %3059 = vmatpush.msra.mxu0 0.0
      %3060 = vmatpush.msra.mxu0 0.0
      %3061 = vmatpush.msra.mxu0 0.0
      %3062 = vmatpush.msra.mxu0 0.0
      %3063 = vmatpush.msra.mxu0 0.0
      %3064 = vmatpush.msra.mxu0 0.0
      %3065 = vmatpush.msra.mxu0 0.0
      %3066 = vmatpush.msra.mxu0 0.0
      %3067 = vmatpush.msra.mxu0 0.0
      %3068 = vmatpush.msra.mxu0 %v2978
      %3069 = vmatmul.f32.gmra.mxu0 %v2991
      %v3070 = vpop.f32.mrf.mxu0
      %v3071 = vadd.f32 0.0, %v3070
      %3072 = vdwg.mxu0
      %3073 = vmatpush.msra.mxu0 0.0
      %3074 = vmatpush.msra.mxu0 0.0
      %3075 = vmatpush.msra.mxu0 0.0
      %3076 = vmatpush.msra.mxu0 0.0
      %3077 = vmatpush.msra.mxu0 0.0
      %3078 = vmatpush.msra.mxu0 0.0
      %3079 = vmatpush.msra.mxu0 0.0
      %3080 = vmatpush.msra.mxu0 0.0
      %3081 = vmatpush.msra.mxu0 0.0
      %3082 = vmatpush.msra.mxu0 0.0
      %3083 = vmatpush.msra.mxu0 0.0
      %3084 = vmatpush.msra.mxu0 0.0
      %3085 = vmatpush.msra.mxu0 0.0
      %3086 = vmatpush.msra.mxu0 0.0
      %3087 = vmatpush.msra.mxu0 0.0
      %3088 = vmatpush.msra.mxu0 %v2979
      %3089 = vmatmul.f32.gmra.mxu0 %v2991
      %v3090 = vpop.f32.mrf.mxu0
      %v3091 = vadd.f32 0.0, %v3090
      %3092 = vdwg.mxu0
      %3093 = vmatpush.msra.mxu0 0.0
      %3094 = vmatpush.msra.mxu0 0.0
      %3095 = vmatpush.msra.mxu0 0.0
      %3096 = vmatpush.msra.mxu0 0.0
      %3097 = vmatpush.msra.mxu0 0.0
      %3098 = vmatpush.msra.mxu0 0.0
      %3099 = vmatpush.msra.mxu0 0.0
      %3100 = vmatpush.msra.mxu0 0.0
      %3101 = vmatpush.msra.mxu0 0.0
      %3102 = vmatpush.msra.mxu0 0.0
      %3103 = vmatpush.msra.mxu0 0.0
      %3104 = vmatpush.msra.mxu0 0.0
      %3105 = vmatpush.msra.mxu0 0.0
      %3106 = vmatpush.msra.mxu0 0.0
      %3107 = vmatpush.msra.mxu0 0.0
      %3108 = vmatpush.msra.mxu0 %v2980
      %3109 = vmatmul.f32.gmra.mxu0 %v2991
      %v3110 = vpop.f32.mrf.mxu0
      %v3111 = vadd.f32 0.0, %v3110
      %3112 = vdwg.mxu0
      %3113 = vmatpush.msra.mxu0 0.0
      %3114 = vmatpush.msra.mxu0 0.0
      %3115 = vmatpush.msra.mxu0 0.0
      %3116 = vmatpush.msra.mxu0 0.0
      %3117 = vmatpush.msra.mxu0 0.0
      %3118 = vmatpush.msra.mxu0 0.0
      %3119 = vmatpush.msra.mxu0 0.0
      %3120 = vmatpush.msra.mxu0 0.0
      %3121 = vmatpush.msra.mxu0 0.0
      %3122 = vmatpush.msra.mxu0 0.0
      %3123 = vmatpush.msra.mxu0 0.0
      %3124 = vmatpush.msra.mxu0 0.0
      %3125 = vmatpush.msra.mxu0 0.0
      %3126 = vmatpush.msra.mxu0 0.0
      %3127 = vmatpush.msra.mxu0 0.0
      %3128 = vmatpush.msra.mxu0 %v2981
      %3129 = vmatmul.f32.gmra.mxu0 %v2991
      %v3130 = vpop.f32.mrf.mxu0
      %v3131 = vadd.f32 0.0, %v3130
      %3132 = vdwg.mxu0
      %3133 = vmatpush.msra.mxu0 0.0
      %3134 = vmatpush.msra.mxu0 0.0
      %3135 = vmatpush.msra.mxu0 0.0
      %3136 = vmatpush.msra.mxu0 0.0
      %3137 = vmatpush.msra.mxu0 0.0
      %3138 = vmatpush.msra.mxu0 0.0
      %3139 = vmatpush.msra.mxu0 0.0
      %3140 = vmatpush.msra.mxu0 0.0
      %3141 = vmatpush.msra.mxu0 0.0
      %3142 = vmatpush.msra.mxu0 0.0
      %3143 = vmatpush.msra.mxu0 0.0
      %3144 = vmatpush.msra.mxu0 0.0
      %3145 = vmatpush.msra.mxu0 0.0
      %3146 = vmatpush.msra.mxu0 0.0
      %3147 = vmatpush.msra.mxu0 0.0
      %3148 = vmatpush.msra.mxu0 %v2974
      %3149 = vmatmul.f32.gmra.mxu0 %v2991
      %v3150 = vpop.f32.mrf.mxu0
      %v3151 = vadd.f32 0.0, %v3150
      %3152 = vdwg.mxu0
      %v3153 = vadd.f32 %v2949, %v3011
      %v3154 = vadd.f32 %v2950, %v3031
      %v3155 = vadd.f32 %v2951, %v3051
      %v3156 = vadd.f32 %v2952, %v3071
      %v3157 = vadd.f32 %v2953, %v3091
      %v3158 = vadd.f32 %v2954, %v3111
      %v3159 = vadd.f32 %v2955, %v3131
      %v3160 = vadd.f32 %v2956, %v3151
      %s3161 = scalar_lea.vmem %s4, 32
      %v3162 = vld [vmem:[%s3161] sm:$0xff]
      %3163 = vrot.lane.b32.xlu0 %v2377, 97
      %v3164 = vpop.permute.xlu0 %3163
      %3165 = vrot.lane.b32.xlu0 %v2378, 97
      %v3166 = vpop.permute.xlu0 %3165
      %3167 = vrot.lane.b32.xlu0 %v2379, 97
      %v3168 = vpop.permute.xlu0 %3167
      %3169 = vrot.lane.b32.xlu0 %v2380, 97
      %v3170 = vpop.permute.xlu0 %3169
      %3171 = vrot.lane.b32.xlu0 %v2381, 97
      %v3172 = vpop.permute.xlu0 %3171
      %3173 = vrot.lane.b32.xlu0 %v2382, 97
      %v3174 = vpop.permute.xlu0 %3173
      %3175 = vrot.lane.b32.xlu0 %v2383, 97
      %v3176 = vpop.permute.xlu0 %3175
      %3177 = vrot.lane.b32.xlu0 %v2384, 97
      %v3178 = vpop.permute.xlu0 %3177
      %v3179 = vsel %vm1261, %v3164, %v3166
      %v3180 = vsel %vm1261, %v3166, %v3168
      %v3181 = vsel %vm1261, %v3168, %v3170
      %v3182 = vsel %vm1261, %v3170, %v3172
      %v3183 = vsel %vm1261, %v3172, %v3174
      %v3184 = vsel %vm1261, %v3174, %v3176
      %v3185 = vsel %vm1261, %v3176, %v3178
      %v3195 = vsel %vm506, %v3162, 0
      %3197 = vmatpush.msra.mxu0 0.0
      %3198 = vmatpush.msra.mxu0 0.0
      %3199 = vmatpush.msra.mxu0 0.0
      %3200 = vmatpush.msra.mxu0 0.0
      %3201 = vmatpush.msra.mxu0 0.0
      %3202 = vmatpush.msra.mxu0 0.0
      %3203 = vmatpush.msra.mxu0 0.0
      %3204 = vmatpush.msra.mxu0 0.0
      %3205 = vmatpush.msra.mxu0 0.0
      %3206 = vmatpush.msra.mxu0 0.0
      %3207 = vmatpush.msra.mxu0 0.0
      %3208 = vmatpush.msra.mxu0 0.0
      %3209 = vmatpush.msra.mxu0 0.0
      %3210 = vmatpush.msra.mxu0 0.0
      %3211 = vmatpush.msra.mxu0 0.0
      %3212 = vmatpush.msra.mxu0 %v3179
      %3213 = vmatmul.f32.gmra.mxu0 %v3195
      %v3214 = vpop.f32.mrf.mxu0
      %v3215 = vadd.f32 0.0, %v3214
      %3216 = vdwg.mxu0
      %3217 = vmatpush.msra.mxu0 0.0
      %3218 = vmatpush.msra.mxu0 0.0
      %3219 = vmatpush.msra.mxu0 0.0
      %3220 = vmatpush.msra.mxu0 0.0
      %3221 = vmatpush.msra.mxu0 0.0
      %3222 = vmatpush.msra.mxu0 0.0
      %3223 = vmatpush.msra.mxu0 0.0
      %3224 = vmatpush.msra.mxu0 0.0
      %3225 = vmatpush.msra.mxu0 0.0
      %3226 = vmatpush.msra.mxu0 0.0
      %3227 = vmatpush.msra.mxu0 0.0
      %3228 = vmatpush.msra.mxu0 0.0
      %3229 = vmatpush.msra.mxu0 0.0
      %3230 = vmatpush.msra.mxu0 0.0
      %3231 = vmatpush.msra.mxu0 0.0
      %3232 = vmatpush.msra.mxu0 %v3180
      %3233 = vmatmul.f32.gmra.mxu0 %v3195
      %v3234 = vpop.f32.mrf.mxu0
      %v3235 = vadd.f32 0.0, %v3234
      %3236 = vdwg.mxu0
      %3237 = vmatpush.msra.mxu0 0.0
      %3238 = vmatpush.msra.mxu0 0.0
      %3239 = vmatpush.msra.mxu0 0.0
      %3240 = vmatpush.msra.mxu0 0.0
      %3241 = vmatpush.msra.mxu0 0.0
      %3242 = vmatpush.msra.mxu0 0.0
      %3243 = vmatpush.msra.mxu0 0.0
      %3244 = vmatpush.msra.mxu0 0.0
      %3245 = vmatpush.msra.mxu0 0.0
      %3246 = vmatpush.msra.mxu0 0.0
      %3247 = vmatpush.msra.mxu0 0.0
      %3248 = vmatpush.msra.mxu0 0.0
      %3249 = vmatpush.msra.mxu0 0.0
      %3250 = vmatpush.msra.mxu0 0.0
      %3251 = vmatpush.msra.mxu0 0.0
      %3252 = vmatpush.msra.mxu0 %v3181
      %3253 = vmatmul.f32.gmra.mxu0 %v3195
      %v3254 = vpop.f32.mrf.mxu0
      %v3255 = vadd.f32 0.0, %v3254
      %3256 = vdwg.mxu0
      %3257 = vmatpush.msra.mxu0 0.0
      %3258 = vmatpush.msra.mxu0 0.0
      %3259 = vmatpush.msra.mxu0 0.0
      %3260 = vmatpush.msra.mxu0 0.0
      %3261 = vmatpush.msra.mxu0 0.0
      %3262 = vmatpush.msra.mxu0 0.0
      %3263 = vmatpush.msra.mxu0 0.0
      %3264 = vmatpush.msra.mxu0 0.0
      %3265 = vmatpush.msra.mxu0 0.0
      %3266 = vmatpush.msra.mxu0 0.0
      %3267 = vmatpush.msra.mxu0 0.0
      %3268 = vmatpush.msra.mxu0 0.0
      %3269 = vmatpush.msra.mxu0 0.0
      %3270 = vmatpush.msra.mxu0 0.0
      %3271 = vmatpush.msra.mxu0 0.0
      %3272 = vmatpush.msra.mxu0 %v3182
      %3273 = vmatmul.f32.gmra.mxu0 %v3195
      %v3274 = vpop.f32.mrf.mxu0
      %v3275 = vadd.f32 0.0, %v3274
      %3276 = vdwg.mxu0
      %3277 = vmatpush.msra.mxu0 0.0
      %3278 = vmatpush.msra.mxu0 0.0
      %3279 = vmatpush.msra.mxu0 0.0
      %3280 = vmatpush.msra.mxu0 0.0
      %3281 = vmatpush.msra.mxu0 0.0
      %3282 = vmatpush.msra.mxu0 0.0
      %3283 = vmatpush.msra.mxu0 0.0
      %3284 = vmatpush.msra.mxu0 0.0
      %3285 = vmatpush.msra.mxu0 0.0
      %3286 = vmatpush.msra.mxu0 0.0
      %3287 = vmatpush.msra.mxu0 0.0
      %3288 = vmatpush.msra.mxu0 0.0
      %3289 = vmatpush.msra.mxu0 0.0
      %3290 = vmatpush.msra.mxu0 0.0
      %3291 = vmatpush.msra.mxu0 0.0
      %3292 = vmatpush.msra.mxu0 %v3183
      %3293 = vmatmul.f32.gmra.mxu0 %v3195
      %v3294 = vpop.f32.mrf.mxu0
      %v3295 = vadd.f32 0.0, %v3294
      %3296 = vdwg.mxu0
      %3297 = vmatpush.msra.mxu0 0.0
      %3298 = vmatpush.msra.mxu0 0.0
      %3299 = vmatpush.msra.mxu0 0.0
      %3300 = vmatpush.msra.mxu0 0.0
      %3301 = vmatpush.msra.mxu0 0.0
      %3302 = vmatpush.msra.mxu0 0.0
      %3303 = vmatpush.msra.mxu0 0.0
      %3304 = vmatpush.msra.mxu0 0.0
      %3305 = vmatpush.msra.mxu0 0.0
      %3306 = vmatpush.msra.mxu0 0.0
      %3307 = vmatpush.msra.mxu0 0.0
      %3308 = vmatpush.msra.mxu0 0.0
      %3309 = vmatpush.msra.mxu0 0.0
      %3310 = vmatpush.msra.mxu0 0.0
      %3311 = vmatpush.msra.mxu0 0.0
      %3312 = vmatpush.msra.mxu0 %v3184
      %3313 = vmatmul.f32.gmra.mxu0 %v3195
      %v3314 = vpop.f32.mrf.mxu0
      %v3315 = vadd.f32 0.0, %v3314
      %3316 = vdwg.mxu0
      %3317 = vmatpush.msra.mxu0 0.0
      %3318 = vmatpush.msra.mxu0 0.0
      %3319 = vmatpush.msra.mxu0 0.0
      %3320 = vmatpush.msra.mxu0 0.0
      %3321 = vmatpush.msra.mxu0 0.0
      %3322 = vmatpush.msra.mxu0 0.0
      %3323 = vmatpush.msra.mxu0 0.0
      %3324 = vmatpush.msra.mxu0 0.0
      %3325 = vmatpush.msra.mxu0 0.0
      %3326 = vmatpush.msra.mxu0 0.0
      %3327 = vmatpush.msra.mxu0 0.0
      %3328 = vmatpush.msra.mxu0 0.0
      %3329 = vmatpush.msra.mxu0 0.0
      %3330 = vmatpush.msra.mxu0 0.0
      %3331 = vmatpush.msra.mxu0 0.0
      %3332 = vmatpush.msra.mxu0 %v3185
      %3333 = vmatmul.f32.gmra.mxu0 %v3195
      %v3334 = vpop.f32.mrf.mxu0
      %v3335 = vadd.f32 0.0, %v3334
      %3336 = vdwg.mxu0
      %3337 = vmatpush.msra.mxu0 0.0
      %3338 = vmatpush.msra.mxu0 0.0
      %3339 = vmatpush.msra.mxu0 0.0
      %3340 = vmatpush.msra.mxu0 0.0
      %3341 = vmatpush.msra.mxu0 0.0
      %3342 = vmatpush.msra.mxu0 0.0
      %3343 = vmatpush.msra.mxu0 0.0
      %3344 = vmatpush.msra.mxu0 0.0
      %3345 = vmatpush.msra.mxu0 0.0
      %3346 = vmatpush.msra.mxu0 0.0
      %3347 = vmatpush.msra.mxu0 0.0
      %3348 = vmatpush.msra.mxu0 0.0
      %3349 = vmatpush.msra.mxu0 0.0
      %3350 = vmatpush.msra.mxu0 0.0
      %3351 = vmatpush.msra.mxu0 0.0
      %3352 = vmatpush.msra.mxu0 %v3178
      %3353 = vmatmul.f32.gmra.mxu0 %v3195
      %v3354 = vpop.f32.mrf.mxu0
      %v3355 = vadd.f32 0.0, %v3354
      %3356 = vdwg.mxu0
      %v3357 = vadd.f32 %v3153, %v3215
      %v3358 = vadd.f32 %v3154, %v3235
      %v3359 = vadd.f32 %v3155, %v3255
      %v3360 = vadd.f32 %v3156, %v3275
      %v3361 = vadd.f32 %v3157, %v3295
      %v3362 = vadd.f32 %v3158, %v3315
      %v3363 = vadd.f32 %v3159, %v3335
      %v3364 = vadd.f32 %v3160, %v3355
      %s3365 = scalar_lea.vmem %s4, 40
      %v3366 = vld [vmem:[%s3365] sm:$0xff]
      %3367 = vrot.lane.b32.xlu0 %v2377, 96
      %v3368 = vpop.permute.xlu0 %3367
      %3369 = vrot.lane.b32.xlu0 %v2378, 96
      %v3370 = vpop.permute.xlu0 %3369
      %3371 = vrot.lane.b32.xlu0 %v2379, 96
      %v3372 = vpop.permute.xlu0 %3371
      %3373 = vrot.lane.b32.xlu0 %v2380, 96
      %v3374 = vpop.permute.xlu0 %3373
      %3375 = vrot.lane.b32.xlu0 %v2381, 96
      %v3376 = vpop.permute.xlu0 %3375
      %3377 = vrot.lane.b32.xlu0 %v2382, 96
      %v3378 = vpop.permute.xlu0 %3377
      %3379 = vrot.lane.b32.xlu0 %v2383, 96
      %v3380 = vpop.permute.xlu0 %3379
      %3381 = vrot.lane.b32.xlu0 %v2384, 96
      %v3382 = vpop.permute.xlu0 %3381
      %v3383 = vsel %vm1466, %v3368, %v3370
      %v3384 = vsel %vm1466, %v3370, %v3372
      %v3385 = vsel %vm1466, %v3372, %v3374
      %v3386 = vsel %vm1466, %v3374, %v3376
      %v3387 = vsel %vm1466, %v3376, %v3378
      %v3388 = vsel %vm1466, %v3378, %v3380
      %v3389 = vsel %vm1466, %v3380, %v3382
      %v3399 = vsel %vm506, %v3366, 0
      %3401 = vmatpush.msra.mxu0 0.0
      %3402 = vmatpush.msra.mxu0 0.0
      %3403 = vmatpush.msra.mxu0 0.0
      %3404 = vmatpush.msra.mxu0 0.0
      %3405 = vmatpush.msra.mxu0 0.0
      %3406 = vmatpush.msra.mxu0 0.0
      %3407 = vmatpush.msra.mxu0 0.0
      %3408 = vmatpush.msra.mxu0 0.0
      %3409 = vmatpush.msra.mxu0 0.0
      %3410 = vmatpush.msra.mxu0 0.0
      %3411 = vmatpush.msra.mxu0 0.0
      %3412 = vmatpush.msra.mxu0 0.0
      %3413 = vmatpush.msra.mxu0 0.0
      %3414 = vmatpush.msra.mxu0 0.0
      %3415 = vmatpush.msra.mxu0 0.0
      %3416 = vmatpush.msra.mxu0 %v3383
      %3417 = vmatmul.f32.gmra.mxu0 %v3399
      %v3418 = vpop.f32.mrf.mxu0
      %v3419 = vadd.f32 0.0, %v3418
      %3420 = vdwg.mxu0
      %3421 = vmatpush.msra.mxu0 0.0
      %3422 = vmatpush.msra.mxu0 0.0
      %3423 = vmatpush.msra.mxu0 0.0
      %3424 = vmatpush.msra.mxu0 0.0
      %3425 = vmatpush.msra.mxu0 0.0
      %3426 = vmatpush.msra.mxu0 0.0
      %3427 = vmatpush.msra.mxu0 0.0
      %3428 = vmatpush.msra.mxu0 0.0
      %3429 = vmatpush.msra.mxu0 0.0
      %3430 = vmatpush.msra.mxu0 0.0
      %3431 = vmatpush.msra.mxu0 0.0
      %3432 = vmatpush.msra.mxu0 0.0
      %3433 = vmatpush.msra.mxu0 0.0
      %3434 = vmatpush.msra.mxu0 0.0
      %3435 = vmatpush.msra.mxu0 0.0
      %3436 = vmatpush.msra.mxu0 %v3384
      %3437 = vmatmul.f32.gmra.mxu0 %v3399
      %v3438 = vpop.f32.mrf.mxu0
      %v3439 = vadd.f32 0.0, %v3438
      %3440 = vdwg.mxu0
      %3441 = vmatpush.msra.mxu0 0.0
      %3442 = vmatpush.msra.mxu0 0.0
      %3443 = vmatpush.msra.mxu0 0.0
      %3444 = vmatpush.msra.mxu0 0.0
      %3445 = vmatpush.msra.mxu0 0.0
      %3446 = vmatpush.msra.mxu0 0.0
      %3447 = vmatpush.msra.mxu0 0.0
      %3448 = vmatpush.msra.mxu0 0.0
      %3449 = vmatpush.msra.mxu0 0.0
      %3450 = vmatpush.msra.mxu0 0.0
      %3451 = vmatpush.msra.mxu0 0.0
      %3452 = vmatpush.msra.mxu0 0.0
      %3453 = vmatpush.msra.mxu0 0.0
      %3454 = vmatpush.msra.mxu0 0.0
      %3455 = vmatpush.msra.mxu0 0.0
      %3456 = vmatpush.msra.mxu0 %v3385
      %3457 = vmatmul.f32.gmra.mxu0 %v3399
      %v3458 = vpop.f32.mrf.mxu0
      %v3459 = vadd.f32 0.0, %v3458
      %3460 = vdwg.mxu0
      %3461 = vmatpush.msra.mxu0 0.0
      %3462 = vmatpush.msra.mxu0 0.0
      %3463 = vmatpush.msra.mxu0 0.0
      %3464 = vmatpush.msra.mxu0 0.0
      %3465 = vmatpush.msra.mxu0 0.0
      %3466 = vmatpush.msra.mxu0 0.0
      %3467 = vmatpush.msra.mxu0 0.0
      %3468 = vmatpush.msra.mxu0 0.0
      %3469 = vmatpush.msra.mxu0 0.0
      %3470 = vmatpush.msra.mxu0 0.0
      %3471 = vmatpush.msra.mxu0 0.0
      %3472 = vmatpush.msra.mxu0 0.0
      %3473 = vmatpush.msra.mxu0 0.0
      %3474 = vmatpush.msra.mxu0 0.0
      %3475 = vmatpush.msra.mxu0 0.0
      %3476 = vmatpush.msra.mxu0 %v3386
      %3477 = vmatmul.f32.gmra.mxu0 %v3399
      %v3478 = vpop.f32.mrf.mxu0
      %v3479 = vadd.f32 0.0, %v3478
      %3480 = vdwg.mxu0
      %3481 = vmatpush.msra.mxu0 0.0
      %3482 = vmatpush.msra.mxu0 0.0
      %3483 = vmatpush.msra.mxu0 0.0
      %3484 = vmatpush.msra.mxu0 0.0
      %3485 = vmatpush.msra.mxu0 0.0
      %3486 = vmatpush.msra.mxu0 0.0
      %3487 = vmatpush.msra.mxu0 0.0
      %3488 = vmatpush.msra.mxu0 0.0
      %3489 = vmatpush.msra.mxu0 0.0
      %3490 = vmatpush.msra.mxu0 0.0
      %3491 = vmatpush.msra.mxu0 0.0
      %3492 = vmatpush.msra.mxu0 0.0
      %3493 = vmatpush.msra.mxu0 0.0
      %3494 = vmatpush.msra.mxu0 0.0
      %3495 = vmatpush.msra.mxu0 0.0
      %3496 = vmatpush.msra.mxu0 %v3387
      %3497 = vmatmul.f32.gmra.mxu0 %v3399
      %v3498 = vpop.f32.mrf.mxu0
      %v3499 = vadd.f32 0.0, %v3498
      %3500 = vdwg.mxu0
      %3501 = vmatpush.msra.mxu0 0.0
      %3502 = vmatpush.msra.mxu0 0.0
      %3503 = vmatpush.msra.mxu0 0.0
      %3504 = vmatpush.msra.mxu0 0.0
      %3505 = vmatpush.msra.mxu0 0.0
      %3506 = vmatpush.msra.mxu0 0.0
      %3507 = vmatpush.msra.mxu0 0.0
      %3508 = vmatpush.msra.mxu0 0.0
      %3509 = vmatpush.msra.mxu0 0.0
      %3510 = vmatpush.msra.mxu0 0.0
      %3511 = vmatpush.msra.mxu0 0.0
      %3512 = vmatpush.msra.mxu0 0.0
      %3513 = vmatpush.msra.mxu0 0.0
      %3514 = vmatpush.msra.mxu0 0.0
      %3515 = vmatpush.msra.mxu0 0.0
      %3516 = vmatpush.msra.mxu0 %v3388
      %3517 = vmatmul.f32.gmra.mxu0 %v3399
      %v3518 = vpop.f32.mrf.mxu0
      %v3519 = vadd.f32 0.0, %v3518
      %3520 = vdwg.mxu0
      %3521 = vmatpush.msra.mxu0 0.0
      %3522 = vmatpush.msra.mxu0 0.0
      %3523 = vmatpush.msra.mxu0 0.0
      %3524 = vmatpush.msra.mxu0 0.0
      %3525 = vmatpush.msra.mxu0 0.0
      %3526 = vmatpush.msra.mxu0 0.0
      %3527 = vmatpush.msra.mxu0 0.0
      %3528 = vmatpush.msra.mxu0 0.0
      %3529 = vmatpush.msra.mxu0 0.0
      %3530 = vmatpush.msra.mxu0 0.0
      %3531 = vmatpush.msra.mxu0 0.0
      %3532 = vmatpush.msra.mxu0 0.0
      %3533 = vmatpush.msra.mxu0 0.0
      %3534 = vmatpush.msra.mxu0 0.0
      %3535 = vmatpush.msra.mxu0 0.0
      %3536 = vmatpush.msra.mxu0 %v3389
      %3537 = vmatmul.f32.gmra.mxu0 %v3399
      %v3538 = vpop.f32.mrf.mxu0
      %v3539 = vadd.f32 0.0, %v3538
      %3540 = vdwg.mxu0
      %3541 = vmatpush.msra.mxu0 0.0
      %3542 = vmatpush.msra.mxu0 0.0
      %3543 = vmatpush.msra.mxu0 0.0
      %3544 = vmatpush.msra.mxu0 0.0
      %3545 = vmatpush.msra.mxu0 0.0
      %3546 = vmatpush.msra.mxu0 0.0
      %3547 = vmatpush.msra.mxu0 0.0
      %3548 = vmatpush.msra.mxu0 0.0
      %3549 = vmatpush.msra.mxu0 0.0
      %3550 = vmatpush.msra.mxu0 0.0
      %3551 = vmatpush.msra.mxu0 0.0
      %3552 = vmatpush.msra.mxu0 0.0
      %3553 = vmatpush.msra.mxu0 0.0
      %3554 = vmatpush.msra.mxu0 0.0
      %3555 = vmatpush.msra.mxu0 0.0
      %3556 = vmatpush.msra.mxu0 %v3382
      %3557 = vmatmul.f32.gmra.mxu0 %v3399
      %v3558 = vpop.f32.mrf.mxu0
      %v3559 = vadd.f32 0.0, %v3558
      %3560 = vdwg.mxu0
      %v3561 = vadd.f32 %v3357, %v3419
      %v3562 = vadd.f32 %v3358, %v3439
      %v3563 = vadd.f32 %v3359, %v3459
      %v3564 = vadd.f32 %v3360, %v3479
      %v3565 = vadd.f32 %v3361, %v3499
      %v3566 = vadd.f32 %v3362, %v3519
      %v3567 = vadd.f32 %v3363, %v3539
      %v3568 = vadd.f32 %v3364, %v3559
      %s3569 = scalar_lea.vmem %s4, 48
      %v3570 = vld [vmem:[%s3569] sm:$0xff]
      %3571 = vrot.lane.b32.xlu0 %v2377, 68
      %v3572 = vpop.permute.xlu0 %3571
      %3573 = vrot.lane.b32.xlu0 %v2378, 68
      %v3574 = vpop.permute.xlu0 %3573
      %3575 = vrot.lane.b32.xlu0 %v2379, 68
      %v3576 = vpop.permute.xlu0 %3575
      %3577 = vrot.lane.b32.xlu0 %v2380, 68
      %v3578 = vpop.permute.xlu0 %3577
      %3579 = vrot.lane.b32.xlu0 %v2381, 68
      %v3580 = vpop.permute.xlu0 %3579
      %3581 = vrot.lane.b32.xlu0 %v2382, 68
      %v3582 = vpop.permute.xlu0 %3581
      %3583 = vrot.lane.b32.xlu0 %v2383, 68
      %v3584 = vpop.permute.xlu0 %3583
      %3585 = vrot.lane.b32.xlu0 %v2384, 68
      %v3586 = vpop.permute.xlu0 %3585
      %v3587 = vsel %vm1671, %v3572, %v3574
      %v3588 = vsel %vm1671, %v3574, %v3576
      %v3589 = vsel %vm1671, %v3576, %v3578
      %v3590 = vsel %vm1671, %v3578, %v3580
      %v3591 = vsel %vm1671, %v3580, %v3582
      %v3592 = vsel %vm1671, %v3582, %v3584
      %v3593 = vsel %vm1671, %v3584, %v3586
      %v3603 = vsel %vm506, %v3570, 0
      %3605 = vmatpush.msra.mxu0 0.0
      %3606 = vmatpush.msra.mxu0 0.0
      %3607 = vmatpush.msra.mxu0 0.0
      %3608 = vmatpush.msra.mxu0 0.0
      %3609 = vmatpush.msra.mxu0 0.0
      %3610 = vmatpush.msra.mxu0 0.0
      %3611 = vmatpush.msra.mxu0 0.0
      %3612 = vmatpush.msra.mxu0 0.0
      %3613 = vmatpush.msra.mxu0 0.0
      %3614 = vmatpush.msra.mxu0 0.0
      %3615 = vmatpush.msra.mxu0 0.0
      %3616 = vmatpush.msra.mxu0 0.0
      %3617 = vmatpush.msra.mxu0 0.0
      %3618 = vmatpush.msra.mxu0 0.0
      %3619 = vmatpush.msra.mxu0 0.0
      %3620 = vmatpush.msra.mxu0 %v3587
      %3621 = vmatmul.f32.gmra.mxu0 %v3603
      %v3622 = vpop.f32.mrf.mxu0
      %v3623 = vadd.f32 0.0, %v3622
      %3624 = vdwg.mxu0
      %3625 = vmatpush.msra.mxu0 0.0
      %3626 = vmatpush.msra.mxu0 0.0
      %3627 = vmatpush.msra.mxu0 0.0
      %3628 = vmatpush.msra.mxu0 0.0
      %3629 = vmatpush.msra.mxu0 0.0
      %3630 = vmatpush.msra.mxu0 0.0
      %3631 = vmatpush.msra.mxu0 0.0
      %3632 = vmatpush.msra.mxu0 0.0
      %3633 = vmatpush.msra.mxu0 0.0
      %3634 = vmatpush.msra.mxu0 0.0
      %3635 = vmatpush.msra.mxu0 0.0
      %3636 = vmatpush.msra.mxu0 0.0
      %3637 = vmatpush.msra.mxu0 0.0
      %3638 = vmatpush.msra.mxu0 0.0
      %3639 = vmatpush.msra.mxu0 0.0
      %3640 = vmatpush.msra.mxu0 %v3588
      %3641 = vmatmul.f32.gmra.mxu0 %v3603
      %v3642 = vpop.f32.mrf.mxu0
      %v3643 = vadd.f32 0.0, %v3642
      %3644 = vdwg.mxu0
      %3645 = vmatpush.msra.mxu0 0.0
      %3646 = vmatpush.msra.mxu0 0.0
      %3647 = vmatpush.msra.mxu0 0.0
      %3648 = vmatpush.msra.mxu0 0.0
      %3649 = vmatpush.msra.mxu0 0.0
      %3650 = vmatpush.msra.mxu0 0.0
      %3651 = vmatpush.msra.mxu0 0.0
      %3652 = vmatpush.msra.mxu0 0.0
      %3653 = vmatpush.msra.mxu0 0.0
      %3654 = vmatpush.msra.mxu0 0.0
      %3655 = vmatpush.msra.mxu0 0.0
      %3656 = vmatpush.msra.mxu0 0.0
      %3657 = vmatpush.msra.mxu0 0.0
      %3658 = vmatpush.msra.mxu0 0.0
      %3659 = vmatpush.msra.mxu0 0.0
      %3660 = vmatpush.msra.mxu0 %v3589
      %3661 = vmatmul.f32.gmra.mxu0 %v3603
      %v3662 = vpop.f32.mrf.mxu0
      %v3663 = vadd.f32 0.0, %v3662
      %3664 = vdwg.mxu0
      %3665 = vmatpush.msra.mxu0 0.0
      %3666 = vmatpush.msra.mxu0 0.0
      %3667 = vmatpush.msra.mxu0 0.0
      %3668 = vmatpush.msra.mxu0 0.0
      %3669 = vmatpush.msra.mxu0 0.0
      %3670 = vmatpush.msra.mxu0 0.0
      %3671 = vmatpush.msra.mxu0 0.0
      %3672 = vmatpush.msra.mxu0 0.0
      %3673 = vmatpush.msra.mxu0 0.0
      %3674 = vmatpush.msra.mxu0 0.0
      %3675 = vmatpush.msra.mxu0 0.0
      %3676 = vmatpush.msra.mxu0 0.0
      %3677 = vmatpush.msra.mxu0 0.0
      %3678 = vmatpush.msra.mxu0 0.0
      %3679 = vmatpush.msra.mxu0 0.0
      %3680 = vmatpush.msra.mxu0 %v3590
      %3681 = vmatmul.f32.gmra.mxu0 %v3603
      %v3682 = vpop.f32.mrf.mxu0
      %v3683 = vadd.f32 0.0, %v3682
      %3684 = vdwg.mxu0
      %3685 = vmatpush.msra.mxu0 0.0
      %3686 = vmatpush.msra.mxu0 0.0
      %3687 = vmatpush.msra.mxu0 0.0
      %3688 = vmatpush.msra.mxu0 0.0
      %3689 = vmatpush.msra.mxu0 0.0
      %3690 = vmatpush.msra.mxu0 0.0
      %3691 = vmatpush.msra.mxu0 0.0
      %3692 = vmatpush.msra.mxu0 0.0
      %3693 = vmatpush.msra.mxu0 0.0
      %3694 = vmatpush.msra.mxu0 0.0
      %3695 = vmatpush.msra.mxu0 0.0
      %3696 = vmatpush.msra.mxu0 0.0
      %3697 = vmatpush.msra.mxu0 0.0
      %3698 = vmatpush.msra.mxu0 0.0
      %3699 = vmatpush.msra.mxu0 0.0
      %3700 = vmatpush.msra.mxu0 %v3591
      %3701 = vmatmul.f32.gmra.mxu0 %v3603
      %v3702 = vpop.f32.mrf.mxu0
      %v3703 = vadd.f32 0.0, %v3702
      %3704 = vdwg.mxu0
      %3705 = vmatpush.msra.mxu0 0.0
      %3706 = vmatpush.msra.mxu0 0.0
      %3707 = vmatpush.msra.mxu0 0.0
      %3708 = vmatpush.msra.mxu0 0.0
      %3709 = vmatpush.msra.mxu0 0.0
      %3710 = vmatpush.msra.mxu0 0.0
      %3711 = vmatpush.msra.mxu0 0.0
      %3712 = vmatpush.msra.mxu0 0.0
      %3713 = vmatpush.msra.mxu0 0.0
      %3714 = vmatpush.msra.mxu0 0.0
      %3715 = vmatpush.msra.mxu0 0.0
      %3716 = vmatpush.msra.mxu0 0.0
      %3717 = vmatpush.msra.mxu0 0.0
      %3718 = vmatpush.msra.mxu0 0.0
      %3719 = vmatpush.msra.mxu0 0.0
      %3720 = vmatpush.msra.mxu0 %v3592
      %3721 = vmatmul.f32.gmra.mxu0 %v3603
      %v3722 = vpop.f32.mrf.mxu0
      %v3723 = vadd.f32 0.0, %v3722
      %3724 = vdwg.mxu0
      %3725 = vmatpush.msra.mxu0 0.0
      %3726 = vmatpush.msra.mxu0 0.0
      %3727 = vmatpush.msra.mxu0 0.0
      %3728 = vmatpush.msra.mxu0 0.0
      %3729 = vmatpush.msra.mxu0 0.0
      %3730 = vmatpush.msra.mxu0 0.0
      %3731 = vmatpush.msra.mxu0 0.0
      %3732 = vmatpush.msra.mxu0 0.0
      %3733 = vmatpush.msra.mxu0 0.0
      %3734 = vmatpush.msra.mxu0 0.0
      %3735 = vmatpush.msra.mxu0 0.0
      %3736 = vmatpush.msra.mxu0 0.0
      %3737 = vmatpush.msra.mxu0 0.0
      %3738 = vmatpush.msra.mxu0 0.0
      %3739 = vmatpush.msra.mxu0 0.0
      %3740 = vmatpush.msra.mxu0 %v3593
      %3741 = vmatmul.f32.gmra.mxu0 %v3603
      %v3742 = vpop.f32.mrf.mxu0
      %v3743 = vadd.f32 0.0, %v3742
      %3744 = vdwg.mxu0
      %3745 = vmatpush.msra.mxu0 0.0
      %3746 = vmatpush.msra.mxu0 0.0
      %3747 = vmatpush.msra.mxu0 0.0
      %3748 = vmatpush.msra.mxu0 0.0
      %3749 = vmatpush.msra.mxu0 0.0
      %3750 = vmatpush.msra.mxu0 0.0
      %3751 = vmatpush.msra.mxu0 0.0
      %3752 = vmatpush.msra.mxu0 0.0
      %3753 = vmatpush.msra.mxu0 0.0
      %3754 = vmatpush.msra.mxu0 0.0
      %3755 = vmatpush.msra.mxu0 0.0
      %3756 = vmatpush.msra.mxu0 0.0
      %3757 = vmatpush.msra.mxu0 0.0
      %3758 = vmatpush.msra.mxu0 0.0
      %3759 = vmatpush.msra.mxu0 0.0
      %3760 = vmatpush.msra.mxu0 %v3586
      %3761 = vmatmul.f32.gmra.mxu0 %v3603
      %v3762 = vpop.f32.mrf.mxu0
      %v3763 = vadd.f32 0.0, %v3762
      %3764 = vdwg.mxu0
      %v3765 = vadd.f32 %v3561, %v3623
      %v3766 = vadd.f32 %v3562, %v3643
      %v3767 = vadd.f32 %v3563, %v3663
      %v3768 = vadd.f32 %v3564, %v3683
      %v3769 = vadd.f32 %v3565, %v3703
      %v3770 = vadd.f32 %v3566, %v3723
      %v3771 = vadd.f32 %v3567, %v3743
      %v3772 = vadd.f32 %v3568, %v3763
      %s3773 = scalar_lea.vmem %s4, 56
      %v3774 = vld [vmem:[%s3773] sm:$0xff]
      %3775 = vrot.lane.b32.xlu0 %v2377, 67
      %v3776 = vpop.permute.xlu0 %3775
      %3777 = vrot.lane.b32.xlu0 %v2378, 67
      %v3778 = vpop.permute.xlu0 %3777
      %3779 = vrot.lane.b32.xlu0 %v2379, 67
      %v3780 = vpop.permute.xlu0 %3779
      %3781 = vrot.lane.b32.xlu0 %v2380, 67
      %v3782 = vpop.permute.xlu0 %3781
      %3783 = vrot.lane.b32.xlu0 %v2381, 67
      %v3784 = vpop.permute.xlu0 %3783
      %3785 = vrot.lane.b32.xlu0 %v2382, 67
      %v3786 = vpop.permute.xlu0 %3785
      %3787 = vrot.lane.b32.xlu0 %v2383, 67
      %v3788 = vpop.permute.xlu0 %3787
      %3789 = vrot.lane.b32.xlu0 %v2384, 67
      %v3790 = vpop.permute.xlu0 %3789
      %v3791 = vsel %vm1876, %v3776, %v3778
      %v3792 = vsel %vm1876, %v3778, %v3780
      %v3793 = vsel %vm1876, %v3780, %v3782
      %v3794 = vsel %vm1876, %v3782, %v3784
      %v3795 = vsel %vm1876, %v3784, %v3786
      %v3796 = vsel %vm1876, %v3786, %v3788
      %v3797 = vsel %vm1876, %v3788, %v3790
      %v3807 = vsel %vm506, %v3774, 0
      %3809 = vmatpush.msra.mxu0 0.0
      %3810 = vmatpush.msra.mxu0 0.0
      %3811 = vmatpush.msra.mxu0 0.0
      %3812 = vmatpush.msra.mxu0 0.0
      %3813 = vmatpush.msra.mxu0 0.0
      %3814 = vmatpush.msra.mxu0 0.0
      %3815 = vmatpush.msra.mxu0 0.0
      %3816 = vmatpush.msra.mxu0 0.0
      %3817 = vmatpush.msra.mxu0 0.0
      %3818 = vmatpush.msra.mxu0 0.0
      %3819 = vmatpush.msra.mxu0 0.0
      %3820 = vmatpush.msra.mxu0 0.0
      %3821 = vmatpush.msra.mxu0 0.0
      %3822 = vmatpush.msra.mxu0 0.0
      %3823 = vmatpush.msra.mxu0 0.0
      %3824 = vmatpush.msra.mxu0 %v3791
      %3825 = vmatmul.f32.gmra.mxu0 %v3807
      %v3826 = vpop.f32.mrf.mxu0
      %v3827 = vadd.f32 0.0, %v3826
      %3828 = vdwg.mxu0
      %3829 = vmatpush.msra.mxu0 0.0
      %3830 = vmatpush.msra.mxu0 0.0
      %3831 = vmatpush.msra.mxu0 0.0
      %3832 = vmatpush.msra.mxu0 0.0
      %3833 = vmatpush.msra.mxu0 0.0
      %3834 = vmatpush.msra.mxu0 0.0
      %3835 = vmatpush.msra.mxu0 0.0
      %3836 = vmatpush.msra.mxu0 0.0
      %3837 = vmatpush.msra.mxu0 0.0
      %3838 = vmatpush.msra.mxu0 0.0
      %3839 = vmatpush.msra.mxu0 0.0
      %3840 = vmatpush.msra.mxu0 0.0
      %3841 = vmatpush.msra.mxu0 0.0
      %3842 = vmatpush.msra.mxu0 0.0
      %3843 = vmatpush.msra.mxu0 0.0
      %3844 = vmatpush.msra.mxu0 %v3792
      %3845 = vmatmul.f32.gmra.mxu0 %v3807
      %v3846 = vpop.f32.mrf.mxu0
      %v3847 = vadd.f32 0.0, %v3846
      %3848 = vdwg.mxu0
      %3849 = vmatpush.msra.mxu0 0.0
      %3850 = vmatpush.msra.mxu0 0.0
      %3851 = vmatpush.msra.mxu0 0.0
      %3852 = vmatpush.msra.mxu0 0.0
      %3853 = vmatpush.msra.mxu0 0.0
      %3854 = vmatpush.msra.mxu0 0.0
      %3855 = vmatpush.msra.mxu0 0.0
      %3856 = vmatpush.msra.mxu0 0.0
      %3857 = vmatpush.msra.mxu0 0.0
      %3858 = vmatpush.msra.mxu0 0.0
      %3859 = vmatpush.msra.mxu0 0.0
      %3860 = vmatpush.msra.mxu0 0.0
      %3861 = vmatpush.msra.mxu0 0.0
      %3862 = vmatpush.msra.mxu0 0.0
      %3863 = vmatpush.msra.mxu0 0.0
      %3864 = vmatpush.msra.mxu0 %v3793
      %3865 = vmatmul.f32.gmra.mxu0 %v3807
      %v3866 = vpop.f32.mrf.mxu0
      %v3867 = vadd.f32 0.0, %v3866
      %3868 = vdwg.mxu0
      %3869 = vmatpush.msra.mxu0 0.0
      %3870 = vmatpush.msra.mxu0 0.0
      %3871 = vmatpush.msra.mxu0 0.0
      %3872 = vmatpush.msra.mxu0 0.0
      %3873 = vmatpush.msra.mxu0 0.0
      %3874 = vmatpush.msra.mxu0 0.0
      %3875 = vmatpush.msra.mxu0 0.0
      %3876 = vmatpush.msra.mxu0 0.0
      %3877 = vmatpush.msra.mxu0 0.0
      %3878 = vmatpush.msra.mxu0 0.0
      %3879 = vmatpush.msra.mxu0 0.0
      %3880 = vmatpush.msra.mxu0 0.0
      %3881 = vmatpush.msra.mxu0 0.0
      %3882 = vmatpush.msra.mxu0 0.0
      %3883 = vmatpush.msra.mxu0 0.0
      %3884 = vmatpush.msra.mxu0 %v3794
      %3885 = vmatmul.f32.gmra.mxu0 %v3807
      %v3886 = vpop.f32.mrf.mxu0
      %v3887 = vadd.f32 0.0, %v3886
      %3888 = vdwg.mxu0
      %3889 = vmatpush.msra.mxu0 0.0
      %3890 = vmatpush.msra.mxu0 0.0
      %3891 = vmatpush.msra.mxu0 0.0
      %3892 = vmatpush.msra.mxu0 0.0
      %3893 = vmatpush.msra.mxu0 0.0
      %3894 = vmatpush.msra.mxu0 0.0
      %3895 = vmatpush.msra.mxu0 0.0
      %3896 = vmatpush.msra.mxu0 0.0
      %3897 = vmatpush.msra.mxu0 0.0
      %3898 = vmatpush.msra.mxu0 0.0
      %3899 = vmatpush.msra.mxu0 0.0
      %3900 = vmatpush.msra.mxu0 0.0
      %3901 = vmatpush.msra.mxu0 0.0
      %3902 = vmatpush.msra.mxu0 0.0
      %3903 = vmatpush.msra.mxu0 0.0
      %3904 = vmatpush.msra.mxu0 %v3795
      %3905 = vmatmul.f32.gmra.mxu0 %v3807
      %v3906 = vpop.f32.mrf.mxu0
      %v3907 = vadd.f32 0.0, %v3906
      %3908 = vdwg.mxu0
      %3909 = vmatpush.msra.mxu0 0.0
      %3910 = vmatpush.msra.mxu0 0.0
      %3911 = vmatpush.msra.mxu0 0.0
      %3912 = vmatpush.msra.mxu0 0.0
      %3913 = vmatpush.msra.mxu0 0.0
      %3914 = vmatpush.msra.mxu0 0.0
      %3915 = vmatpush.msra.mxu0 0.0
      %3916 = vmatpush.msra.mxu0 0.0
      %3917 = vmatpush.msra.mxu0 0.0
      %3918 = vmatpush.msra.mxu0 0.0
      %3919 = vmatpush.msra.mxu0 0.0
      %3920 = vmatpush.msra.mxu0 0.0
      %3921 = vmatpush.msra.mxu0 0.0
      %3922 = vmatpush.msra.mxu0 0.0
      %3923 = vmatpush.msra.mxu0 0.0
      %3924 = vmatpush.msra.mxu0 %v3796
      %3925 = vmatmul.f32.gmra.mxu0 %v3807
      %v3926 = vpop.f32.mrf.mxu0
      %v3927 = vadd.f32 0.0, %v3926
      %3928 = vdwg.mxu0
      %3929 = vmatpush.msra.mxu0 0.0
      %3930 = vmatpush.msra.mxu0 0.0
      %3931 = vmatpush.msra.mxu0 0.0
      %3932 = vmatpush.msra.mxu0 0.0
      %3933 = vmatpush.msra.mxu0 0.0
      %3934 = vmatpush.msra.mxu0 0.0
      %3935 = vmatpush.msra.mxu0 0.0
      %3936 = vmatpush.msra.mxu0 0.0
      %3937 = vmatpush.msra.mxu0 0.0
      %3938 = vmatpush.msra.mxu0 0.0
      %3939 = vmatpush.msra.mxu0 0.0
      %3940 = vmatpush.msra.mxu0 0.0
      %3941 = vmatpush.msra.mxu0 0.0
      %3942 = vmatpush.msra.mxu0 0.0
      %3943 = vmatpush.msra.mxu0 0.0
      %3944 = vmatpush.msra.mxu0 %v3797
      %3945 = vmatmul.f32.gmra.mxu0 %v3807
      %v3946 = vpop.f32.mrf.mxu0
      %v3947 = vadd.f32 0.0, %v3946
      %3948 = vdwg.mxu0
      %3949 = vmatpush.msra.mxu0 0.0
      %3950 = vmatpush.msra.mxu0 0.0
      %3951 = vmatpush.msra.mxu0 0.0
      %3952 = vmatpush.msra.mxu0 0.0
      %3953 = vmatpush.msra.mxu0 0.0
      %3954 = vmatpush.msra.mxu0 0.0
      %3955 = vmatpush.msra.mxu0 0.0
      %3956 = vmatpush.msra.mxu0 0.0
      %3957 = vmatpush.msra.mxu0 0.0
      %3958 = vmatpush.msra.mxu0 0.0
      %3959 = vmatpush.msra.mxu0 0.0
      %3960 = vmatpush.msra.mxu0 0.0
      %3961 = vmatpush.msra.mxu0 0.0
      %3962 = vmatpush.msra.mxu0 0.0
      %3963 = vmatpush.msra.mxu0 0.0
      %3964 = vmatpush.msra.mxu0 %v3790
      %3965 = vmatmul.f32.gmra.mxu0 %v3807
      %v3966 = vpop.f32.mrf.mxu0
      %v3967 = vadd.f32 0.0, %v3966
      %3968 = vdwg.mxu0
      %v3969 = vadd.f32 %v3765, %v3827
      %v3970 = vadd.f32 %v3766, %v3847
      %v3971 = vadd.f32 %v3767, %v3867
      %v3972 = vadd.f32 %v3768, %v3887
      %v3973 = vadd.f32 %v3769, %v3907
      %v3974 = vadd.f32 %v3770, %v3927
      %v3975 = vadd.f32 %v3771, %v3947
      %v3976 = vadd.f32 %v3772, %v3967
      %s3977 = scalar_lea.vmem %s4, 64
      %v3978 = vld [vmem:[%s3977] sm:$0xff]
      %3979 = vrot.lane.b32.xlu0 %v2377, 66
      %v3980 = vpop.permute.xlu0 %3979
      %3981 = vrot.lane.b32.xlu0 %v2378, 66
      %v3982 = vpop.permute.xlu0 %3981
      %3983 = vrot.lane.b32.xlu0 %v2379, 66
      %v3984 = vpop.permute.xlu0 %3983
      %3985 = vrot.lane.b32.xlu0 %v2380, 66
      %v3986 = vpop.permute.xlu0 %3985
      %3987 = vrot.lane.b32.xlu0 %v2381, 66
      %v3988 = vpop.permute.xlu0 %3987
      %3989 = vrot.lane.b32.xlu0 %v2382, 66
      %v3990 = vpop.permute.xlu0 %3989
      %3991 = vrot.lane.b32.xlu0 %v2383, 66
      %v3992 = vpop.permute.xlu0 %3991
      %3993 = vrot.lane.b32.xlu0 %v2384, 66
      %v3994 = vpop.permute.xlu0 %3993
      %v3995 = vsel %vm395, %v3980, %v3982
      %v3996 = vsel %vm395, %v3982, %v3984
      %v3997 = vsel %vm395, %v3984, %v3986
      %v3998 = vsel %vm395, %v3986, %v3988
      %v3999 = vsel %vm395, %v3988, %v3990
      %v4000 = vsel %vm395, %v3990, %v3992
      %v4001 = vsel %vm395, %v3992, %v3994
      %v4011 = vsel %vm506, %v3978, 0
      %4013 = vmatpush.msra.mxu0 0.0
      %4014 = vmatpush.msra.mxu0 0.0
      %4015 = vmatpush.msra.mxu0 0.0
      %4016 = vmatpush.msra.mxu0 0.0
      %4017 = vmatpush.msra.mxu0 0.0
      %4018 = vmatpush.msra.mxu0 0.0
      %4019 = vmatpush.msra.mxu0 0.0
      %4020 = vmatpush.msra.mxu0 0.0
      %4021 = vmatpush.msra.mxu0 0.0
      %4022 = vmatpush.msra.mxu0 0.0
      %4023 = vmatpush.msra.mxu0 0.0
      %4024 = vmatpush.msra.mxu0 0.0
      %4025 = vmatpush.msra.mxu0 0.0
      %4026 = vmatpush.msra.mxu0 0.0
      %4027 = vmatpush.msra.mxu0 0.0
      %4028 = vmatpush.msra.mxu0 %v3995
      %4029 = vmatmul.f32.gmra.mxu0 %v4011
      %v4030 = vpop.f32.mrf.mxu0
      %v4031 = vadd.f32 0.0, %v4030
      %4032 = vdwg.mxu0
      %4033 = vmatpush.msra.mxu0 0.0
      %4034 = vmatpush.msra.mxu0 0.0
      %4035 = vmatpush.msra.mxu0 0.0
      %4036 = vmatpush.msra.mxu0 0.0
      %4037 = vmatpush.msra.mxu0 0.0
      %4038 = vmatpush.msra.mxu0 0.0
      %4039 = vmatpush.msra.mxu0 0.0
      %4040 = vmatpush.msra.mxu0 0.0
      %4041 = vmatpush.msra.mxu0 0.0
      %4042 = vmatpush.msra.mxu0 0.0
      %4043 = vmatpush.msra.mxu0 0.0
      %4044 = vmatpush.msra.mxu0 0.0
      %4045 = vmatpush.msra.mxu0 0.0
      %4046 = vmatpush.msra.mxu0 0.0
      %4047 = vmatpush.msra.mxu0 0.0
      %4048 = vmatpush.msra.mxu0 %v3996
      %4049 = vmatmul.f32.gmra.mxu0 %v4011
      %v4050 = vpop.f32.mrf.mxu0
      %v4051 = vadd.f32 0.0, %v4050
      %4052 = vdwg.mxu0
      %4053 = vmatpush.msra.mxu0 0.0
      %4054 = vmatpush.msra.mxu0 0.0
      %4055 = vmatpush.msra.mxu0 0.0
      %4056 = vmatpush.msra.mxu0 0.0
      %4057 = vmatpush.msra.mxu0 0.0
      %4058 = vmatpush.msra.mxu0 0.0
      %4059 = vmatpush.msra.mxu0 0.0
      %4060 = vmatpush.msra.mxu0 0.0
      %4061 = vmatpush.msra.mxu0 0.0
      %4062 = vmatpush.msra.mxu0 0.0
      %4063 = vmatpush.msra.mxu0 0.0
      %4064 = vmatpush.msra.mxu0 0.0
      %4065 = vmatpush.msra.mxu0 0.0
      %4066 = vmatpush.msra.mxu0 0.0
      %4067 = vmatpush.msra.mxu0 0.0
      %4068 = vmatpush.msra.mxu0 %v3997
      %4069 = vmatmul.f32.gmra.mxu0 %v4011
      %v4070 = vpop.f32.mrf.mxu0
      %v4071 = vadd.f32 0.0, %v4070
      %4072 = vdwg.mxu0
      %4073 = vmatpush.msra.mxu0 0.0
      %4074 = vmatpush.msra.mxu0 0.0
      %4075 = vmatpush.msra.mxu0 0.0
      %4076 = vmatpush.msra.mxu0 0.0
      %4077 = vmatpush.msra.mxu0 0.0
      %4078 = vmatpush.msra.mxu0 0.0
      %4079 = vmatpush.msra.mxu0 0.0
      %4080 = vmatpush.msra.mxu0 0.0
      %4081 = vmatpush.msra.mxu0 0.0
      %4082 = vmatpush.msra.mxu0 0.0
      %4083 = vmatpush.msra.mxu0 0.0
      %4084 = vmatpush.msra.mxu0 0.0
      %4085 = vmatpush.msra.mxu0 0.0
      %4086 = vmatpush.msra.mxu0 0.0
      %4087 = vmatpush.msra.mxu0 0.0
      %4088 = vmatpush.msra.mxu0 %v3998
      %4089 = vmatmul.f32.gmra.mxu0 %v4011
      %v4090 = vpop.f32.mrf.mxu0
      %v4091 = vadd.f32 0.0, %v4090
      %4092 = vdwg.mxu0
      %4093 = vmatpush.msra.mxu0 0.0
      %4094 = vmatpush.msra.mxu0 0.0
      %4095 = vmatpush.msra.mxu0 0.0
      %4096 = vmatpush.msra.mxu0 0.0
      %4097 = vmatpush.msra.mxu0 0.0
      %4098 = vmatpush.msra.mxu0 0.0
      %4099 = vmatpush.msra.mxu0 0.0
      %4100 = vmatpush.msra.mxu0 0.0
      %4101 = vmatpush.msra.mxu0 0.0
      %4102 = vmatpush.msra.mxu0 0.0
      %4103 = vmatpush.msra.mxu0 0.0
      %4104 = vmatpush.msra.mxu0 0.0
      %4105 = vmatpush.msra.mxu0 0.0
      %4106 = vmatpush.msra.mxu0 0.0
      %4107 = vmatpush.msra.mxu0 0.0
      %4108 = vmatpush.msra.mxu0 %v3999
      %4109 = vmatmul.f32.gmra.mxu0 %v4011
      %v4110 = vpop.f32.mrf.mxu0
      %v4111 = vadd.f32 0.0, %v4110
      %4112 = vdwg.mxu0
      %4113 = vmatpush.msra.mxu0 0.0
      %4114 = vmatpush.msra.mxu0 0.0
      %4115 = vmatpush.msra.mxu0 0.0
      %4116 = vmatpush.msra.mxu0 0.0
      %4117 = vmatpush.msra.mxu0 0.0
      %4118 = vmatpush.msra.mxu0 0.0
      %4119 = vmatpush.msra.mxu0 0.0
      %4120 = vmatpush.msra.mxu0 0.0
      %4121 = vmatpush.msra.mxu0 0.0
      %4122 = vmatpush.msra.mxu0 0.0
      %4123 = vmatpush.msra.mxu0 0.0
      %4124 = vmatpush.msra.mxu0 0.0
      %4125 = vmatpush.msra.mxu0 0.0
      %4126 = vmatpush.msra.mxu0 0.0
      %4127 = vmatpush.msra.mxu0 0.0
      %4128 = vmatpush.msra.mxu0 %v4000
      %4129 = vmatmul.f32.gmra.mxu0 %v4011
      %v4130 = vpop.f32.mrf.mxu0
      %v4131 = vadd.f32 0.0, %v4130
      %4132 = vdwg.mxu0
      %4133 = vmatpush.msra.mxu0 0.0
      %4134 = vmatpush.msra.mxu0 0.0
      %4135 = vmatpush.msra.mxu0 0.0
      %4136 = vmatpush.msra.mxu0 0.0
      %4137 = vmatpush.msra.mxu0 0.0
      %4138 = vmatpush.msra.mxu0 0.0
      %4139 = vmatpush.msra.mxu0 0.0
      %4140 = vmatpush.msra.mxu0 0.0
      %4141 = vmatpush.msra.mxu0 0.0
      %4142 = vmatpush.msra.mxu0 0.0
      %4143 = vmatpush.msra.mxu0 0.0
      %4144 = vmatpush.msra.mxu0 0.0
      %4145 = vmatpush.msra.mxu0 0.0
      %4146 = vmatpush.msra.mxu0 0.0
      %4147 = vmatpush.msra.mxu0 0.0
      %4148 = vmatpush.msra.mxu0 %v4001
      %4149 = vmatmul.f32.gmra.mxu0 %v4011
      %v4150 = vpop.f32.mrf.mxu0
      %v4151 = vadd.f32 0.0, %v4150
      %4152 = vdwg.mxu0
      %4153 = vmatpush.msra.mxu0 0.0
      %4154 = vmatpush.msra.mxu0 0.0
      %4155 = vmatpush.msra.mxu0 0.0
      %4156 = vmatpush.msra.mxu0 0.0
      %4157 = vmatpush.msra.mxu0 0.0
      %4158 = vmatpush.msra.mxu0 0.0
      %4159 = vmatpush.msra.mxu0 0.0
      %4160 = vmatpush.msra.mxu0 0.0
      %4161 = vmatpush.msra.mxu0 0.0
      %4162 = vmatpush.msra.mxu0 0.0
      %4163 = vmatpush.msra.mxu0 0.0
      %4164 = vmatpush.msra.mxu0 0.0
      %4165 = vmatpush.msra.mxu0 0.0
      %4166 = vmatpush.msra.mxu0 0.0
      %4167 = vmatpush.msra.mxu0 0.0
      %4168 = vmatpush.msra.mxu0 %v3994
      %4169 = vmatmul.f32.gmra.mxu0 %v4011
      %v4170 = vpop.f32.mrf.mxu0
      %v4171 = vadd.f32 0.0, %v4170
      %4172 = vdwg.mxu0
      %v4173 = vadd.f32 %v3969, %v4031
      %v4174 = vadd.f32 %v3970, %v4051
      %v4175 = vadd.f32 %v3971, %v4071
      %v4176 = vadd.f32 %v3972, %v4091
      %v4177 = vadd.f32 %v3973, %v4111
      %v4178 = vadd.f32 %v3974, %v4131
      %v4179 = vadd.f32 %v3975, %v4151
      %v4180 = vadd.f32 %v3976, %v4171
      %v4181 = vld [vmem:[%s5] sm:$0xff]
      %4183 = vset.pattern.permute.xlu0 0
      %4184 = vperm.xlu0 %4183, %v4181
      %v4185 = vpop.permute.xlu0 %4184
      %v4187 = vadd.f32 %v4173, %v4185
      %v4188 = vadd.f32 %v4174, %v4185
      %v4189 = vadd.f32 %v4175, %v4185
      %v4190 = vadd.f32 %v4176, %v4185
      %v4191 = vadd.f32 %v4177, %v4185
      %v4192 = vadd.f32 %v4178, %v4185
      %v4193 = vadd.f32 %v4179, %v4185
      %v4194 = vadd.f32 %v4180, %v4185
      %vm4195 = vcmp.ge.f32.partialorder %v4187, 0.0
      %vm4196 = vcmp.ge.f32.partialorder %v4188, 0.0
      %vm4197 = vcmp.ge.f32.partialorder %v4189, 0.0
      %vm4198 = vcmp.ge.f32.partialorder %v4190, 0.0
      %vm4199 = vcmp.ge.f32.partialorder %v4191, 0.0
      %vm4200 = vcmp.ge.f32.partialorder %v4192, 0.0
      %vm4201 = vcmp.ge.f32.partialorder %v4193, 0.0
      %vm4202 = vcmp.ge.f32.partialorder %v4194, 0.0
      %v4203 = vmul.f32 %v4187, 0.2
      %v4204 = vmul.f32 %v4188, 0.2
      %v4205 = vmul.f32 %v4189, 0.2
      %v4206 = vmul.f32 %v4190, 0.2
      %v4207 = vmul.f32 %v4191, 0.2
      %v4208 = vmul.f32 %v4192, 0.2
      %v4209 = vmul.f32 %v4193, 0.2
      %v4210 = vmul.f32 %v4194, 0.2
      %v4211 = vsel %vm4195, %v4187, %v4203
      %v4212 = vsel %vm4196, %v4188, %v4204
      %v4213 = vsel %vm4197, %v4189, %v4205
      %v4214 = vsel %vm4198, %v4190, %v4206
      %v4215 = vsel %vm4199, %v4191, %v4207
      %v4216 = vsel %vm4200, %v4192, %v4208
      %v4217 = vsel %vm4201, %v4193, %v4209
      %v4218 = vsel %vm4202, %v4194, %v4210
      %v4219 = vmul.f32 %v4211, %v2306
      %v4220 = vmul.f32 %v4212, %v2307
      %v4221 = vmul.f32 %v4213, %v2308
      %v4222 = vmul.f32 %v4214, %v2309
      %v4223 = vmul.f32 %v4215, %v2310
      %v4224 = vmul.f32 %v4216, %v2311
      %v4225 = vmul.f32 %v4217, %v2312
      %v4226 = vmul.f32 %v4218, %v2313
      %4235 = vrot.lane.b32.xlu0 %v4219, 31
      %v4236 = vpop.permute.xlu0 %4235
      %4237 = vrot.lane.b32.xlu0 %v4220, 31
      %v4238 = vpop.permute.xlu0 %4237
      %4239 = vrot.lane.b32.xlu0 %v4221, 31
      %v4240 = vpop.permute.xlu0 %4239
      %4241 = vrot.lane.b32.xlu0 %v4222, 31
      %v4242 = vpop.permute.xlu0 %4241
      %4243 = vrot.lane.b32.xlu0 %v4223, 31
      %v4244 = vpop.permute.xlu0 %4243
      %4245 = vrot.lane.b32.xlu0 %v4224, 31
      %v4246 = vpop.permute.xlu0 %4245
      %4247 = vrot.lane.b32.xlu0 %v4225, 31
      %v4248 = vpop.permute.xlu0 %4247
      %4249 = vrot.lane.b32.xlu0 %v4226, 31
      %v4250 = vpop.permute.xlu0 %4249
      %v4251 = vsel %vm429, %v4236, %v4238
      %v4252 = vsel %vm429, %v4238, %v4240
      %v4253 = vsel %vm429, %v4240, %v4242
      %v4254 = vsel %vm429, %v4242, %v4244
      %v4255 = vsel %vm429, %v4244, %v4246
      %v4256 = vsel %vm429, %v4246, %v4248
      %v4257 = vsel %vm429, %v4248, %v4250
      %4266 = vst.msk [vmem:[#allocation2] sm:$0xff] %vm445, %v4236
      %4267 = vst [vmem:[#allocation2 + $0x8] sm:$0xff] %v4251
      %4268 = vst [vmem:[#allocation2 + $0x10] sm:$0xff] %v4252
      %4269 = vst [vmem:[#allocation2 + $0x18] sm:$0xff] %v4253
      %4270 = vst [vmem:[#allocation2 + $0x20] sm:$0xff] %v4254
      %4271 = vst [vmem:[#allocation2 + $0x28] sm:$0xff] %v4255
      %4272 = vst [vmem:[#allocation2 + $0x30] sm:$0xff] %v4256
      %4273 = vst.msk [vmem:[#allocation2 + $0x38] sm:$0xff] %vm453, %v4257
      %v4274 = vld [vmem:[#allocation2] sm:$0xff]
      %v4275 = vld [vmem:[#allocation2 + $0x8] sm:$0xff]
      %v4276 = vld [vmem:[#allocation2 + $0x10] sm:$0xff]
      %v4277 = vld [vmem:[#allocation2 + $0x18] sm:$0xff]
      %v4278 = vld [vmem:[#allocation2 + $0x20] sm:$0xff]
      %v4279 = vld [vmem:[#allocation2 + $0x28] sm:$0xff]
      %v4280 = vld [vmem:[#allocation2 + $0x30] sm:$0xff]
      %v4281 = vld [vmem:[#allocation2 + $0x38] sm:$0xff]
      %v4282 = vld [vmem:[%s6] sm:$0xff]
      %v4283 = vld [vmem:[%s6 + $0x8] sm:$0xff]
      %s4284 = scalar_lea.vmem %s6, 16
      %v4285 = vld [vmem:[%s4284] sm:$0xff]
      %v4286 = vld [vmem:[%s4284 + $0x8] sm:$0xff]
      %4295 = vrot.lane.b32.xlu0 %v4274, 127
      %v4296 = vpop.permute.xlu0 %4295
      %4297 = vrot.lane.b32.xlu0 %v4275, 127
      %v4298 = vpop.permute.xlu0 %4297
      %4299 = vrot.lane.b32.xlu0 %v4276, 127
      %v4300 = vpop.permute.xlu0 %4299
      %4301 = vrot.lane.b32.xlu0 %v4277, 127
      %v4302 = vpop.permute.xlu0 %4301
      %4303 = vrot.lane.b32.xlu0 %v4278, 127
      %v4304 = vpop.permute.xlu0 %4303
      %4305 = vrot.lane.b32.xlu0 %v4279, 127
      %v4306 = vpop.permute.xlu0 %4305
      %4307 = vrot.lane.b32.xlu0 %v4280, 127
      %v4308 = vpop.permute.xlu0 %4307
      %4309 = vrot.lane.b32.xlu0 %v4281, 127
      %v4310 = vpop.permute.xlu0 %4309
      %v4311 = vsel %vm490, %v4296, %v4298
      %v4312 = vsel %vm490, %v4298, %v4300
      %v4313 = vsel %vm490, %v4300, %v4302
      %v4314 = vsel %vm490, %v4302, %v4304
      %v4315 = vsel %vm490, %v4304, %v4306
      %v4316 = vsel %vm490, %v4306, %v4308
      %v4317 = vsel %vm490, %v4308, %v4310
      %v4327 = vsel %vm506, %v4285, 0
      %v4330 = vsel %vm506, %v4286, 0
      %4332 = vmatpush.msra.mxu0 0.0
      %4333 = vmatpush.msra.mxu0 0.0
      %4334 = vmatpush.msra.mxu0 0.0
      %4335 = vmatpush.msra.mxu0 0.0
      %4336 = vmatpush.msra.mxu0 0.0
      %4337 = vmatpush.msra.mxu0 0.0
      %4338 = vmatpush.msra.mxu0 0.0
      %4339 = vmatpush.msra.mxu0 0.0
      %4340 = vmatpush.msra.mxu0 0.0
      %4341 = vmatpush.msra.mxu0 0.0
      %4342 = vmatpush.msra.mxu0 0.0
      %4343 = vmatpush.msra.mxu0 0.0
      %4344 = vmatpush.msra.mxu0 0.0
      %4345 = vmatpush.msra.mxu0 0.0
      %4346 = vmatpush.msra.mxu0 0.0
      %4347 = vmatpush.msra.mxu0 %v4311
      %4348 = vmatmul.f32.gmra.mxu0 %v4327
      %v4349 = vpop.f32.mrf.mxu0
      %v4350 = vadd.f32 0.0, %v4349
      %4351 = vmatmul.f32.gmra.mxu0 %v4330
      %v4352 = vpop.f32.mrf.mxu0
      %v4353 = vadd.f32 0.0, %v4352
      %4354 = vdwg.mxu0
      %4355 = vmatpush.msra.mxu0 0.0
      %4356 = vmatpush.msra.mxu0 0.0
      %4357 = vmatpush.msra.mxu0 0.0
      %4358 = vmatpush.msra.mxu0 0.0
      %4359 = vmatpush.msra.mxu0 0.0
      %4360 = vmatpush.msra.mxu0 0.0
      %4361 = vmatpush.msra.mxu0 0.0
      %4362 = vmatpush.msra.mxu0 0.0
      %4363 = vmatpush.msra.mxu0 0.0
      %4364 = vmatpush.msra.mxu0 0.0
      %4365 = vmatpush.msra.mxu0 0.0
      %4366 = vmatpush.msra.mxu0 0.0
      %4367 = vmatpush.msra.mxu0 0.0
      %4368 = vmatpush.msra.mxu0 0.0
      %4369 = vmatpush.msra.mxu0 0.0
      %4370 = vmatpush.msra.mxu0 %v4312
      %4371 = vmatmul.f32.gmra.mxu0 %v4327
      %v4372 = vpop.f32.mrf.mxu0
      %v4373 = vadd.f32 0.0, %v4372
      %4374 = vmatmul.f32.gmra.mxu0 %v4330
      %v4375 = vpop.f32.mrf.mxu0
      %v4376 = vadd.f32 0.0, %v4375
      %4377 = vdwg.mxu0
      %4378 = vmatpush.msra.mxu0 0.0
      %4379 = vmatpush.msra.mxu0 0.0
      %4380 = vmatpush.msra.mxu0 0.0
      %4381 = vmatpush.msra.mxu0 0.0
      %4382 = vmatpush.msra.mxu0 0.0
      %4383 = vmatpush.msra.mxu0 0.0
      %4384 = vmatpush.msra.mxu0 0.0
      %4385 = vmatpush.msra.mxu0 0.0
      %4386 = vmatpush.msra.mxu0 0.0
      %4387 = vmatpush.msra.mxu0 0.0
      %4388 = vmatpush.msra.mxu0 0.0
      %4389 = vmatpush.msra.mxu0 0.0
      %4390 = vmatpush.msra.mxu0 0.0
      %4391 = vmatpush.msra.mxu0 0.0
      %4392 = vmatpush.msra.mxu0 0.0
      %4393 = vmatpush.msra.mxu0 %v4313
      %4394 = vmatmul.f32.gmra.mxu0 %v4327
      %v4395 = vpop.f32.mrf.mxu0
      %v4396 = vadd.f32 0.0, %v4395
      %4397 = vmatmul.f32.gmra.mxu0 %v4330
      %v4398 = vpop.f32.mrf.mxu0
      %v4399 = vadd.f32 0.0, %v4398
      %4400 = vdwg.mxu0
      %4401 = vmatpush.msra.mxu0 0.0
      %4402 = vmatpush.msra.mxu0 0.0
      %4403 = vmatpush.msra.mxu0 0.0
      %4404 = vmatpush.msra.mxu0 0.0
      %4405 = vmatpush.msra.mxu0 0.0
      %4406 = vmatpush.msra.mxu0 0.0
      %4407 = vmatpush.msra.mxu0 0.0
      %4408 = vmatpush.msra.mxu0 0.0
      %4409 = vmatpush.msra.mxu0 0.0
      %4410 = vmatpush.msra.mxu0 0.0
      %4411 = vmatpush.msra.mxu0 0.0
      %4412 = vmatpush.msra.mxu0 0.0
      %4413 = vmatpush.msra.mxu0 0.0
      %4414 = vmatpush.msra.mxu0 0.0
      %4415 = vmatpush.msra.mxu0 0.0
      %4416 = vmatpush.msra.mxu0 %v4314
      %4417 = vmatmul.f32.gmra.mxu0 %v4327
      %v4418 = vpop.f32.mrf.mxu0
      %v4419 = vadd.f32 0.0, %v4418
      %4420 = vmatmul.f32.gmra.mxu0 %v4330
      %v4421 = vpop.f32.mrf.mxu0
      %v4422 = vadd.f32 0.0, %v4421
      %4423 = vdwg.mxu0
      %4424 = vmatpush.msra.mxu0 0.0
      %4425 = vmatpush.msra.mxu0 0.0
      %4426 = vmatpush.msra.mxu0 0.0
      %4427 = vmatpush.msra.mxu0 0.0
      %4428 = vmatpush.msra.mxu0 0.0
      %4429 = vmatpush.msra.mxu0 0.0
      %4430 = vmatpush.msra.mxu0 0.0
      %4431 = vmatpush.msra.mxu0 0.0
      %4432 = vmatpush.msra.mxu0 0.0
      %4433 = vmatpush.msra.mxu0 0.0
      %4434 = vmatpush.msra.mxu0 0.0
      %4435 = vmatpush.msra.mxu0 0.0
      %4436 = vmatpush.msra.mxu0 0.0
      %4437 = vmatpush.msra.mxu0 0.0
      %4438 = vmatpush.msra.mxu0 0.0
      %4439 = vmatpush.msra.mxu0 %v4315
      %4440 = vmatmul.f32.gmra.mxu0 %v4327
      %v4441 = vpop.f32.mrf.mxu0
      %v4442 = vadd.f32 0.0, %v4441
      %4443 = vmatmul.f32.gmra.mxu0 %v4330
      %v4444 = vpop.f32.mrf.mxu0
      %v4445 = vadd.f32 0.0, %v4444
      %4446 = vdwg.mxu0
      %4447 = vmatpush.msra.mxu0 0.0
      %4448 = vmatpush.msra.mxu0 0.0
      %4449 = vmatpush.msra.mxu0 0.0
      %4450 = vmatpush.msra.mxu0 0.0
      %4451 = vmatpush.msra.mxu0 0.0
      %4452 = vmatpush.msra.mxu0 0.0
      %4453 = vmatpush.msra.mxu0 0.0
      %4454 = vmatpush.msra.mxu0 0.0
      %4455 = vmatpush.msra.mxu0 0.0
      %4456 = vmatpush.msra.mxu0 0.0
      %4457 = vmatpush.msra.mxu0 0.0
      %4458 = vmatpush.msra.mxu0 0.0
      %4459 = vmatpush.msra.mxu0 0.0
      %4460 = vmatpush.msra.mxu0 0.0
      %4461 = vmatpush.msra.mxu0 0.0
      %4462 = vmatpush.msra.mxu0 %v4316
      %4463 = vmatmul.f32.gmra.mxu0 %v4327
      %v4464 = vpop.f32.mrf.mxu0
      %v4465 = vadd.f32 0.0, %v4464
      %4466 = vmatmul.f32.gmra.mxu0 %v4330
      %v4467 = vpop.f32.mrf.mxu0
      %v4468 = vadd.f32 0.0, %v4467
      %4469 = vdwg.mxu0
      %4470 = vmatpush.msra.mxu0 0.0
      %4471 = vmatpush.msra.mxu0 0.0
      %4472 = vmatpush.msra.mxu0 0.0
      %4473 = vmatpush.msra.mxu0 0.0
      %4474 = vmatpush.msra.mxu0 0.0
      %4475 = vmatpush.msra.mxu0 0.0
      %4476 = vmatpush.msra.mxu0 0.0
      %4477 = vmatpush.msra.mxu0 0.0
      %4478 = vmatpush.msra.mxu0 0.0
      %4479 = vmatpush.msra.mxu0 0.0
      %4480 = vmatpush.msra.mxu0 0.0
      %4481 = vmatpush.msra.mxu0 0.0
      %4482 = vmatpush.msra.mxu0 0.0
      %4483 = vmatpush.msra.mxu0 0.0
      %4484 = vmatpush.msra.mxu0 0.0
      %4485 = vmatpush.msra.mxu0 %v4317
      %4486 = vmatmul.f32.gmra.mxu0 %v4327
      %v4487 = vpop.f32.mrf.mxu0
      %v4488 = vadd.f32 0.0, %v4487
      %4489 = vmatmul.f32.gmra.mxu0 %v4330
      %v4490 = vpop.f32.mrf.mxu0
      %v4491 = vadd.f32 0.0, %v4490
      %4492 = vdwg.mxu0
      %4493 = vmatpush.msra.mxu0 0.0
      %4494 = vmatpush.msra.mxu0 0.0
      %4495 = vmatpush.msra.mxu0 0.0
      %4496 = vmatpush.msra.mxu0 0.0
      %4497 = vmatpush.msra.mxu0 0.0
      %4498 = vmatpush.msra.mxu0 0.0
      %4499 = vmatpush.msra.mxu0 0.0
      %4500 = vmatpush.msra.mxu0 0.0
      %4501 = vmatpush.msra.mxu0 0.0
      %4502 = vmatpush.msra.mxu0 0.0
      %4503 = vmatpush.msra.mxu0 0.0
      %4504 = vmatpush.msra.mxu0 0.0
      %4505 = vmatpush.msra.mxu0 0.0
      %4506 = vmatpush.msra.mxu0 0.0
      %4507 = vmatpush.msra.mxu0 0.0
      %4508 = vmatpush.msra.mxu0 %v4310
      %4509 = vmatmul.f32.gmra.mxu0 %v4327
      %v4510 = vpop.f32.mrf.mxu0
      %v4511 = vadd.f32 0.0, %v4510
      %4512 = vmatmul.f32.gmra.mxu0 %v4330
      %v4513 = vpop.f32.mrf.mxu0
      %v4514 = vadd.f32 0.0, %v4513
      %4515 = vdwg.mxu0
      %v4517 = vsel %vm506, %v4282, 0
      %v4520 = vsel %vm506, %v4283, 0
      %4522 = vmatpush.msra.mxu0 0.0
      %4523 = vmatpush.msra.mxu0 0.0
      %4524 = vmatpush.msra.mxu0 0.0
      %4525 = vmatpush.msra.mxu0 0.0
      %4526 = vmatpush.msra.mxu0 0.0
      %4527 = vmatpush.msra.mxu0 0.0
      %4528 = vmatpush.msra.mxu0 0.0
      %4529 = vmatpush.msra.mxu0 0.0
      %4530 = vmatpush.msra.mxu0 0.0
      %4531 = vmatpush.msra.mxu0 0.0
      %4532 = vmatpush.msra.mxu0 0.0
      %4533 = vmatpush.msra.mxu0 0.0
      %4534 = vmatpush.msra.mxu0 0.0
      %4535 = vmatpush.msra.mxu0 0.0
      %4536 = vmatpush.msra.mxu0 0.0
      %4537 = vmatpush.msra.mxu0 %v4274
      %4538 = vmatmul.f32.gmra.mxu0 %v4517
      %v4539 = vpop.f32.mrf.mxu0
      %v4540 = vadd.f32 %v4350, %v4539
      %4541 = vmatmul.f32.gmra.mxu0 %v4520
      %v4542 = vpop.f32.mrf.mxu0
      %v4543 = vadd.f32 %v4353, %v4542
      %4544 = vdwg.mxu0
      %4545 = vmatpush.msra.mxu0 0.0
      %4546 = vmatpush.msra.mxu0 0.0
      %4547 = vmatpush.msra.mxu0 0.0
      %4548 = vmatpush.msra.mxu0 0.0
      %4549 = vmatpush.msra.mxu0 0.0
      %4550 = vmatpush.msra.mxu0 0.0
      %4551 = vmatpush.msra.mxu0 0.0
      %4552 = vmatpush.msra.mxu0 0.0
      %4553 = vmatpush.msra.mxu0 0.0
      %4554 = vmatpush.msra.mxu0 0.0
      %4555 = vmatpush.msra.mxu0 0.0
      %4556 = vmatpush.msra.mxu0 0.0
      %4557 = vmatpush.msra.mxu0 0.0
      %4558 = vmatpush.msra.mxu0 0.0
      %4559 = vmatpush.msra.mxu0 0.0
      %4560 = vmatpush.msra.mxu0 %v4275
      %4561 = vmatmul.f32.gmra.mxu0 %v4517
      %v4562 = vpop.f32.mrf.mxu0
      %v4563 = vadd.f32 %v4373, %v4562
      %4564 = vmatmul.f32.gmra.mxu0 %v4520
      %v4565 = vpop.f32.mrf.mxu0
      %v4566 = vadd.f32 %v4376, %v4565
      %4567 = vdwg.mxu0
      %4568 = vmatpush.msra.mxu0 0.0
      %4569 = vmatpush.msra.mxu0 0.0
      %4570 = vmatpush.msra.mxu0 0.0
      %4571 = vmatpush.msra.mxu0 0.0
      %4572 = vmatpush.msra.mxu0 0.0
      %4573 = vmatpush.msra.mxu0 0.0
      %4574 = vmatpush.msra.mxu0 0.0
      %4575 = vmatpush.msra.mxu0 0.0
      %4576 = vmatpush.msra.mxu0 0.0
      %4577 = vmatpush.msra.mxu0 0.0
      %4578 = vmatpush.msra.mxu0 0.0
      %4579 = vmatpush.msra.mxu0 0.0
      %4580 = vmatpush.msra.mxu0 0.0
      %4581 = vmatpush.msra.mxu0 0.0
      %4582 = vmatpush.msra.mxu0 0.0
      %4583 = vmatpush.msra.mxu0 %v4276
      %4584 = vmatmul.f32.gmra.mxu0 %v4517
      %v4585 = vpop.f32.mrf.mxu0
      %v4586 = vadd.f32 %v4396, %v4585
      %4587 = vmatmul.f32.gmra.mxu0 %v4520
      %v4588 = vpop.f32.mrf.mxu0
      %v4589 = vadd.f32 %v4399, %v4588
      %4590 = vdwg.mxu0
      %4591 = vmatpush.msra.mxu0 0.0
      %4592 = vmatpush.msra.mxu0 0.0
      %4593 = vmatpush.msra.mxu0 0.0
      %4594 = vmatpush.msra.mxu0 0.0
      %4595 = vmatpush.msra.mxu0 0.0
      %4596 = vmatpush.msra.mxu0 0.0
      %4597 = vmatpush.msra.mxu0 0.0
      %4598 = vmatpush.msra.mxu0 0.0
      %4599 = vmatpush.msra.mxu0 0.0
      %4600 = vmatpush.msra.mxu0 0.0
      %4601 = vmatpush.msra.mxu0 0.0
      %4602 = vmatpush.msra.mxu0 0.0
      %4603 = vmatpush.msra.mxu0 0.0
      %4604 = vmatpush.msra.mxu0 0.0
      %4605 = vmatpush.msra.mxu0 0.0
      %4606 = vmatpush.msra.mxu0 %v4277
      %4607 = vmatmul.f32.gmra.mxu0 %v4517
      %v4608 = vpop.f32.mrf.mxu0
      %v4609 = vadd.f32 %v4419, %v4608
      %4610 = vmatmul.f32.gmra.mxu0 %v4520
      %v4611 = vpop.f32.mrf.mxu0
      %v4612 = vadd.f32 %v4422, %v4611
      %4613 = vdwg.mxu0
      %4614 = vmatpush.msra.mxu0 0.0
      %4615 = vmatpush.msra.mxu0 0.0
      %4616 = vmatpush.msra.mxu0 0.0
      %4617 = vmatpush.msra.mxu0 0.0
      %4618 = vmatpush.msra.mxu0 0.0
      %4619 = vmatpush.msra.mxu0 0.0
      %4620 = vmatpush.msra.mxu0 0.0
      %4621 = vmatpush.msra.mxu0 0.0
      %4622 = vmatpush.msra.mxu0 0.0
      %4623 = vmatpush.msra.mxu0 0.0
      %4624 = vmatpush.msra.mxu0 0.0
      %4625 = vmatpush.msra.mxu0 0.0
      %4626 = vmatpush.msra.mxu0 0.0
      %4627 = vmatpush.msra.mxu0 0.0
      %4628 = vmatpush.msra.mxu0 0.0
      %4629 = vmatpush.msra.mxu0 %v4278
      %4630 = vmatmul.f32.gmra.mxu0 %v4517
      %v4631 = vpop.f32.mrf.mxu0
      %v4632 = vadd.f32 %v4442, %v4631
      %4633 = vmatmul.f32.gmra.mxu0 %v4520
      %v4634 = vpop.f32.mrf.mxu0
      %v4635 = vadd.f32 %v4445, %v4634
      %4636 = vdwg.mxu0
      %4637 = vmatpush.msra.mxu0 0.0
      %4638 = vmatpush.msra.mxu0 0.0
      %4639 = vmatpush.msra.mxu0 0.0
      %4640 = vmatpush.msra.mxu0 0.0
      %4641 = vmatpush.msra.mxu0 0.0
      %4642 = vmatpush.msra.mxu0 0.0
      %4643 = vmatpush.msra.mxu0 0.0
      %4644 = vmatpush.msra.mxu0 0.0
      %4645 = vmatpush.msra.mxu0 0.0
      %4646 = vmatpush.msra.mxu0 0.0
      %4647 = vmatpush.msra.mxu0 0.0
      %4648 = vmatpush.msra.mxu0 0.0
      %4649 = vmatpush.msra.mxu0 0.0
      %4650 = vmatpush.msra.mxu0 0.0
      %4651 = vmatpush.msra.mxu0 0.0
      %4652 = vmatpush.msra.mxu0 %v4279
      %4653 = vmatmul.f32.gmra.mxu0 %v4517
      %v4654 = vpop.f32.mrf.mxu0
      %v4655 = vadd.f32 %v4465, %v4654
      %4656 = vmatmul.f32.gmra.mxu0 %v4520
      %v4657 = vpop.f32.mrf.mxu0
      %v4658 = vadd.f32 %v4468, %v4657
      %4659 = vdwg.mxu0
      %4660 = vmatpush.msra.mxu0 0.0
      %4661 = vmatpush.msra.mxu0 0.0
      %4662 = vmatpush.msra.mxu0 0.0
      %4663 = vmatpush.msra.mxu0 0.0
      %4664 = vmatpush.msra.mxu0 0.0
      %4665 = vmatpush.msra.mxu0 0.0
      %4666 = vmatpush.msra.mxu0 0.0
      %4667 = vmatpush.msra.mxu0 0.0
      %4668 = vmatpush.msra.mxu0 0.0
      %4669 = vmatpush.msra.mxu0 0.0
      %4670 = vmatpush.msra.mxu0 0.0
      %4671 = vmatpush.msra.mxu0 0.0
      %4672 = vmatpush.msra.mxu0 0.0
      %4673 = vmatpush.msra.mxu0 0.0
      %4674 = vmatpush.msra.mxu0 0.0
      %4675 = vmatpush.msra.mxu0 %v4280
      %4676 = vmatmul.f32.gmra.mxu0 %v4517
      %v4677 = vpop.f32.mrf.mxu0
      %v4678 = vadd.f32 %v4488, %v4677
      %4679 = vmatmul.f32.gmra.mxu0 %v4520
      %v4680 = vpop.f32.mrf.mxu0
      %v4681 = vadd.f32 %v4491, %v4680
      %4682 = vdwg.mxu0
      %4683 = vmatpush.msra.mxu0 0.0
      %4684 = vmatpush.msra.mxu0 0.0
      %4685 = vmatpush.msra.mxu0 0.0
      %4686 = vmatpush.msra.mxu0 0.0
      %4687 = vmatpush.msra.mxu0 0.0
      %4688 = vmatpush.msra.mxu0 0.0
      %4689 = vmatpush.msra.mxu0 0.0
      %4690 = vmatpush.msra.mxu0 0.0
      %4691 = vmatpush.msra.mxu0 0.0
      %4692 = vmatpush.msra.mxu0 0.0
      %4693 = vmatpush.msra.mxu0 0.0
      %4694 = vmatpush.msra.mxu0 0.0
      %4695 = vmatpush.msra.mxu0 0.0
      %4696 = vmatpush.msra.mxu0 0.0
      %4697 = vmatpush.msra.mxu0 0.0
      %4698 = vmatpush.msra.mxu0 %v4281
      %4699 = vmatmul.f32.gmra.mxu0 %v4517
      %v4700 = vpop.f32.mrf.mxu0
      %v4701 = vadd.f32 %v4511, %v4700
      %4702 = vmatmul.f32.gmra.mxu0 %v4520
      %v4703 = vpop.f32.mrf.mxu0
      %v4704 = vadd.f32 %v4514, %v4703
      %4705 = vdwg.mxu0
      %s4706 = scalar_lea.vmem %s6, 32
      %v4707 = vld [vmem:[%s4706] sm:$0xff]
      %v4708 = vld [vmem:[%s4706 + $0x8] sm:$0xff]
      %4709 = vrot.lane.b32.xlu0 %v4274, 126
      %v4710 = vpop.permute.xlu0 %4709
      %4711 = vrot.lane.b32.xlu0 %v4275, 126
      %v4712 = vpop.permute.xlu0 %4711
      %4713 = vrot.lane.b32.xlu0 %v4276, 126
      %v4714 = vpop.permute.xlu0 %4713
      %4715 = vrot.lane.b32.xlu0 %v4277, 126
      %v4716 = vpop.permute.xlu0 %4715
      %4717 = vrot.lane.b32.xlu0 %v4278, 126
      %v4718 = vpop.permute.xlu0 %4717
      %4719 = vrot.lane.b32.xlu0 %v4279, 126
      %v4720 = vpop.permute.xlu0 %4719
      %4721 = vrot.lane.b32.xlu0 %v4280, 126
      %v4722 = vpop.permute.xlu0 %4721
      %4723 = vrot.lane.b32.xlu0 %v4281, 126
      %v4724 = vpop.permute.xlu0 %4723
      %v4725 = vsel %vm851, %v4710, %v4712
      %v4726 = vsel %vm851, %v4712, %v4714
      %v4727 = vsel %vm851, %v4714, %v4716
      %v4728 = vsel %vm851, %v4716, %v4718
      %v4729 = vsel %vm851, %v4718, %v4720
      %v4730 = vsel %vm851, %v4720, %v4722
      %v4731 = vsel %vm851, %v4722, %v4724
      %v4741 = vsel %vm506, %v4707, 0
      %v4744 = vsel %vm506, %v4708, 0
      %4746 = vmatpush.msra.mxu0 0.0
      %4747 = vmatpush.msra.mxu0 0.0
      %4748 = vmatpush.msra.mxu0 0.0
      %4749 = vmatpush.msra.mxu0 0.0
      %4750 = vmatpush.msra.mxu0 0.0
      %4751 = vmatpush.msra.mxu0 0.0
      %4752 = vmatpush.msra.mxu0 0.0
      %4753 = vmatpush.msra.mxu0 0.0
      %4754 = vmatpush.msra.mxu0 0.0
      %4755 = vmatpush.msra.mxu0 0.0
      %4756 = vmatpush.msra.mxu0 0.0
      %4757 = vmatpush.msra.mxu0 0.0
      %4758 = vmatpush.msra.mxu0 0.0
      %4759 = vmatpush.msra.mxu0 0.0
      %4760 = vmatpush.msra.mxu0 0.0
      %4761 = vmatpush.msra.mxu0 %v4725
      %4762 = vmatmul.f32.gmra.mxu0 %v4741
      %v4763 = vpop.f32.mrf.mxu0
      %v4764 = vadd.f32 0.0, %v4763
      %4765 = vmatmul.f32.gmra.mxu0 %v4744
      %v4766 = vpop.f32.mrf.mxu0
      %v4767 = vadd.f32 0.0, %v4766
      %4768 = vdwg.mxu0
      %4769 = vmatpush.msra.mxu0 0.0
      %4770 = vmatpush.msra.mxu0 0.0
      %4771 = vmatpush.msra.mxu0 0.0
      %4772 = vmatpush.msra.mxu0 0.0
      %4773 = vmatpush.msra.mxu0 0.0
      %4774 = vmatpush.msra.mxu0 0.0
      %4775 = vmatpush.msra.mxu0 0.0
      %4776 = vmatpush.msra.mxu0 0.0
      %4777 = vmatpush.msra.mxu0 0.0
      %4778 = vmatpush.msra.mxu0 0.0
      %4779 = vmatpush.msra.mxu0 0.0
      %4780 = vmatpush.msra.mxu0 0.0
      %4781 = vmatpush.msra.mxu0 0.0
      %4782 = vmatpush.msra.mxu0 0.0
      %4783 = vmatpush.msra.mxu0 0.0
      %4784 = vmatpush.msra.mxu0 %v4726
      %4785 = vmatmul.f32.gmra.mxu0 %v4741
      %v4786 = vpop.f32.mrf.mxu0
      %v4787 = vadd.f32 0.0, %v4786
      %4788 = vmatmul.f32.gmra.mxu0 %v4744
      %v4789 = vpop.f32.mrf.mxu0
      %v4790 = vadd.f32 0.0, %v4789
      %4791 = vdwg.mxu0
      %4792 = vmatpush.msra.mxu0 0.0
      %4793 = vmatpush.msra.mxu0 0.0
      %4794 = vmatpush.msra.mxu0 0.0
      %4795 = vmatpush.msra.mxu0 0.0
      %4796 = vmatpush.msra.mxu0 0.0
      %4797 = vmatpush.msra.mxu0 0.0
      %4798 = vmatpush.msra.mxu0 0.0
      %4799 = vmatpush.msra.mxu0 0.0
      %4800 = vmatpush.msra.mxu0 0.0
      %4801 = vmatpush.msra.mxu0 0.0
      %4802 = vmatpush.msra.mxu0 0.0
      %4803 = vmatpush.msra.mxu0 0.0
      %4804 = vmatpush.msra.mxu0 0.0
      %4805 = vmatpush.msra.mxu0 0.0
      %4806 = vmatpush.msra.mxu0 0.0
      %4807 = vmatpush.msra.mxu0 %v4727
      %4808 = vmatmul.f32.gmra.mxu0 %v4741
      %v4809 = vpop.f32.mrf.mxu0
      %v4810 = vadd.f32 0.0, %v4809
      %4811 = vmatmul.f32.gmra.mxu0 %v4744
      %v4812 = vpop.f32.mrf.mxu0
      %v4813 = vadd.f32 0.0, %v4812
      %4814 = vdwg.mxu0
      %4815 = vmatpush.msra.mxu0 0.0
      %4816 = vmatpush.msra.mxu0 0.0
      %4817 = vmatpush.msra.mxu0 0.0
      %4818 = vmatpush.msra.mxu0 0.0
      %4819 = vmatpush.msra.mxu0 0.0
      %4820 = vmatpush.msra.mxu0 0.0
      %4821 = vmatpush.msra.mxu0 0.0
      %4822 = vmatpush.msra.mxu0 0.0
      %4823 = vmatpush.msra.mxu0 0.0
      %4824 = vmatpush.msra.mxu0 0.0
      %4825 = vmatpush.msra.mxu0 0.0
      %4826 = vmatpush.msra.mxu0 0.0
      %4827 = vmatpush.msra.mxu0 0.0
      %4828 = vmatpush.msra.mxu0 0.0
      %4829 = vmatpush.msra.mxu0 0.0
      %4830 = vmatpush.msra.mxu0 %v4728
      %4831 = vmatmul.f32.gmra.mxu0 %v4741
      %v4832 = vpop.f32.mrf.mxu0
      %v4833 = vadd.f32 0.0, %v4832
      %4834 = vmatmul.f32.gmra.mxu0 %v4744
      %v4835 = vpop.f32.mrf.mxu0
      %v4836 = vadd.f32 0.0, %v4835
      %4837 = vdwg.mxu0
      %4838 = vmatpush.msra.mxu0 0.0
      %4839 = vmatpush.msra.mxu0 0.0
      %4840 = vmatpush.msra.mxu0 0.0
      %4841 = vmatpush.msra.mxu0 0.0
      %4842 = vmatpush.msra.mxu0 0.0
      %4843 = vmatpush.msra.mxu0 0.0
      %4844 = vmatpush.msra.mxu0 0.0
      %4845 = vmatpush.msra.mxu0 0.0
      %4846 = vmatpush.msra.mxu0 0.0
      %4847 = vmatpush.msra.mxu0 0.0
      %4848 = vmatpush.msra.mxu0 0.0
      %4849 = vmatpush.msra.mxu0 0.0
      %4850 = vmatpush.msra.mxu0 0.0
      %4851 = vmatpush.msra.mxu0 0.0
      %4852 = vmatpush.msra.mxu0 0.0
      %4853 = vmatpush.msra.mxu0 %v4729
      %4854 = vmatmul.f32.gmra.mxu0 %v4741
      %v4855 = vpop.f32.mrf.mxu0
      %v4856 = vadd.f32 0.0, %v4855
      %4857 = vmatmul.f32.gmra.mxu0 %v4744
      %v4858 = vpop.f32.mrf.mxu0
      %v4859 = vadd.f32 0.0, %v4858
      %4860 = vdwg.mxu0
      %4861 = vmatpush.msra.mxu0 0.0
      %4862 = vmatpush.msra.mxu0 0.0
      %4863 = vmatpush.msra.mxu0 0.0
      %4864 = vmatpush.msra.mxu0 0.0
      %4865 = vmatpush.msra.mxu0 0.0
      %4866 = vmatpush.msra.mxu0 0.0
      %4867 = vmatpush.msra.mxu0 0.0
      %4868 = vmatpush.msra.mxu0 0.0
      %4869 = vmatpush.msra.mxu0 0.0
      %4870 = vmatpush.msra.mxu0 0.0
      %4871 = vmatpush.msra.mxu0 0.0
      %4872 = vmatpush.msra.mxu0 0.0
      %4873 = vmatpush.msra.mxu0 0.0
      %4874 = vmatpush.msra.mxu0 0.0
      %4875 = vmatpush.msra.mxu0 0.0
      %4876 = vmatpush.msra.mxu0 %v4730
      %4877 = vmatmul.f32.gmra.mxu0 %v4741
      %v4878 = vpop.f32.mrf.mxu0
      %v4879 = vadd.f32 0.0, %v4878
      %4880 = vmatmul.f32.gmra.mxu0 %v4744
      %v4881 = vpop.f32.mrf.mxu0
      %v4882 = vadd.f32 0.0, %v4881
      %4883 = vdwg.mxu0
      %4884 = vmatpush.msra.mxu0 0.0
      %4885 = vmatpush.msra.mxu0 0.0
      %4886 = vmatpush.msra.mxu0 0.0
      %4887 = vmatpush.msra.mxu0 0.0
      %4888 = vmatpush.msra.mxu0 0.0
      %4889 = vmatpush.msra.mxu0 0.0
      %4890 = vmatpush.msra.mxu0 0.0
      %4891 = vmatpush.msra.mxu0 0.0
      %4892 = vmatpush.msra.mxu0 0.0
      %4893 = vmatpush.msra.mxu0 0.0
      %4894 = vmatpush.msra.mxu0 0.0
      %4895 = vmatpush.msra.mxu0 0.0
      %4896 = vmatpush.msra.mxu0 0.0
      %4897 = vmatpush.msra.mxu0 0.0
      %4898 = vmatpush.msra.mxu0 0.0
      %4899 = vmatpush.msra.mxu0 %v4731
      %4900 = vmatmul.f32.gmra.mxu0 %v4741
      %v4901 = vpop.f32.mrf.mxu0
      %v4902 = vadd.f32 0.0, %v4901
      %4903 = vmatmul.f32.gmra.mxu0 %v4744
      %v4904 = vpop.f32.mrf.mxu0
      %v4905 = vadd.f32 0.0, %v4904
      %4906 = vdwg.mxu0
      %4907 = vmatpush.msra.mxu0 0.0
      %4908 = vmatpush.msra.mxu0 0.0
      %4909 = vmatpush.msra.mxu0 0.0
      %4910 = vmatpush.msra.mxu0 0.0
      %4911 = vmatpush.msra.mxu0 0.0
      %4912 = vmatpush.msra.mxu0 0.0
      %4913 = vmatpush.msra.mxu0 0.0
      %4914 = vmatpush.msra.mxu0 0.0
      %4915 = vmatpush.msra.mxu0 0.0
      %4916 = vmatpush.msra.mxu0 0.0
      %4917 = vmatpush.msra.mxu0 0.0
      %4918 = vmatpush.msra.mxu0 0.0
      %4919 = vmatpush.msra.mxu0 0.0
      %4920 = vmatpush.msra.mxu0 0.0
      %4921 = vmatpush.msra.mxu0 0.0
      %4922 = vmatpush.msra.mxu0 %v4724
      %4923 = vmatmul.f32.gmra.mxu0 %v4741
      %v4924 = vpop.f32.mrf.mxu0
      %v4925 = vadd.f32 0.0, %v4924
      %4926 = vmatmul.f32.gmra.mxu0 %v4744
      %v4927 = vpop.f32.mrf.mxu0
      %v4928 = vadd.f32 0.0, %v4927
      %4929 = vdwg.mxu0
      %v4930 = vadd.f32 %v4540, %v4764
      %v4931 = vadd.f32 %v4563, %v4787
      %v4932 = vadd.f32 %v4586, %v4810
      %v4933 = vadd.f32 %v4609, %v4833
      %v4934 = vadd.f32 %v4632, %v4856
      %v4935 = vadd.f32 %v4655, %v4879
      %v4936 = vadd.f32 %v4678, %v4902
      %v4937 = vadd.f32 %v4701, %v4925
      %v4938 = vadd.f32 %v4543, %v4767
      %v4939 = vadd.f32 %v4566, %v4790
      %v4940 = vadd.f32 %v4589, %v4813
      %v4941 = vadd.f32 %v4612, %v4836
      %v4942 = vadd.f32 %v4635, %v4859
      %v4943 = vadd.f32 %v4658, %v4882
      %v4944 = vadd.f32 %v4681, %v4905
      %v4945 = vadd.f32 %v4704, %v4928
      %s4946 = scalar_lea.vmem %s6, 48
      %v4947 = vld [vmem:[%s4946] sm:$0xff]
      %v4948 = vld [vmem:[%s4946 + $0x8] sm:$0xff]
      %4949 = vrot.lane.b32.xlu0 %v4274, 98
      %v4950 = vpop.permute.xlu0 %4949
      %4951 = vrot.lane.b32.xlu0 %v4275, 98
      %v4952 = vpop.permute.xlu0 %4951
      %4953 = vrot.lane.b32.xlu0 %v4276, 98
      %v4954 = vpop.permute.xlu0 %4953
      %4955 = vrot.lane.b32.xlu0 %v4277, 98
      %v4956 = vpop.permute.xlu0 %4955
      %4957 = vrot.lane.b32.xlu0 %v4278, 98
      %v4958 = vpop.permute.xlu0 %4957
      %4959 = vrot.lane.b32.xlu0 %v4279, 98
      %v4960 = vpop.permute.xlu0 %4959
      %4961 = vrot.lane.b32.xlu0 %v4280, 98
      %v4962 = vpop.permute.xlu0 %4961
      %4963 = vrot.lane.b32.xlu0 %v4281, 98
      %v4964 = vpop.permute.xlu0 %4963
      %v4965 = vsel %vm1056, %v4950, %v4952
      %v4966 = vsel %vm1056, %v4952, %v4954
      %v4967 = vsel %vm1056, %v4954, %v4956
      %v4968 = vsel %vm1056, %v4956, %v4958
      %v4969 = vsel %vm1056, %v4958, %v4960
      %v4970 = vsel %vm1056, %v4960, %v4962
      %v4971 = vsel %vm1056, %v4962, %v4964
      %v4981 = vsel %vm506, %v4947, 0
      %v4984 = vsel %vm506, %v4948, 0
      %4986 = vmatpush.msra.mxu0 0.0
      %4987 = vmatpush.msra.mxu0 0.0
      %4988 = vmatpush.msra.mxu0 0.0
      %4989 = vmatpush.msra.mxu0 0.0
      %4990 = vmatpush.msra.mxu0 0.0
      %4991 = vmatpush.msra.mxu0 0.0
      %4992 = vmatpush.msra.mxu0 0.0
      %4993 = vmatpush.msra.mxu0 0.0
      %4994 = vmatpush.msra.mxu0 0.0
      %4995 = vmatpush.msra.mxu0 0.0
      %4996 = vmatpush.msra.mxu0 0.0
      %4997 = vmatpush.msra.mxu0 0.0
      %4998 = vmatpush.msra.mxu0 0.0
      %4999 = vmatpush.msra.mxu0 0.0
      %5000 = vmatpush.msra.mxu0 0.0
      %5001 = vmatpush.msra.mxu0 %v4965
      %5002 = vmatmul.f32.gmra.mxu0 %v4981
      %v5003 = vpop.f32.mrf.mxu0
      %v5004 = vadd.f32 0.0, %v5003
      %5005 = vmatmul.f32.gmra.mxu0 %v4984
      %v5006 = vpop.f32.mrf.mxu0
      %v5007 = vadd.f32 0.0, %v5006
      %5008 = vdwg.mxu0
      %5009 = vmatpush.msra.mxu0 0.0
      %5010 = vmatpush.msra.mxu0 0.0
      %5011 = vmatpush.msra.mxu0 0.0
      %5012 = vmatpush.msra.mxu0 0.0
      %5013 = vmatpush.msra.mxu0 0.0
      %5014 = vmatpush.msra.mxu0 0.0
      %5015 = vmatpush.msra.mxu0 0.0
      %5016 = vmatpush.msra.mxu0 0.0
      %5017 = vmatpush.msra.mxu0 0.0
      %5018 = vmatpush.msra.mxu0 0.0
      %5019 = vmatpush.msra.mxu0 0.0
      %5020 = vmatpush.msra.mxu0 0.0
      %5021 = vmatpush.msra.mxu0 0.0
      %5022 = vmatpush.msra.mxu0 0.0
      %5023 = vmatpush.msra.mxu0 0.0
      %5024 = vmatpush.msra.mxu0 %v4966
      %5025 = vmatmul.f32.gmra.mxu0 %v4981
      %v5026 = vpop.f32.mrf.mxu0
      %v5027 = vadd.f32 0.0, %v5026
      %5028 = vmatmul.f32.gmra.mxu0 %v4984
      %v5029 = vpop.f32.mrf.mxu0
      %v5030 = vadd.f32 0.0, %v5029
      %5031 = vdwg.mxu0
      %5032 = vmatpush.msra.mxu0 0.0
      %5033 = vmatpush.msra.mxu0 0.0
      %5034 = vmatpush.msra.mxu0 0.0
      %5035 = vmatpush.msra.mxu0 0.0
      %5036 = vmatpush.msra.mxu0 0.0
      %5037 = vmatpush.msra.mxu0 0.0
      %5038 = vmatpush.msra.mxu0 0.0
      %5039 = vmatpush.msra.mxu0 0.0
      %5040 = vmatpush.msra.mxu0 0.0
      %5041 = vmatpush.msra.mxu0 0.0
      %5042 = vmatpush.msra.mxu0 0.0
      %5043 = vmatpush.msra.mxu0 0.0
      %5044 = vmatpush.msra.mxu0 0.0
      %5045 = vmatpush.msra.mxu0 0.0
      %5046 = vmatpush.msra.mxu0 0.0
      %5047 = vmatpush.msra.mxu0 %v4967
      %5048 = vmatmul.f32.gmra.mxu0 %v4981
      %v5049 = vpop.f32.mrf.mxu0
      %v5050 = vadd.f32 0.0, %v5049
      %5051 = vmatmul.f32.gmra.mxu0 %v4984
      %v5052 = vpop.f32.mrf.mxu0
      %v5053 = vadd.f32 0.0, %v5052
      %5054 = vdwg.mxu0
      %5055 = vmatpush.msra.mxu0 0.0
      %5056 = vmatpush.msra.mxu0 0.0
      %5057 = vmatpush.msra.mxu0 0.0
      %5058 = vmatpush.msra.mxu0 0.0
      %5059 = vmatpush.msra.mxu0 0.0
      %5060 = vmatpush.msra.mxu0 0.0
      %5061 = vmatpush.msra.mxu0 0.0
      %5062 = vmatpush.msra.mxu0 0.0
      %5063 = vmatpush.msra.mxu0 0.0
      %5064 = vmatpush.msra.mxu0 0.0
      %5065 = vmatpush.msra.mxu0 0.0
      %5066 = vmatpush.msra.mxu0 0.0
      %5067 = vmatpush.msra.mxu0 0.0
      %5068 = vmatpush.msra.mxu0 0.0
      %5069 = vmatpush.msra.mxu0 0.0
      %5070 = vmatpush.msra.mxu0 %v4968
      %5071 = vmatmul.f32.gmra.mxu0 %v4981
      %v5072 = vpop.f32.mrf.mxu0
      %v5073 = vadd.f32 0.0, %v5072
      %5074 = vmatmul.f32.gmra.mxu0 %v4984
      %v5075 = vpop.f32.mrf.mxu0
      %v5076 = vadd.f32 0.0, %v5075
      %5077 = vdwg.mxu0
      %5078 = vmatpush.msra.mxu0 0.0
      %5079 = vmatpush.msra.mxu0 0.0
      %5080 = vmatpush.msra.mxu0 0.0
      %5081 = vmatpush.msra.mxu0 0.0
      %5082 = vmatpush.msra.mxu0 0.0
      %5083 = vmatpush.msra.mxu0 0.0
      %5084 = vmatpush.msra.mxu0 0.0
      %5085 = vmatpush.msra.mxu0 0.0
      %5086 = vmatpush.msra.mxu0 0.0
      %5087 = vmatpush.msra.mxu0 0.0
      %5088 = vmatpush.msra.mxu0 0.0
      %5089 = vmatpush.msra.mxu0 0.0
      %5090 = vmatpush.msra.mxu0 0.0
      %5091 = vmatpush.msra.mxu0 0.0
      %5092 = vmatpush.msra.mxu0 0.0
      %5093 = vmatpush.msra.mxu0 %v4969
      %5094 = vmatmul.f32.gmra.mxu0 %v4981
      %v5095 = vpop.f32.mrf.mxu0
      %v5096 = vadd.f32 0.0, %v5095
      %5097 = vmatmul.f32.gmra.mxu0 %v4984
      %v5098 = vpop.f32.mrf.mxu0
      %v5099 = vadd.f32 0.0, %v5098
      %5100 = vdwg.mxu0
      %5101 = vmatpush.msra.mxu0 0.0
      %5102 = vmatpush.msra.mxu0 0.0
      %5103 = vmatpush.msra.mxu0 0.0
      %5104 = vmatpush.msra.mxu0 0.0
      %5105 = vmatpush.msra.mxu0 0.0
      %5106 = vmatpush.msra.mxu0 0.0
      %5107 = vmatpush.msra.mxu0 0.0
      %5108 = vmatpush.msra.mxu0 0.0
      %5109 = vmatpush.msra.mxu0 0.0
      %5110 = vmatpush.msra.mxu0 0.0
      %5111 = vmatpush.msra.mxu0 0.0
      %5112 = vmatpush.msra.mxu0 0.0
      %5113 = vmatpush.msra.mxu0 0.0
      %5114 = vmatpush.msra.mxu0 0.0
      %5115 = vmatpush.msra.mxu0 0.0
      %5116 = vmatpush.msra.mxu0 %v4970
      %5117 = vmatmul.f32.gmra.mxu0 %v4981
      %v5118 = vpop.f32.mrf.mxu0
      %v5119 = vadd.f32 0.0, %v5118
      %5120 = vmatmul.f32.gmra.mxu0 %v4984
      %v5121 = vpop.f32.mrf.mxu0
      %v5122 = vadd.f32 0.0, %v5121
      %5123 = vdwg.mxu0
      %5124 = vmatpush.msra.mxu0 0.0
      %5125 = vmatpush.msra.mxu0 0.0
      %5126 = vmatpush.msra.mxu0 0.0
      %5127 = vmatpush.msra.mxu0 0.0
      %5128 = vmatpush.msra.mxu0 0.0
      %5129 = vmatpush.msra.mxu0 0.0
      %5130 = vmatpush.msra.mxu0 0.0
      %5131 = vmatpush.msra.mxu0 0.0
      %5132 = vmatpush.msra.mxu0 0.0
      %5133 = vmatpush.msra.mxu0 0.0
      %5134 = vmatpush.msra.mxu0 0.0
      %5135 = vmatpush.msra.mxu0 0.0
      %5136 = vmatpush.msra.mxu0 0.0
      %5137 = vmatpush.msra.mxu0 0.0
      %5138 = vmatpush.msra.mxu0 0.0
      %5139 = vmatpush.msra.mxu0 %v4971
      %5140 = vmatmul.f32.gmra.mxu0 %v4981
      %v5141 = vpop.f32.mrf.mxu0
      %v5142 = vadd.f32 0.0, %v5141
      %5143 = vmatmul.f32.gmra.mxu0 %v4984
      %v5144 = vpop.f32.mrf.mxu0
      %v5145 = vadd.f32 0.0, %v5144
      %5146 = vdwg.mxu0
      %5147 = vmatpush.msra.mxu0 0.0
      %5148 = vmatpush.msra.mxu0 0.0
      %5149 = vmatpush.msra.mxu0 0.0
      %5150 = vmatpush.msra.mxu0 0.0
      %5151 = vmatpush.msra.mxu0 0.0
      %5152 = vmatpush.msra.mxu0 0.0
      %5153 = vmatpush.msra.mxu0 0.0
      %5154 = vmatpush.msra.mxu0 0.0
      %5155 = vmatpush.msra.mxu0 0.0
      %5156 = vmatpush.msra.mxu0 0.0
      %5157 = vmatpush.msra.mxu0 0.0
      %5158 = vmatpush.msra.mxu0 0.0
      %5159 = vmatpush.msra.mxu0 0.0
      %5160 = vmatpush.msra.mxu0 0.0
      %5161 = vmatpush.msra.mxu0 0.0
      %5162 = vmatpush.msra.mxu0 %v4964
      %5163 = vmatmul.f32.gmra.mxu0 %v4981
      %v5164 = vpop.f32.mrf.mxu0
      %v5165 = vadd.f32 0.0, %v5164
      %5166 = vmatmul.f32.gmra.mxu0 %v4984
      %v5167 = vpop.f32.mrf.mxu0
      %v5168 = vadd.f32 0.0, %v5167
      %5169 = vdwg.mxu0
      %v5170 = vadd.f32 %v4930, %v5004
      %v5171 = vadd.f32 %v4931, %v5027
      %v5172 = vadd.f32 %v4932, %v5050
      %v5173 = vadd.f32 %v4933, %v5073
      %v5174 = vadd.f32 %v4934, %v5096
      %v5175 = vadd.f32 %v4935, %v5119
      %v5176 = vadd.f32 %v4936, %v5142
      %v5177 = vadd.f32 %v4937, %v5165
      %v5178 = vadd.f32 %v4938, %v5007
      %v5179 = vadd.f32 %v4939, %v5030
      %v5180 = vadd.f32 %v4940, %v5053
      %v5181 = vadd.f32 %v4941, %v5076
      %v5182 = vadd.f32 %v4942, %v5099
      %v5183 = vadd.f32 %v4943, %v5122
      %v5184 = vadd.f32 %v4944, %v5145
      %v5185 = vadd.f32 %v4945, %v5168
      %s5186 = scalar_lea.vmem %s6, 64
      %v5187 = vld [vmem:[%s5186] sm:$0xff]
      %v5188 = vld [vmem:[%s5186 + $0x8] sm:$0xff]
      %5189 = vrot.lane.b32.xlu0 %v4274, 97
      %v5190 = vpop.permute.xlu0 %5189
      %5191 = vrot.lane.b32.xlu0 %v4275, 97
      %v5192 = vpop.permute.xlu0 %5191
      %5193 = vrot.lane.b32.xlu0 %v4276, 97
      %v5194 = vpop.permute.xlu0 %5193
      %5195 = vrot.lane.b32.xlu0 %v4277, 97
      %v5196 = vpop.permute.xlu0 %5195
      %5197 = vrot.lane.b32.xlu0 %v4278, 97
      %v5198 = vpop.permute.xlu0 %5197
      %5199 = vrot.lane.b32.xlu0 %v4279, 97
      %v5200 = vpop.permute.xlu0 %5199
      %5201 = vrot.lane.b32.xlu0 %v4280, 97
      %v5202 = vpop.permute.xlu0 %5201
      %5203 = vrot.lane.b32.xlu0 %v4281, 97
      %v5204 = vpop.permute.xlu0 %5203
      %v5205 = vsel %vm1261, %v5190, %v5192
      %v5206 = vsel %vm1261, %v5192, %v5194
      %v5207 = vsel %vm1261, %v5194, %v5196
      %v5208 = vsel %vm1261, %v5196, %v5198
      %v5209 = vsel %vm1261, %v5198, %v5200
      %v5210 = vsel %vm1261, %v5200, %v5202
      %v5211 = vsel %vm1261, %v5202, %v5204
      %v5221 = vsel %vm506, %v5187, 0
      %v5224 = vsel %vm506, %v5188, 0
      %5226 = vmatpush.msra.mxu0 0.0
      %5227 = vmatpush.msra.mxu0 0.0
      %5228 = vmatpush.msra.mxu0 0.0
      %5229 = vmatpush.msra.mxu0 0.0
      %5230 = vmatpush.msra.mxu0 0.0
      %5231 = vmatpush.msra.mxu0 0.0
      %5232 = vmatpush.msra.mxu0 0.0
      %5233 = vmatpush.msra.mxu0 0.0
      %5234 = vmatpush.msra.mxu0 0.0
      %5235 = vmatpush.msra.mxu0 0.0
      %5236 = vmatpush.msra.mxu0 0.0
      %5237 = vmatpush.msra.mxu0 0.0
      %5238 = vmatpush.msra.mxu0 0.0
      %5239 = vmatpush.msra.mxu0 0.0
      %5240 = vmatpush.msra.mxu0 0.0
      %5241 = vmatpush.msra.mxu0 %v5205
      %5242 = vmatmul.f32.gmra.mxu0 %v5221
      %v5243 = vpop.f32.mrf.mxu0
      %v5244 = vadd.f32 0.0, %v5243
      %5245 = vmatmul.f32.gmra.mxu0 %v5224
      %v5246 = vpop.f32.mrf.mxu0
      %v5247 = vadd.f32 0.0, %v5246
      %5248 = vdwg.mxu0
      %5249 = vmatpush.msra.mxu0 0.0
      %5250 = vmatpush.msra.mxu0 0.0
      %5251 = vmatpush.msra.mxu0 0.0
      %5252 = vmatpush.msra.mxu0 0.0
      %5253 = vmatpush.msra.mxu0 0.0
      %5254 = vmatpush.msra.mxu0 0.0
      %5255 = vmatpush.msra.mxu0 0.0
      %5256 = vmatpush.msra.mxu0 0.0
      %5257 = vmatpush.msra.mxu0 0.0
      %5258 = vmatpush.msra.mxu0 0.0
      %5259 = vmatpush.msra.mxu0 0.0
      %5260 = vmatpush.msra.mxu0 0.0
      %5261 = vmatpush.msra.mxu0 0.0
      %5262 = vmatpush.msra.mxu0 0.0
      %5263 = vmatpush.msra.mxu0 0.0
      %5264 = vmatpush.msra.mxu0 %v5206
      %5265 = vmatmul.f32.gmra.mxu0 %v5221
      %v5266 = vpop.f32.mrf.mxu0
      %v5267 = vadd.f32 0.0, %v5266
      %5268 = vmatmul.f32.gmra.mxu0 %v5224
      %v5269 = vpop.f32.mrf.mxu0
      %v5270 = vadd.f32 0.0, %v5269
      %5271 = vdwg.mxu0
      %5272 = vmatpush.msra.mxu0 0.0
      %5273 = vmatpush.msra.mxu0 0.0
      %5274 = vmatpush.msra.mxu0 0.0
      %5275 = vmatpush.msra.mxu0 0.0
      %5276 = vmatpush.msra.mxu0 0.0
      %5277 = vmatpush.msra.mxu0 0.0
      %5278 = vmatpush.msra.mxu0 0.0
      %5279 = vmatpush.msra.mxu0 0.0
      %5280 = vmatpush.msra.mxu0 0.0
      %5281 = vmatpush.msra.mxu0 0.0
      %5282 = vmatpush.msra.mxu0 0.0
      %5283 = vmatpush.msra.mxu0 0.0
      %5284 = vmatpush.msra.mxu0 0.0
      %5285 = vmatpush.msra.mxu0 0.0
      %5286 = vmatpush.msra.mxu0 0.0
      %5287 = vmatpush.msra.mxu0 %v5207
      %5288 = vmatmul.f32.gmra.mxu0 %v5221
      %v5289 = vpop.f32.mrf.mxu0
      %v5290 = vadd.f32 0.0, %v5289
      %5291 = vmatmul.f32.gmra.mxu0 %v5224
      %v5292 = vpop.f32.mrf.mxu0
      %v5293 = vadd.f32 0.0, %v5292
      %5294 = vdwg.mxu0
      %5295 = vmatpush.msra.mxu0 0.0
      %5296 = vmatpush.msra.mxu0 0.0
      %5297 = vmatpush.msra.mxu0 0.0
      %5298 = vmatpush.msra.mxu0 0.0
      %5299 = vmatpush.msra.mxu0 0.0
      %5300 = vmatpush.msra.mxu0 0.0
      %5301 = vmatpush.msra.mxu0 0.0
      %5302 = vmatpush.msra.mxu0 0.0
      %5303 = vmatpush.msra.mxu0 0.0
      %5304 = vmatpush.msra.mxu0 0.0
      %5305 = vmatpush.msra.mxu0 0.0
      %5306 = vmatpush.msra.mxu0 0.0
      %5307 = vmatpush.msra.mxu0 0.0
      %5308 = vmatpush.msra.mxu0 0.0
      %5309 = vmatpush.msra.mxu0 0.0
      %5310 = vmatpush.msra.mxu0 %v5208
      %5311 = vmatmul.f32.gmra.mxu0 %v5221
      %v5312 = vpop.f32.mrf.mxu0
      %v5313 = vadd.f32 0.0, %v5312
      %5314 = vmatmul.f32.gmra.mxu0 %v5224
      %v5315 = vpop.f32.mrf.mxu0
      %v5316 = vadd.f32 0.0, %v5315
      %5317 = vdwg.mxu0
      %5318 = vmatpush.msra.mxu0 0.0
      %5319 = vmatpush.msra.mxu0 0.0
      %5320 = vmatpush.msra.mxu0 0.0
      %5321 = vmatpush.msra.mxu0 0.0
      %5322 = vmatpush.msra.mxu0 0.0
      %5323 = vmatpush.msra.mxu0 0.0
      %5324 = vmatpush.msra.mxu0 0.0
      %5325 = vmatpush.msra.mxu0 0.0
      %5326 = vmatpush.msra.mxu0 0.0
      %5327 = vmatpush.msra.mxu0 0.0
      %5328 = vmatpush.msra.mxu0 0.0
      %5329 = vmatpush.msra.mxu0 0.0
      %5330 = vmatpush.msra.mxu0 0.0
      %5331 = vmatpush.msra.mxu0 0.0
      %5332 = vmatpush.msra.mxu0 0.0
      %5333 = vmatpush.msra.mxu0 %v5209
      %5334 = vmatmul.f32.gmra.mxu0 %v5221
      %v5335 = vpop.f32.mrf.mxu0
      %v5336 = vadd.f32 0.0, %v5335
      %5337 = vmatmul.f32.gmra.mxu0 %v5224
      %v5338 = vpop.f32.mrf.mxu0
      %v5339 = vadd.f32 0.0, %v5338
      %5340 = vdwg.mxu0
      %5341 = vmatpush.msra.mxu0 0.0
      %5342 = vmatpush.msra.mxu0 0.0
      %5343 = vmatpush.msra.mxu0 0.0
      %5344 = vmatpush.msra.mxu0 0.0
      %5345 = vmatpush.msra.mxu0 0.0
      %5346 = vmatpush.msra.mxu0 0.0
      %5347 = vmatpush.msra.mxu0 0.0
      %5348 = vmatpush.msra.mxu0 0.0
      %5349 = vmatpush.msra.mxu0 0.0
      %5350 = vmatpush.msra.mxu0 0.0
      %5351 = vmatpush.msra.mxu0 0.0
      %5352 = vmatpush.msra.mxu0 0.0
      %5353 = vmatpush.msra.mxu0 0.0
      %5354 = vmatpush.msra.mxu0 0.0
      %5355 = vmatpush.msra.mxu0 0.0
      %5356 = vmatpush.msra.mxu0 %v5210
      %5357 = vmatmul.f32.gmra.mxu0 %v5221
      %v5358 = vpop.f32.mrf.mxu0
      %v5359 = vadd.f32 0.0, %v5358
      %5360 = vmatmul.f32.gmra.mxu0 %v5224
      %v5361 = vpop.f32.mrf.mxu0
      %v5362 = vadd.f32 0.0, %v5361
      %5363 = vdwg.mxu0
      %5364 = vmatpush.msra.mxu0 0.0
      %5365 = vmatpush.msra.mxu0 0.0
      %5366 = vmatpush.msra.mxu0 0.0
      %5367 = vmatpush.msra.mxu0 0.0
      %5368 = vmatpush.msra.mxu0 0.0
      %5369 = vmatpush.msra.mxu0 0.0
      %5370 = vmatpush.msra.mxu0 0.0
      %5371 = vmatpush.msra.mxu0 0.0
      %5372 = vmatpush.msra.mxu0 0.0
      %5373 = vmatpush.msra.mxu0 0.0
      %5374 = vmatpush.msra.mxu0 0.0
      %5375 = vmatpush.msra.mxu0 0.0
      %5376 = vmatpush.msra.mxu0 0.0
      %5377 = vmatpush.msra.mxu0 0.0
      %5378 = vmatpush.msra.mxu0 0.0
      %5379 = vmatpush.msra.mxu0 %v5211
      %5380 = vmatmul.f32.gmra.mxu0 %v5221
      %v5381 = vpop.f32.mrf.mxu0
      %v5382 = vadd.f32 0.0, %v5381
      %5383 = vmatmul.f32.gmra.mxu0 %v5224
      %v5384 = vpop.f32.mrf.mxu0
      %v5385 = vadd.f32 0.0, %v5384
      %5386 = vdwg.mxu0
      %5387 = vmatpush.msra.mxu0 0.0
      %5388 = vmatpush.msra.mxu0 0.0
      %5389 = vmatpush.msra.mxu0 0.0
      %5390 = vmatpush.msra.mxu0 0.0
      %5391 = vmatpush.msra.mxu0 0.0
      %5392 = vmatpush.msra.mxu0 0.0
      %5393 = vmatpush.msra.mxu0 0.0
      %5394 = vmatpush.msra.mxu0 0.0
      %5395 = vmatpush.msra.mxu0 0.0
      %5396 = vmatpush.msra.mxu0 0.0
      %5397 = vmatpush.msra.mxu0 0.0
      %5398 = vmatpush.msra.mxu0 0.0
      %5399 = vmatpush.msra.mxu0 0.0
      %5400 = vmatpush.msra.mxu0 0.0
      %5401 = vmatpush.msra.mxu0 0.0
      %5402 = vmatpush.msra.mxu0 %v5204
      %5403 = vmatmul.f32.gmra.mxu0 %v5221
      %v5404 = vpop.f32.mrf.mxu0
      %v5405 = vadd.f32 0.0, %v5404
      %5406 = vmatmul.f32.gmra.mxu0 %v5224
      %v5407 = vpop.f32.mrf.mxu0
      %v5408 = vadd.f32 0.0, %v5407
      %5409 = vdwg.mxu0
      %v5410 = vadd.f32 %v5170, %v5244
      %v5411 = vadd.f32 %v5171, %v5267
      %v5412 = vadd.f32 %v5172, %v5290
      %v5413 = vadd.f32 %v5173, %v5313
      %v5414 = vadd.f32 %v5174, %v5336
      %v5415 = vadd.f32 %v5175, %v5359
      %v5416 = vadd.f32 %v5176, %v5382
      %v5417 = vadd.f32 %v5177, %v5405
      %v5418 = vadd.f32 %v5178, %v5247
      %v5419 = vadd.f32 %v5179, %v5270
      %v5420 = vadd.f32 %v5180, %v5293
      %v5421 = vadd.f32 %v5181, %v5316
      %v5422 = vadd.f32 %v5182, %v5339
      %v5423 = vadd.f32 %v5183, %v5362
      %v5424 = vadd.f32 %v5184, %v5385
      %v5425 = vadd.f32 %v5185, %v5408
      %s5426 = scalar_lea.vmem %s6, 80
      %v5427 = vld [vmem:[%s5426] sm:$0xff]
      %v5428 = vld [vmem:[%s5426 + $0x8] sm:$0xff]
      %5429 = vrot.lane.b32.xlu0 %v4274, 96
      %v5430 = vpop.permute.xlu0 %5429
      %5431 = vrot.lane.b32.xlu0 %v4275, 96
      %v5432 = vpop.permute.xlu0 %5431
      %5433 = vrot.lane.b32.xlu0 %v4276, 96
      %v5434 = vpop.permute.xlu0 %5433
      %5435 = vrot.lane.b32.xlu0 %v4277, 96
      %v5436 = vpop.permute.xlu0 %5435
      %5437 = vrot.lane.b32.xlu0 %v4278, 96
      %v5438 = vpop.permute.xlu0 %5437
      %5439 = vrot.lane.b32.xlu0 %v4279, 96
      %v5440 = vpop.permute.xlu0 %5439
      %5441 = vrot.lane.b32.xlu0 %v4280, 96
      %v5442 = vpop.permute.xlu0 %5441
      %5443 = vrot.lane.b32.xlu0 %v4281, 96
      %v5444 = vpop.permute.xlu0 %5443
      %v5445 = vsel %vm1466, %v5430, %v5432
      %v5446 = vsel %vm1466, %v5432, %v5434
      %v5447 = vsel %vm1466, %v5434, %v5436
      %v5448 = vsel %vm1466, %v5436, %v5438
      %v5449 = vsel %vm1466, %v5438, %v5440
      %v5450 = vsel %vm1466, %v5440, %v5442
      %v5451 = vsel %vm1466, %v5442, %v5444
      %v5461 = vsel %vm506, %v5427, 0
      %v5464 = vsel %vm506, %v5428, 0
      %5466 = vmatpush.msra.mxu0 0.0
      %5467 = vmatpush.msra.mxu0 0.0
      %5468 = vmatpush.msra.mxu0 0.0
      %5469 = vmatpush.msra.mxu0 0.0
      %5470 = vmatpush.msra.mxu0 0.0
      %5471 = vmatpush.msra.mxu0 0.0
      %5472 = vmatpush.msra.mxu0 0.0
      %5473 = vmatpush.msra.mxu0 0.0
      %5474 = vmatpush.msra.mxu0 0.0
      %5475 = vmatpush.msra.mxu0 0.0
      %5476 = vmatpush.msra.mxu0 0.0
      %5477 = vmatpush.msra.mxu0 0.0
      %5478 = vmatpush.msra.mxu0 0.0
      %5479 = vmatpush.msra.mxu0 0.0
      %5480 = vmatpush.msra.mxu0 0.0
      %5481 = vmatpush.msra.mxu0 %v5445
      %5482 = vmatmul.f32.gmra.mxu0 %v5461
      %v5483 = vpop.f32.mrf.mxu0
      %v5484 = vadd.f32 0.0, %v5483
      %5485 = vmatmul.f32.gmra.mxu0 %v5464
      %v5486 = vpop.f32.mrf.mxu0
      %v5487 = vadd.f32 0.0, %v5486
      %5488 = vdwg.mxu0
      %5489 = vmatpush.msra.mxu0 0.0
      %5490 = vmatpush.msra.mxu0 0.0
      %5491 = vmatpush.msra.mxu0 0.0
      %5492 = vmatpush.msra.mxu0 0.0
      %5493 = vmatpush.msra.mxu0 0.0
      %5494 = vmatpush.msra.mxu0 0.0
      %5495 = vmatpush.msra.mxu0 0.0
      %5496 = vmatpush.msra.mxu0 0.0
      %5497 = vmatpush.msra.mxu0 0.0
      %5498 = vmatpush.msra.mxu0 0.0
      %5499 = vmatpush.msra.mxu0 0.0
      %5500 = vmatpush.msra.mxu0 0.0
      %5501 = vmatpush.msra.mxu0 0.0
      %5502 = vmatpush.msra.mxu0 0.0
      %5503 = vmatpush.msra.mxu0 0.0
      %5504 = vmatpush.msra.mxu0 %v5446
      %5505 = vmatmul.f32.gmra.mxu0 %v5461
      %v5506 = vpop.f32.mrf.mxu0
      %v5507 = vadd.f32 0.0, %v5506
      %5508 = vmatmul.f32.gmra.mxu0 %v5464
      %v5509 = vpop.f32.mrf.mxu0
      %v5510 = vadd.f32 0.0, %v5509
      %5511 = vdwg.mxu0
      %5512 = vmatpush.msra.mxu0 0.0
      %5513 = vmatpush.msra.mxu0 0.0
      %5514 = vmatpush.msra.mxu0 0.0
      %5515 = vmatpush.msra.mxu0 0.0
      %5516 = vmatpush.msra.mxu0 0.0
      %5517 = vmatpush.msra.mxu0 0.0
      %5518 = vmatpush.msra.mxu0 0.0
      %5519 = vmatpush.msra.mxu0 0.0
      %5520 = vmatpush.msra.mxu0 0.0
      %5521 = vmatpush.msra.mxu0 0.0
      %5522 = vmatpush.msra.mxu0 0.0
      %5523 = vmatpush.msra.mxu0 0.0
      %5524 = vmatpush.msra.mxu0 0.0
      %5525 = vmatpush.msra.mxu0 0.0
      %5526 = vmatpush.msra.mxu0 0.0
      %5527 = vmatpush.msra.mxu0 %v5447
      %5528 = vmatmul.f32.gmra.mxu0 %v5461
      %v5529 = vpop.f32.mrf.mxu0
      %v5530 = vadd.f32 0.0, %v5529
      %5531 = vmatmul.f32.gmra.mxu0 %v5464
      %v5532 = vpop.f32.mrf.mxu0
      %v5533 = vadd.f32 0.0, %v5532
      %5534 = vdwg.mxu0
      %5535 = vmatpush.msra.mxu0 0.0
      %5536 = vmatpush.msra.mxu0 0.0
      %5537 = vmatpush.msra.mxu0 0.0
      %5538 = vmatpush.msra.mxu0 0.0
      %5539 = vmatpush.msra.mxu0 0.0
      %5540 = vmatpush.msra.mxu0 0.0
      %5541 = vmatpush.msra.mxu0 0.0
      %5542 = vmatpush.msra.mxu0 0.0
      %5543 = vmatpush.msra.mxu0 0.0
      %5544 = vmatpush.msra.mxu0 0.0
      %5545 = vmatpush.msra.mxu0 0.0
      %5546 = vmatpush.msra.mxu0 0.0
      %5547 = vmatpush.msra.mxu0 0.0
      %5548 = vmatpush.msra.mxu0 0.0
      %5549 = vmatpush.msra.mxu0 0.0
      %5550 = vmatpush.msra.mxu0 %v5448
      %5551 = vmatmul.f32.gmra.mxu0 %v5461
      %v5552 = vpop.f32.mrf.mxu0
      %v5553 = vadd.f32 0.0, %v5552
      %5554 = vmatmul.f32.gmra.mxu0 %v5464
      %v5555 = vpop.f32.mrf.mxu0
      %v5556 = vadd.f32 0.0, %v5555
      %5557 = vdwg.mxu0
      %5558 = vmatpush.msra.mxu0 0.0
      %5559 = vmatpush.msra.mxu0 0.0
      %5560 = vmatpush.msra.mxu0 0.0
      %5561 = vmatpush.msra.mxu0 0.0
      %5562 = vmatpush.msra.mxu0 0.0
      %5563 = vmatpush.msra.mxu0 0.0
      %5564 = vmatpush.msra.mxu0 0.0
      %5565 = vmatpush.msra.mxu0 0.0
      %5566 = vmatpush.msra.mxu0 0.0
      %5567 = vmatpush.msra.mxu0 0.0
      %5568 = vmatpush.msra.mxu0 0.0
      %5569 = vmatpush.msra.mxu0 0.0
      %5570 = vmatpush.msra.mxu0 0.0
      %5571 = vmatpush.msra.mxu0 0.0
      %5572 = vmatpush.msra.mxu0 0.0
      %5573 = vmatpush.msra.mxu0 %v5449
      %5574 = vmatmul.f32.gmra.mxu0 %v5461
      %v5575 = vpop.f32.mrf.mxu0
      %v5576 = vadd.f32 0.0, %v5575
      %5577 = vmatmul.f32.gmra.mxu0 %v5464
      %v5578 = vpop.f32.mrf.mxu0
      %v5579 = vadd.f32 0.0, %v5578
      %5580 = vdwg.mxu0
      %5581 = vmatpush.msra.mxu0 0.0
      %5582 = vmatpush.msra.mxu0 0.0
      %5583 = vmatpush.msra.mxu0 0.0
      %5584 = vmatpush.msra.mxu0 0.0
      %5585 = vmatpush.msra.mxu0 0.0
      %5586 = vmatpush.msra.mxu0 0.0
      %5587 = vmatpush.msra.mxu0 0.0
      %5588 = vmatpush.msra.mxu0 0.0
      %5589 = vmatpush.msra.mxu0 0.0
      %5590 = vmatpush.msra.mxu0 0.0
      %5591 = vmatpush.msra.mxu0 0.0
      %5592 = vmatpush.msra.mxu0 0.0
      %5593 = vmatpush.msra.mxu0 0.0
      %5594 = vmatpush.msra.mxu0 0.0
      %5595 = vmatpush.msra.mxu0 0.0
      %5596 = vmatpush.msra.mxu0 %v5450
      %5597 = vmatmul.f32.gmra.mxu0 %v5461
      %v5598 = vpop.f32.mrf.mxu0
      %v5599 = vadd.f32 0.0, %v5598
      %5600 = vmatmul.f32.gmra.mxu0 %v5464
      %v5601 = vpop.f32.mrf.mxu0
      %v5602 = vadd.f32 0.0, %v5601
      %5603 = vdwg.mxu0
      %5604 = vmatpush.msra.mxu0 0.0
      %5605 = vmatpush.msra.mxu0 0.0
      %5606 = vmatpush.msra.mxu0 0.0
      %5607 = vmatpush.msra.mxu0 0.0
      %5608 = vmatpush.msra.mxu0 0.0
      %5609 = vmatpush.msra.mxu0 0.0
      %5610 = vmatpush.msra.mxu0 0.0
      %5611 = vmatpush.msra.mxu0 0.0
      %5612 = vmatpush.msra.mxu0 0.0
      %5613 = vmatpush.msra.mxu0 0.0
      %5614 = vmatpush.msra.mxu0 0.0
      %5615 = vmatpush.msra.mxu0 0.0
      %5616 = vmatpush.msra.mxu0 0.0
      %5617 = vmatpush.msra.mxu0 0.0
      %5618 = vmatpush.msra.mxu0 0.0
      %5619 = vmatpush.msra.mxu0 %v5451
      %5620 = vmatmul.f32.gmra.mxu0 %v5461
      %v5621 = vpop.f32.mrf.mxu0
      %v5622 = vadd.f32 0.0, %v5621
      %5623 = vmatmul.f32.gmra.mxu0 %v5464
      %v5624 = vpop.f32.mrf.mxu0
      %v5625 = vadd.f32 0.0, %v5624
      %5626 = vdwg.mxu0
      %5627 = vmatpush.msra.mxu0 0.0
      %5628 = vmatpush.msra.mxu0 0.0
      %5629 = vmatpush.msra.mxu0 0.0
      %5630 = vmatpush.msra.mxu0 0.0
      %5631 = vmatpush.msra.mxu0 0.0
      %5632 = vmatpush.msra.mxu0 0.0
      %5633 = vmatpush.msra.mxu0 0.0
      %5634 = vmatpush.msra.mxu0 0.0
      %5635 = vmatpush.msra.mxu0 0.0
      %5636 = vmatpush.msra.mxu0 0.0
      %5637 = vmatpush.msra.mxu0 0.0
      %5638 = vmatpush.msra.mxu0 0.0
      %5639 = vmatpush.msra.mxu0 0.0
      %5640 = vmatpush.msra.mxu0 0.0
      %5641 = vmatpush.msra.mxu0 0.0
      %5642 = vmatpush.msra.mxu0 %v5444
      %5643 = vmatmul.f32.gmra.mxu0 %v5461
      %v5644 = vpop.f32.mrf.mxu0
      %v5645 = vadd.f32 0.0, %v5644
      %5646 = vmatmul.f32.gmra.mxu0 %v5464
      %v5647 = vpop.f32.mrf.mxu0
      %v5648 = vadd.f32 0.0, %v5647
      %5649 = vdwg.mxu0
      %v5650 = vadd.f32 %v5410, %v5484
      %v5651 = vadd.f32 %v5411, %v5507
      %v5652 = vadd.f32 %v5412, %v5530
      %v5653 = vadd.f32 %v5413, %v5553
      %v5654 = vadd.f32 %v5414, %v5576
      %v5655 = vadd.f32 %v5415, %v5599
      %v5656 = vadd.f32 %v5416, %v5622
      %v5657 = vadd.f32 %v5417, %v5645
      %v5658 = vadd.f32 %v5418, %v5487
      %v5659 = vadd.f32 %v5419, %v5510
      %v5660 = vadd.f32 %v5420, %v5533
      %v5661 = vadd.f32 %v5421, %v5556
      %v5662 = vadd.f32 %v5422, %v5579
      %v5663 = vadd.f32 %v5423, %v5602
      %v5664 = vadd.f32 %v5424, %v5625
      %v5665 = vadd.f32 %v5425, %v5648
      %s5666 = scalar_lea.vmem %s6, 96
      %v5667 = vld [vmem:[%s5666] sm:$0xff]
      %v5668 = vld [vmem:[%s5666 + $0x8] sm:$0xff]
      %5669 = vrot.lane.b32.xlu0 %v4274, 68
      %v5670 = vpop.permute.xlu0 %5669
      %5671 = vrot.lane.b32.xlu0 %v4275, 68
      %v5672 = vpop.permute.xlu0 %5671
      %5673 = vrot.lane.b32.xlu0 %v4276, 68
      %v5674 = vpop.permute.xlu0 %5673
      %5675 = vrot.lane.b32.xlu0 %v4277, 68
      %v5676 = vpop.permute.xlu0 %5675
      %5677 = vrot.lane.b32.xlu0 %v4278, 68
      %v5678 = vpop.permute.xlu0 %5677
      %5679 = vrot.lane.b32.xlu0 %v4279, 68
      %v5680 = vpop.permute.xlu0 %5679
      %5681 = vrot.lane.b32.xlu0 %v4280, 68
      %v5682 = vpop.permute.xlu0 %5681
      %5683 = vrot.lane.b32.xlu0 %v4281, 68
      %v5684 = vpop.permute.xlu0 %5683
      %v5685 = vsel %vm1671, %v5670, %v5672
      %v5686 = vsel %vm1671, %v5672, %v5674
      %v5687 = vsel %vm1671, %v5674, %v5676
      %v5688 = vsel %vm1671, %v5676, %v5678
      %v5689 = vsel %vm1671, %v5678, %v5680
      %v5690 = vsel %vm1671, %v5680, %v5682
      %v5691 = vsel %vm1671, %v5682, %v5684
      %v5701 = vsel %vm506, %v5667, 0
      %v5704 = vsel %vm506, %v5668, 0
      %5706 = vmatpush.msra.mxu0 0.0
      %5707 = vmatpush.msra.mxu0 0.0
      %5708 = vmatpush.msra.mxu0 0.0
      %5709 = vmatpush.msra.mxu0 0.0
      %5710 = vmatpush.msra.mxu0 0.0
      %5711 = vmatpush.msra.mxu0 0.0
      %5712 = vmatpush.msra.mxu0 0.0
      %5713 = vmatpush.msra.mxu0 0.0
      %5714 = vmatpush.msra.mxu0 0.0
      %5715 = vmatpush.msra.mxu0 0.0
      %5716 = vmatpush.msra.mxu0 0.0
      %5717 = vmatpush.msra.mxu0 0.0
      %5718 = vmatpush.msra.mxu0 0.0
      %5719 = vmatpush.msra.mxu0 0.0
      %5720 = vmatpush.msra.mxu0 0.0
      %5721 = vmatpush.msra.mxu0 %v5685
      %5722 = vmatmul.f32.gmra.mxu0 %v5701
      %v5723 = vpop.f32.mrf.mxu0
      %v5724 = vadd.f32 0.0, %v5723
      %5725 = vmatmul.f32.gmra.mxu0 %v5704
      %v5726 = vpop.f32.mrf.mxu0
      %v5727 = vadd.f32 0.0, %v5726
      %5728 = vdwg.mxu0
      %5729 = vmatpush.msra.mxu0 0.0
      %5730 = vmatpush.msra.mxu0 0.0
      %5731 = vmatpush.msra.mxu0 0.0
      %5732 = vmatpush.msra.mxu0 0.0
      %5733 = vmatpush.msra.mxu0 0.0
      %5734 = vmatpush.msra.mxu0 0.0
      %5735 = vmatpush.msra.mxu0 0.0
      %5736 = vmatpush.msra.mxu0 0.0
      %5737 = vmatpush.msra.mxu0 0.0
      %5738 = vmatpush.msra.mxu0 0.0
      %5739 = vmatpush.msra.mxu0 0.0
      %5740 = vmatpush.msra.mxu0 0.0
      %5741 = vmatpush.msra.mxu0 0.0
      %5742 = vmatpush.msra.mxu0 0.0
      %5743 = vmatpush.msra.mxu0 0.0
      %5744 = vmatpush.msra.mxu0 %v5686
      %5745 = vmatmul.f32.gmra.mxu0 %v5701
      %v5746 = vpop.f32.mrf.mxu0
      %v5747 = vadd.f32 0.0, %v5746
      %5748 = vmatmul.f32.gmra.mxu0 %v5704
      %v5749 = vpop.f32.mrf.mxu0
      %v5750 = vadd.f32 0.0, %v5749
      %5751 = vdwg.mxu0
      %5752 = vmatpush.msra.mxu0 0.0
      %5753 = vmatpush.msra.mxu0 0.0
      %5754 = vmatpush.msra.mxu0 0.0
      %5755 = vmatpush.msra.mxu0 0.0
      %5756 = vmatpush.msra.mxu0 0.0
      %5757 = vmatpush.msra.mxu0 0.0
      %5758 = vmatpush.msra.mxu0 0.0
      %5759 = vmatpush.msra.mxu0 0.0
      %5760 = vmatpush.msra.mxu0 0.0
      %5761 = vmatpush.msra.mxu0 0.0
      %5762 = vmatpush.msra.mxu0 0.0
      %5763 = vmatpush.msra.mxu0 0.0
      %5764 = vmatpush.msra.mxu0 0.0
      %5765 = vmatpush.msra.mxu0 0.0
      %5766 = vmatpush.msra.mxu0 0.0
      %5767 = vmatpush.msra.mxu0 %v5687
      %5768 = vmatmul.f32.gmra.mxu0 %v5701
      %v5769 = vpop.f32.mrf.mxu0
      %v5770 = vadd.f32 0.0, %v5769
      %5771 = vmatmul.f32.gmra.mxu0 %v5704
      %v5772 = vpop.f32.mrf.mxu0
      %v5773 = vadd.f32 0.0, %v5772
      %5774 = vdwg.mxu0
      %5775 = vmatpush.msra.mxu0 0.0
      %5776 = vmatpush.msra.mxu0 0.0
      %5777 = vmatpush.msra.mxu0 0.0
      %5778 = vmatpush.msra.mxu0 0.0
      %5779 = vmatpush.msra.mxu0 0.0
      %5780 = vmatpush.msra.mxu0 0.0
      %5781 = vmatpush.msra.mxu0 0.0
      %5782 = vmatpush.msra.mxu0 0.0
      %5783 = vmatpush.msra.mxu0 0.0
      %5784 = vmatpush.msra.mxu0 0.0
      %5785 = vmatpush.msra.mxu0 0.0
      %5786 = vmatpush.msra.mxu0 0.0
      %5787 = vmatpush.msra.mxu0 0.0
      %5788 = vmatpush.msra.mxu0 0.0
      %5789 = vmatpush.msra.mxu0 0.0
      %5790 = vmatpush.msra.mxu0 %v5688
      %5791 = vmatmul.f32.gmra.mxu0 %v5701
      %v5792 = vpop.f32.mrf.mxu0
      %v5793 = vadd.f32 0.0, %v5792
      %5794 = vmatmul.f32.gmra.mxu0 %v5704
      %v5795 = vpop.f32.mrf.mxu0
      %v5796 = vadd.f32 0.0, %v5795
      %5797 = vdwg.mxu0
      %5798 = vmatpush.msra.mxu0 0.0
      %5799 = vmatpush.msra.mxu0 0.0
      %5800 = vmatpush.msra.mxu0 0.0
      %5801 = vmatpush.msra.mxu0 0.0
      %5802 = vmatpush.msra.mxu0 0.0
      %5803 = vmatpush.msra.mxu0 0.0
      %5804 = vmatpush.msra.mxu0 0.0
      %5805 = vmatpush.msra.mxu0 0.0
      %5806 = vmatpush.msra.mxu0 0.0
      %5807 = vmatpush.msra.mxu0 0.0
      %5808 = vmatpush.msra.mxu0 0.0
      %5809 = vmatpush.msra.mxu0 0.0
      %5810 = vmatpush.msra.mxu0 0.0
      %5811 = vmatpush.msra.mxu0 0.0
      %5812 = vmatpush.msra.mxu0 0.0
      %5813 = vmatpush.msra.mxu0 %v5689
      %5814 = vmatmul.f32.gmra.mxu0 %v5701
      %v5815 = vpop.f32.mrf.mxu0
      %v5816 = vadd.f32 0.0, %v5815
      %5817 = vmatmul.f32.gmra.mxu0 %v5704
      %v5818 = vpop.f32.mrf.mxu0
      %v5819 = vadd.f32 0.0, %v5818
      %5820 = vdwg.mxu0
      %5821 = vmatpush.msra.mxu0 0.0
      %5822 = vmatpush.msra.mxu0 0.0
      %5823 = vmatpush.msra.mxu0 0.0
      %5824 = vmatpush.msra.mxu0 0.0
      %5825 = vmatpush.msra.mxu0 0.0
      %5826 = vmatpush.msra.mxu0 0.0
      %5827 = vmatpush.msra.mxu0 0.0
      %5828 = vmatpush.msra.mxu0 0.0
      %5829 = vmatpush.msra.mxu0 0.0
      %5830 = vmatpush.msra.mxu0 0.0
      %5831 = vmatpush.msra.mxu0 0.0
      %5832 = vmatpush.msra.mxu0 0.0
      %5833 = vmatpush.msra.mxu0 0.0
      %5834 = vmatpush.msra.mxu0 0.0
      %5835 = vmatpush.msra.mxu0 0.0
      %5836 = vmatpush.msra.mxu0 %v5690
      %5837 = vmatmul.f32.gmra.mxu0 %v5701
      %v5838 = vpop.f32.mrf.mxu0
      %v5839 = vadd.f32 0.0, %v5838
      %5840 = vmatmul.f32.gmra.mxu0 %v5704
      %v5841 = vpop.f32.mrf.mxu0
      %v5842 = vadd.f32 0.0, %v5841
      %5843 = vdwg.mxu0
      %5844 = vmatpush.msra.mxu0 0.0
      %5845 = vmatpush.msra.mxu0 0.0
      %5846 = vmatpush.msra.mxu0 0.0
      %5847 = vmatpush.msra.mxu0 0.0
      %5848 = vmatpush.msra.mxu0 0.0
      %5849 = vmatpush.msra.mxu0 0.0
      %5850 = vmatpush.msra.mxu0 0.0
      %5851 = vmatpush.msra.mxu0 0.0
      %5852 = vmatpush.msra.mxu0 0.0
      %5853 = vmatpush.msra.mxu0 0.0
      %5854 = vmatpush.msra.mxu0 0.0
      %5855 = vmatpush.msra.mxu0 0.0
      %5856 = vmatpush.msra.mxu0 0.0
      %5857 = vmatpush.msra.mxu0 0.0
      %5858 = vmatpush.msra.mxu0 0.0
      %5859 = vmatpush.msra.mxu0 %v5691
      %5860 = vmatmul.f32.gmra.mxu0 %v5701
      %v5861 = vpop.f32.mrf.mxu0
      %v5862 = vadd.f32 0.0, %v5861
      %5863 = vmatmul.f32.gmra.mxu0 %v5704
      %v5864 = vpop.f32.mrf.mxu0
      %v5865 = vadd.f32 0.0, %v5864
      %5866 = vdwg.mxu0
      %5867 = vmatpush.msra.mxu0 0.0
      %5868 = vmatpush.msra.mxu0 0.0
      %5869 = vmatpush.msra.mxu0 0.0
      %5870 = vmatpush.msra.mxu0 0.0
      %5871 = vmatpush.msra.mxu0 0.0
      %5872 = vmatpush.msra.mxu0 0.0
      %5873 = vmatpush.msra.mxu0 0.0
      %5874 = vmatpush.msra.mxu0 0.0
      %5875 = vmatpush.msra.mxu0 0.0
      %5876 = vmatpush.msra.mxu0 0.0
      %5877 = vmatpush.msra.mxu0 0.0
      %5878 = vmatpush.msra.mxu0 0.0
      %5879 = vmatpush.msra.mxu0 0.0
      %5880 = vmatpush.msra.mxu0 0.0
      %5881 = vmatpush.msra.mxu0 0.0
      %5882 = vmatpush.msra.mxu0 %v5684
      %5883 = vmatmul.f32.gmra.mxu0 %v5701
      %v5884 = vpop.f32.mrf.mxu0
      %v5885 = vadd.f32 0.0, %v5884
      %5886 = vmatmul.f32.gmra.mxu0 %v5704
      %v5887 = vpop.f32.mrf.mxu0
      %v5888 = vadd.f32 0.0, %v5887
      %5889 = vdwg.mxu0
      %v5890 = vadd.f32 %v5650, %v5724
      %v5891 = vadd.f32 %v5651, %v5747
      %v5892 = vadd.f32 %v5652, %v5770
      %v5893 = vadd.f32 %v5653, %v5793
      %v5894 = vadd.f32 %v5654, %v5816
      %v5895 = vadd.f32 %v5655, %v5839
      %v5896 = vadd.f32 %v5656, %v5862
      %v5897 = vadd.f32 %v5657, %v5885
      %v5898 = vadd.f32 %v5658, %v5727
      %v5899 = vadd.f32 %v5659, %v5750
      %v5900 = vadd.f32 %v5660, %v5773
      %v5901 = vadd.f32 %v5661, %v5796
      %v5902 = vadd.f32 %v5662, %v5819
      %v5903 = vadd.f32 %v5663, %v5842
      %v5904 = vadd.f32 %v5664, %v5865
      %v5905 = vadd.f32 %v5665, %v5888
      %s5906 = scalar_lea.vmem %s6, 112
      %v5907 = vld [vmem:[%s5906] sm:$0xff]
      %v5908 = vld [vmem:[%s5906 + $0x8] sm:$0xff]
      %5909 = vrot.lane.b32.xlu0 %v4274, 67
      %v5910 = vpop.permute.xlu0 %5909
      %5911 = vrot.lane.b32.xlu0 %v4275, 67
      %v5912 = vpop.permute.xlu0 %5911
      %5913 = vrot.lane.b32.xlu0 %v4276, 67
      %v5914 = vpop.permute.xlu0 %5913
      %5915 = vrot.lane.b32.xlu0 %v4277, 67
      %v5916 = vpop.permute.xlu0 %5915
      %5917 = vrot.lane.b32.xlu0 %v4278, 67
      %v5918 = vpop.permute.xlu0 %5917
      %5919 = vrot.lane.b32.xlu0 %v4279, 67
      %v5920 = vpop.permute.xlu0 %5919
      %5921 = vrot.lane.b32.xlu0 %v4280, 67
      %v5922 = vpop.permute.xlu0 %5921
      %5923 = vrot.lane.b32.xlu0 %v4281, 67
      %v5924 = vpop.permute.xlu0 %5923
      %v5925 = vsel %vm1876, %v5910, %v5912
      %v5926 = vsel %vm1876, %v5912, %v5914
      %v5927 = vsel %vm1876, %v5914, %v5916
      %v5928 = vsel %vm1876, %v5916, %v5918
      %v5929 = vsel %vm1876, %v5918, %v5920
      %v5930 = vsel %vm1876, %v5920, %v5922
      %v5931 = vsel %vm1876, %v5922, %v5924
      %v5941 = vsel %vm506, %v5907, 0
      %v5944 = vsel %vm506, %v5908, 0
      %5946 = vmatpush.msra.mxu0 0.0
      %5947 = vmatpush.msra.mxu0 0.0
      %5948 = vmatpush.msra.mxu0 0.0
      %5949 = vmatpush.msra.mxu0 0.0
      %5950 = vmatpush.msra.mxu0 0.0
      %5951 = vmatpush.msra.mxu0 0.0
      %5952 = vmatpush.msra.mxu0 0.0
      %5953 = vmatpush.msra.mxu0 0.0
      %5954 = vmatpush.msra.mxu0 0.0
      %5955 = vmatpush.msra.mxu0 0.0
      %5956 = vmatpush.msra.mxu0 0.0
      %5957 = vmatpush.msra.mxu0 0.0
      %5958 = vmatpush.msra.mxu0 0.0
      %5959 = vmatpush.msra.mxu0 0.0
      %5960 = vmatpush.msra.mxu0 0.0
      %5961 = vmatpush.msra.mxu0 %v5925
      %5962 = vmatmul.f32.gmra.mxu0 %v5941
      %v5963 = vpop.f32.mrf.mxu0
      %v5964 = vadd.f32 0.0, %v5963
      %5965 = vmatmul.f32.gmra.mxu0 %v5944
      %v5966 = vpop.f32.mrf.mxu0
      %v5967 = vadd.f32 0.0, %v5966
      %5968 = vdwg.mxu0
      %5969 = vmatpush.msra.mxu0 0.0
      %5970 = vmatpush.msra.mxu0 0.0
      %5971 = vmatpush.msra.mxu0 0.0
      %5972 = vmatpush.msra.mxu0 0.0
      %5973 = vmatpush.msra.mxu0 0.0
      %5974 = vmatpush.msra.mxu0 0.0
      %5975 = vmatpush.msra.mxu0 0.0
      %5976 = vmatpush.msra.mxu0 0.0
      %5977 = vmatpush.msra.mxu0 0.0
      %5978 = vmatpush.msra.mxu0 0.0
      %5979 = vmatpush.msra.mxu0 0.0
      %5980 = vmatpush.msra.mxu0 0.0
      %5981 = vmatpush.msra.mxu0 0.0
      %5982 = vmatpush.msra.mxu0 0.0
      %5983 = vmatpush.msra.mxu0 0.0
      %5984 = vmatpush.msra.mxu0 %v5926
      %5985 = vmatmul.f32.gmra.mxu0 %v5941
      %v5986 = vpop.f32.mrf.mxu0
      %v5987 = vadd.f32 0.0, %v5986
      %5988 = vmatmul.f32.gmra.mxu0 %v5944
      %v5989 = vpop.f32.mrf.mxu0
      %v5990 = vadd.f32 0.0, %v5989
      %5991 = vdwg.mxu0
      %5992 = vmatpush.msra.mxu0 0.0
      %5993 = vmatpush.msra.mxu0 0.0
      %5994 = vmatpush.msra.mxu0 0.0
      %5995 = vmatpush.msra.mxu0 0.0
      %5996 = vmatpush.msra.mxu0 0.0
      %5997 = vmatpush.msra.mxu0 0.0
      %5998 = vmatpush.msra.mxu0 0.0
      %5999 = vmatpush.msra.mxu0 0.0
      %6000 = vmatpush.msra.mxu0 0.0
      %6001 = vmatpush.msra.mxu0 0.0
      %6002 = vmatpush.msra.mxu0 0.0
      %6003 = vmatpush.msra.mxu0 0.0
      %6004 = vmatpush.msra.mxu0 0.0
      %6005 = vmatpush.msra.mxu0 0.0
      %6006 = vmatpush.msra.mxu0 0.0
      %6007 = vmatpush.msra.mxu0 %v5927
      %6008 = vmatmul.f32.gmra.mxu0 %v5941
      %v6009 = vpop.f32.mrf.mxu0
      %v6010 = vadd.f32 0.0, %v6009
      %6011 = vmatmul.f32.gmra.mxu0 %v5944
      %v6012 = vpop.f32.mrf.mxu0
      %v6013 = vadd.f32 0.0, %v6012
      %6014 = vdwg.mxu0
      %6015 = vmatpush.msra.mxu0 0.0
      %6016 = vmatpush.msra.mxu0 0.0
      %6017 = vmatpush.msra.mxu0 0.0
      %6018 = vmatpush.msra.mxu0 0.0
      %6019 = vmatpush.msra.mxu0 0.0
      %6020 = vmatpush.msra.mxu0 0.0
      %6021 = vmatpush.msra.mxu0 0.0
      %6022 = vmatpush.msra.mxu0 0.0
      %6023 = vmatpush.msra.mxu0 0.0
      %6024 = vmatpush.msra.mxu0 0.0
      %6025 = vmatpush.msra.mxu0 0.0
      %6026 = vmatpush.msra.mxu0 0.0
      %6027 = vmatpush.msra.mxu0 0.0
      %6028 = vmatpush.msra.mxu0 0.0
      %6029 = vmatpush.msra.mxu0 0.0
      %6030 = vmatpush.msra.mxu0 %v5928
      %6031 = vmatmul.f32.gmra.mxu0 %v5941
      %v6032 = vpop.f32.mrf.mxu0
      %v6033 = vadd.f32 0.0, %v6032
      %6034 = vmatmul.f32.gmra.mxu0 %v5944
      %v6035 = vpop.f32.mrf.mxu0
      %v6036 = vadd.f32 0.0, %v6035
      %6037 = vdwg.mxu0
      %6038 = vmatpush.msra.mxu0 0.0
      %6039 = vmatpush.msra.mxu0 0.0
      %6040 = vmatpush.msra.mxu0 0.0
      %6041 = vmatpush.msra.mxu0 0.0
      %6042 = vmatpush.msra.mxu0 0.0
      %6043 = vmatpush.msra.mxu0 0.0
      %6044 = vmatpush.msra.mxu0 0.0
      %6045 = vmatpush.msra.mxu0 0.0
      %6046 = vmatpush.msra.mxu0 0.0
      %6047 = vmatpush.msra.mxu0 0.0
      %6048 = vmatpush.msra.mxu0 0.0
      %6049 = vmatpush.msra.mxu0 0.0
      %6050 = vmatpush.msra.mxu0 0.0
      %6051 = vmatpush.msra.mxu0 0.0
      %6052 = vmatpush.msra.mxu0 0.0
      %6053 = vmatpush.msra.mxu0 %v5929
      %6054 = vmatmul.f32.gmra.mxu0 %v5941
      %v6055 = vpop.f32.mrf.mxu0
      %v6056 = vadd.f32 0.0, %v6055
      %6057 = vmatmul.f32.gmra.mxu0 %v5944
      %v6058 = vpop.f32.mrf.mxu0
      %v6059 = vadd.f32 0.0, %v6058
      %6060 = vdwg.mxu0
      %6061 = vmatpush.msra.mxu0 0.0
      %6062 = vmatpush.msra.mxu0 0.0
      %6063 = vmatpush.msra.mxu0 0.0
      %6064 = vmatpush.msra.mxu0 0.0
      %6065 = vmatpush.msra.mxu0 0.0
      %6066 = vmatpush.msra.mxu0 0.0
      %6067 = vmatpush.msra.mxu0 0.0
      %6068 = vmatpush.msra.mxu0 0.0
      %6069 = vmatpush.msra.mxu0 0.0
      %6070 = vmatpush.msra.mxu0 0.0
      %6071 = vmatpush.msra.mxu0 0.0
      %6072 = vmatpush.msra.mxu0 0.0
      %6073 = vmatpush.msra.mxu0 0.0
      %6074 = vmatpush.msra.mxu0 0.0
      %6075 = vmatpush.msra.mxu0 0.0
      %6076 = vmatpush.msra.mxu0 %v5930
      %6077 = vmatmul.f32.gmra.mxu0 %v5941
      %v6078 = vpop.f32.mrf.mxu0
      %v6079 = vadd.f32 0.0, %v6078
      %6080 = vmatmul.f32.gmra.mxu0 %v5944
      %v6081 = vpop.f32.mrf.mxu0
      %v6082 = vadd.f32 0.0, %v6081
      %6083 = vdwg.mxu0
      %6084 = vmatpush.msra.mxu0 0.0
      %6085 = vmatpush.msra.mxu0 0.0
      %6086 = vmatpush.msra.mxu0 0.0
      %6087 = vmatpush.msra.mxu0 0.0
      %6088 = vmatpush.msra.mxu0 0.0
      %6089 = vmatpush.msra.mxu0 0.0
      %6090 = vmatpush.msra.mxu0 0.0
      %6091 = vmatpush.msra.mxu0 0.0
      %6092 = vmatpush.msra.mxu0 0.0
      %6093 = vmatpush.msra.mxu0 0.0
      %6094 = vmatpush.msra.mxu0 0.0
      %6095 = vmatpush.msra.mxu0 0.0
      %6096 = vmatpush.msra.mxu0 0.0
      %6097 = vmatpush.msra.mxu0 0.0
      %6098 = vmatpush.msra.mxu0 0.0
      %6099 = vmatpush.msra.mxu0 %v5931
      %6100 = vmatmul.f32.gmra.mxu0 %v5941
      %v6101 = vpop.f32.mrf.mxu0
      %v6102 = vadd.f32 0.0, %v6101
      %6103 = vmatmul.f32.gmra.mxu0 %v5944
      %v6104 = vpop.f32.mrf.mxu0
      %v6105 = vadd.f32 0.0, %v6104
      %6106 = vdwg.mxu0
      %6107 = vmatpush.msra.mxu0 0.0
      %6108 = vmatpush.msra.mxu0 0.0
      %6109 = vmatpush.msra.mxu0 0.0
      %6110 = vmatpush.msra.mxu0 0.0
      %6111 = vmatpush.msra.mxu0 0.0
      %6112 = vmatpush.msra.mxu0 0.0
      %6113 = vmatpush.msra.mxu0 0.0
      %6114 = vmatpush.msra.mxu0 0.0
      %6115 = vmatpush.msra.mxu0 0.0
      %6116 = vmatpush.msra.mxu0 0.0
      %6117 = vmatpush.msra.mxu0 0.0
      %6118 = vmatpush.msra.mxu0 0.0
      %6119 = vmatpush.msra.mxu0 0.0
      %6120 = vmatpush.msra.mxu0 0.0
      %6121 = vmatpush.msra.mxu0 0.0
      %6122 = vmatpush.msra.mxu0 %v5924
      %6123 = vmatmul.f32.gmra.mxu0 %v5941
      %v6124 = vpop.f32.mrf.mxu0
      %v6125 = vadd.f32 0.0, %v6124
      %6126 = vmatmul.f32.gmra.mxu0 %v5944
      %v6127 = vpop.f32.mrf.mxu0
      %v6128 = vadd.f32 0.0, %v6127
      %6129 = vdwg.mxu0
      %v6130 = vadd.f32 %v5890, %v5964
      %v6131 = vadd.f32 %v5891, %v5987
      %v6132 = vadd.f32 %v5892, %v6010
      %v6133 = vadd.f32 %v5893, %v6033
      %v6134 = vadd.f32 %v5894, %v6056
      %v6135 = vadd.f32 %v5895, %v6079
      %v6136 = vadd.f32 %v5896, %v6102
      %v6137 = vadd.f32 %v5897, %v6125
      %v6138 = vadd.f32 %v5898, %v5967
      %v6139 = vadd.f32 %v5899, %v5990
      %v6140 = vadd.f32 %v5900, %v6013
      %v6141 = vadd.f32 %v5901, %v6036
      %v6142 = vadd.f32 %v5902, %v6059
      %v6143 = vadd.f32 %v5903, %v6082
      %v6144 = vadd.f32 %v5904, %v6105
      %v6145 = vadd.f32 %v5905, %v6128
      %s6146 = scalar_lea.vmem %s6, 128
      %v6147 = vld [vmem:[%s6146] sm:$0xff]
      %v6148 = vld [vmem:[%s6146 + $0x8] sm:$0xff]
      %6149 = vrot.lane.b32.xlu0 %v4274, 66
      %v6150 = vpop.permute.xlu0 %6149
      %6151 = vrot.lane.b32.xlu0 %v4275, 66
      %v6152 = vpop.permute.xlu0 %6151
      %6153 = vrot.lane.b32.xlu0 %v4276, 66
      %v6154 = vpop.permute.xlu0 %6153
      %6155 = vrot.lane.b32.xlu0 %v4277, 66
      %v6156 = vpop.permute.xlu0 %6155
      %6157 = vrot.lane.b32.xlu0 %v4278, 66
      %v6158 = vpop.permute.xlu0 %6157
      %6159 = vrot.lane.b32.xlu0 %v4279, 66
      %v6160 = vpop.permute.xlu0 %6159
      %6161 = vrot.lane.b32.xlu0 %v4280, 66
      %v6162 = vpop.permute.xlu0 %6161
      %6163 = vrot.lane.b32.xlu0 %v4281, 66
      %v6164 = vpop.permute.xlu0 %6163
      %v6165 = vsel %vm395, %v6150, %v6152
      %v6166 = vsel %vm395, %v6152, %v6154
      %v6167 = vsel %vm395, %v6154, %v6156
      %v6168 = vsel %vm395, %v6156, %v6158
      %v6169 = vsel %vm395, %v6158, %v6160
      %v6170 = vsel %vm395, %v6160, %v6162
      %v6171 = vsel %vm395, %v6162, %v6164
      %v6181 = vsel %vm506, %v6147, 0
      %v6184 = vsel %vm506, %v6148, 0
      %6186 = vmatpush.msra.mxu0 0.0
      %6187 = vmatpush.msra.mxu0 0.0
      %6188 = vmatpush.msra.mxu0 0.0
      %6189 = vmatpush.msra.mxu0 0.0
      %6190 = vmatpush.msra.mxu0 0.0
      %6191 = vmatpush.msra.mxu0 0.0
      %6192 = vmatpush.msra.mxu0 0.0
      %6193 = vmatpush.msra.mxu0 0.0
      %6194 = vmatpush.msra.mxu0 0.0
      %6195 = vmatpush.msra.mxu0 0.0
      %6196 = vmatpush.msra.mxu0 0.0
      %6197 = vmatpush.msra.mxu0 0.0
      %6198 = vmatpush.msra.mxu0 0.0
      %6199 = vmatpush.msra.mxu0 0.0
      %6200 = vmatpush.msra.mxu0 0.0
      %6201 = vmatpush.msra.mxu0 %v6165
      %6202 = vmatmul.f32.gmra.mxu0 %v6181
      %v6203 = vpop.f32.mrf.mxu0
      %v6204 = vadd.f32 0.0, %v6203
      %6205 = vmatmul.f32.gmra.mxu0 %v6184
      %v6206 = vpop.f32.mrf.mxu0
      %v6207 = vadd.f32 0.0, %v6206
      %6208 = vdwg.mxu0
      %6209 = vmatpush.msra.mxu0 0.0
      %6210 = vmatpush.msra.mxu0 0.0
      %6211 = vmatpush.msra.mxu0 0.0
      %6212 = vmatpush.msra.mxu0 0.0
      %6213 = vmatpush.msra.mxu0 0.0
      %6214 = vmatpush.msra.mxu0 0.0
      %6215 = vmatpush.msra.mxu0 0.0
      %6216 = vmatpush.msra.mxu0 0.0
      %6217 = vmatpush.msra.mxu0 0.0
      %6218 = vmatpush.msra.mxu0 0.0
      %6219 = vmatpush.msra.mxu0 0.0
      %6220 = vmatpush.msra.mxu0 0.0
      %6221 = vmatpush.msra.mxu0 0.0
      %6222 = vmatpush.msra.mxu0 0.0
      %6223 = vmatpush.msra.mxu0 0.0
      %6224 = vmatpush.msra.mxu0 %v6166
      %6225 = vmatmul.f32.gmra.mxu0 %v6181
      %v6226 = vpop.f32.mrf.mxu0
      %v6227 = vadd.f32 0.0, %v6226
      %6228 = vmatmul.f32.gmra.mxu0 %v6184
      %v6229 = vpop.f32.mrf.mxu0
      %v6230 = vadd.f32 0.0, %v6229
      %6231 = vdwg.mxu0
      %6232 = vmatpush.msra.mxu0 0.0
      %6233 = vmatpush.msra.mxu0 0.0
      %6234 = vmatpush.msra.mxu0 0.0
      %6235 = vmatpush.msra.mxu0 0.0
      %6236 = vmatpush.msra.mxu0 0.0
      %6237 = vmatpush.msra.mxu0 0.0
      %6238 = vmatpush.msra.mxu0 0.0
      %6239 = vmatpush.msra.mxu0 0.0
      %6240 = vmatpush.msra.mxu0 0.0
      %6241 = vmatpush.msra.mxu0 0.0
      %6242 = vmatpush.msra.mxu0 0.0
      %6243 = vmatpush.msra.mxu0 0.0
      %6244 = vmatpush.msra.mxu0 0.0
      %6245 = vmatpush.msra.mxu0 0.0
      %6246 = vmatpush.msra.mxu0 0.0
      %6247 = vmatpush.msra.mxu0 %v6167
      %6248 = vmatmul.f32.gmra.mxu0 %v6181
      %v6249 = vpop.f32.mrf.mxu0
      %v6250 = vadd.f32 0.0, %v6249
      %6251 = vmatmul.f32.gmra.mxu0 %v6184
      %v6252 = vpop.f32.mrf.mxu0
      %v6253 = vadd.f32 0.0, %v6252
      %6254 = vdwg.mxu0
      %6255 = vmatpush.msra.mxu0 0.0
      %6256 = vmatpush.msra.mxu0 0.0
      %6257 = vmatpush.msra.mxu0 0.0
      %6258 = vmatpush.msra.mxu0 0.0
      %6259 = vmatpush.msra.mxu0 0.0
      %6260 = vmatpush.msra.mxu0 0.0
      %6261 = vmatpush.msra.mxu0 0.0
      %6262 = vmatpush.msra.mxu0 0.0
      %6263 = vmatpush.msra.mxu0 0.0
      %6264 = vmatpush.msra.mxu0 0.0
      %6265 = vmatpush.msra.mxu0 0.0
      %6266 = vmatpush.msra.mxu0 0.0
      %6267 = vmatpush.msra.mxu0 0.0
      %6268 = vmatpush.msra.mxu0 0.0
      %6269 = vmatpush.msra.mxu0 0.0
      %6270 = vmatpush.msra.mxu0 %v6168
      %6271 = vmatmul.f32.gmra.mxu0 %v6181
      %v6272 = vpop.f32.mrf.mxu0
      %v6273 = vadd.f32 0.0, %v6272
      %6274 = vmatmul.f32.gmra.mxu0 %v6184
      %v6275 = vpop.f32.mrf.mxu0
      %v6276 = vadd.f32 0.0, %v6275
      %6277 = vdwg.mxu0
      %6278 = vmatpush.msra.mxu0 0.0
      %6279 = vmatpush.msra.mxu0 0.0
      %6280 = vmatpush.msra.mxu0 0.0
      %6281 = vmatpush.msra.mxu0 0.0
      %6282 = vmatpush.msra.mxu0 0.0
      %6283 = vmatpush.msra.mxu0 0.0
      %6284 = vmatpush.msra.mxu0 0.0
      %6285 = vmatpush.msra.mxu0 0.0
      %6286 = vmatpush.msra.mxu0 0.0
      %6287 = vmatpush.msra.mxu0 0.0
      %6288 = vmatpush.msra.mxu0 0.0
      %6289 = vmatpush.msra.mxu0 0.0
      %6290 = vmatpush.msra.mxu0 0.0
      %6291 = vmatpush.msra.mxu0 0.0
      %6292 = vmatpush.msra.mxu0 0.0
      %6293 = vmatpush.msra.mxu0 %v6169
      %6294 = vmatmul.f32.gmra.mxu0 %v6181
      %v6295 = vpop.f32.mrf.mxu0
      %v6296 = vadd.f32 0.0, %v6295
      %6297 = vmatmul.f32.gmra.mxu0 %v6184
      %v6298 = vpop.f32.mrf.mxu0
      %v6299 = vadd.f32 0.0, %v6298
      %6300 = vdwg.mxu0
      %6301 = vmatpush.msra.mxu0 0.0
      %6302 = vmatpush.msra.mxu0 0.0
      %6303 = vmatpush.msra.mxu0 0.0
      %6304 = vmatpush.msra.mxu0 0.0
      %6305 = vmatpush.msra.mxu0 0.0
      %6306 = vmatpush.msra.mxu0 0.0
      %6307 = vmatpush.msra.mxu0 0.0
      %6308 = vmatpush.msra.mxu0 0.0
      %6309 = vmatpush.msra.mxu0 0.0
      %6310 = vmatpush.msra.mxu0 0.0
      %6311 = vmatpush.msra.mxu0 0.0
      %6312 = vmatpush.msra.mxu0 0.0
      %6313 = vmatpush.msra.mxu0 0.0
      %6314 = vmatpush.msra.mxu0 0.0
      %6315 = vmatpush.msra.mxu0 0.0
      %6316 = vmatpush.msra.mxu0 %v6170
      %6317 = vmatmul.f32.gmra.mxu0 %v6181
      %v6318 = vpop.f32.mrf.mxu0
      %v6319 = vadd.f32 0.0, %v6318
      %6320 = vmatmul.f32.gmra.mxu0 %v6184
      %v6321 = vpop.f32.mrf.mxu0
      %v6322 = vadd.f32 0.0, %v6321
      %6323 = vdwg.mxu0
      %6324 = vmatpush.msra.mxu0 0.0
      %6325 = vmatpush.msra.mxu0 0.0
      %6326 = vmatpush.msra.mxu0 0.0
      %6327 = vmatpush.msra.mxu0 0.0
      %6328 = vmatpush.msra.mxu0 0.0
      %6329 = vmatpush.msra.mxu0 0.0
      %6330 = vmatpush.msra.mxu0 0.0
      %6331 = vmatpush.msra.mxu0 0.0
      %6332 = vmatpush.msra.mxu0 0.0
      %6333 = vmatpush.msra.mxu0 0.0
      %6334 = vmatpush.msra.mxu0 0.0
      %6335 = vmatpush.msra.mxu0 0.0
      %6336 = vmatpush.msra.mxu0 0.0
      %6337 = vmatpush.msra.mxu0 0.0
      %6338 = vmatpush.msra.mxu0 0.0
      %6339 = vmatpush.msra.mxu0 %v6171
      %6340 = vmatmul.f32.gmra.mxu0 %v6181
      %v6341 = vpop.f32.mrf.mxu0
      %v6342 = vadd.f32 0.0, %v6341
      %6343 = vmatmul.f32.gmra.mxu0 %v6184
      %v6344 = vpop.f32.mrf.mxu0
      %v6345 = vadd.f32 0.0, %v6344
      %6346 = vdwg.mxu0
      %6347 = vmatpush.msra.mxu0 0.0
      %6348 = vmatpush.msra.mxu0 0.0
      %6349 = vmatpush.msra.mxu0 0.0
      %6350 = vmatpush.msra.mxu0 0.0
      %6351 = vmatpush.msra.mxu0 0.0
      %6352 = vmatpush.msra.mxu0 0.0
      %6353 = vmatpush.msra.mxu0 0.0
      %6354 = vmatpush.msra.mxu0 0.0
      %6355 = vmatpush.msra.mxu0 0.0
      %6356 = vmatpush.msra.mxu0 0.0
      %6357 = vmatpush.msra.mxu0 0.0
      %6358 = vmatpush.msra.mxu0 0.0
      %6359 = vmatpush.msra.mxu0 0.0
      %6360 = vmatpush.msra.mxu0 0.0
      %6361 = vmatpush.msra.mxu0 0.0
      %6362 = vmatpush.msra.mxu0 %v6164
      %6363 = vmatmul.f32.gmra.mxu0 %v6181
      %v6364 = vpop.f32.mrf.mxu0
      %v6365 = vadd.f32 0.0, %v6364
      %6366 = vmatmul.f32.gmra.mxu0 %v6184
      %v6367 = vpop.f32.mrf.mxu0
      %v6368 = vadd.f32 0.0, %v6367
      %6369 = vdwg.mxu0
      %v6370 = vadd.f32 %v6130, %v6204
      %v6371 = vadd.f32 %v6131, %v6227
      %v6372 = vadd.f32 %v6132, %v6250
      %v6373 = vadd.f32 %v6133, %v6273
      %v6374 = vadd.f32 %v6134, %v6296
      %v6375 = vadd.f32 %v6135, %v6319
      %v6376 = vadd.f32 %v6136, %v6342
      %v6377 = vadd.f32 %v6137, %v6365
      %v6378 = vadd.f32 %v6138, %v6207
      %v6379 = vadd.f32 %v6139, %v6230
      %v6380 = vadd.f32 %v6140, %v6253
      %v6381 = vadd.f32 %v6141, %v6276
      %v6382 = vadd.f32 %v6142, %v6299
      %v6383 = vadd.f32 %v6143, %v6322
      %v6384 = vadd.f32 %v6144, %v6345
      %v6385 = vadd.f32 %v6145, %v6368
      %v6386 = vld [vmem:[%s7] sm:$0xff]
      %v6387 = vld [vmem:[%s7 + $0x8] sm:$0xff]
      %6389 = vset.pattern.permute.xlu0 0
      %6390 = vperm.xlu0 %6389, %v6386
      %v6391 = vpop.permute.xlu0 %6390
      %6394 = vset.pattern.permute.xlu0 0
      %6395 = vperm.xlu0 %6394, %v6387
      %v6396 = vpop.permute.xlu0 %6395
      %v6398 = vadd.f32 %v6370, %v6391
      %v6399 = vadd.f32 %v6371, %v6391
      %v6400 = vadd.f32 %v6372, %v6391
      %v6401 = vadd.f32 %v6373, %v6391
      %v6402 = vadd.f32 %v6374, %v6391
      %v6403 = vadd.f32 %v6375, %v6391
      %v6404 = vadd.f32 %v6376, %v6391
      %v6405 = vadd.f32 %v6377, %v6391
      %v6406 = vadd.f32 %v6378, %v6396
      %v6407 = vadd.f32 %v6379, %v6396
      %v6408 = vadd.f32 %v6380, %v6396
      %v6409 = vadd.f32 %v6381, %v6396
      %v6410 = vadd.f32 %v6382, %v6396
      %v6411 = vadd.f32 %v6383, %v6396
      %v6412 = vadd.f32 %v6384, %v6396
      %v6413 = vadd.f32 %v6385, %v6396
      %vm6414 = vcmp.ge.f32.partialorder %v6398, 0.0
      %vm6415 = vcmp.ge.f32.partialorder %v6399, 0.0
      %vm6416 = vcmp.ge.f32.partialorder %v6400, 0.0
      %vm6417 = vcmp.ge.f32.partialorder %v6401, 0.0
      %vm6418 = vcmp.ge.f32.partialorder %v6402, 0.0
      %vm6419 = vcmp.ge.f32.partialorder %v6403, 0.0
      %vm6420 = vcmp.ge.f32.partialorder %v6404, 0.0
      %vm6421 = vcmp.ge.f32.partialorder %v6405, 0.0
      %vm6422 = vcmp.ge.f32.partialorder %v6406, 0.0
      %vm6423 = vcmp.ge.f32.partialorder %v6407, 0.0
      %vm6424 = vcmp.ge.f32.partialorder %v6408, 0.0
      %vm6425 = vcmp.ge.f32.partialorder %v6409, 0.0
      %vm6426 = vcmp.ge.f32.partialorder %v6410, 0.0
      %vm6427 = vcmp.ge.f32.partialorder %v6411, 0.0
      %vm6428 = vcmp.ge.f32.partialorder %v6412, 0.0
      %vm6429 = vcmp.ge.f32.partialorder %v6413, 0.0
      %v6430 = vmul.f32 %v6398, 0.2
      %v6431 = vmul.f32 %v6399, 0.2
      %v6432 = vmul.f32 %v6400, 0.2
      %v6433 = vmul.f32 %v6401, 0.2
      %v6434 = vmul.f32 %v6402, 0.2
      %v6435 = vmul.f32 %v6403, 0.2
      %v6436 = vmul.f32 %v6404, 0.2
      %v6437 = vmul.f32 %v6405, 0.2
      %v6438 = vmul.f32 %v6406, 0.2
      %v6439 = vmul.f32 %v6407, 0.2
      %v6440 = vmul.f32 %v6408, 0.2
      %v6441 = vmul.f32 %v6409, 0.2
      %v6442 = vmul.f32 %v6410, 0.2
      %v6443 = vmul.f32 %v6411, 0.2
      %v6444 = vmul.f32 %v6412, 0.2
      %v6445 = vmul.f32 %v6413, 0.2
      %v6446 = vsel %vm6414, %v6398, %v6430
      %v6447 = vsel %vm6415, %v6399, %v6431
      %v6448 = vsel %vm6416, %v6400, %v6432
      %v6449 = vsel %vm6417, %v6401, %v6433
      %v6450 = vsel %vm6418, %v6402, %v6434
      %v6451 = vsel %vm6419, %v6403, %v6435
      %v6452 = vsel %vm6420, %v6404, %v6436
      %v6453 = vsel %vm6421, %v6405, %v6437
      %v6454 = vsel %vm6422, %v6406, %v6438
      %v6455 = vsel %vm6423, %v6407, %v6439
      %v6456 = vsel %vm6424, %v6408, %v6440
      %v6457 = vsel %vm6425, %v6409, %v6441
      %v6458 = vsel %vm6426, %v6410, %v6442
      %v6459 = vsel %vm6427, %v6411, %v6443
      %v6460 = vsel %vm6428, %v6412, %v6444
      %v6461 = vsel %vm6429, %v6413, %v6445
      %v6462 = vmul.f32 %v6446, %v2306
      %v6463 = vmul.f32 %v6447, %v2307
      %v6464 = vmul.f32 %v6448, %v2308
      %v6465 = vmul.f32 %v6449, %v2309
      %v6466 = vmul.f32 %v6450, %v2310
      %v6467 = vmul.f32 %v6451, %v2311
      %v6468 = vmul.f32 %v6452, %v2312
      %v6469 = vmul.f32 %v6453, %v2313
      %v6470 = vmul.f32 %v6454, %v2306
      %v6471 = vmul.f32 %v6455, %v2307
      %v6472 = vmul.f32 %v6456, %v2308
      %v6473 = vmul.f32 %v6457, %v2309
      %v6474 = vmul.f32 %v6458, %v2310
      %v6475 = vmul.f32 %v6459, %v2311
      %v6476 = vmul.f32 %v6460, %v2312
      %v6477 = vmul.f32 %v6461, %v2313
      %6478 = vst [vmem:[#allocation3] sm:$0xff] %v6462
      %6479 = vst [vmem:[#allocation3 + $0x8] sm:$0xff] %v6463
      %6480 = vst [vmem:[#allocation3 + $0x10] sm:$0xff] %v6464
      %6481 = vst [vmem:[#allocation3 + $0x18] sm:$0xff] %v6465
      %6482 = vst [vmem:[#allocation3 + $0x20] sm:$0xff] %v6466
      %6483 = vst [vmem:[#allocation3 + $0x28] sm:$0xff] %v6467
      %6484 = vst [vmem:[#allocation3 + $0x30] sm:$0xff] %v6468
      %vm6485 = vcmask 31744
      %6486 = vst.msk [vmem:[#allocation3 + $0x38] sm:$0xff] %vm6485, %v6469
      %6487 = vst [vmem:[#allocation3 + $0x40] sm:$0xff] %v6470
      %6488 = vst [vmem:[#allocation3 + $0x48] sm:$0xff] %v6471
      %6489 = vst [vmem:[#allocation3 + $0x50] sm:$0xff] %v6472
      %6490 = vst [vmem:[#allocation3 + $0x58] sm:$0xff] %v6473
      %6491 = vst [vmem:[#allocation3 + $0x60] sm:$0xff] %v6474
      %6492 = vst [vmem:[#allocation3 + $0x68] sm:$0xff] %v6475
      %6493 = vst [vmem:[#allocation3 + $0x70] sm:$0xff] %v6476
      %6494 = vst.msk [vmem:[#allocation3 + $0x78] sm:$0xff] %vm6485, %v6477
      %v6495 = vld [vmem:[%s8] sm:$0xff]
      %v6496 = vld [vmem:[%s8 + $0x8] sm:$0xff]
      %v6497 = vld [vmem:[%s9] sm:$0xff]
      %v6498 = vld [vmem:[%s9 + $0x8] sm:$0xff]
      %6500 = vset.pattern.permute.xlu0 0
      %6501 = vperm.xlu0 %6500, %v6497
      %v6502 = vpop.permute.xlu0 %6501
      %6505 = vset.pattern.permute.xlu0 0
      %6506 = vperm.xlu0 %6505, %v6498
      %v6507 = vpop.permute.xlu0 %6506
      %vm6509 = vcmask 130048
      %v6511 = vsel %vm6509, %v6495, 0
      %v6514 = vsel %vm6509, %v6496, 0
      %6516 = vmatpush.msra.mxu0 0.0
      %6517 = vmatpush.msra.mxu0 0.0
      %6518 = vmatpush.msra.mxu0 0.0
      %6519 = vmatpush.msra.mxu0 0.0
      %6520 = vmatpush.msra.mxu0 0.0
      %6521 = vmatpush.msra.mxu0 0.0
      %6522 = vmatpush.msra.mxu0 0.0
      %6523 = vmatpush.msra.mxu0 0.0
      %6524 = vmatpush.msra.mxu0 0.0
      %6525 = vmatpush.msra.mxu0 0.0
      %6526 = vmatpush.msra.mxu0 0.0
      %6527 = vmatpush.msra.mxu0 0.0
      %6528 = vmatpush.msra.mxu0 0.0
      %6529 = vmatpush.msra.mxu0 0.0
      %6530 = vmatpush.msra.mxu0 %v6470
      %6531 = vmatpush.msra.mxu0 %v6462
      %6532 = vmatmul.f32.gmra.mxu0 %v6511
      %v6533 = vpop.f32.mrf.mxu0
      %v6534 = vadd.f32 %v6502, %v6533
      %6535 = vmatmul.f32.gmra.mxu0 %v6514
      %v6536 = vpop.f32.mrf.mxu0
      %v6537 = vadd.f32 %v6507, %v6536
      %6538 = vdwg.mxu0
      %6539 = vmatpush.msra.mxu0 0.0
      %6540 = vmatpush.msra.mxu0 0.0
      %6541 = vmatpush.msra.mxu0 0.0
      %6542 = vmatpush.msra.mxu0 0.0
      %6543 = vmatpush.msra.mxu0 0.0
      %6544 = vmatpush.msra.mxu0 0.0
      %6545 = vmatpush.msra.mxu0 0.0
      %6546 = vmatpush.msra.mxu0 0.0
      %6547 = vmatpush.msra.mxu0 0.0
      %6548 = vmatpush.msra.mxu0 0.0
      %6549 = vmatpush.msra.mxu0 0.0
      %6550 = vmatpush.msra.mxu0 0.0
      %6551 = vmatpush.msra.mxu0 0.0
      %6552 = vmatpush.msra.mxu0 0.0
      %6553 = vmatpush.msra.mxu0 %v6471
      %6554 = vmatpush.msra.mxu0 %v6463
      %6555 = vmatmul.f32.gmra.mxu0 %v6511
      %v6556 = vpop.f32.mrf.mxu0
      %v6557 = vadd.f32 %v6502, %v6556
      %6558 = vmatmul.f32.gmra.mxu0 %v6514
      %v6559 = vpop.f32.mrf.mxu0
      %v6560 = vadd.f32 %v6507, %v6559
      %6561 = vdwg.mxu0
      %6562 = vmatpush.msra.mxu0 0.0
      %6563 = vmatpush.msra.mxu0 0.0
      %6564 = vmatpush.msra.mxu0 0.0
      %6565 = vmatpush.msra.mxu0 0.0
      %6566 = vmatpush.msra.mxu0 0.0
      %6567 = vmatpush.msra.mxu0 0.0
      %6568 = vmatpush.msra.mxu0 0.0
      %6569 = vmatpush.msra.mxu0 0.0
      %6570 = vmatpush.msra.mxu0 0.0
      %6571 = vmatpush.msra.mxu0 0.0
      %6572 = vmatpush.msra.mxu0 0.0
      %6573 = vmatpush.msra.mxu0 0.0
      %6574 = vmatpush.msra.mxu0 0.0
      %6575 = vmatpush.msra.mxu0 0.0
      %6576 = vmatpush.msra.mxu0 %v6472
      %6577 = vmatpush.msra.mxu0 %v6464
      %6578 = vmatmul.f32.gmra.mxu0 %v6511
      %v6579 = vpop.f32.mrf.mxu0
      %v6580 = vadd.f32 %v6502, %v6579
      %6581 = vmatmul.f32.gmra.mxu0 %v6514
      %v6582 = vpop.f32.mrf.mxu0
      %v6583 = vadd.f32 %v6507, %v6582
      %6584 = vdwg.mxu0
      %6585 = vmatpush.msra.mxu0 0.0
      %6586 = vmatpush.msra.mxu0 0.0
      %6587 = vmatpush.msra.mxu0 0.0
      %6588 = vmatpush.msra.mxu0 0.0
      %6589 = vmatpush.msra.mxu0 0.0
      %6590 = vmatpush.msra.mxu0 0.0
      %6591 = vmatpush.msra.mxu0 0.0
      %6592 = vmatpush.msra.mxu0 0.0
      %6593 = vmatpush.msra.mxu0 0.0
      %6594 = vmatpush.msra.mxu0 0.0
      %6595 = vmatpush.msra.mxu0 0.0
      %6596 = vmatpush.msra.mxu0 0.0
      %6597 = vmatpush.msra.mxu0 0.0
      %6598 = vmatpush.msra.mxu0 0.0
      %6599 = vmatpush.msra.mxu0 %v6473
      %6600 = vmatpush.msra.mxu0 %v6465
      %6601 = vmatmul.f32.gmra.mxu0 %v6511
      %v6602 = vpop.f32.mrf.mxu0
      %v6603 = vadd.f32 %v6502, %v6602
      %6604 = vmatmul.f32.gmra.mxu0 %v6514
      %v6605 = vpop.f32.mrf.mxu0
      %v6606 = vadd.f32 %v6507, %v6605
      %6607 = vdwg.mxu0
      %6608 = vmatpush.msra.mxu0 0.0
      %6609 = vmatpush.msra.mxu0 0.0
      %6610 = vmatpush.msra.mxu0 0.0
      %6611 = vmatpush.msra.mxu0 0.0
      %6612 = vmatpush.msra.mxu0 0.0
      %6613 = vmatpush.msra.mxu0 0.0
      %6614 = vmatpush.msra.mxu0 0.0
      %6615 = vmatpush.msra.mxu0 0.0
      %6616 = vmatpush.msra.mxu0 0.0
      %6617 = vmatpush.msra.mxu0 0.0
      %6618 = vmatpush.msra.mxu0 0.0
      %6619 = vmatpush.msra.mxu0 0.0
      %6620 = vmatpush.msra.mxu0 0.0
      %6621 = vmatpush.msra.mxu0 0.0
      %6622 = vmatpush.msra.mxu0 %v6474
      %6623 = vmatpush.msra.mxu0 %v6466
      %6624 = vmatmul.f32.gmra.mxu0 %v6511
      %v6625 = vpop.f32.mrf.mxu0
      %v6626 = vadd.f32 %v6502, %v6625
      %6627 = vmatmul.f32.gmra.mxu0 %v6514
      %v6628 = vpop.f32.mrf.mxu0
      %v6629 = vadd.f32 %v6507, %v6628
      %6630 = vdwg.mxu0
      %6631 = vmatpush.msra.mxu0 0.0
      %6632 = vmatpush.msra.mxu0 0.0
      %6633 = vmatpush.msra.mxu0 0.0
      %6634 = vmatpush.msra.mxu0 0.0
      %6635 = vmatpush.msra.mxu0 0.0
      %6636 = vmatpush.msra.mxu0 0.0
      %6637 = vmatpush.msra.mxu0 0.0
      %6638 = vmatpush.msra.mxu0 0.0
      %6639 = vmatpush.msra.mxu0 0.0
      %6640 = vmatpush.msra.mxu0 0.0
      %6641 = vmatpush.msra.mxu0 0.0
      %6642 = vmatpush.msra.mxu0 0.0
      %6643 = vmatpush.msra.mxu0 0.0
      %6644 = vmatpush.msra.mxu0 0.0
      %6645 = vmatpush.msra.mxu0 %v6475
      %6646 = vmatpush.msra.mxu0 %v6467
      %6647 = vmatmul.f32.gmra.mxu0 %v6511
      %v6648 = vpop.f32.mrf.mxu0
      %v6649 = vadd.f32 %v6502, %v6648
      %6650 = vmatmul.f32.gmra.mxu0 %v6514
      %v6651 = vpop.f32.mrf.mxu0
      %v6652 = vadd.f32 %v6507, %v6651
      %6653 = vdwg.mxu0
      %6654 = vmatpush.msra.mxu0 0.0
      %6655 = vmatpush.msra.mxu0 0.0
      %6656 = vmatpush.msra.mxu0 0.0
      %6657 = vmatpush.msra.mxu0 0.0
      %6658 = vmatpush.msra.mxu0 0.0
      %6659 = vmatpush.msra.mxu0 0.0
      %6660 = vmatpush.msra.mxu0 0.0
      %6661 = vmatpush.msra.mxu0 0.0
      %6662 = vmatpush.msra.mxu0 0.0
      %6663 = vmatpush.msra.mxu0 0.0
      %6664 = vmatpush.msra.mxu0 0.0
      %6665 = vmatpush.msra.mxu0 0.0
      %6666 = vmatpush.msra.mxu0 0.0
      %6667 = vmatpush.msra.mxu0 0.0
      %6668 = vmatpush.msra.mxu0 %v6476
      %6669 = vmatpush.msra.mxu0 %v6468
      %6670 = vmatmul.f32.gmra.mxu0 %v6511
      %v6671 = vpop.f32.mrf.mxu0
      %v6672 = vadd.f32 %v6502, %v6671
      %6673 = vmatmul.f32.gmra.mxu0 %v6514
      %v6674 = vpop.f32.mrf.mxu0
      %v6675 = vadd.f32 %v6507, %v6674
      %6676 = vdwg.mxu0
      %6677 = vmatpush.msra.mxu0 0.0
      %6678 = vmatpush.msra.mxu0 0.0
      %6679 = vmatpush.msra.mxu0 0.0
      %6680 = vmatpush.msra.mxu0 0.0
      %6681 = vmatpush.msra.mxu0 0.0
      %6682 = vmatpush.msra.mxu0 0.0
      %6683 = vmatpush.msra.mxu0 0.0
      %6684 = vmatpush.msra.mxu0 0.0
      %6685 = vmatpush.msra.mxu0 0.0
      %6686 = vmatpush.msra.mxu0 0.0
      %6687 = vmatpush.msra.mxu0 0.0
      %6688 = vmatpush.msra.mxu0 0.0
      %6689 = vmatpush.msra.mxu0 0.0
      %6690 = vmatpush.msra.mxu0 0.0
      %6691 = vmatpush.msra.mxu0 %v6477
      %6692 = vmatpush.msra.mxu0 %v6469
      %6693 = vmatmul.f32.gmra.mxu0 %v6511
      %v6694 = vpop.f32.mrf.mxu0
      %v6695 = vadd.f32 %v6502, %v6694
      %6696 = vmatmul.f32.gmra.mxu0 %v6514
      %v6697 = vpop.f32.mrf.mxu0
      %v6698 = vadd.f32 %v6507, %v6697
      %6699 = vdwg.mxu0
      %v6700 = vmax.f32 %v6534, 0.0
      %v6701 = vmax.f32 %v6557, 0.0
      %v6702 = vmax.f32 %v6580, 0.0
      %v6703 = vmax.f32 %v6603, 0.0
      %v6704 = vmax.f32 %v6626, 0.0
      %v6705 = vmax.f32 %v6649, 0.0
      %v6706 = vmax.f32 %v6672, 0.0
      %v6707 = vmax.f32 %v6695, 0.0
      %v6708 = vmax.f32 %v6537, 0.0
      %v6709 = vmax.f32 %v6560, 0.0
      %v6710 = vmax.f32 %v6583, 0.0
      %v6711 = vmax.f32 %v6606, 0.0
      %v6712 = vmax.f32 %v6629, 0.0
      %v6713 = vmax.f32 %v6652, 0.0
      %v6714 = vmax.f32 %v6675, 0.0
      %v6715 = vmax.f32 %v6698, 0.0
      %s6716 = scalar_lea.vmem %s8, 16
      %v6717 = vld [vmem:[%s6716] sm:$0xff]
      %v6718 = vld [vmem:[%s6716 + $0x8] sm:$0xff]
      %s6719 = scalar_lea.vmem %s9, 16
      %v6720 = vld [vmem:[%s6719] sm:$0xff]
      %v6721 = vld [vmem:[%s6719 + $0x8] sm:$0xff]
      %6723 = vset.pattern.permute.xlu0 0
      %6724 = vperm.xlu0 %6723, %v6720
      %v6725 = vpop.permute.xlu0 %6724
      %6728 = vset.pattern.permute.xlu0 0
      %6729 = vperm.xlu0 %6728, %v6721
      %v6730 = vpop.permute.xlu0 %6729
      %v6733 = vsel %vm6509, %v6717, 0
      %v6736 = vsel %vm6509, %v6718, 0
      %6738 = vmatpush.msra.mxu0 0.0
      %6739 = vmatpush.msra.mxu0 0.0
      %6740 = vmatpush.msra.mxu0 0.0
      %6741 = vmatpush.msra.mxu0 0.0
      %6742 = vmatpush.msra.mxu0 0.0
      %6743 = vmatpush.msra.mxu0 0.0
      %6744 = vmatpush.msra.mxu0 0.0
      %6745 = vmatpush.msra.mxu0 0.0
      %6746 = vmatpush.msra.mxu0 0.0
      %6747 = vmatpush.msra.mxu0 0.0
      %6748 = vmatpush.msra.mxu0 0.0
      %6749 = vmatpush.msra.mxu0 0.0
      %6750 = vmatpush.msra.mxu0 0.0
      %6751 = vmatpush.msra.mxu0 0.0
      %6752 = vmatpush.msra.mxu0 %v6708
      %6753 = vmatpush.msra.mxu0 %v6700
      %6754 = vmatmul.f32.gmra.mxu0 %v6733
      %v6755 = vpop.f32.mrf.mxu0
      %v6756 = vadd.f32 %v6725, %v6755
      %6757 = vmatmul.f32.gmra.mxu0 %v6736
      %v6758 = vpop.f32.mrf.mxu0
      %v6759 = vadd.f32 %v6730, %v6758
      %6760 = vdwg.mxu0
      %6761 = vmatpush.msra.mxu0 0.0
      %6762 = vmatpush.msra.mxu0 0.0
      %6763 = vmatpush.msra.mxu0 0.0
      %6764 = vmatpush.msra.mxu0 0.0
      %6765 = vmatpush.msra.mxu0 0.0
      %6766 = vmatpush.msra.mxu0 0.0
      %6767 = vmatpush.msra.mxu0 0.0
      %6768 = vmatpush.msra.mxu0 0.0
      %6769 = vmatpush.msra.mxu0 0.0
      %6770 = vmatpush.msra.mxu0 0.0
      %6771 = vmatpush.msra.mxu0 0.0
      %6772 = vmatpush.msra.mxu0 0.0
      %6773 = vmatpush.msra.mxu0 0.0
      %6774 = vmatpush.msra.mxu0 0.0
      %6775 = vmatpush.msra.mxu0 %v6709
      %6776 = vmatpush.msra.mxu0 %v6701
      %6777 = vmatmul.f32.gmra.mxu0 %v6733
      %v6778 = vpop.f32.mrf.mxu0
      %v6779 = vadd.f32 %v6725, %v6778
      %6780 = vmatmul.f32.gmra.mxu0 %v6736
      %v6781 = vpop.f32.mrf.mxu0
      %v6782 = vadd.f32 %v6730, %v6781
      %6783 = vdwg.mxu0
      %6784 = vmatpush.msra.mxu0 0.0
      %6785 = vmatpush.msra.mxu0 0.0
      %6786 = vmatpush.msra.mxu0 0.0
      %6787 = vmatpush.msra.mxu0 0.0
      %6788 = vmatpush.msra.mxu0 0.0
      %6789 = vmatpush.msra.mxu0 0.0
      %6790 = vmatpush.msra.mxu0 0.0
      %6791 = vmatpush.msra.mxu0 0.0
      %6792 = vmatpush.msra.mxu0 0.0
      %6793 = vmatpush.msra.mxu0 0.0
      %6794 = vmatpush.msra.mxu0 0.0
      %6795 = vmatpush.msra.mxu0 0.0
      %6796 = vmatpush.msra.mxu0 0.0
      %6797 = vmatpush.msra.mxu0 0.0
      %6798 = vmatpush.msra.mxu0 %v6710
      %6799 = vmatpush.msra.mxu0 %v6702
      %6800 = vmatmul.f32.gmra.mxu0 %v6733
      %v6801 = vpop.f32.mrf.mxu0
      %v6802 = vadd.f32 %v6725, %v6801
      %6803 = vmatmul.f32.gmra.mxu0 %v6736
      %v6804 = vpop.f32.mrf.mxu0
      %v6805 = vadd.f32 %v6730, %v6804
      %6806 = vdwg.mxu0
      %6807 = vmatpush.msra.mxu0 0.0
      %6808 = vmatpush.msra.mxu0 0.0
      %6809 = vmatpush.msra.mxu0 0.0
      %6810 = vmatpush.msra.mxu0 0.0
      %6811 = vmatpush.msra.mxu0 0.0
      %6812 = vmatpush.msra.mxu0 0.0
      %6813 = vmatpush.msra.mxu0 0.0
      %6814 = vmatpush.msra.mxu0 0.0
      %6815 = vmatpush.msra.mxu0 0.0
      %6816 = vmatpush.msra.mxu0 0.0
      %6817 = vmatpush.msra.mxu0 0.0
      %6818 = vmatpush.msra.mxu0 0.0
      %6819 = vmatpush.msra.mxu0 0.0
      %6820 = vmatpush.msra.mxu0 0.0
      %6821 = vmatpush.msra.mxu0 %v6711
      %6822 = vmatpush.msra.mxu0 %v6703
      %6823 = vmatmul.f32.gmra.mxu0 %v6733
      %v6824 = vpop.f32.mrf.mxu0
      %v6825 = vadd.f32 %v6725, %v6824
      %6826 = vmatmul.f32.gmra.mxu0 %v6736
      %v6827 = vpop.f32.mrf.mxu0
      %v6828 = vadd.f32 %v6730, %v6827
      %6829 = vdwg.mxu0
      %6830 = vmatpush.msra.mxu0 0.0
      %6831 = vmatpush.msra.mxu0 0.0
      %6832 = vmatpush.msra.mxu0 0.0
      %6833 = vmatpush.msra.mxu0 0.0
      %6834 = vmatpush.msra.mxu0 0.0
      %6835 = vmatpush.msra.mxu0 0.0
      %6836 = vmatpush.msra.mxu0 0.0
      %6837 = vmatpush.msra.mxu0 0.0
      %6838 = vmatpush.msra.mxu0 0.0
      %6839 = vmatpush.msra.mxu0 0.0
      %6840 = vmatpush.msra.mxu0 0.0
      %6841 = vmatpush.msra.mxu0 0.0
      %6842 = vmatpush.msra.mxu0 0.0
      %6843 = vmatpush.msra.mxu0 0.0
      %6844 = vmatpush.msra.mxu0 %v6712
      %6845 = vmatpush.msra.mxu0 %v6704
      %6846 = vmatmul.f32.gmra.mxu0 %v6733
      %v6847 = vpop.f32.mrf.mxu0
      %v6848 = vadd.f32 %v6725, %v6847
      %6849 = vmatmul.f32.gmra.mxu0 %v6736
      %v6850 = vpop.f32.mrf.mxu0
      %v6851 = vadd.f32 %v6730, %v6850
      %6852 = vdwg.mxu0
      %6853 = vmatpush.msra.mxu0 0.0
      %6854 = vmatpush.msra.mxu0 0.0
      %6855 = vmatpush.msra.mxu0 0.0
      %6856 = vmatpush.msra.mxu0 0.0
      %6857 = vmatpush.msra.mxu0 0.0
      %6858 = vmatpush.msra.mxu0 0.0
      %6859 = vmatpush.msra.mxu0 0.0
      %6860 = vmatpush.msra.mxu0 0.0
      %6861 = vmatpush.msra.mxu0 0.0
      %6862 = vmatpush.msra.mxu0 0.0
      %6863 = vmatpush.msra.mxu0 0.0
      %6864 = vmatpush.msra.mxu0 0.0
      %6865 = vmatpush.msra.mxu0 0.0
      %6866 = vmatpush.msra.mxu0 0.0
      %6867 = vmatpush.msra.mxu0 %v6713
      %6868 = vmatpush.msra.mxu0 %v6705
      %6869 = vmatmul.f32.gmra.mxu0 %v6733
      %v6870 = vpop.f32.mrf.mxu0
      %v6871 = vadd.f32 %v6725, %v6870
      %6872 = vmatmul.f32.gmra.mxu0 %v6736
      %v6873 = vpop.f32.mrf.mxu0
      %v6874 = vadd.f32 %v6730, %v6873
      %6875 = vdwg.mxu0
      %6876 = vmatpush.msra.mxu0 0.0
      %6877 = vmatpush.msra.mxu0 0.0
      %6878 = vmatpush.msra.mxu0 0.0
      %6879 = vmatpush.msra.mxu0 0.0
      %6880 = vmatpush.msra.mxu0 0.0
      %6881 = vmatpush.msra.mxu0 0.0
      %6882 = vmatpush.msra.mxu0 0.0
      %6883 = vmatpush.msra.mxu0 0.0
      %6884 = vmatpush.msra.mxu0 0.0
      %6885 = vmatpush.msra.mxu0 0.0
      %6886 = vmatpush.msra.mxu0 0.0
      %6887 = vmatpush.msra.mxu0 0.0
      %6888 = vmatpush.msra.mxu0 0.0
      %6889 = vmatpush.msra.mxu0 0.0
      %6890 = vmatpush.msra.mxu0 %v6714
      %6891 = vmatpush.msra.mxu0 %v6706
      %6892 = vmatmul.f32.gmra.mxu0 %v6733
      %v6893 = vpop.f32.mrf.mxu0
      %v6894 = vadd.f32 %v6725, %v6893
      %6895 = vmatmul.f32.gmra.mxu0 %v6736
      %v6896 = vpop.f32.mrf.mxu0
      %v6897 = vadd.f32 %v6730, %v6896
      %6898 = vdwg.mxu0
      %6899 = vmatpush.msra.mxu0 0.0
      %6900 = vmatpush.msra.mxu0 0.0
      %6901 = vmatpush.msra.mxu0 0.0
      %6902 = vmatpush.msra.mxu0 0.0
      %6903 = vmatpush.msra.mxu0 0.0
      %6904 = vmatpush.msra.mxu0 0.0
      %6905 = vmatpush.msra.mxu0 0.0
      %6906 = vmatpush.msra.mxu0 0.0
      %6907 = vmatpush.msra.mxu0 0.0
      %6908 = vmatpush.msra.mxu0 0.0
      %6909 = vmatpush.msra.mxu0 0.0
      %6910 = vmatpush.msra.mxu0 0.0
      %6911 = vmatpush.msra.mxu0 0.0
      %6912 = vmatpush.msra.mxu0 0.0
      %6913 = vmatpush.msra.mxu0 %v6715
      %6914 = vmatpush.msra.mxu0 %v6707
      %6915 = vmatmul.f32.gmra.mxu0 %v6733
      %v6916 = vpop.f32.mrf.mxu0
      %v6917 = vadd.f32 %v6725, %v6916
      %6918 = vmatmul.f32.gmra.mxu0 %v6736
      %v6919 = vpop.f32.mrf.mxu0
      %v6920 = vadd.f32 %v6730, %v6919
      %6921 = vdwg.mxu0
      %v6922 = vmax.f32 %v6756, 0.0
      %v6923 = vmax.f32 %v6779, 0.0
      %v6924 = vmax.f32 %v6802, 0.0
      %v6925 = vmax.f32 %v6825, 0.0
      %v6926 = vmax.f32 %v6848, 0.0
      %v6927 = vmax.f32 %v6871, 0.0
      %v6928 = vmax.f32 %v6894, 0.0
      %v6929 = vmax.f32 %v6917, 0.0
      %v6930 = vmax.f32 %v6759, 0.0
      %v6931 = vmax.f32 %v6782, 0.0
      %v6932 = vmax.f32 %v6805, 0.0
      %v6933 = vmax.f32 %v6828, 0.0
      %v6934 = vmax.f32 %v6851, 0.0
      %v6935 = vmax.f32 %v6874, 0.0
      %v6936 = vmax.f32 %v6897, 0.0
      %v6937 = vmax.f32 %v6920, 0.0
      %s6938 = scalar_lea.vmem %s8, 32
      %v6939 = vld [vmem:[%s6938] sm:$0xff]
      %v6940 = vld [vmem:[%s6938 + $0x8] sm:$0xff]
      %s6941 = scalar_lea.vmem %s9, 32
      %v6942 = vld [vmem:[%s6941] sm:$0xff]
      %v6943 = vld [vmem:[%s6941 + $0x8] sm:$0xff]
      %6945 = vset.pattern.permute.xlu0 0
      %6946 = vperm.xlu0 %6945, %v6942
      %v6947 = vpop.permute.xlu0 %6946
      %6950 = vset.pattern.permute.xlu0 0
      %6951 = vperm.xlu0 %6950, %v6943
      %v6952 = vpop.permute.xlu0 %6951
      %v6955 = vsel %vm6509, %v6939, 0
      %v6958 = vsel %vm6509, %v6940, 0
      %6960 = vmatpush.msra.mxu0 0.0
      %6961 = vmatpush.msra.mxu0 0.0
      %6962 = vmatpush.msra.mxu0 0.0
      %6963 = vmatpush.msra.mxu0 0.0
      %6964 = vmatpush.msra.mxu0 0.0
      %6965 = vmatpush.msra.mxu0 0.0
      %6966 = vmatpush.msra.mxu0 0.0
      %6967 = vmatpush.msra.mxu0 0.0
      %6968 = vmatpush.msra.mxu0 0.0
      %6969 = vmatpush.msra.mxu0 0.0
      %6970 = vmatpush.msra.mxu0 0.0
      %6971 = vmatpush.msra.mxu0 0.0
      %6972 = vmatpush.msra.mxu0 0.0
      %6973 = vmatpush.msra.mxu0 0.0
      %6974 = vmatpush.msra.mxu0 %v6930
      %6975 = vmatpush.msra.mxu0 %v6922
      %6976 = vmatmul.f32.gmra.mxu0 %v6955
      %v6977 = vpop.f32.mrf.mxu0
      %v6978 = vadd.f32 %v6947, %v6977
      %6979 = vmatmul.f32.gmra.mxu0 %v6958
      %v6980 = vpop.f32.mrf.mxu0
      %v6981 = vadd.f32 %v6952, %v6980
      %6982 = vdwg.mxu0
      %6983 = vmatpush.msra.mxu0 0.0
      %6984 = vmatpush.msra.mxu0 0.0
      %6985 = vmatpush.msra.mxu0 0.0
      %6986 = vmatpush.msra.mxu0 0.0
      %6987 = vmatpush.msra.mxu0 0.0
      %6988 = vmatpush.msra.mxu0 0.0
      %6989 = vmatpush.msra.mxu0 0.0
      %6990 = vmatpush.msra.mxu0 0.0
      %6991 = vmatpush.msra.mxu0 0.0
      %6992 = vmatpush.msra.mxu0 0.0
      %6993 = vmatpush.msra.mxu0 0.0
      %6994 = vmatpush.msra.mxu0 0.0
      %6995 = vmatpush.msra.mxu0 0.0
      %6996 = vmatpush.msra.mxu0 0.0
      %6997 = vmatpush.msra.mxu0 %v6931
      %6998 = vmatpush.msra.mxu0 %v6923
      %6999 = vmatmul.f32.gmra.mxu0 %v6955
      %v7000 = vpop.f32.mrf.mxu0
      %v7001 = vadd.f32 %v6947, %v7000
      %7002 = vmatmul.f32.gmra.mxu0 %v6958
      %v7003 = vpop.f32.mrf.mxu0
      %v7004 = vadd.f32 %v6952, %v7003
      %7005 = vdwg.mxu0
      %7006 = vmatpush.msra.mxu0 0.0
      %7007 = vmatpush.msra.mxu0 0.0
      %7008 = vmatpush.msra.mxu0 0.0
      %7009 = vmatpush.msra.mxu0 0.0
      %7010 = vmatpush.msra.mxu0 0.0
      %7011 = vmatpush.msra.mxu0 0.0
      %7012 = vmatpush.msra.mxu0 0.0
      %7013 = vmatpush.msra.mxu0 0.0
      %7014 = vmatpush.msra.mxu0 0.0
      %7015 = vmatpush.msra.mxu0 0.0
      %7016 = vmatpush.msra.mxu0 0.0
      %7017 = vmatpush.msra.mxu0 0.0
      %7018 = vmatpush.msra.mxu0 0.0
      %7019 = vmatpush.msra.mxu0 0.0
      %7020 = vmatpush.msra.mxu0 %v6932
      %7021 = vmatpush.msra.mxu0 %v6924
      %7022 = vmatmul.f32.gmra.mxu0 %v6955
      %v7023 = vpop.f32.mrf.mxu0
      %v7024 = vadd.f32 %v6947, %v7023
      %7025 = vmatmul.f32.gmra.mxu0 %v6958
      %v7026 = vpop.f32.mrf.mxu0
      %v7027 = vadd.f32 %v6952, %v7026
      %7028 = vdwg.mxu0
      %7029 = vmatpush.msra.mxu0 0.0
      %7030 = vmatpush.msra.mxu0 0.0
      %7031 = vmatpush.msra.mxu0 0.0
      %7032 = vmatpush.msra.mxu0 0.0
      %7033 = vmatpush.msra.mxu0 0.0
      %7034 = vmatpush.msra.mxu0 0.0
      %7035 = vmatpush.msra.mxu0 0.0
      %7036 = vmatpush.msra.mxu0 0.0
      %7037 = vmatpush.msra.mxu0 0.0
      %7038 = vmatpush.msra.mxu0 0.0
      %7039 = vmatpush.msra.mxu0 0.0
      %7040 = vmatpush.msra.mxu0 0.0
      %7041 = vmatpush.msra.mxu0 0.0
      %7042 = vmatpush.msra.mxu0 0.0
      %7043 = vmatpush.msra.mxu0 %v6933
      %7044 = vmatpush.msra.mxu0 %v6925
      %7045 = vmatmul.f32.gmra.mxu0 %v6955
      %v7046 = vpop.f32.mrf.mxu0
      %v7047 = vadd.f32 %v6947, %v7046
      %7048 = vmatmul.f32.gmra.mxu0 %v6958
      %v7049 = vpop.f32.mrf.mxu0
      %v7050 = vadd.f32 %v6952, %v7049
      %7051 = vdwg.mxu0
      %7052 = vmatpush.msra.mxu0 0.0
      %7053 = vmatpush.msra.mxu0 0.0
      %7054 = vmatpush.msra.mxu0 0.0
      %7055 = vmatpush.msra.mxu0 0.0
      %7056 = vmatpush.msra.mxu0 0.0
      %7057 = vmatpush.msra.mxu0 0.0
      %7058 = vmatpush.msra.mxu0 0.0
      %7059 = vmatpush.msra.mxu0 0.0
      %7060 = vmatpush.msra.mxu0 0.0
      %7061 = vmatpush.msra.mxu0 0.0
      %7062 = vmatpush.msra.mxu0 0.0
      %7063 = vmatpush.msra.mxu0 0.0
      %7064 = vmatpush.msra.mxu0 0.0
      %7065 = vmatpush.msra.mxu0 0.0
      %7066 = vmatpush.msra.mxu0 %v6934
      %7067 = vmatpush.msra.mxu0 %v6926
      %7068 = vmatmul.f32.gmra.mxu0 %v6955
      %v7069 = vpop.f32.mrf.mxu0
      %v7070 = vadd.f32 %v6947, %v7069
      %7071 = vmatmul.f32.gmra.mxu0 %v6958
      %v7072 = vpop.f32.mrf.mxu0
      %v7073 = vadd.f32 %v6952, %v7072
      %7074 = vdwg.mxu0
      %7075 = vmatpush.msra.mxu0 0.0
      %7076 = vmatpush.msra.mxu0 0.0
      %7077 = vmatpush.msra.mxu0 0.0
      %7078 = vmatpush.msra.mxu0 0.0
      %7079 = vmatpush.msra.mxu0 0.0
      %7080 = vmatpush.msra.mxu0 0.0
      %7081 = vmatpush.msra.mxu0 0.0
      %7082 = vmatpush.msra.mxu0 0.0
      %7083 = vmatpush.msra.mxu0 0.0
      %7084 = vmatpush.msra.mxu0 0.0
      %7085 = vmatpush.msra.mxu0 0.0
      %7086 = vmatpush.msra.mxu0 0.0
      %7087 = vmatpush.msra.mxu0 0.0
      %7088 = vmatpush.msra.mxu0 0.0
      %7089 = vmatpush.msra.mxu0 %v6935
      %7090 = vmatpush.msra.mxu0 %v6927
      %7091 = vmatmul.f32.gmra.mxu0 %v6955
      %v7092 = vpop.f32.mrf.mxu0
      %v7093 = vadd.f32 %v6947, %v7092
      %7094 = vmatmul.f32.gmra.mxu0 %v6958
      %v7095 = vpop.f32.mrf.mxu0
      %v7096 = vadd.f32 %v6952, %v7095
      %7097 = vdwg.mxu0
      %7098 = vmatpush.msra.mxu0 0.0
      %7099 = vmatpush.msra.mxu0 0.0
      %7100 = vmatpush.msra.mxu0 0.0
      %7101 = vmatpush.msra.mxu0 0.0
      %7102 = vmatpush.msra.mxu0 0.0
      %7103 = vmatpush.msra.mxu0 0.0
      %7104 = vmatpush.msra.mxu0 0.0
      %7105 = vmatpush.msra.mxu0 0.0
      %7106 = vmatpush.msra.mxu0 0.0
      %7107 = vmatpush.msra.mxu0 0.0
      %7108 = vmatpush.msra.mxu0 0.0
      %7109 = vmatpush.msra.mxu0 0.0
      %7110 = vmatpush.msra.mxu0 0.0
      %7111 = vmatpush.msra.mxu0 0.0
      %7112 = vmatpush.msra.mxu0 %v6936
      %7113 = vmatpush.msra.mxu0 %v6928
      %7114 = vmatmul.f32.gmra.mxu0 %v6955
      %v7115 = vpop.f32.mrf.mxu0
      %v7116 = vadd.f32 %v6947, %v7115
      %7117 = vmatmul.f32.gmra.mxu0 %v6958
      %v7118 = vpop.f32.mrf.mxu0
      %v7119 = vadd.f32 %v6952, %v7118
      %7120 = vdwg.mxu0
      %7121 = vmatpush.msra.mxu0 0.0
      %7122 = vmatpush.msra.mxu0 0.0
      %7123 = vmatpush.msra.mxu0 0.0
      %7124 = vmatpush.msra.mxu0 0.0
      %7125 = vmatpush.msra.mxu0 0.0
      %7126 = vmatpush.msra.mxu0 0.0
      %7127 = vmatpush.msra.mxu0 0.0
      %7128 = vmatpush.msra.mxu0 0.0
      %7129 = vmatpush.msra.mxu0 0.0
      %7130 = vmatpush.msra.mxu0 0.0
      %7131 = vmatpush.msra.mxu0 0.0
      %7132 = vmatpush.msra.mxu0 0.0
      %7133 = vmatpush.msra.mxu0 0.0
      %7134 = vmatpush.msra.mxu0 0.0
      %7135 = vmatpush.msra.mxu0 %v6937
      %7136 = vmatpush.msra.mxu0 %v6929
      %7137 = vmatmul.f32.gmra.mxu0 %v6955
      %v7138 = vpop.f32.mrf.mxu0
      %v7139 = vadd.f32 %v6947, %v7138
      %7140 = vmatmul.f32.gmra.mxu0 %v6958
      %v7141 = vpop.f32.mrf.mxu0
      %v7142 = vadd.f32 %v6952, %v7141
      %7143 = vdwg.mxu0
      %v7144 = vmax.f32 %v6978, 0.0
      %v7145 = vmax.f32 %v7001, 0.0
      %v7146 = vmax.f32 %v7024, 0.0
      %v7147 = vmax.f32 %v7047, 0.0
      %v7148 = vmax.f32 %v7070, 0.0
      %v7149 = vmax.f32 %v7093, 0.0
      %v7150 = vmax.f32 %v7116, 0.0
      %v7151 = vmax.f32 %v7139, 0.0
      %v7152 = vmax.f32 %v6981, 0.0
      %v7153 = vmax.f32 %v7004, 0.0
      %v7154 = vmax.f32 %v7027, 0.0
      %v7155 = vmax.f32 %v7050, 0.0
      %v7156 = vmax.f32 %v7073, 0.0
      %v7157 = vmax.f32 %v7096, 0.0
      %v7158 = vmax.f32 %v7119, 0.0
      %v7159 = vmax.f32 %v7142, 0.0
      %s7160 = scalar_lea.vmem %s8, 48
      %v7161 = vld [vmem:[%s7160] sm:$0xff]
      %v7162 = vld [vmem:[%s7160 + $0x8] sm:$0xff]
      %s7163 = scalar_lea.vmem %s9, 48
      %v7164 = vld [vmem:[%s7163] sm:$0xff]
      %v7165 = vld [vmem:[%s7163 + $0x8] sm:$0xff]
      %7167 = vset.pattern.permute.xlu0 0
      %7168 = vperm.xlu0 %7167, %v7164
      %v7169 = vpop.permute.xlu0 %7168
      %7172 = vset.pattern.permute.xlu0 0
      %7173 = vperm.xlu0 %7172, %v7165
      %v7174 = vpop.permute.xlu0 %7173
      %v7177 = vsel %vm6509, %v7161, 0
      %v7180 = vsel %vm6509, %v7162, 0
      %7182 = vmatpush.msra.mxu0 0.0
      %7183 = vmatpush.msra.mxu0 0.0
      %7184 = vmatpush.msra.mxu0 0.0
      %7185 = vmatpush.msra.mxu0 0.0
      %7186 = vmatpush.msra.mxu0 0.0
      %7187 = vmatpush.msra.mxu0 0.0
      %7188 = vmatpush.msra.mxu0 0.0
      %7189 = vmatpush.msra.mxu0 0.0
      %7190 = vmatpush.msra.mxu0 0.0
      %7191 = vmatpush.msra.mxu0 0.0
      %7192 = vmatpush.msra.mxu0 0.0
      %7193 = vmatpush.msra.mxu0 0.0
      %7194 = vmatpush.msra.mxu0 0.0
      %7195 = vmatpush.msra.mxu0 0.0
      %7196 = vmatpush.msra.mxu0 %v7152
      %7197 = vmatpush.msra.mxu0 %v7144
      %7198 = vmatmul.f32.gmra.mxu0 %v7177
      %v7199 = vpop.f32.mrf.mxu0
      %v7200 = vadd.f32 %v7169, %v7199
      %7201 = vmatmul.f32.gmra.mxu0 %v7180
      %v7202 = vpop.f32.mrf.mxu0
      %v7203 = vadd.f32 %v7174, %v7202
      %7204 = vdwg.mxu0
      %7205 = vmatpush.msra.mxu0 0.0
      %7206 = vmatpush.msra.mxu0 0.0
      %7207 = vmatpush.msra.mxu0 0.0
      %7208 = vmatpush.msra.mxu0 0.0
      %7209 = vmatpush.msra.mxu0 0.0
      %7210 = vmatpush.msra.mxu0 0.0
      %7211 = vmatpush.msra.mxu0 0.0
      %7212 = vmatpush.msra.mxu0 0.0
      %7213 = vmatpush.msra.mxu0 0.0
      %7214 = vmatpush.msra.mxu0 0.0
      %7215 = vmatpush.msra.mxu0 0.0
      %7216 = vmatpush.msra.mxu0 0.0
      %7217 = vmatpush.msra.mxu0 0.0
      %7218 = vmatpush.msra.mxu0 0.0
      %7219 = vmatpush.msra.mxu0 %v7153
      %7220 = vmatpush.msra.mxu0 %v7145
      %7221 = vmatmul.f32.gmra.mxu0 %v7177
      %v7222 = vpop.f32.mrf.mxu0
      %v7223 = vadd.f32 %v7169, %v7222
      %7224 = vmatmul.f32.gmra.mxu0 %v7180
      %v7225 = vpop.f32.mrf.mxu0
      %v7226 = vadd.f32 %v7174, %v7225
      %7227 = vdwg.mxu0
      %7228 = vmatpush.msra.mxu0 0.0
      %7229 = vmatpush.msra.mxu0 0.0
      %7230 = vmatpush.msra.mxu0 0.0
      %7231 = vmatpush.msra.mxu0 0.0
      %7232 = vmatpush.msra.mxu0 0.0
      %7233 = vmatpush.msra.mxu0 0.0
      %7234 = vmatpush.msra.mxu0 0.0
      %7235 = vmatpush.msra.mxu0 0.0
      %7236 = vmatpush.msra.mxu0 0.0
      %7237 = vmatpush.msra.mxu0 0.0
      %7238 = vmatpush.msra.mxu0 0.0
      %7239 = vmatpush.msra.mxu0 0.0
      %7240 = vmatpush.msra.mxu0 0.0
      %7241 = vmatpush.msra.mxu0 0.0
      %7242 = vmatpush.msra.mxu0 %v7154
      %7243 = vmatpush.msra.mxu0 %v7146
      %7244 = vmatmul.f32.gmra.mxu0 %v7177
      %v7245 = vpop.f32.mrf.mxu0
      %v7246 = vadd.f32 %v7169, %v7245
      %7247 = vmatmul.f32.gmra.mxu0 %v7180
      %v7248 = vpop.f32.mrf.mxu0
      %v7249 = vadd.f32 %v7174, %v7248
      %7250 = vdwg.mxu0
      %7251 = vmatpush.msra.mxu0 0.0
      %7252 = vmatpush.msra.mxu0 0.0
      %7253 = vmatpush.msra.mxu0 0.0
      %7254 = vmatpush.msra.mxu0 0.0
      %7255 = vmatpush.msra.mxu0 0.0
      %7256 = vmatpush.msra.mxu0 0.0
      %7257 = vmatpush.msra.mxu0 0.0
      %7258 = vmatpush.msra.mxu0 0.0
      %7259 = vmatpush.msra.mxu0 0.0
      %7260 = vmatpush.msra.mxu0 0.0
      %7261 = vmatpush.msra.mxu0 0.0
      %7262 = vmatpush.msra.mxu0 0.0
      %7263 = vmatpush.msra.mxu0 0.0
      %7264 = vmatpush.msra.mxu0 0.0
      %7265 = vmatpush.msra.mxu0 %v7155
      %7266 = vmatpush.msra.mxu0 %v7147
      %7267 = vmatmul.f32.gmra.mxu0 %v7177
      %v7268 = vpop.f32.mrf.mxu0
      %v7269 = vadd.f32 %v7169, %v7268
      %7270 = vmatmul.f32.gmra.mxu0 %v7180
      %v7271 = vpop.f32.mrf.mxu0
      %v7272 = vadd.f32 %v7174, %v7271
      %7273 = vdwg.mxu0
      %7274 = vmatpush.msra.mxu0 0.0
      %7275 = vmatpush.msra.mxu0 0.0
      %7276 = vmatpush.msra.mxu0 0.0
      %7277 = vmatpush.msra.mxu0 0.0
      %7278 = vmatpush.msra.mxu0 0.0
      %7279 = vmatpush.msra.mxu0 0.0
      %7280 = vmatpush.msra.mxu0 0.0
      %7281 = vmatpush.msra.mxu0 0.0
      %7282 = vmatpush.msra.mxu0 0.0
      %7283 = vmatpush.msra.mxu0 0.0
      %7284 = vmatpush.msra.mxu0 0.0
      %7285 = vmatpush.msra.mxu0 0.0
      %7286 = vmatpush.msra.mxu0 0.0
      %7287 = vmatpush.msra.mxu0 0.0
      %7288 = vmatpush.msra.mxu0 %v7156
      %7289 = vmatpush.msra.mxu0 %v7148
      %7290 = vmatmul.f32.gmra.mxu0 %v7177
      %v7291 = vpop.f32.mrf.mxu0
      %v7292 = vadd.f32 %v7169, %v7291
      %7293 = vmatmul.f32.gmra.mxu0 %v7180
      %v7294 = vpop.f32.mrf.mxu0
      %v7295 = vadd.f32 %v7174, %v7294
      %7296 = vdwg.mxu0
      %7297 = vmatpush.msra.mxu0 0.0
      %7298 = vmatpush.msra.mxu0 0.0
      %7299 = vmatpush.msra.mxu0 0.0
      %7300 = vmatpush.msra.mxu0 0.0
      %7301 = vmatpush.msra.mxu0 0.0
      %7302 = vmatpush.msra.mxu0 0.0
      %7303 = vmatpush.msra.mxu0 0.0
      %7304 = vmatpush.msra.mxu0 0.0
      %7305 = vmatpush.msra.mxu0 0.0
      %7306 = vmatpush.msra.mxu0 0.0
      %7307 = vmatpush.msra.mxu0 0.0
      %7308 = vmatpush.msra.mxu0 0.0
      %7309 = vmatpush.msra.mxu0 0.0
      %7310 = vmatpush.msra.mxu0 0.0
      %7311 = vmatpush.msra.mxu0 %v7157
      %7312 = vmatpush.msra.mxu0 %v7149
      %7313 = vmatmul.f32.gmra.mxu0 %v7177
      %v7314 = vpop.f32.mrf.mxu0
      %v7315 = vadd.f32 %v7169, %v7314
      %7316 = vmatmul.f32.gmra.mxu0 %v7180
      %v7317 = vpop.f32.mrf.mxu0
      %v7318 = vadd.f32 %v7174, %v7317
      %7319 = vdwg.mxu0
      %7320 = vmatpush.msra.mxu0 0.0
      %7321 = vmatpush.msra.mxu0 0.0
      %7322 = vmatpush.msra.mxu0 0.0
      %7323 = vmatpush.msra.mxu0 0.0
      %7324 = vmatpush.msra.mxu0 0.0
      %7325 = vmatpush.msra.mxu0 0.0
      %7326 = vmatpush.msra.mxu0 0.0
      %7327 = vmatpush.msra.mxu0 0.0
      %7328 = vmatpush.msra.mxu0 0.0
      %7329 = vmatpush.msra.mxu0 0.0
      %7330 = vmatpush.msra.mxu0 0.0
      %7331 = vmatpush.msra.mxu0 0.0
      %7332 = vmatpush.msra.mxu0 0.0
      %7333 = vmatpush.msra.mxu0 0.0
      %7334 = vmatpush.msra.mxu0 %v7158
      %7335 = vmatpush.msra.mxu0 %v7150
      %7336 = vmatmul.f32.gmra.mxu0 %v7177
      %v7337 = vpop.f32.mrf.mxu0
      %v7338 = vadd.f32 %v7169, %v7337
      %7339 = vmatmul.f32.gmra.mxu0 %v7180
      %v7340 = vpop.f32.mrf.mxu0
      %v7341 = vadd.f32 %v7174, %v7340
      %7342 = vdwg.mxu0
      %7343 = vmatpush.msra.mxu0 0.0
      %7344 = vmatpush.msra.mxu0 0.0
      %7345 = vmatpush.msra.mxu0 0.0
      %7346 = vmatpush.msra.mxu0 0.0
      %7347 = vmatpush.msra.mxu0 0.0
      %7348 = vmatpush.msra.mxu0 0.0
      %7349 = vmatpush.msra.mxu0 0.0
      %7350 = vmatpush.msra.mxu0 0.0
      %7351 = vmatpush.msra.mxu0 0.0
      %7352 = vmatpush.msra.mxu0 0.0
      %7353 = vmatpush.msra.mxu0 0.0
      %7354 = vmatpush.msra.mxu0 0.0
      %7355 = vmatpush.msra.mxu0 0.0
      %7356 = vmatpush.msra.mxu0 0.0
      %7357 = vmatpush.msra.mxu0 %v7159
      %7358 = vmatpush.msra.mxu0 %v7151
      %7359 = vmatmul.f32.gmra.mxu0 %v7177
      %v7360 = vpop.f32.mrf.mxu0
      %v7361 = vadd.f32 %v7169, %v7360
      %7362 = vmatmul.f32.gmra.mxu0 %v7180
      %v7363 = vpop.f32.mrf.mxu0
      %v7364 = vadd.f32 %v7174, %v7363
      %7365 = vdwg.mxu0
      %v7366 = vmax.f32 %v7200, 0.0
      %v7367 = vmax.f32 %v7223, 0.0
      %v7368 = vmax.f32 %v7246, 0.0
      %v7369 = vmax.f32 %v7269, 0.0
      %v7370 = vmax.f32 %v7292, 0.0
      %v7371 = vmax.f32 %v7315, 0.0
      %v7372 = vmax.f32 %v7338, 0.0
      %v7373 = vmax.f32 %v7361, 0.0
      %v7374 = vmax.f32 %v7203, 0.0
      %v7375 = vmax.f32 %v7226, 0.0
      %v7376 = vmax.f32 %v7249, 0.0
      %v7377 = vmax.f32 %v7272, 0.0
      %v7378 = vmax.f32 %v7295, 0.0
      %v7379 = vmax.f32 %v7318, 0.0
      %v7380 = vmax.f32 %v7341, 0.0
      %v7381 = vmax.f32 %v7364, 0.0
      %s7382 = scalar_lea.vmem %s8, 64
      %v7383 = vld [vmem:[%s7382] sm:$0xff]
      %v7384 = vld [vmem:[%s7382 + $0x8] sm:$0xff]
      %s7385 = scalar_lea.vmem %s9, 64
      %v7386 = vld [vmem:[%s7385] sm:$0xff]
      %v7387 = vld [vmem:[%s7385 + $0x8] sm:$0xff]
      %7389 = vset.pattern.permute.xlu0 0
      %7390 = vperm.xlu0 %7389, %v7386
      %v7391 = vpop.permute.xlu0 %7390
      %7394 = vset.pattern.permute.xlu0 0
      %7395 = vperm.xlu0 %7394, %v7387
      %v7396 = vpop.permute.xlu0 %7395
      %v7399 = vsel %vm6509, %v7383, 0
      %v7402 = vsel %vm6509, %v7384, 0
      %7404 = vmatpush.msra.mxu0 0.0
      %7405 = vmatpush.msra.mxu0 0.0
      %7406 = vmatpush.msra.mxu0 0.0
      %7407 = vmatpush.msra.mxu0 0.0
      %7408 = vmatpush.msra.mxu0 0.0
      %7409 = vmatpush.msra.mxu0 0.0
      %7410 = vmatpush.msra.mxu0 0.0
      %7411 = vmatpush.msra.mxu0 0.0
      %7412 = vmatpush.msra.mxu0 0.0
      %7413 = vmatpush.msra.mxu0 0.0
      %7414 = vmatpush.msra.mxu0 0.0
      %7415 = vmatpush.msra.mxu0 0.0
      %7416 = vmatpush.msra.mxu0 0.0
      %7417 = vmatpush.msra.mxu0 0.0
      %7418 = vmatpush.msra.mxu0 %v7374
      %7419 = vmatpush.msra.mxu0 %v7366
      %7420 = vmatmul.f32.gmra.mxu0 %v7399
      %v7421 = vpop.f32.mrf.mxu0
      %v7422 = vadd.f32 %v7391, %v7421
      %7423 = vmatmul.f32.gmra.mxu0 %v7402
      %v7424 = vpop.f32.mrf.mxu0
      %v7425 = vadd.f32 %v7396, %v7424
      %7426 = vdwg.mxu0
      %7427 = vmatpush.msra.mxu0 0.0
      %7428 = vmatpush.msra.mxu0 0.0
      %7429 = vmatpush.msra.mxu0 0.0
      %7430 = vmatpush.msra.mxu0 0.0
      %7431 = vmatpush.msra.mxu0 0.0
      %7432 = vmatpush.msra.mxu0 0.0
      %7433 = vmatpush.msra.mxu0 0.0
      %7434 = vmatpush.msra.mxu0 0.0
      %7435 = vmatpush.msra.mxu0 0.0
      %7436 = vmatpush.msra.mxu0 0.0
      %7437 = vmatpush.msra.mxu0 0.0
      %7438 = vmatpush.msra.mxu0 0.0
      %7439 = vmatpush.msra.mxu0 0.0
      %7440 = vmatpush.msra.mxu0 0.0
      %7441 = vmatpush.msra.mxu0 %v7375
      %7442 = vmatpush.msra.mxu0 %v7367
      %7443 = vmatmul.f32.gmra.mxu0 %v7399
      %v7444 = vpop.f32.mrf.mxu0
      %v7445 = vadd.f32 %v7391, %v7444
      %7446 = vmatmul.f32.gmra.mxu0 %v7402
      %v7447 = vpop.f32.mrf.mxu0
      %v7448 = vadd.f32 %v7396, %v7447
      %7449 = vdwg.mxu0
      %7450 = vmatpush.msra.mxu0 0.0
      %7451 = vmatpush.msra.mxu0 0.0
      %7452 = vmatpush.msra.mxu0 0.0
      %7453 = vmatpush.msra.mxu0 0.0
      %7454 = vmatpush.msra.mxu0 0.0
      %7455 = vmatpush.msra.mxu0 0.0
      %7456 = vmatpush.msra.mxu0 0.0
      %7457 = vmatpush.msra.mxu0 0.0
      %7458 = vmatpush.msra.mxu0 0.0
      %7459 = vmatpush.msra.mxu0 0.0
      %7460 = vmatpush.msra.mxu0 0.0
      %7461 = vmatpush.msra.mxu0 0.0
      %7462 = vmatpush.msra.mxu0 0.0
      %7463 = vmatpush.msra.mxu0 0.0
      %7464 = vmatpush.msra.mxu0 %v7376
      %7465 = vmatpush.msra.mxu0 %v7368
      %7466 = vmatmul.f32.gmra.mxu0 %v7399
      %v7467 = vpop.f32.mrf.mxu0
      %v7468 = vadd.f32 %v7391, %v7467
      %7469 = vmatmul.f32.gmra.mxu0 %v7402
      %v7470 = vpop.f32.mrf.mxu0
      %v7471 = vadd.f32 %v7396, %v7470
      %7472 = vdwg.mxu0
      %7473 = vmatpush.msra.mxu0 0.0
      %7474 = vmatpush.msra.mxu0 0.0
      %7475 = vmatpush.msra.mxu0 0.0
      %7476 = vmatpush.msra.mxu0 0.0
      %7477 = vmatpush.msra.mxu0 0.0
      %7478 = vmatpush.msra.mxu0 0.0
      %7479 = vmatpush.msra.mxu0 0.0
      %7480 = vmatpush.msra.mxu0 0.0
      %7481 = vmatpush.msra.mxu0 0.0
      %7482 = vmatpush.msra.mxu0 0.0
      %7483 = vmatpush.msra.mxu0 0.0
      %7484 = vmatpush.msra.mxu0 0.0
      %7485 = vmatpush.msra.mxu0 0.0
      %7486 = vmatpush.msra.mxu0 0.0
      %7487 = vmatpush.msra.mxu0 %v7377
      %7488 = vmatpush.msra.mxu0 %v7369
      %7489 = vmatmul.f32.gmra.mxu0 %v7399
      %v7490 = vpop.f32.mrf.mxu0
      %v7491 = vadd.f32 %v7391, %v7490
      %7492 = vmatmul.f32.gmra.mxu0 %v7402
      %v7493 = vpop.f32.mrf.mxu0
      %v7494 = vadd.f32 %v7396, %v7493
      %7495 = vdwg.mxu0
      %7496 = vmatpush.msra.mxu0 0.0
      %7497 = vmatpush.msra.mxu0 0.0
      %7498 = vmatpush.msra.mxu0 0.0
      %7499 = vmatpush.msra.mxu0 0.0
      %7500 = vmatpush.msra.mxu0 0.0
      %7501 = vmatpush.msra.mxu0 0.0
      %7502 = vmatpush.msra.mxu0 0.0
      %7503 = vmatpush.msra.mxu0 0.0
      %7504 = vmatpush.msra.mxu0 0.0
      %7505 = vmatpush.msra.mxu0 0.0
      %7506 = vmatpush.msra.mxu0 0.0
      %7507 = vmatpush.msra.mxu0 0.0
      %7508 = vmatpush.msra.mxu0 0.0
      %7509 = vmatpush.msra.mxu0 0.0
      %7510 = vmatpush.msra.mxu0 %v7378
      %7511 = vmatpush.msra.mxu0 %v7370
      %7512 = vmatmul.f32.gmra.mxu0 %v7399
      %v7513 = vpop.f32.mrf.mxu0
      %v7514 = vadd.f32 %v7391, %v7513
      %7515 = vmatmul.f32.gmra.mxu0 %v7402
      %v7516 = vpop.f32.mrf.mxu0
      %v7517 = vadd.f32 %v7396, %v7516
      %7518 = vdwg.mxu0
      %7519 = vmatpush.msra.mxu0 0.0
      %7520 = vmatpush.msra.mxu0 0.0
      %7521 = vmatpush.msra.mxu0 0.0
      %7522 = vmatpush.msra.mxu0 0.0
      %7523 = vmatpush.msra.mxu0 0.0
      %7524 = vmatpush.msra.mxu0 0.0
      %7525 = vmatpush.msra.mxu0 0.0
      %7526 = vmatpush.msra.mxu0 0.0
      %7527 = vmatpush.msra.mxu0 0.0
      %7528 = vmatpush.msra.mxu0 0.0
      %7529 = vmatpush.msra.mxu0 0.0
      %7530 = vmatpush.msra.mxu0 0.0
      %7531 = vmatpush.msra.mxu0 0.0
      %7532 = vmatpush.msra.mxu0 0.0
      %7533 = vmatpush.msra.mxu0 %v7379
      %7534 = vmatpush.msra.mxu0 %v7371
      %7535 = vmatmul.f32.gmra.mxu0 %v7399
      %v7536 = vpop.f32.mrf.mxu0
      %v7537 = vadd.f32 %v7391, %v7536
      %7538 = vmatmul.f32.gmra.mxu0 %v7402
      %v7539 = vpop.f32.mrf.mxu0
      %v7540 = vadd.f32 %v7396, %v7539
      %7541 = vdwg.mxu0
      %7542 = vmatpush.msra.mxu0 0.0
      %7543 = vmatpush.msra.mxu0 0.0
      %7544 = vmatpush.msra.mxu0 0.0
      %7545 = vmatpush.msra.mxu0 0.0
      %7546 = vmatpush.msra.mxu0 0.0
      %7547 = vmatpush.msra.mxu0 0.0
      %7548 = vmatpush.msra.mxu0 0.0
      %7549 = vmatpush.msra.mxu0 0.0
      %7550 = vmatpush.msra.mxu0 0.0
      %7551 = vmatpush.msra.mxu0 0.0
      %7552 = vmatpush.msra.mxu0 0.0
      %7553 = vmatpush.msra.mxu0 0.0
      %7554 = vmatpush.msra.mxu0 0.0
      %7555 = vmatpush.msra.mxu0 0.0
      %7556 = vmatpush.msra.mxu0 %v7380
      %7557 = vmatpush.msra.mxu0 %v7372
      %7558 = vmatmul.f32.gmra.mxu0 %v7399
      %v7559 = vpop.f32.mrf.mxu0
      %v7560 = vadd.f32 %v7391, %v7559
      %7561 = vmatmul.f32.gmra.mxu0 %v7402
      %v7562 = vpop.f32.mrf.mxu0
      %v7563 = vadd.f32 %v7396, %v7562
      %7564 = vdwg.mxu0
      %7565 = vmatpush.msra.mxu0 0.0
      %7566 = vmatpush.msra.mxu0 0.0
      %7567 = vmatpush.msra.mxu0 0.0
      %7568 = vmatpush.msra.mxu0 0.0
      %7569 = vmatpush.msra.mxu0 0.0
      %7570 = vmatpush.msra.mxu0 0.0
      %7571 = vmatpush.msra.mxu0 0.0
      %7572 = vmatpush.msra.mxu0 0.0
      %7573 = vmatpush.msra.mxu0 0.0
      %7574 = vmatpush.msra.mxu0 0.0
      %7575 = vmatpush.msra.mxu0 0.0
      %7576 = vmatpush.msra.mxu0 0.0
      %7577 = vmatpush.msra.mxu0 0.0
      %7578 = vmatpush.msra.mxu0 0.0
      %7579 = vmatpush.msra.mxu0 %v7381
      %7580 = vmatpush.msra.mxu0 %v7373
      %7581 = vmatmul.f32.gmra.mxu0 %v7399
      %v7582 = vpop.f32.mrf.mxu0
      %v7583 = vadd.f32 %v7391, %v7582
      %7584 = vmatmul.f32.gmra.mxu0 %v7402
      %v7585 = vpop.f32.mrf.mxu0
      %v7586 = vadd.f32 %v7396, %v7585
      %7587 = vdwg.mxu0
      %v7588 = vmax.f32 %v7422, 0.0
      %v7589 = vmax.f32 %v7445, 0.0
      %v7590 = vmax.f32 %v7468, 0.0
      %v7591 = vmax.f32 %v7491, 0.0
      %v7592 = vmax.f32 %v7514, 0.0
      %v7593 = vmax.f32 %v7537, 0.0
      %v7594 = vmax.f32 %v7560, 0.0
      %v7595 = vmax.f32 %v7583, 0.0
      %v7596 = vmax.f32 %v7425, 0.0
      %v7597 = vmax.f32 %v7448, 0.0
      %v7598 = vmax.f32 %v7471, 0.0
      %v7599 = vmax.f32 %v7494, 0.0
      %v7600 = vmax.f32 %v7517, 0.0
      %v7601 = vmax.f32 %v7540, 0.0
      %v7602 = vmax.f32 %v7563, 0.0
      %v7603 = vmax.f32 %v7586, 0.0
      %s7604 = scalar_lea.vmem %s8, 80
      %v7605 = vld [vmem:[%s7604] sm:$0xff]
      %v7606 = vld [vmem:[%s7604 + $0x8] sm:$0xff]
      %s7607 = scalar_lea.vmem %s9, 80
      %v7608 = vld [vmem:[%s7607] sm:$0xff]
      %v7609 = vld [vmem:[%s7607 + $0x8] sm:$0xff]
      %7611 = vset.pattern.permute.xlu0 0
      %7612 = vperm.xlu0 %7611, %v7608
      %v7613 = vpop.permute.xlu0 %7612
      %7616 = vset.pattern.permute.xlu0 0
      %7617 = vperm.xlu0 %7616, %v7609
      %v7618 = vpop.permute.xlu0 %7617
      %v7621 = vsel %vm6509, %v7605, 0
      %v7624 = vsel %vm6509, %v7606, 0
      %7626 = vmatpush.msra.mxu0 0.0
      %7627 = vmatpush.msra.mxu0 0.0
      %7628 = vmatpush.msra.mxu0 0.0
      %7629 = vmatpush.msra.mxu0 0.0
      %7630 = vmatpush.msra.mxu0 0.0
      %7631 = vmatpush.msra.mxu0 0.0
      %7632 = vmatpush.msra.mxu0 0.0
      %7633 = vmatpush.msra.mxu0 0.0
      %7634 = vmatpush.msra.mxu0 0.0
      %7635 = vmatpush.msra.mxu0 0.0
      %7636 = vmatpush.msra.mxu0 0.0
      %7637 = vmatpush.msra.mxu0 0.0
      %7638 = vmatpush.msra.mxu0 0.0
      %7639 = vmatpush.msra.mxu0 0.0
      %7640 = vmatpush.msra.mxu0 %v7596
      %7641 = vmatpush.msra.mxu0 %v7588
      %7642 = vmatmul.f32.gmra.mxu0 %v7621
      %v7643 = vpop.f32.mrf.mxu0
      %v7644 = vadd.f32 %v7613, %v7643
      %7645 = vmatmul.f32.gmra.mxu0 %v7624
      %v7646 = vpop.f32.mrf.mxu0
      %v7647 = vadd.f32 %v7618, %v7646
      %7648 = vdwg.mxu0
      %7649 = vmatpush.msra.mxu0 0.0
      %7650 = vmatpush.msra.mxu0 0.0
      %7651 = vmatpush.msra.mxu0 0.0
      %7652 = vmatpush.msra.mxu0 0.0
      %7653 = vmatpush.msra.mxu0 0.0
      %7654 = vmatpush.msra.mxu0 0.0
      %7655 = vmatpush.msra.mxu0 0.0
      %7656 = vmatpush.msra.mxu0 0.0
      %7657 = vmatpush.msra.mxu0 0.0
      %7658 = vmatpush.msra.mxu0 0.0
      %7659 = vmatpush.msra.mxu0 0.0
      %7660 = vmatpush.msra.mxu0 0.0
      %7661 = vmatpush.msra.mxu0 0.0
      %7662 = vmatpush.msra.mxu0 0.0
      %7663 = vmatpush.msra.mxu0 %v7597
      %7664 = vmatpush.msra.mxu0 %v7589
      %7665 = vmatmul.f32.gmra.mxu0 %v7621
      %v7666 = vpop.f32.mrf.mxu0
      %v7667 = vadd.f32 %v7613, %v7666
      %7668 = vmatmul.f32.gmra.mxu0 %v7624
      %v7669 = vpop.f32.mrf.mxu0
      %v7670 = vadd.f32 %v7618, %v7669
      %7671 = vdwg.mxu0
      %7672 = vmatpush.msra.mxu0 0.0
      %7673 = vmatpush.msra.mxu0 0.0
      %7674 = vmatpush.msra.mxu0 0.0
      %7675 = vmatpush.msra.mxu0 0.0
      %7676 = vmatpush.msra.mxu0 0.0
      %7677 = vmatpush.msra.mxu0 0.0
      %7678 = vmatpush.msra.mxu0 0.0
      %7679 = vmatpush.msra.mxu0 0.0
      %7680 = vmatpush.msra.mxu0 0.0
      %7681 = vmatpush.msra.mxu0 0.0
      %7682 = vmatpush.msra.mxu0 0.0
      %7683 = vmatpush.msra.mxu0 0.0
      %7684 = vmatpush.msra.mxu0 0.0
      %7685 = vmatpush.msra.mxu0 0.0
      %7686 = vmatpush.msra.mxu0 %v7598
      %7687 = vmatpush.msra.mxu0 %v7590
      %7688 = vmatmul.f32.gmra.mxu0 %v7621
      %v7689 = vpop.f32.mrf.mxu0
      %v7690 = vadd.f32 %v7613, %v7689
      %7691 = vmatmul.f32.gmra.mxu0 %v7624
      %v7692 = vpop.f32.mrf.mxu0
      %v7693 = vadd.f32 %v7618, %v7692
      %7694 = vdwg.mxu0
      %7695 = vmatpush.msra.mxu0 0.0
      %7696 = vmatpush.msra.mxu0 0.0
      %7697 = vmatpush.msra.mxu0 0.0
      %7698 = vmatpush.msra.mxu0 0.0
      %7699 = vmatpush.msra.mxu0 0.0
      %7700 = vmatpush.msra.mxu0 0.0
      %7701 = vmatpush.msra.mxu0 0.0
      %7702 = vmatpush.msra.mxu0 0.0
      %7703 = vmatpush.msra.mxu0 0.0
      %7704 = vmatpush.msra.mxu0 0.0
      %7705 = vmatpush.msra.mxu0 0.0
      %7706 = vmatpush.msra.mxu0 0.0
      %7707 = vmatpush.msra.mxu0 0.0
      %7708 = vmatpush.msra.mxu0 0.0
      %7709 = vmatpush.msra.mxu0 %v7599
      %7710 = vmatpush.msra.mxu0 %v7591
      %7711 = vmatmul.f32.gmra.mxu0 %v7621
      %v7712 = vpop.f32.mrf.mxu0
      %v7713 = vadd.f32 %v7613, %v7712
      %7714 = vmatmul.f32.gmra.mxu0 %v7624
      %v7715 = vpop.f32.mrf.mxu0
      %v7716 = vadd.f32 %v7618, %v7715
      %7717 = vdwg.mxu0
      %7718 = vmatpush.msra.mxu0 0.0
      %7719 = vmatpush.msra.mxu0 0.0
      %7720 = vmatpush.msra.mxu0 0.0
      %7721 = vmatpush.msra.mxu0 0.0
      %7722 = vmatpush.msra.mxu0 0.0
      %7723 = vmatpush.msra.mxu0 0.0
      %7724 = vmatpush.msra.mxu0 0.0
      %7725 = vmatpush.msra.mxu0 0.0
      %7726 = vmatpush.msra.mxu0 0.0
      %7727 = vmatpush.msra.mxu0 0.0
      %7728 = vmatpush.msra.mxu0 0.0
      %7729 = vmatpush.msra.mxu0 0.0
      %7730 = vmatpush.msra.mxu0 0.0
      %7731 = vmatpush.msra.mxu0 0.0
      %7732 = vmatpush.msra.mxu0 %v7600
      %7733 = vmatpush.msra.mxu0 %v7592
      %7734 = vmatmul.f32.gmra.mxu0 %v7621
      %v7735 = vpop.f32.mrf.mxu0
      %v7736 = vadd.f32 %v7613, %v7735
      %7737 = vmatmul.f32.gmra.mxu0 %v7624
      %v7738 = vpop.f32.mrf.mxu0
      %v7739 = vadd.f32 %v7618, %v7738
      %7740 = vdwg.mxu0
      %7741 = vmatpush.msra.mxu0 0.0
      %7742 = vmatpush.msra.mxu0 0.0
      %7743 = vmatpush.msra.mxu0 0.0
      %7744 = vmatpush.msra.mxu0 0.0
      %7745 = vmatpush.msra.mxu0 0.0
      %7746 = vmatpush.msra.mxu0 0.0
      %7747 = vmatpush.msra.mxu0 0.0
      %7748 = vmatpush.msra.mxu0 0.0
      %7749 = vmatpush.msra.mxu0 0.0
      %7750 = vmatpush.msra.mxu0 0.0
      %7751 = vmatpush.msra.mxu0 0.0
      %7752 = vmatpush.msra.mxu0 0.0
      %7753 = vmatpush.msra.mxu0 0.0
      %7754 = vmatpush.msra.mxu0 0.0
      %7755 = vmatpush.msra.mxu0 %v7601
      %7756 = vmatpush.msra.mxu0 %v7593
      %7757 = vmatmul.f32.gmra.mxu0 %v7621
      %v7758 = vpop.f32.mrf.mxu0
      %v7759 = vadd.f32 %v7613, %v7758
      %7760 = vmatmul.f32.gmra.mxu0 %v7624
      %v7761 = vpop.f32.mrf.mxu0
      %v7762 = vadd.f32 %v7618, %v7761
      %7763 = vdwg.mxu0
      %7764 = vmatpush.msra.mxu0 0.0
      %7765 = vmatpush.msra.mxu0 0.0
      %7766 = vmatpush.msra.mxu0 0.0
      %7767 = vmatpush.msra.mxu0 0.0
      %7768 = vmatpush.msra.mxu0 0.0
      %7769 = vmatpush.msra.mxu0 0.0
      %7770 = vmatpush.msra.mxu0 0.0
      %7771 = vmatpush.msra.mxu0 0.0
      %7772 = vmatpush.msra.mxu0 0.0
      %7773 = vmatpush.msra.mxu0 0.0
      %7774 = vmatpush.msra.mxu0 0.0
      %7775 = vmatpush.msra.mxu0 0.0
      %7776 = vmatpush.msra.mxu0 0.0
      %7777 = vmatpush.msra.mxu0 0.0
      %7778 = vmatpush.msra.mxu0 %v7602
      %7779 = vmatpush.msra.mxu0 %v7594
      %7780 = vmatmul.f32.gmra.mxu0 %v7621
      %v7781 = vpop.f32.mrf.mxu0
      %v7782 = vadd.f32 %v7613, %v7781
      %7783 = vmatmul.f32.gmra.mxu0 %v7624
      %v7784 = vpop.f32.mrf.mxu0
      %v7785 = vadd.f32 %v7618, %v7784
      %7786 = vdwg.mxu0
      %7787 = vmatpush.msra.mxu0 0.0
      %7788 = vmatpush.msra.mxu0 0.0
      %7789 = vmatpush.msra.mxu0 0.0
      %7790 = vmatpush.msra.mxu0 0.0
      %7791 = vmatpush.msra.mxu0 0.0
      %7792 = vmatpush.msra.mxu0 0.0
      %7793 = vmatpush.msra.mxu0 0.0
      %7794 = vmatpush.msra.mxu0 0.0
      %7795 = vmatpush.msra.mxu0 0.0
      %7796 = vmatpush.msra.mxu0 0.0
      %7797 = vmatpush.msra.mxu0 0.0
      %7798 = vmatpush.msra.mxu0 0.0
      %7799 = vmatpush.msra.mxu0 0.0
      %7800 = vmatpush.msra.mxu0 0.0
      %7801 = vmatpush.msra.mxu0 %v7603
      %7802 = vmatpush.msra.mxu0 %v7595
      %7803 = vmatmul.f32.gmra.mxu0 %v7621
      %v7804 = vpop.f32.mrf.mxu0
      %v7805 = vadd.f32 %v7613, %v7804
      %7806 = vmatmul.f32.gmra.mxu0 %v7624
      %v7807 = vpop.f32.mrf.mxu0
      %v7808 = vadd.f32 %v7618, %v7807
      %7809 = vdwg.mxu0
      %v7810 = vmax.f32 %v7644, 0.0
      %v7811 = vmax.f32 %v7667, 0.0
      %v7812 = vmax.f32 %v7690, 0.0
      %v7813 = vmax.f32 %v7713, 0.0
      %v7814 = vmax.f32 %v7736, 0.0
      %v7815 = vmax.f32 %v7759, 0.0
      %v7816 = vmax.f32 %v7782, 0.0
      %v7817 = vmax.f32 %v7805, 0.0
      %v7818 = vmax.f32 %v7647, 0.0
      %v7819 = vmax.f32 %v7670, 0.0
      %v7820 = vmax.f32 %v7693, 0.0
      %v7821 = vmax.f32 %v7716, 0.0
      %v7822 = vmax.f32 %v7739, 0.0
      %v7823 = vmax.f32 %v7762, 0.0
      %v7824 = vmax.f32 %v7785, 0.0
      %v7825 = vmax.f32 %v7808, 0.0
      %s7826 = scalar_lea.vmem %s8, 96
      %v7827 = vld [vmem:[%s7826] sm:$0xff]
      %v7828 = vld [vmem:[%s7826 + $0x8] sm:$0xff]
      %s7829 = scalar_lea.vmem %s9, 96
      %v7830 = vld [vmem:[%s7829] sm:$0xff]
      %v7831 = vld [vmem:[%s7829 + $0x8] sm:$0xff]
      %7833 = vset.pattern.permute.xlu0 0
      %7834 = vperm.xlu0 %7833, %v7830
      %v7835 = vpop.permute.xlu0 %7834
      %7838 = vset.pattern.permute.xlu0 0
      %7839 = vperm.xlu0 %7838, %v7831
      %v7840 = vpop.permute.xlu0 %7839
      %v7843 = vsel %vm6509, %v7827, 0
      %v7846 = vsel %vm6509, %v7828, 0
      %7848 = vmatpush.msra.mxu0 0.0
      %7849 = vmatpush.msra.mxu0 0.0
      %7850 = vmatpush.msra.mxu0 0.0
      %7851 = vmatpush.msra.mxu0 0.0
      %7852 = vmatpush.msra.mxu0 0.0
      %7853 = vmatpush.msra.mxu0 0.0
      %7854 = vmatpush.msra.mxu0 0.0
      %7855 = vmatpush.msra.mxu0 0.0
      %7856 = vmatpush.msra.mxu0 0.0
      %7857 = vmatpush.msra.mxu0 0.0
      %7858 = vmatpush.msra.mxu0 0.0
      %7859 = vmatpush.msra.mxu0 0.0
      %7860 = vmatpush.msra.mxu0 0.0
      %7861 = vmatpush.msra.mxu0 0.0
      %7862 = vmatpush.msra.mxu0 %v7818
      %7863 = vmatpush.msra.mxu0 %v7810
      %7864 = vmatmul.f32.gmra.mxu0 %v7843
      %v7865 = vpop.f32.mrf.mxu0
      %v7866 = vadd.f32 %v7835, %v7865
      %7867 = vmatmul.f32.gmra.mxu0 %v7846
      %v7868 = vpop.f32.mrf.mxu0
      %v7869 = vadd.f32 %v7840, %v7868
      %7870 = vdwg.mxu0
      %7871 = vmatpush.msra.mxu0 0.0
      %7872 = vmatpush.msra.mxu0 0.0
      %7873 = vmatpush.msra.mxu0 0.0
      %7874 = vmatpush.msra.mxu0 0.0
      %7875 = vmatpush.msra.mxu0 0.0
      %7876 = vmatpush.msra.mxu0 0.0
      %7877 = vmatpush.msra.mxu0 0.0
      %7878 = vmatpush.msra.mxu0 0.0
      %7879 = vmatpush.msra.mxu0 0.0
      %7880 = vmatpush.msra.mxu0 0.0
      %7881 = vmatpush.msra.mxu0 0.0
      %7882 = vmatpush.msra.mxu0 0.0
      %7883 = vmatpush.msra.mxu0 0.0
      %7884 = vmatpush.msra.mxu0 0.0
      %7885 = vmatpush.msra.mxu0 %v7819
      %7886 = vmatpush.msra.mxu0 %v7811
      %7887 = vmatmul.f32.gmra.mxu0 %v7843
      %v7888 = vpop.f32.mrf.mxu0
      %v7889 = vadd.f32 %v7835, %v7888
      %7890 = vmatmul.f32.gmra.mxu0 %v7846
      %v7891 = vpop.f32.mrf.mxu0
      %v7892 = vadd.f32 %v7840, %v7891
      %7893 = vdwg.mxu0
      %7894 = vmatpush.msra.mxu0 0.0
      %7895 = vmatpush.msra.mxu0 0.0
      %7896 = vmatpush.msra.mxu0 0.0
      %7897 = vmatpush.msra.mxu0 0.0
      %7898 = vmatpush.msra.mxu0 0.0
      %7899 = vmatpush.msra.mxu0 0.0
      %7900 = vmatpush.msra.mxu0 0.0
      %7901 = vmatpush.msra.mxu0 0.0
      %7902 = vmatpush.msra.mxu0 0.0
      %7903 = vmatpush.msra.mxu0 0.0
      %7904 = vmatpush.msra.mxu0 0.0
      %7905 = vmatpush.msra.mxu0 0.0
      %7906 = vmatpush.msra.mxu0 0.0
      %7907 = vmatpush.msra.mxu0 0.0
      %7908 = vmatpush.msra.mxu0 %v7820
      %7909 = vmatpush.msra.mxu0 %v7812
      %7910 = vmatmul.f32.gmra.mxu0 %v7843
      %v7911 = vpop.f32.mrf.mxu0
      %v7912 = vadd.f32 %v7835, %v7911
      %7913 = vmatmul.f32.gmra.mxu0 %v7846
      %v7914 = vpop.f32.mrf.mxu0
      %v7915 = vadd.f32 %v7840, %v7914
      %7916 = vdwg.mxu0
      %7917 = vmatpush.msra.mxu0 0.0
      %7918 = vmatpush.msra.mxu0 0.0
      %7919 = vmatpush.msra.mxu0 0.0
      %7920 = vmatpush.msra.mxu0 0.0
      %7921 = vmatpush.msra.mxu0 0.0
      %7922 = vmatpush.msra.mxu0 0.0
      %7923 = vmatpush.msra.mxu0 0.0
      %7924 = vmatpush.msra.mxu0 0.0
      %7925 = vmatpush.msra.mxu0 0.0
      %7926 = vmatpush.msra.mxu0 0.0
      %7927 = vmatpush.msra.mxu0 0.0
      %7928 = vmatpush.msra.mxu0 0.0
      %7929 = vmatpush.msra.mxu0 0.0
      %7930 = vmatpush.msra.mxu0 0.0
      %7931 = vmatpush.msra.mxu0 %v7821
      %7932 = vmatpush.msra.mxu0 %v7813
      %7933 = vmatmul.f32.gmra.mxu0 %v7843
      %v7934 = vpop.f32.mrf.mxu0
      %v7935 = vadd.f32 %v7835, %v7934
      %7936 = vmatmul.f32.gmra.mxu0 %v7846
      %v7937 = vpop.f32.mrf.mxu0
      %v7938 = vadd.f32 %v7840, %v7937
      %7939 = vdwg.mxu0
      %7940 = vmatpush.msra.mxu0 0.0
      %7941 = vmatpush.msra.mxu0 0.0
      %7942 = vmatpush.msra.mxu0 0.0
      %7943 = vmatpush.msra.mxu0 0.0
      %7944 = vmatpush.msra.mxu0 0.0
      %7945 = vmatpush.msra.mxu0 0.0
      %7946 = vmatpush.msra.mxu0 0.0
      %7947 = vmatpush.msra.mxu0 0.0
      %7948 = vmatpush.msra.mxu0 0.0
      %7949 = vmatpush.msra.mxu0 0.0
      %7950 = vmatpush.msra.mxu0 0.0
      %7951 = vmatpush.msra.mxu0 0.0
      %7952 = vmatpush.msra.mxu0 0.0
      %7953 = vmatpush.msra.mxu0 0.0
      %7954 = vmatpush.msra.mxu0 %v7822
      %7955 = vmatpush.msra.mxu0 %v7814
      %7956 = vmatmul.f32.gmra.mxu0 %v7843
      %v7957 = vpop.f32.mrf.mxu0
      %v7958 = vadd.f32 %v7835, %v7957
      %7959 = vmatmul.f32.gmra.mxu0 %v7846
      %v7960 = vpop.f32.mrf.mxu0
      %v7961 = vadd.f32 %v7840, %v7960
      %7962 = vdwg.mxu0
      %7963 = vmatpush.msra.mxu0 0.0
      %7964 = vmatpush.msra.mxu0 0.0
      %7965 = vmatpush.msra.mxu0 0.0
      %7966 = vmatpush.msra.mxu0 0.0
      %7967 = vmatpush.msra.mxu0 0.0
      %7968 = vmatpush.msra.mxu0 0.0
      %7969 = vmatpush.msra.mxu0 0.0
      %7970 = vmatpush.msra.mxu0 0.0
      %7971 = vmatpush.msra.mxu0 0.0
      %7972 = vmatpush.msra.mxu0 0.0
      %7973 = vmatpush.msra.mxu0 0.0
      %7974 = vmatpush.msra.mxu0 0.0
      %7975 = vmatpush.msra.mxu0 0.0
      %7976 = vmatpush.msra.mxu0 0.0
      %7977 = vmatpush.msra.mxu0 %v7823
      %7978 = vmatpush.msra.mxu0 %v7815
      %7979 = vmatmul.f32.gmra.mxu0 %v7843
      %v7980 = vpop.f32.mrf.mxu0
      %v7981 = vadd.f32 %v7835, %v7980
      %7982 = vmatmul.f32.gmra.mxu0 %v7846
      %v7983 = vpop.f32.mrf.mxu0
      %v7984 = vadd.f32 %v7840, %v7983
      %7985 = vdwg.mxu0
      %7986 = vmatpush.msra.mxu0 0.0
      %7987 = vmatpush.msra.mxu0 0.0
      %7988 = vmatpush.msra.mxu0 0.0
      %7989 = vmatpush.msra.mxu0 0.0
      %7990 = vmatpush.msra.mxu0 0.0
      %7991 = vmatpush.msra.mxu0 0.0
      %7992 = vmatpush.msra.mxu0 0.0
      %7993 = vmatpush.msra.mxu0 0.0
      %7994 = vmatpush.msra.mxu0 0.0
      %7995 = vmatpush.msra.mxu0 0.0
      %7996 = vmatpush.msra.mxu0 0.0
      %7997 = vmatpush.msra.mxu0 0.0
      %7998 = vmatpush.msra.mxu0 0.0
      %7999 = vmatpush.msra.mxu0 0.0
      %8000 = vmatpush.msra.mxu0 %v7824
      %8001 = vmatpush.msra.mxu0 %v7816
      %8002 = vmatmul.f32.gmra.mxu0 %v7843
      %v8003 = vpop.f32.mrf.mxu0
      %v8004 = vadd.f32 %v7835, %v8003
      %8005 = vmatmul.f32.gmra.mxu0 %v7846
      %v8006 = vpop.f32.mrf.mxu0
      %v8007 = vadd.f32 %v7840, %v8006
      %8008 = vdwg.mxu0
      %8009 = vmatpush.msra.mxu0 0.0
      %8010 = vmatpush.msra.mxu0 0.0
      %8011 = vmatpush.msra.mxu0 0.0
      %8012 = vmatpush.msra.mxu0 0.0
      %8013 = vmatpush.msra.mxu0 0.0
      %8014 = vmatpush.msra.mxu0 0.0
      %8015 = vmatpush.msra.mxu0 0.0
      %8016 = vmatpush.msra.mxu0 0.0
      %8017 = vmatpush.msra.mxu0 0.0
      %8018 = vmatpush.msra.mxu0 0.0
      %8019 = vmatpush.msra.mxu0 0.0
      %8020 = vmatpush.msra.mxu0 0.0
      %8021 = vmatpush.msra.mxu0 0.0
      %8022 = vmatpush.msra.mxu0 0.0
      %8023 = vmatpush.msra.mxu0 %v7825
      %8024 = vmatpush.msra.mxu0 %v7817
      %8025 = vmatmul.f32.gmra.mxu0 %v7843
      %v8026 = vpop.f32.mrf.mxu0
      %v8027 = vadd.f32 %v7835, %v8026
      %8028 = vmatmul.f32.gmra.mxu0 %v7846
      %v8029 = vpop.f32.mrf.mxu0
      %v8030 = vadd.f32 %v7840, %v8029
      %8031 = vdwg.mxu0
      %v8032 = vmax.f32 %v7866, 0.0
      %v8033 = vmax.f32 %v7889, 0.0
      %v8034 = vmax.f32 %v7912, 0.0
      %v8035 = vmax.f32 %v7935, 0.0
      %v8036 = vmax.f32 %v7958, 0.0
      %v8037 = vmax.f32 %v7981, 0.0
      %v8038 = vmax.f32 %v8004, 0.0
      %v8039 = vmax.f32 %v8027, 0.0
      %v8040 = vmax.f32 %v7869, 0.0
      %v8041 = vmax.f32 %v7892, 0.0
      %v8042 = vmax.f32 %v7915, 0.0
      %v8043 = vmax.f32 %v7938, 0.0
      %v8044 = vmax.f32 %v7961, 0.0
      %v8045 = vmax.f32 %v7984, 0.0
      %v8046 = vmax.f32 %v8007, 0.0
      %v8047 = vmax.f32 %v8030, 0.0
      %s8048 = scalar_lea.vmem %s8, 112
      %v8049 = vld [vmem:[%s8048] sm:$0xff]
      %v8050 = vld [vmem:[%s8048 + $0x8] sm:$0xff]
      %s8051 = scalar_lea.vmem %s9, 112
      %v8052 = vld [vmem:[%s8051] sm:$0xff]
      %v8053 = vld [vmem:[%s8051 + $0x8] sm:$0xff]
      %8055 = vset.pattern.permute.xlu0 0
      %8056 = vperm.xlu0 %8055, %v8052
      %v8057 = vpop.permute.xlu0 %8056
      %8060 = vset.pattern.permute.xlu0 0
      %8061 = vperm.xlu0 %8060, %v8053
      %v8062 = vpop.permute.xlu0 %8061
      %v8065 = vsel %vm6509, %v8049, 0
      %v8068 = vsel %vm6509, %v8050, 0
      %8070 = vmatpush.msra.mxu0 0.0
      %8071 = vmatpush.msra.mxu0 0.0
      %8072 = vmatpush.msra.mxu0 0.0
      %8073 = vmatpush.msra.mxu0 0.0
      %8074 = vmatpush.msra.mxu0 0.0
      %8075 = vmatpush.msra.mxu0 0.0
      %8076 = vmatpush.msra.mxu0 0.0
      %8077 = vmatpush.msra.mxu0 0.0
      %8078 = vmatpush.msra.mxu0 0.0
      %8079 = vmatpush.msra.mxu0 0.0
      %8080 = vmatpush.msra.mxu0 0.0
      %8081 = vmatpush.msra.mxu0 0.0
      %8082 = vmatpush.msra.mxu0 0.0
      %8083 = vmatpush.msra.mxu0 0.0
      %8084 = vmatpush.msra.mxu0 %v8040
      %8085 = vmatpush.msra.mxu0 %v8032
      %8086 = vmatmul.f32.gmra.mxu0 %v8065
      %v8087 = vpop.f32.mrf.mxu0
      %v8088 = vadd.f32 %v8057, %v8087
      %8089 = vmatmul.f32.gmra.mxu0 %v8068
      %v8090 = vpop.f32.mrf.mxu0
      %v8091 = vadd.f32 %v8062, %v8090
      %8092 = vdwg.mxu0
      %8093 = vmatpush.msra.mxu0 0.0
      %8094 = vmatpush.msra.mxu0 0.0
      %8095 = vmatpush.msra.mxu0 0.0
      %8096 = vmatpush.msra.mxu0 0.0
      %8097 = vmatpush.msra.mxu0 0.0
      %8098 = vmatpush.msra.mxu0 0.0
      %8099 = vmatpush.msra.mxu0 0.0
      %8100 = vmatpush.msra.mxu0 0.0
      %8101 = vmatpush.msra.mxu0 0.0
      %8102 = vmatpush.msra.mxu0 0.0
      %8103 = vmatpush.msra.mxu0 0.0
      %8104 = vmatpush.msra.mxu0 0.0
      %8105 = vmatpush.msra.mxu0 0.0
      %8106 = vmatpush.msra.mxu0 0.0
      %8107 = vmatpush.msra.mxu0 %v8041
      %8108 = vmatpush.msra.mxu0 %v8033
      %8109 = vmatmul.f32.gmra.mxu0 %v8065
      %v8110 = vpop.f32.mrf.mxu0
      %v8111 = vadd.f32 %v8057, %v8110
      %8112 = vmatmul.f32.gmra.mxu0 %v8068
      %v8113 = vpop.f32.mrf.mxu0
      %v8114 = vadd.f32 %v8062, %v8113
      %8115 = vdwg.mxu0
      %8116 = vmatpush.msra.mxu0 0.0
      %8117 = vmatpush.msra.mxu0 0.0
      %8118 = vmatpush.msra.mxu0 0.0
      %8119 = vmatpush.msra.mxu0 0.0
      %8120 = vmatpush.msra.mxu0 0.0
      %8121 = vmatpush.msra.mxu0 0.0
      %8122 = vmatpush.msra.mxu0 0.0
      %8123 = vmatpush.msra.mxu0 0.0
      %8124 = vmatpush.msra.mxu0 0.0
      %8125 = vmatpush.msra.mxu0 0.0
      %8126 = vmatpush.msra.mxu0 0.0
      %8127 = vmatpush.msra.mxu0 0.0
      %8128 = vmatpush.msra.mxu0 0.0
      %8129 = vmatpush.msra.mxu0 0.0
      %8130 = vmatpush.msra.mxu0 %v8042
      %8131 = vmatpush.msra.mxu0 %v8034
      %8132 = vmatmul.f32.gmra.mxu0 %v8065
      %v8133 = vpop.f32.mrf.mxu0
      %v8134 = vadd.f32 %v8057, %v8133
      %8135 = vmatmul.f32.gmra.mxu0 %v8068
      %v8136 = vpop.f32.mrf.mxu0
      %v8137 = vadd.f32 %v8062, %v8136
      %8138 = vdwg.mxu0
      %8139 = vmatpush.msra.mxu0 0.0
      %8140 = vmatpush.msra.mxu0 0.0
      %8141 = vmatpush.msra.mxu0 0.0
      %8142 = vmatpush.msra.mxu0 0.0
      %8143 = vmatpush.msra.mxu0 0.0
      %8144 = vmatpush.msra.mxu0 0.0
      %8145 = vmatpush.msra.mxu0 0.0
      %8146 = vmatpush.msra.mxu0 0.0
      %8147 = vmatpush.msra.mxu0 0.0
      %8148 = vmatpush.msra.mxu0 0.0
      %8149 = vmatpush.msra.mxu0 0.0
      %8150 = vmatpush.msra.mxu0 0.0
      %8151 = vmatpush.msra.mxu0 0.0
      %8152 = vmatpush.msra.mxu0 0.0
      %8153 = vmatpush.msra.mxu0 %v8043
      %8154 = vmatpush.msra.mxu0 %v8035
      %8155 = vmatmul.f32.gmra.mxu0 %v8065
      %v8156 = vpop.f32.mrf.mxu0
      %v8157 = vadd.f32 %v8057, %v8156
      %8158 = vmatmul.f32.gmra.mxu0 %v8068
      %v8159 = vpop.f32.mrf.mxu0
      %v8160 = vadd.f32 %v8062, %v8159
      %8161 = vdwg.mxu0
      %8162 = vmatpush.msra.mxu0 0.0
      %8163 = vmatpush.msra.mxu0 0.0
      %8164 = vmatpush.msra.mxu0 0.0
      %8165 = vmatpush.msra.mxu0 0.0
      %8166 = vmatpush.msra.mxu0 0.0
      %8167 = vmatpush.msra.mxu0 0.0
      %8168 = vmatpush.msra.mxu0 0.0
      %8169 = vmatpush.msra.mxu0 0.0
      %8170 = vmatpush.msra.mxu0 0.0
      %8171 = vmatpush.msra.mxu0 0.0
      %8172 = vmatpush.msra.mxu0 0.0
      %8173 = vmatpush.msra.mxu0 0.0
      %8174 = vmatpush.msra.mxu0 0.0
      %8175 = vmatpush.msra.mxu0 0.0
      %8176 = vmatpush.msra.mxu0 %v8044
      %8177 = vmatpush.msra.mxu0 %v8036
      %8178 = vmatmul.f32.gmra.mxu0 %v8065
      %v8179 = vpop.f32.mrf.mxu0
      %v8180 = vadd.f32 %v8057, %v8179
      %8181 = vmatmul.f32.gmra.mxu0 %v8068
      %v8182 = vpop.f32.mrf.mxu0
      %v8183 = vadd.f32 %v8062, %v8182
      %8184 = vdwg.mxu0
      %8185 = vmatpush.msra.mxu0 0.0
      %8186 = vmatpush.msra.mxu0 0.0
      %8187 = vmatpush.msra.mxu0 0.0
      %8188 = vmatpush.msra.mxu0 0.0
      %8189 = vmatpush.msra.mxu0 0.0
      %8190 = vmatpush.msra.mxu0 0.0
      %8191 = vmatpush.msra.mxu0 0.0
      %8192 = vmatpush.msra.mxu0 0.0
      %8193 = vmatpush.msra.mxu0 0.0
      %8194 = vmatpush.msra.mxu0 0.0
      %8195 = vmatpush.msra.mxu0 0.0
      %8196 = vmatpush.msra.mxu0 0.0
      %8197 = vmatpush.msra.mxu0 0.0
      %8198 = vmatpush.msra.mxu0 0.0
      %8199 = vmatpush.msra.mxu0 %v8045
      %8200 = vmatpush.msra.mxu0 %v8037
      %8201 = vmatmul.f32.gmra.mxu0 %v8065
      %v8202 = vpop.f32.mrf.mxu0
      %v8203 = vadd.f32 %v8057, %v8202
      %8204 = vmatmul.f32.gmra.mxu0 %v8068
      %v8205 = vpop.f32.mrf.mxu0
      %v8206 = vadd.f32 %v8062, %v8205
      %8207 = vdwg.mxu0
      %8208 = vmatpush.msra.mxu0 0.0
      %8209 = vmatpush.msra.mxu0 0.0
      %8210 = vmatpush.msra.mxu0 0.0
      %8211 = vmatpush.msra.mxu0 0.0
      %8212 = vmatpush.msra.mxu0 0.0
      %8213 = vmatpush.msra.mxu0 0.0
      %8214 = vmatpush.msra.mxu0 0.0
      %8215 = vmatpush.msra.mxu0 0.0
      %8216 = vmatpush.msra.mxu0 0.0
      %8217 = vmatpush.msra.mxu0 0.0
      %8218 = vmatpush.msra.mxu0 0.0
      %8219 = vmatpush.msra.mxu0 0.0
      %8220 = vmatpush.msra.mxu0 0.0
      %8221 = vmatpush.msra.mxu0 0.0
      %8222 = vmatpush.msra.mxu0 %v8046
      %8223 = vmatpush.msra.mxu0 %v8038
      %8224 = vmatmul.f32.gmra.mxu0 %v8065
      %v8225 = vpop.f32.mrf.mxu0
      %v8226 = vadd.f32 %v8057, %v8225
      %8227 = vmatmul.f32.gmra.mxu0 %v8068
      %v8228 = vpop.f32.mrf.mxu0
      %v8229 = vadd.f32 %v8062, %v8228
      %8230 = vdwg.mxu0
      %8231 = vmatpush.msra.mxu0 0.0
      %8232 = vmatpush.msra.mxu0 0.0
      %8233 = vmatpush.msra.mxu0 0.0
      %8234 = vmatpush.msra.mxu0 0.0
      %8235 = vmatpush.msra.mxu0 0.0
      %8236 = vmatpush.msra.mxu0 0.0
      %8237 = vmatpush.msra.mxu0 0.0
      %8238 = vmatpush.msra.mxu0 0.0
      %8239 = vmatpush.msra.mxu0 0.0
      %8240 = vmatpush.msra.mxu0 0.0
      %8241 = vmatpush.msra.mxu0 0.0
      %8242 = vmatpush.msra.mxu0 0.0
      %8243 = vmatpush.msra.mxu0 0.0
      %8244 = vmatpush.msra.mxu0 0.0
      %8245 = vmatpush.msra.mxu0 %v8047
      %8246 = vmatpush.msra.mxu0 %v8039
      %8247 = vmatmul.f32.gmra.mxu0 %v8065
      %v8248 = vpop.f32.mrf.mxu0
      %v8249 = vadd.f32 %v8057, %v8248
      %8250 = vmatmul.f32.gmra.mxu0 %v8068
      %v8251 = vpop.f32.mrf.mxu0
      %v8252 = vadd.f32 %v8062, %v8251
      %8253 = vdwg.mxu0
      %v8254 = vmax.f32 %v8088, 0.0
      %v8255 = vmax.f32 %v8111, 0.0
      %v8256 = vmax.f32 %v8134, 0.0
      %v8257 = vmax.f32 %v8157, 0.0
      %v8258 = vmax.f32 %v8180, 0.0
      %v8259 = vmax.f32 %v8203, 0.0
      %v8260 = vmax.f32 %v8226, 0.0
      %v8261 = vmax.f32 %v8249, 0.0
      %v8262 = vmax.f32 %v8091, 0.0
      %v8263 = vmax.f32 %v8114, 0.0
      %v8264 = vmax.f32 %v8137, 0.0
      %v8265 = vmax.f32 %v8160, 0.0
      %v8266 = vmax.f32 %v8183, 0.0
      %v8267 = vmax.f32 %v8206, 0.0
      %v8268 = vmax.f32 %v8229, 0.0
      %v8269 = vmax.f32 %v8252, 0.0
      %s8270 = scalar_lea.vmem %s8, 128
      %v8271 = vld [vmem:[%s8270] sm:$0xff]
      %v8272 = vld [vmem:[%s8270 + $0x8] sm:$0xff]
      %s8273 = scalar_lea.vmem %s9, 128
      %v8274 = vld [vmem:[%s8273] sm:$0xff]
      %v8275 = vld [vmem:[%s8273 + $0x8] sm:$0xff]
      %8277 = vset.pattern.permute.xlu0 0
      %8278 = vperm.xlu0 %8277, %v8274
      %v8279 = vpop.permute.xlu0 %8278
      %8282 = vset.pattern.permute.xlu0 0
      %8283 = vperm.xlu0 %8282, %v8275
      %v8284 = vpop.permute.xlu0 %8283
      %v8286 = vsel %vm6509, %v8271, 0
      %v8289 = vsel %vm6509, %v8272, 0
      %8291 = vmatpush.msra.mxu0 0.0
      %8292 = vmatpush.msra.mxu0 0.0
      %8293 = vmatpush.msra.mxu0 0.0
      %8294 = vmatpush.msra.mxu0 0.0
      %8295 = vmatpush.msra.mxu0 0.0
      %8296 = vmatpush.msra.mxu0 0.0
      %8297 = vmatpush.msra.mxu0 0.0
      %8298 = vmatpush.msra.mxu0 0.0
      %8299 = vmatpush.msra.mxu0 0.0
      %8300 = vmatpush.msra.mxu0 0.0
      %8301 = vmatpush.msra.mxu0 0.0
      %8302 = vmatpush.msra.mxu0 0.0
      %8303 = vmatpush.msra.mxu0 0.0
      %8304 = vmatpush.msra.mxu0 0.0
      %8305 = vmatpush.msra.mxu0 %v8262
      %8306 = vmatpush.msra.mxu0 %v8254
      %8307 = vmatmul.f32.gmra.mxu0 %v8286
      %v8308 = vpop.f32.mrf.mxu0
      %v8309 = vadd.f32 %v8279, %v8308
      %8310 = vmatmul.f32.gmra.mxu0 %v8289
      %v8311 = vpop.f32.mrf.mxu0
      %8312 = vdwg.mxu0
      %8313 = vmatpush.msra.mxu0 0.0
      %8314 = vmatpush.msra.mxu0 0.0
      %8315 = vmatpush.msra.mxu0 0.0
      %8316 = vmatpush.msra.mxu0 0.0
      %8317 = vmatpush.msra.mxu0 0.0
      %8318 = vmatpush.msra.mxu0 0.0
      %8319 = vmatpush.msra.mxu0 0.0
      %8320 = vmatpush.msra.mxu0 0.0
      %8321 = vmatpush.msra.mxu0 0.0
      %8322 = vmatpush.msra.mxu0 0.0
      %8323 = vmatpush.msra.mxu0 0.0
      %8324 = vmatpush.msra.mxu0 0.0
      %8325 = vmatpush.msra.mxu0 0.0
      %8326 = vmatpush.msra.mxu0 0.0
      %8327 = vmatpush.msra.mxu0 %v8263
      %8328 = vmatpush.msra.mxu0 %v8255
      %8329 = vmatmul.f32.gmra.mxu0 %v8286
      %v8330 = vpop.f32.mrf.mxu0
      %v8331 = vadd.f32 %v8279, %v8330
      %8332 = vmatmul.f32.gmra.mxu0 %v8289
      %v8333 = vpop.f32.mrf.mxu0
      %8334 = vdwg.mxu0
      %8335 = vmatpush.msra.mxu0 0.0
      %8336 = vmatpush.msra.mxu0 0.0
      %8337 = vmatpush.msra.mxu0 0.0
      %8338 = vmatpush.msra.mxu0 0.0
      %8339 = vmatpush.msra.mxu0 0.0
      %8340 = vmatpush.msra.mxu0 0.0
      %8341 = vmatpush.msra.mxu0 0.0
      %8342 = vmatpush.msra.mxu0 0.0
      %8343 = vmatpush.msra.mxu0 0.0
      %8344 = vmatpush.msra.mxu0 0.0
      %8345 = vmatpush.msra.mxu0 0.0
      %8346 = vmatpush.msra.mxu0 0.0
      %8347 = vmatpush.msra.mxu0 0.0
      %8348 = vmatpush.msra.mxu0 0.0
      %8349 = vmatpush.msra.mxu0 %v8264
      %8350 = vmatpush.msra.mxu0 %v8256
      %8351 = vmatmul.f32.gmra.mxu0 %v8286
      %v8352 = vpop.f32.mrf.mxu0
      %v8353 = vadd.f32 %v8279, %v8352
      %8354 = vmatmul.f32.gmra.mxu0 %v8289
      %v8355 = vpop.f32.mrf.mxu0
      %8356 = vdwg.mxu0
      %8357 = vmatpush.msra.mxu0 0.0
      %8358 = vmatpush.msra.mxu0 0.0
      %8359 = vmatpush.msra.mxu0 0.0
      %8360 = vmatpush.msra.mxu0 0.0
      %8361 = vmatpush.msra.mxu0 0.0
      %8362 = vmatpush.msra.mxu0 0.0
      %8363 = vmatpush.msra.mxu0 0.0
      %8364 = vmatpush.msra.mxu0 0.0
      %8365 = vmatpush.msra.mxu0 0.0
      %8366 = vmatpush.msra.mxu0 0.0
      %8367 = vmatpush.msra.mxu0 0.0
      %8368 = vmatpush.msra.mxu0 0.0
      %8369 = vmatpush.msra.mxu0 0.0
      %8370 = vmatpush.msra.mxu0 0.0
      %8371 = vmatpush.msra.mxu0 %v8265
      %8372 = vmatpush.msra.mxu0 %v8257
      %8373 = vmatmul.f32.gmra.mxu0 %v8286
      %v8374 = vpop.f32.mrf.mxu0
      %v8375 = vadd.f32 %v8279, %v8374
      %8376 = vmatmul.f32.gmra.mxu0 %v8289
      %v8377 = vpop.f32.mrf.mxu0
      %8378 = vdwg.mxu0
      %8379 = vmatpush.msra.mxu0 0.0
      %8380 = vmatpush.msra.mxu0 0.0
      %8381 = vmatpush.msra.mxu0 0.0
      %8382 = vmatpush.msra.mxu0 0.0
      %8383 = vmatpush.msra.mxu0 0.0
      %8384 = vmatpush.msra.mxu0 0.0
      %8385 = vmatpush.msra.mxu0 0.0
      %8386 = vmatpush.msra.mxu0 0.0
      %8387 = vmatpush.msra.mxu0 0.0
      %8388 = vmatpush.msra.mxu0 0.0
      %8389 = vmatpush.msra.mxu0 0.0
      %8390 = vmatpush.msra.mxu0 0.0
      %8391 = vmatpush.msra.mxu0 0.0
      %8392 = vmatpush.msra.mxu0 0.0
      %8393 = vmatpush.msra.mxu0 %v8266
      %8394 = vmatpush.msra.mxu0 %v8258
      %8395 = vmatmul.f32.gmra.mxu0 %v8286
      %v8396 = vpop.f32.mrf.mxu0
      %v8397 = vadd.f32 %v8279, %v8396
      %8398 = vmatmul.f32.gmra.mxu0 %v8289
      %v8399 = vpop.f32.mrf.mxu0
      %8400 = vdwg.mxu0
      %8401 = vmatpush.msra.mxu0 0.0
      %8402 = vmatpush.msra.mxu0 0.0
      %8403 = vmatpush.msra.mxu0 0.0
      %8404 = vmatpush.msra.mxu0 0.0
      %8405 = vmatpush.msra.mxu0 0.0
      %8406 = vmatpush.msra.mxu0 0.0
      %8407 = vmatpush.msra.mxu0 0.0
      %8408 = vmatpush.msra.mxu0 0.0
      %8409 = vmatpush.msra.mxu0 0.0
      %8410 = vmatpush.msra.mxu0 0.0
      %8411 = vmatpush.msra.mxu0 0.0
      %8412 = vmatpush.msra.mxu0 0.0
      %8413 = vmatpush.msra.mxu0 0.0
      %8414 = vmatpush.msra.mxu0 0.0
      %8415 = vmatpush.msra.mxu0 %v8267
      %8416 = vmatpush.msra.mxu0 %v8259
      %8417 = vmatmul.f32.gmra.mxu0 %v8286
      %v8418 = vpop.f32.mrf.mxu0
      %v8419 = vadd.f32 %v8279, %v8418
      %8420 = vmatmul.f32.gmra.mxu0 %v8289
      %v8421 = vpop.f32.mrf.mxu0
      %8422 = vdwg.mxu0
      %8423 = vmatpush.msra.mxu0 0.0
      %8424 = vmatpush.msra.mxu0 0.0
      %8425 = vmatpush.msra.mxu0 0.0
      %8426 = vmatpush.msra.mxu0 0.0
      %8427 = vmatpush.msra.mxu0 0.0
      %8428 = vmatpush.msra.mxu0 0.0
      %8429 = vmatpush.msra.mxu0 0.0
      %8430 = vmatpush.msra.mxu0 0.0
      %8431 = vmatpush.msra.mxu0 0.0
      %8432 = vmatpush.msra.mxu0 0.0
      %8433 = vmatpush.msra.mxu0 0.0
      %8434 = vmatpush.msra.mxu0 0.0
      %8435 = vmatpush.msra.mxu0 0.0
      %8436 = vmatpush.msra.mxu0 0.0
      %8437 = vmatpush.msra.mxu0 %v8268
      %8438 = vmatpush.msra.mxu0 %v8260
      %8439 = vmatmul.f32.gmra.mxu0 %v8286
      %v8440 = vpop.f32.mrf.mxu0
      %v8441 = vadd.f32 %v8279, %v8440
      %8442 = vmatmul.f32.gmra.mxu0 %v8289
      %v8443 = vpop.f32.mrf.mxu0
      %8444 = vdwg.mxu0
      %8445 = vmatpush.msra.mxu0 0.0
      %8446 = vmatpush.msra.mxu0 0.0
      %8447 = vmatpush.msra.mxu0 0.0
      %8448 = vmatpush.msra.mxu0 0.0
      %8449 = vmatpush.msra.mxu0 0.0
      %8450 = vmatpush.msra.mxu0 0.0
      %8451 = vmatpush.msra.mxu0 0.0
      %8452 = vmatpush.msra.mxu0 0.0
      %8453 = vmatpush.msra.mxu0 0.0
      %8454 = vmatpush.msra.mxu0 0.0
      %8455 = vmatpush.msra.mxu0 0.0
      %8456 = vmatpush.msra.mxu0 0.0
      %8457 = vmatpush.msra.mxu0 0.0
      %8458 = vmatpush.msra.mxu0 0.0
      %8459 = vmatpush.msra.mxu0 %v8269
      %8460 = vmatpush.msra.mxu0 %v8261
      %8461 = vmatmul.f32.gmra.mxu0 %v8286
      %v8462 = vpop.f32.mrf.mxu0
      %v8463 = vadd.f32 %v8279, %v8462
      %8464 = vmatmul.f32.gmra.mxu0 %v8289
      %v8465 = vpop.f32.mrf.mxu0
      %8466 = vdwg.mxu0
      %v8467 = vmax.f32 %v8309, 0.0
      %v8468 = vmax.f32 %v8331, 0.0
      %v8469 = vmax.f32 %v8353, 0.0
      %v8470 = vmax.f32 %v8375, 0.0
      %v8471 = vmax.f32 %v8397, 0.0
      %v8472 = vmax.f32 %v8419, 0.0
      %v8473 = vmax.f32 %v8441, 0.0
      %v8474 = vmax.f32 %v8463, 0.0
      %v8475 = vld [vmem:[%s10] sm:$0xff]
      %v8476 = vld [vmem:[%s10 + $0x8] sm:$0xff]
      %v8477 = vld [vmem:[#allocation3] sm:$0xff]
      %v8478 = vld [vmem:[#allocation3 + $0x8] sm:$0xff]
      %v8479 = vld [vmem:[#allocation3 + $0x10] sm:$0xff]
      %v8480 = vld [vmem:[#allocation3 + $0x18] sm:$0xff]
      %v8481 = vld [vmem:[#allocation3 + $0x20] sm:$0xff]
      %v8482 = vld [vmem:[#allocation3 + $0x28] sm:$0xff]
      %v8483 = vld [vmem:[#allocation3 + $0x30] sm:$0xff]
      %v8484 = vld [vmem:[#allocation3 + $0x38] sm:$0xff]
      %v8485 = vld [vmem:[#allocation3 + $0x40] sm:$0xff]
      %v8486 = vld [vmem:[#allocation3 + $0x48] sm:$0xff]
      %v8487 = vld [vmem:[#allocation3 + $0x50] sm:$0xff]
      %v8488 = vld [vmem:[#allocation3 + $0x58] sm:$0xff]
      %v8489 = vld [vmem:[#allocation3 + $0x60] sm:$0xff]
      %v8490 = vld [vmem:[#allocation3 + $0x68] sm:$0xff]
      %v8491 = vld [vmem:[#allocation3 + $0x70] sm:$0xff]
      %v8492 = vld [vmem:[#allocation3 + $0x78] sm:$0xff]
      %v8494 = vsel %vm6509, %v8475, 0
      %v8497 = vsel %vm6509, %v8476, 0
      %8499 = vmatpush.msra.mxu0 0.0
      %8500 = vmatpush.msra.mxu0 0.0
      %8501 = vmatpush.msra.mxu0 0.0
      %8502 = vmatpush.msra.mxu0 0.0
      %8503 = vmatpush.msra.mxu0 0.0
      %8504 = vmatpush.msra.mxu0 0.0
      %8505 = vmatpush.msra.mxu0 0.0
      %8506 = vmatpush.msra.mxu0 0.0
      %8507 = vmatpush.msra.mxu0 0.0
      %8508 = vmatpush.msra.mxu0 0.0
      %8509 = vmatpush.msra.mxu0 0.0
      %8510 = vmatpush.msra.mxu0 0.0
      %8511 = vmatpush.msra.mxu0 0.0
      %8512 = vmatpush.msra.mxu0 0.0
      %8513 = vmatpush.msra.mxu0 %v8485
      %8514 = vmatpush.msra.mxu0 %v8477
      %8515 = vmatmul.f32.gmra.mxu0 %v8494
      %v8516 = vpop.f32.mrf.mxu0
      %v8517 = vadd.f32 0.0, %v8516
      %8518 = vmatmul.f32.gmra.mxu0 %v8497
      %v8519 = vpop.f32.mrf.mxu0
      %8520 = vdwg.mxu0
      %8521 = vmatpush.msra.mxu0 0.0
      %8522 = vmatpush.msra.mxu0 0.0
      %8523 = vmatpush.msra.mxu0 0.0
      %8524 = vmatpush.msra.mxu0 0.0
      %8525 = vmatpush.msra.mxu0 0.0
      %8526 = vmatpush.msra.mxu0 0.0
      %8527 = vmatpush.msra.mxu0 0.0
      %8528 = vmatpush.msra.mxu0 0.0
      %8529 = vmatpush.msra.mxu0 0.0
      %8530 = vmatpush.msra.mxu0 0.0
      %8531 = vmatpush.msra.mxu0 0.0
      %8532 = vmatpush.msra.mxu0 0.0
      %8533 = vmatpush.msra.mxu0 0.0
      %8534 = vmatpush.msra.mxu0 0.0
      %8535 = vmatpush.msra.mxu0 %v8486
      %8536 = vmatpush.msra.mxu0 %v8478
      %8537 = vmatmul.f32.gmra.mxu0 %v8494
      %v8538 = vpop.f32.mrf.mxu0
      %v8539 = vadd.f32 0.0, %v8538
      %8540 = vmatmul.f32.gmra.mxu0 %v8497
      %v8541 = vpop.f32.mrf.mxu0
      %8542 = vdwg.mxu0
      %8543 = vmatpush.msra.mxu0 0.0
      %8544 = vmatpush.msra.mxu0 0.0
      %8545 = vmatpush.msra.mxu0 0.0
      %8546 = vmatpush.msra.mxu0 0.0
      %8547 = vmatpush.msra.mxu0 0.0
      %8548 = vmatpush.msra.mxu0 0.0
      %8549 = vmatpush.msra.mxu0 0.0
      %8550 = vmatpush.msra.mxu0 0.0
      %8551 = vmatpush.msra.mxu0 0.0
      %8552 = vmatpush.msra.mxu0 0.0
      %8553 = vmatpush.msra.mxu0 0.0
      %8554 = vmatpush.msra.mxu0 0.0
      %8555 = vmatpush.msra.mxu0 0.0
      %8556 = vmatpush.msra.mxu0 0.0
      %8557 = vmatpush.msra.mxu0 %v8487
      %8558 = vmatpush.msra.mxu0 %v8479
      %8559 = vmatmul.f32.gmra.mxu0 %v8494
      %v8560 = vpop.f32.mrf.mxu0
      %v8561 = vadd.f32 0.0, %v8560
      %8562 = vmatmul.f32.gmra.mxu0 %v8497
      %v8563 = vpop.f32.mrf.mxu0
      %8564 = vdwg.mxu0
      %8565 = vmatpush.msra.mxu0 0.0
      %8566 = vmatpush.msra.mxu0 0.0
      %8567 = vmatpush.msra.mxu0 0.0
      %8568 = vmatpush.msra.mxu0 0.0
      %8569 = vmatpush.msra.mxu0 0.0
      %8570 = vmatpush.msra.mxu0 0.0
      %8571 = vmatpush.msra.mxu0 0.0
      %8572 = vmatpush.msra.mxu0 0.0
      %8573 = vmatpush.msra.mxu0 0.0
      %8574 = vmatpush.msra.mxu0 0.0
      %8575 = vmatpush.msra.mxu0 0.0
      %8576 = vmatpush.msra.mxu0 0.0
      %8577 = vmatpush.msra.mxu0 0.0
      %8578 = vmatpush.msra.mxu0 0.0
      %8579 = vmatpush.msra.mxu0 %v8488
      %8580 = vmatpush.msra.mxu0 %v8480
      %8581 = vmatmul.f32.gmra.mxu0 %v8494
      %v8582 = vpop.f32.mrf.mxu0
      %v8583 = vadd.f32 0.0, %v8582
      %8584 = vmatmul.f32.gmra.mxu0 %v8497
      %v8585 = vpop.f32.mrf.mxu0
      %8586 = vdwg.mxu0
      %8587 = vmatpush.msra.mxu0 0.0
      %8588 = vmatpush.msra.mxu0 0.0
      %8589 = vmatpush.msra.mxu0 0.0
      %8590 = vmatpush.msra.mxu0 0.0
      %8591 = vmatpush.msra.mxu0 0.0
      %8592 = vmatpush.msra.mxu0 0.0
      %8593 = vmatpush.msra.mxu0 0.0
      %8594 = vmatpush.msra.mxu0 0.0
      %8595 = vmatpush.msra.mxu0 0.0
      %8596 = vmatpush.msra.mxu0 0.0
      %8597 = vmatpush.msra.mxu0 0.0
      %8598 = vmatpush.msra.mxu0 0.0
      %8599 = vmatpush.msra.mxu0 0.0
      %8600 = vmatpush.msra.mxu0 0.0
      %8601 = vmatpush.msra.mxu0 %v8489
      %8602 = vmatpush.msra.mxu0 %v8481
      %8603 = vmatmul.f32.gmra.mxu0 %v8494
      %v8604 = vpop.f32.mrf.mxu0
      %v8605 = vadd.f32 0.0, %v8604
      %8606 = vmatmul.f32.gmra.mxu0 %v8497
      %v8607 = vpop.f32.mrf.mxu0
      %8608 = vdwg.mxu0
      %8609 = vmatpush.msra.mxu0 0.0
      %8610 = vmatpush.msra.mxu0 0.0
      %8611 = vmatpush.msra.mxu0 0.0
      %8612 = vmatpush.msra.mxu0 0.0
      %8613 = vmatpush.msra.mxu0 0.0
      %8614 = vmatpush.msra.mxu0 0.0
      %8615 = vmatpush.msra.mxu0 0.0
      %8616 = vmatpush.msra.mxu0 0.0
      %8617 = vmatpush.msra.mxu0 0.0
      %8618 = vmatpush.msra.mxu0 0.0
      %8619 = vmatpush.msra.mxu0 0.0
      %8620 = vmatpush.msra.mxu0 0.0
      %8621 = vmatpush.msra.mxu0 0.0
      %8622 = vmatpush.msra.mxu0 0.0
      %8623 = vmatpush.msra.mxu0 %v8490
      %8624 = vmatpush.msra.mxu0 %v8482
      %8625 = vmatmul.f32.gmra.mxu0 %v8494
      %v8626 = vpop.f32.mrf.mxu0
      %v8627 = vadd.f32 0.0, %v8626
      %8628 = vmatmul.f32.gmra.mxu0 %v8497
      %v8629 = vpop.f32.mrf.mxu0
      %8630 = vdwg.mxu0
      %8631 = vmatpush.msra.mxu0 0.0
      %8632 = vmatpush.msra.mxu0 0.0
      %8633 = vmatpush.msra.mxu0 0.0
      %8634 = vmatpush.msra.mxu0 0.0
      %8635 = vmatpush.msra.mxu0 0.0
      %8636 = vmatpush.msra.mxu0 0.0
      %8637 = vmatpush.msra.mxu0 0.0
      %8638 = vmatpush.msra.mxu0 0.0
      %8639 = vmatpush.msra.mxu0 0.0
      %8640 = vmatpush.msra.mxu0 0.0
      %8641 = vmatpush.msra.mxu0 0.0
      %8642 = vmatpush.msra.mxu0 0.0
      %8643 = vmatpush.msra.mxu0 0.0
      %8644 = vmatpush.msra.mxu0 0.0
      %8645 = vmatpush.msra.mxu0 %v8491
      %8646 = vmatpush.msra.mxu0 %v8483
      %8647 = vmatmul.f32.gmra.mxu0 %v8494
      %v8648 = vpop.f32.mrf.mxu0
      %v8649 = vadd.f32 0.0, %v8648
      %8650 = vmatmul.f32.gmra.mxu0 %v8497
      %v8651 = vpop.f32.mrf.mxu0
      %8652 = vdwg.mxu0
      %8653 = vmatpush.msra.mxu0 0.0
      %8654 = vmatpush.msra.mxu0 0.0
      %8655 = vmatpush.msra.mxu0 0.0
      %8656 = vmatpush.msra.mxu0 0.0
      %8657 = vmatpush.msra.mxu0 0.0
      %8658 = vmatpush.msra.mxu0 0.0
      %8659 = vmatpush.msra.mxu0 0.0
      %8660 = vmatpush.msra.mxu0 0.0
      %8661 = vmatpush.msra.mxu0 0.0
      %8662 = vmatpush.msra.mxu0 0.0
      %8663 = vmatpush.msra.mxu0 0.0
      %8664 = vmatpush.msra.mxu0 0.0
      %8665 = vmatpush.msra.mxu0 0.0
      %8666 = vmatpush.msra.mxu0 0.0
      %8667 = vmatpush.msra.mxu0 %v8492
      %8668 = vmatpush.msra.mxu0 %v8484
      %8669 = vmatmul.f32.gmra.mxu0 %v8494
      %v8670 = vpop.f32.mrf.mxu0
      %v8671 = vadd.f32 0.0, %v8670
      %8672 = vmatmul.f32.gmra.mxu0 %v8497
      %v8673 = vpop.f32.mrf.mxu0
      %8674 = vdwg.mxu0
      %v8675 = vsub.f32 %v8517, %v8467
      %v8676 = vsub.f32 %v8539, %v8468
      %v8677 = vsub.f32 %v8561, %v8469
      %v8678 = vsub.f32 %v8583, %v8470
      %v8679 = vsub.f32 %v8605, %v8471
      %v8680 = vsub.f32 %v8627, %v8472
      %v8681 = vsub.f32 %v8649, %v8473
      %v8682 = vsub.f32 %v8671, %v8474
      %v8683 = vand.u32 2147483647, %v8675
      %v8684 = vand.u32 2147483647, %v8676
      %v8685 = vand.u32 2147483647, %v8677
      %v8686 = vand.u32 2147483647, %v8678
      %v8687 = vand.u32 2147483647, %v8679
      %v8688 = vand.u32 2147483647, %v8680
      %v8689 = vand.u32 2147483647, %v8681
      %v8690 = vand.u32 2147483647, %v8682
      %v8691 = vmax.f32 %v8683, 0.0
      %v8692 = vmax.f32 %v8684, 0.0
      %v8693 = vmax.f32 %v8685, 0.0
      %v8694 = vmax.f32 %v8686, 0.0
      %v8695 = vmax.f32 %v8687, 0.0
      %v8696 = vmax.f32 %v8688, 0.0
      %v8697 = vmax.f32 %v8689, 0.0
      %v8698 = vmax.f32 %v8690, 0.0
      %v8699 = vmin.f32 %v8691, 1.0
      %v8700 = vmin.f32 %v8692, 1.0
      %v8701 = vmin.f32 %v8693, 1.0
      %v8702 = vmin.f32 %v8694, 1.0
      %v8703 = vmin.f32 %v8695, 1.0
      %v8704 = vmin.f32 %v8696, 1.0
      %v8705 = vmin.f32 %v8697, 1.0
      %v8706 = vmin.f32 %v8698, 1.0
      %v8707 = vsub.f32 1.0, %v8699
      %v8708 = vsub.f32 1.0, %v8700
      %v8709 = vsub.f32 1.0, %v8701
      %v8710 = vsub.f32 1.0, %v8702
      %v8711 = vsub.f32 1.0, %v8703
      %v8712 = vsub.f32 1.0, %v8704
      %v8713 = vsub.f32 1.0, %v8705
      %v8714 = vsub.f32 1.0, %v8706
      %v8715 = vmul.f32 %v8707, %v8707
      %v8716 = vmul.f32 %v8708, %v8708
      %v8717 = vmul.f32 %v8709, %v8709
      %v8718 = vmul.f32 %v8710, %v8710
      %v8719 = vmul.f32 %v8711, %v8711
      %v8720 = vmul.f32 %v8712, %v8712
      %v8721 = vmul.f32 %v8713, %v8713
      %v8722 = vmul.f32 %v8714, %v8714
      %v8723 = vmul.f32 %v8715, %v8715
      %v8724 = vmul.f32 %v8716, %v8716
      %v8725 = vmul.f32 %v8717, %v8717
      %v8726 = vmul.f32 %v8718, %v8718
      %v8727 = vmul.f32 %v8719, %v8719
      %v8728 = vmul.f32 %v8720, %v8720
      %v8729 = vmul.f32 %v8721, %v8721
      %v8730 = vmul.f32 %v8722, %v8722
      %v8731 = vmul.f32 %v8723, %v8723
      %v8732 = vmul.f32 %v8724, %v8724
      %v8733 = vmul.f32 %v8725, %v8725
      %v8734 = vmul.f32 %v8726, %v8726
      %v8735 = vmul.f32 %v8727, %v8727
      %v8736 = vmul.f32 %v8728, %v8728
      %v8737 = vmul.f32 %v8729, %v8729
      %v8738 = vmul.f32 %v8730, %v8730
      %v8747 = vrot.slane %v8732, 6
      %v8748 = vrot.slane %v8733, 4
      %v8749 = vrot.slane %v8734, 2
      %v8750 = vrot.slane %v8736, 6
      %v8751 = vrot.slane %v8737, 4
      %v8752 = vrot.slane %v8738, 2
      %vm8753 = vcmask 1041408
      %v8754 = vsel %vm8753, %v8731, %v8747
      %vm8755 = vcmask 1045508
      %v8756 = vsel %vm8755, %v8748, %v8749
      %vm8757 = vcmask 1043456
      %v8758 = vsel %vm8757, %v8754, %v8756
      %v8759 = vsel %vm8753, %v8735, %v8750
      %v8760 = vsel %vm8755, %v8751, %v8752
      %v8761 = vsel %vm8757, %v8759, %v8760
      %8764 = vst [vmem:[%s386] sm:$0xff] %v8758
      %vm8765 = vcmask 1043458
      %vm8766 = vmor %vm8765, %vm8753
      %vm8767 = vmor %vm8755, %vm8766
      %vm8768 = vcmask 31750
      %vm8769 = vmor %vm8768, %vm8767
      %8770 = vst.msk [vmem:[%s386 + $0x8] sm:$0xff] %vm8769, %v8761
      %p8771 = scmp.lt.s32.totalorder %s22, 1
      %s8772 = scalar_select %p8771, %s22, 1
      %s8773 = smul.addr %s8772, 8
      %s8774 = smul.addr %s8773, 2
      %s8775 = scalar_lea.vmem %s11, %s8774
      // Predicated region
      $region65: #{cnn_encoder_forward.1} parent=63 // pred_check
        %p8776 = pneg %p276
      $region66: #{cnn_encoder_forward.1} parent=63 // pred_check_branch
        %8778 = sbr.rel (%p8776) target = $region68
      $region67: #{cnn_encoder_forward.1} parent=63 // pred_region
        _
      $region68: #{cnn_encoder_forward.1} parent=63 // pred_fallthru
        _
    $region64: #{cnn_encoder_forward.1} parent=5 // pred_fallthru
      _
    %p8779 = scmp.le.s32.totalorder 2, %s17
    // Predicated region
    $region69: #{cnn_encoder_forward.1} parent=5 // pred_check
      %p8780 = pneg %p8779
    $region70: #{cnn_encoder_forward.1} parent=5 // pred_check_branch
      %8782 = sbr.rel (%p8780) target = $region72
    $region71: #{cnn_encoder_forward.1} parent=5 // pred_region
      %s8783 = ssub.s32 %s17, 2
      // Predicated region
      $region73: #{cnn_encoder_forward.1} parent=71 // pred_check
        %p8784 = pneg %p282
      $region74: #{cnn_encoder_forward.1} parent=71 // pred_check_branch
        %8786 = sbr.rel (%p8784) target = $region76
      $region75: #{cnn_encoder_forward.1} parent=71 // pred_region
        %p8787 = scmp.lt.s32.totalorder %s23, 1
        %s8788 = scalar_select %p8787, %s23, 1
        %s8789 = smul.addr %s8788, 8
        %s8790 = smul.addr %s8789, 2
        %s8791 = scalar_lea.vmem %s11, %s8790
      $region76: #{cnn_encoder_forward.1} parent=71 // pred_fallthru
        _
    $region72: #{cnn_encoder_forward.1} parent=5 // pred_fallthru
      _
  $region6: #{cnn_encoder_forward.1} parent=0 // loop_footer
    %s21 = sadd.s32 1, %s17
  $region7: #{cnn_encoder_forward.1} parent=0 // loop_footer_branch
    %16 = sbr.rel target = $region3
  $region8: #{cnn_encoder_forward.1} parent=0 // loop_exit
    _

</llo_original>
